<compile_context>
chip_gen: v7x
topology: tpu7x:2x2x1
jax: 0.10.0
libtpu: 0.0.40
codegen_flags: <defaults>
</compile_context>

<pallas_src>
import functools
import numpy as np
import jax
import jax.numpy as jnp
from jax import lax
from jax.experimental import pallas as pl
from jax.experimental.pallas import tpu as pltpu

_VMEM_LIMIT = 48 * 1024 * 1024   # above the 16/32 MiB scoped defaults, below v7x's 64 MiB/TC


def _round_up(x, m):
    return ((x + m - 1) // m) * m


def _pick_row_tile(M, cap=512):
    if M <= cap:
        return M
    for cand in (512, 256, 128, 64, 32, 16, 8):
        if M % cand == 0:
            return cand
    return M


def _pick_batch_tile(B):
    bt = B
    for cand in (128, 64, 32, 16, 8):
        if B % cand == 0:
            bt = cand
            break
    # v7x has 2 TensorCores; keep >= 2 parallel batch blocks when we can afford to.
    if B // bt < 2 and bt > 8:
        bt //= 2
    return bt


def _pick_time_chunk(T, Bt, Hp, requested=None):
    if requested is not None:
        tc = min(requested, T)
    else:
        budget = 8 * 1024 * 1024                      # bf16 gx chunks, 2 dirs x double buffer
        per_step = 2 * 2 * Bt * 4 * Hp * 2
        tc = max(1, min(T, budget // per_step))
    while T % tc != 0:                                # keep chunks dividing T
        tc -= 1
    return tc


def _fuse_directions_default():
    # v6e/v7x: 256-wide MXU -> one fused K=2*Hp push per timestep.
    # v5e: 128-wide MXU -> two separate K=Hp matmuls are preferable.
    try:
        kind = jax.devices()[0].device_kind.lower()
    except Exception:
        return True
    return not ("v5 lite" in kind or "v5e" in kind or "v5lite" in kind)


# ---------------------------------------------------------------------------
# Pallas kernels
# ---------------------------------------------------------------------------
def _input_proj_kernel(*refs, n_inputs):
    """Hoisted, time-independent input projection: gx = sum_i x_i @ w_i + b.

    refs = (x_0..x_{n-1}, w_0..w_{n-1}, b, out).  Accumulation and bias add in f32,
    bf16 output (gx is the dominant memory-bound tensor).
    """
    out_ref = refs[-1]
    b_ref = refs[2 * n_inputs]
    acc = jnp.dot(refs[0][...], refs[n_inputs][...], preferred_element_type=jnp.float32)
    for i in range(1, n_inputs):
        acc = acc + jnp.dot(refs[i][...], refs[n_inputs + i][...],
                            preferred_element_type=jnp.float32)
    out_ref[...] = (acc + b_ref[...]).astype(out_ref.dtype)


def _bilstm_recurrence_kernel(gx_f_ref, gx_b_ref, wrec_ref, len_ref, *out_and_scratch,
                              seq_len, chunk, Hp, reduce_mean, fuse_dirs, unroll):
    """Fused fwd+bwd LSTM recurrence over one time chunk; h/c carried across chunks.

    gx_f_ref : (Tc, Bt, 4Hp) bf16  fwd gate pre-activations, chunk c (ascending time)
    gx_b_ref : (Tc, Bt, 4Hp) bf16  bwd gate pre-activations, mirrored chunk nc-1-c
    wrec_ref : (2Hp, 8Hp)    bf16  block-diagonal recurrent weights [fwd | bwd]
    len_ref  : (Bt, 1)       i32   valid lengths
    outputs  : reduce_mean -> (Bt, 2Hp) f32 mean accumulator / result
               else        -> out_f (Tc, Bt, Hp) bf16, out_b (Tc, Bt, Hp) bf16
    scratch  : h_sc (Bt, 2Hp) bf16, c_sc (Bt, 2Hp) f32
    """
    if reduce_mean:
        out_ref, h_sc, c_sc = out_and_scratch
    else:
        out_f_ref, out_b_ref, h_sc, c_sc = out_and_scratch

    T, Tc = seq_len, chunk
    c_idx = pl.program_id(1)
    nc = pl.num_programs(1)

    @pl.when(c_idx == 0)
    def _():
        h_sc[...] = jnp.zeros_like(h_sc)
        c_sc[...] = jnp.zeros_like(c_sc)
        if reduce_mean:
            out_ref[...] = jnp.zeros_like(out_ref)

    lens = len_ref[...]                                               # (Bt, 1) i32
    lane_is_fwd = lax.broadcasted_iota(jnp.int32, (1, 2 * Hp), 1) < Hp  # hoisted
    t_base = c_idx * Tc

    def gates_to_hc(g4, c_half):
        i = jax.nn.sigmoid(g4[:, 0 * Hp:1 * Hp])
        f = jax.nn.sigmoid(g4[:, 1 * Hp:2 * Hp])
        g = jnp.tanh(g4[:, 2 * Hp:3 * Hp])
        o = jax.nn.sigmoid(g4[:, 3 * Hp:4 * Hp])
        c_new = f * c_half + i * g
        return o * jnp.tanh(c_new), c_new

    def one_step(lt, h, c):
        gt = t_base + lt                                              # global fwd time
        gxf = gx_f_ref[lt].astype(jnp.float32)                        # (Bt, 4Hp)
        gxb = gx_b_ref[Tc - 1 - lt].astype(jnp.float32)               # global time T-1-gt
        if fuse_dirs:
            grec = jnp.dot(h, wrec_ref[...], preferred_element_type=jnp.float32)  # (Bt, 8Hp)
            g_f = gxf + grec[:, 0:4 * Hp]
            g_b = gxb + grec[:, 4 * Hp:8 * Hp]
        else:
            g_f = gxf + jnp.dot(h[:, 0:Hp], wrec_ref[0:Hp, 0:4 * Hp],
                                preferred_element_type=jnp.float32)
            g_b = gxb + jnp.dot(h[:, Hp:2 * Hp], wrec_ref[Hp:2 * Hp, 4 * Hp:8 * Hp],
                                preferred_element_type=jnp.float32)
        hf_new, cf_new = gates_to_hc(g_f, c[:, 0:Hp])
        hb_new, cb_new = gates_to_hc(g_b, c[:, Hp:2 * Hp])
        h_new = jnp.concatenate([hf_new, hb_new], axis=-1)            # f32 (Bt, 2Hp)
        c_new = jnp.concatenate([cf_new, cb_new], axis=-1)
        # Per-lane time: fwd lanes use gt, bwd lanes use T-1-gt (packed-sequence masking).
        t_lane = jnp.where(lane_is_fwd, gt, T - 1 - gt)               # (1, 2Hp) i32
        valid = t_lane < lens                                         # (Bt, 2Hp) bool
        out_h = jnp.where(valid, h_new, 0.0)
        h = jnp.where(valid, h_new.astype(h.dtype), h)
        c = jnp.where(valid, c_new, c)
        return h, c, out_h

    h0, c0 = h_sc[...], c_sc[...]
    if reduce_mean:
        def step(lt, carry):
            h, c, acc = carry
            h, c, out_h = one_step(lt, h, c)
            return h, c, acc + out_h

        acc0 = jnp.zeros((h0.shape[0], 2 * Hp), jnp.float32)
        h_fin, c_fin, acc = lax.fori_loop(0, Tc, step, (h0, c0, acc0), unroll=unroll)
        out_ref[...] += acc                                           # one touch per chunk

        @pl.when(c_idx == nc - 1)
        def _():
            inv_len = pl.reciprocal(jnp.maximum(lens, 1).astype(jnp.float32), approx=True)
            out_ref[...] = out_ref[...] * inv_len
    else:
        def step(lt, carry):
            h, c = carry
            h, c, out_h = one_step(lt, h, c)
            out_f_ref[lt] = out_h[:, 0:Hp].astype(out_f_ref.dtype)
            out_b_ref[Tc - 1 - lt] = out_h[:, Hp:2 * Hp].astype(out_b_ref.dtype)
            return h, c

        h_fin, c_fin = lax.fori_loop(0, Tc, step, (h0, c0), unroll=unroll)

    h_sc[...] = h_fin
    c_sc[...] = c_fin


# ---------------------------------------------------------------------------
# pallas_call wrappers
# ---------------------------------------------------------------------------
def input_projection(xs, ws, b):
    """gx = sum_i xs[i] @ ws[i] + b ; bf16 output of shape (M, G)."""
    M = xs[0].shape[0]
    G = b.shape[1]
    n = len(xs)
    tm = _pick_row_tile(M)
    in_specs = ([pl.BlockSpec((tm, x.shape[1]), lambda i: (i, 0)) for x in xs] +
                [pl.BlockSpec(w.shape, lambda i: (0, 0)) for w in ws] +
                [pl.BlockSpec((1, G), lambda i: (0, 0))])
    return pl.pallas_call(
        functools.partial(_input_proj_kernel, n_inputs=n),
        out_shape=jax.ShapeDtypeStruct((M, G), jnp.bfloat16),
        grid=(M // tm,),
        in_specs=in_specs,
        out_specs=pl.BlockSpec((tm, G), lambda i: (i, 0)),
        compiler_params=pltpu.CompilerParams(
            dimension_semantics=("parallel",), vmem_limit_bytes=_VMEM_LIMIT),
    )(*xs, *ws, b)


def bilstm_recurrence(gx, w_rec, lens2, *, T, Hp, reduce_mean, time_chunk=None, fuse_dirs=True):
    """gx: (T, B, 8Hp) bf16 -> (out_f, out_b) each (T, B, Hp) bf16, or (B, 2Hp) f32 mean."""
    _, B, G = gx.shape
    assert G == 8 * Hp
    Bt = _pick_batch_tile(B)
    nb = B // Bt
    Tc = _pick_time_chunk(T, Bt, Hp, time_chunk)
    nc = T // Tc
    unroll = True if Tc <= 8 else 4

    kernel = functools.partial(_bilstm_recurrence_kernel, seq_len=T, chunk=Tc, Hp=Hp,
                               reduce_mean=reduce_mean, fuse_dirs=fuse_dirs, unroll=unroll)

    in_specs = [
        pl.BlockSpec((Tc, Bt, 4 * Hp), lambda b, c: (c, b, 0)),            # fwd gate chunk
        pl.BlockSpec((Tc, Bt, 4 * Hp), lambda b, c: (nc - 1 - c, b, 1)),   # mirrored bwd chunk
        pl.BlockSpec((2 * Hp, 8 * Hp), lambda b, c: (0, 0)),
        pl.BlockSpec((Bt, 1), lambda b, c: (b, 0)),
    ]
    scratch = [pltpu.VMEM((Bt, 2 * Hp), jnp.bfloat16),   # h state (bf16: feeds MXU directly)
               pltpu.VMEM((Bt, 2 * Hp), jnp.float32)]    # c state (f32)
    if reduce_mean:
        out_shape = jax.ShapeDtypeStruct((B, 2 * Hp), jnp.float32)
        out_specs = pl.BlockSpec((Bt, 2 * Hp), lambda b, c: (b, 0))
    else:
        out_shape = (jax.ShapeDtypeStruct((T, B, Hp), jnp.bfloat16),
                     jax.ShapeDtypeStruct((T, B, Hp), jnp.bfloat16))
        out_specs = (pl.BlockSpec((Tc, Bt, Hp), lambda b, c: (c, b, 0)),
                     pl.BlockSpec((Tc, Bt, Hp), lambda b, c: (nc - 1 - c, b, 0)))

    return pl.pallas_call(
        kernel,
        out_shape=out_shape,
        grid=(nb, nc),                       # batch parallel (megacore), time chunks serial
        in_specs=in_specs,
        out_specs=out_specs,
        scratch_shapes=scratch,
        compiler_params=pltpu.CompilerParams(
            dimension_semantics=("parallel", "arbitrary"),
            vmem_limit_bytes=_VMEM_LIMIT),
    )(gx, gx, w_rec, lens2)


# ---------------------------------------------------------------------------
# One-time weight preparation (gate-padded, direction-fused, bf16) -- outside jit
# ---------------------------------------------------------------------------
def _pad_gate_cols(w, H, Hp):
    """(rows, 4H) -> (rows, 4Hp): each PyTorch gate block (i,f,g,o) placed 128-lane aligned."""
    rows = w.shape[0]
    out = jnp.zeros((rows, 4 * Hp), jnp.float32)
    for g in range(4):
        out = out.at[:, g * Hp:g * Hp + H].set(w[:, g * H:(g + 1) * H])
    return out


def prepare_params(params, H):
    """Repack PyTorch-layout LSTM weights into kernel layouts (runs once, outside jit)."""
    Hp = _round_up(H, 128)
    layers = []
    for li, layer in enumerate(params["lstm"]):
        # Block-diagonal recurrent weight: rows [0:Hp] (fwd h) -> cols [0:4Hp] (fwd gates),
        # rows [Hp:2Hp] (bwd h) -> cols [4Hp:8Hp] (bwd gates).
        whh_f = _pad_gate_cols(jnp.transpose(layer["w_hh_f"]), H, Hp)     # (H, 4Hp)
        whh_b = _pad_gate_cols(jnp.transpose(layer["w_hh_b"]), H, Hp)
        w_rec = jnp.zeros((2 * Hp, 8 * Hp), jnp.float32)
        w_rec = w_rec.at[0:H, 0:4 * Hp].set(whh_f)
        w_rec = w_rec.at[Hp:Hp + H, 4 * Hp:8 * Hp].set(whh_b)

        b_cat = jnp.concatenate(
            [_pad_gate_cols(layer["b_f"].reshape(1, 4 * H), H, Hp),
             _pad_gate_cols(layer["b_b"].reshape(1, 4 * H), H, Hp)], axis=1)   # (1, 8Hp)

        if li == 0:
            w_f0 = _pad_gate_cols(jnp.transpose(layer["w_ih_f"]), H, Hp)       # (E, 4Hp)
            w_b0 = _pad_gate_cols(jnp.transpose(layer["w_ih_b"]), H, Hp)
            w_proj = [jnp.concatenate([w_f0, w_b0], axis=1).astype(jnp.bfloat16)]  # (E, 8Hp)
        else:
            # Layer l>0 consumes two Hp-padded streams: prev layer's fwd half and bwd half.
            def half(w_ih, lo):
                wt = _pad_gate_cols(jnp.transpose(w_ih[:, lo:lo + H]), H, Hp)  # (H, 4Hp)
                return jnp.zeros((Hp, 4 * Hp), jnp.float32).at[0:H].set(wt)
            w_from_f = jnp.concatenate([half(layer["w_ih_f"], 0), half(layer["w_ih_b"], 0)], 1)
            w_from_b = jnp.concatenate([half(layer["w_ih_f"], H), half(layer["w_ih_b"], H)], 1)
            w_proj = [w_from_f.astype(jnp.bfloat16), w_from_b.astype(jnp.bfloat16)]

        layers.append({"w_proj": w_proj, "b": b_cat.astype(jnp.float32),
                       "w_rec": w_rec.astype(jnp.bfloat16)})
    return {"embedding": params["embedding"], "layers": layers}


# ---------------------------------------------------------------------------
# Forward pass (mirrors RNN.forward with bidirectional=True -> reduce='mean')
# ---------------------------------------------------------------------------
def rnn_forward(prep, x_tokens, seq_lengths, *, H, Hp, time_chunk=None, fuse_dirs=True):
    B, T = x_tokens.shape
    embed = prep["embedding"][x_tokens]                           # (B, T, E)  XLA gather glue
    # Dropout: eval-mode identity.
    x = jnp.transpose(embed, (1, 0, 2)).astype(jnp.bfloat16)      # time-major (T, B, E)
    xs = [x.reshape(T * B, -1)]
    lens2 = seq_lengths.reshape(B, 1).astype(jnp.int32)

    num_layers = len(prep["layers"])
    out = None
    for li, layer in enumerate(prep["layers"]):
        gx = input_projection(xs, layer["w_proj"], layer["b"]).reshape(T, B, 8 * Hp)
        last = (li == num_layers - 1)
        res = bilstm_recurrence(gx, layer["w_rec"], lens2, T=T, Hp=Hp, reduce_mean=last,
                                time_chunk=time_chunk, fuse_dirs=fuse_dirs)
        if last:
            out = res
        else:
            out_f, out_b = res
            xs = [out_f.reshape(T * B, Hp), out_b.reshape(T * B, Hp)]

    # out is (B, 2Hp) = [fwd padded | bwd padded]; strip hidden-size padding -> (B, 2H).
    return jnp.concatenate([out[:, 0:H], out[:, Hp:Hp + H]], axis=-1)


# ---------------------------------------------------------------------------
# Pure-JAX f32 reference (correctness check)
# ---------------------------------------------------------------------------
def _lstm_dir_ref(x, w_ih, w_hh, b, seq_lengths, reverse):
    T, B, _ = x.shape
    H = w_hh.shape[1]
    h = jnp.zeros((B, H), jnp.float32)
    c = jnp.zeros((B, H), jnp.float32)
    outs = [None] * T
    lens = seq_lengths.reshape(B, 1)
    order = range(T - 1, -1, -1) if reverse else range(T)
    for tt in order:
        gates = x[tt] @ w_ih.T + h @ w_hh.T + b
        i, f, g, o = jnp.split(gates, 4, axis=-1)
        i, f, g, o = jax.nn.sigmoid(i), jax.nn.sigmoid(f), jnp.tanh(g), jax.nn.sigmoid(o)
        c_new = f * c + i * g
        h_new = o * jnp.tanh(c_new)
        valid = tt < lens
        h = jnp.where(valid, h_new, h)
        c = jnp.where(valid, c_new, c)
        outs[tt] = jnp.where(valid, h_new, 0.0)
    return jnp.stack(outs, 0)


def rnn_forward_ref(params, x_tokens, seq_lengths):
    embed = params["embedding"][x_tokens]
    h = jnp.transpose(embed, (1, 0, 2)).astype(jnp.float32)
    for layer in params["lstm"]:
        fwd = _lstm_dir_ref(h, layer["w_ih_f"], layer["w_hh_f"], layer["b_f"], seq_lengths, False)
        bwd = _lstm_dir_ref(h, layer["w_ih_b"], layer["w_hh_b"], layer["b_b"], seq_lengths, True)
        h = jnp.concatenate([fwd, bwd], axis=-1)
    lens = seq_lengths.reshape(-1, 1).astype(jnp.float32)
    return jnp.sum(h, axis=0) / lens


# ---------------------------------------------------------------------------
# Parameter init + main
# ---------------------------------------------------------------------------
def init_params(key, vocab, embed_size, hidden_size, num_layers, bidirectional=True):
    params = {}
    key, k_emb = jax.random.split(key)
    params["embedding"] = jax.random.normal(k_emb, (vocab, embed_size), jnp.float32) * 0.1

    scale = 1.0 / np.sqrt(hidden_size)
    ndirs = 2 if bidirectional else 1
    layers = []
    in_size = embed_size
    for _ in range(num_layers):
        layer = {}
        for tag in ("f", "b"):
            key, k1, k2, k3, k4 = jax.random.split(key, 5)
            layer[f"w_ih_{tag}"] = jax.random.uniform(k1, (4 * hidden_size, in_size),
                                                      jnp.float32, -scale, scale)
            layer[f"w_hh_{tag}"] = jax.random.uniform(k2, (4 * hidden_size, hidden_size),
                                                      jnp.float32, -scale, scale)
            b_ih = jax.random.uniform(k3, (4 * hidden_size,), jnp.float32, -scale, scale)
            b_hh = jax.random.uniform(k4, (4 * hidden_size,), jnp.float32, -scale, scale)
            layer[f"b_{tag}"] = b_ih + b_hh
        layers.append(layer)
        in_size = ndirs * hidden_size
    params["lstm"] = layers
    return params


if __name__ == "__main__":
    B, T = 2, 8
    vocab, embed_size, hidden_size, num_layers = 50, 32, 32, 2

    key = jax.random.PRNGKey(0)
    key, k_tok = jax.random.split(key)
    params = init_params(key, vocab, embed_size, hidden_size, num_layers)

    x_tokens = jax.random.randint(k_tok, (B, T), 0, vocab)        # (B, T) int32 token ids
    seq_lengths = jnp.array([8, 5], dtype=jnp.int32)              # valid lengths per batch

    Hp = _round_up(hidden_size, 128)
    prep = prepare_params(params, hidden_size)                    # one-time repack, outside jit

    fwd = jax.jit(functools.partial(rnn_forward, H=hidden_size, Hp=Hp,
                                    time_chunk=4,                 # 2 chunks: exercises chunk carry
                                    fuse_dirs=_fuse_directions_default()))
    out = jax.block_until_ready(fwd(prep, x_tokens, seq_lengths))

    ref = rnn_forward_ref(params, x_tokens, seq_lengths)
    # bf16 MXU operands, bf16 gx storage and bf16 h state (f32 accumulation / cell state)
    # vs. the f32 reference -> loosened tolerance.
    np.testing.assert_allclose(np.asarray(out), np.asarray(ref), atol=2e-2, rtol=2e-2)

    assert out.shape == (B, 2 * hidden_size)
    print("KERNEL_OK")
</pallas_src>

<mosaic_0001>
module attributes {stable_mosaic.version = 11 : i64} {
  func.func @_bilstm_recurrence_kernel(%arg0: i32, %arg1: i32, %arg2: memref<4x2x512xbf16, #tpu.memory_space<vmem>>, %arg3: memref<4x2x512xbf16, #tpu.memory_space<vmem>>, %arg4: memref<256x1024xbf16, #tpu.memory_space<vmem>>, %arg5: memref<2x1xi32, #tpu.memory_space<vmem>>, %arg6: memref<4x2x128xbf16, #tpu.memory_space<vmem>>, %arg7: memref<4x2x128xbf16, #tpu.memory_space<vmem>>, %arg8: memref<2x256xbf16, #tpu.memory_space<vmem>>, %arg9: memref<2x256xf32, #tpu.memory_space<vmem>>) attributes {dimension_semantics = [#tpu.dimension_semantics<parallel>, #tpu.dimension_semantics<arbitrary>], iteration_bounds = array<i64: 1, 2>, scalar_prefetch = 0 : i64, scratch_operands = 2 : i64, tpu.core_type = #tpu.core_type<tc>, window_params = [{transform_indices = @transform_0, window_bounds = array<i64: 4, 2, 512>}, {transform_indices = @transform_1, window_bounds = array<i64: 4, 2, 512>}, {pipeline_mode = #tpu.pipeline_mode<synchronous>, transform_indices = @transform_2, window_bounds = array<i64: 256, 1024>}, {transform_indices = @transform_3, window_bounds = array<i64: 2, 1>}, {transform_indices = @transform_4, window_bounds = array<i64: 4, 2, 128>}, {transform_indices = @transform_5, window_bounds = array<i64: 4, 2, 128>}]} {
    %c0_i32 = arith.constant 0 : i32
    %0 = arith.cmpi eq, %arg1, %c0_i32 : i32
    %1 = arith.extui %0 : i1 to i32
    %c0_i32_0 = arith.constant 0 : i32
    %2 = arith.cmpi ne, %1, %c0_i32_0 : i32
    scf.if %2 {
      %cst_94 = arith.constant 0.000000e+00 : bf16
      %392 = vector.broadcast %cst_94 : bf16 to vector<2x256xbf16>
      %c0_95 = arith.constant 0 : index
      %c0_96 = arith.constant 0 : index
      %393 = vector.load %arg8[%c0_95, %c0_96] : memref<2x256xbf16, #tpu.memory_space<vmem>>, vector<2x256xbf16>
      tpu.vector_store %arg8[%c0_95, %c0_96], %392 {strides = array<i32>} : memref<2x256xbf16, #tpu.memory_space<vmem>>, vector<2x256xbf16>,
      %cst_97 = arith.constant 0.000000e+00 : f32
      %394 = vector.broadcast %cst_97 : f32 to vector<2x256xf32>
      %c0_98 = arith.constant 0 : index
      %c0_99 = arith.constant 0 : index
      %395 = vector.load %arg9[%c0_98, %c0_99] : memref<2x256xf32, #tpu.memory_space<vmem>>, vector<2x256xf32>
      tpu.vector_store %arg9[%c0_98, %c0_99], %394 {strides = array<i32>} : memref<2x256xf32, #tpu.memory_space<vmem>>, vector<2x256xf32>,
    } else {
    }
    %c0 = arith.constant 0 : index
    %c0_1 = arith.constant 0 : index
    %3 = vector.load %arg5[%c0, %c0_1] : memref<2x1xi32, #tpu.memory_space<vmem>>, vector<2x1xi32>
    %4 = tpu.iota {dimensions = array<i32: 1>} : vector<1x256xi32>
    %c128_i32 = arith.constant 128 : i32
    %5 = vector.broadcast %c128_i32 : i32 to vector<1x256xi32>
    %6 = arith.cmpi slt, %4, %5 : vector<1x256xi32>
    %c4_i32 = arith.constant 4 : i32
    %7 = arith.muli %arg1, %c4_i32 : i32
    %c0_2 = arith.constant 0 : index
    %c0_3 = arith.constant 0 : index
    %8 = vector.load %arg8[%c0_2, %c0_3] : memref<2x256xbf16, #tpu.memory_space<vmem>>, vector<2x256xbf16>
    %c0_4 = arith.constant 0 : index
    %c0_5 = arith.constant 0 : index
    %9 = vector.load %arg9[%c0_4, %c0_5] : memref<2x256xf32, #tpu.memory_space<vmem>>, vector<2x256xf32>
    %c0_i32_6 = arith.constant 0 : i32
    %10 = arith.addi %7, %c0_i32_6 : i32
    %11 = arith.index_cast %c0_i32_6 : i32 to index
    %c0_7 = arith.constant 0 : index
    %c0_8 = arith.constant 0 : index
    %12 = vector.load %arg2[%11, %c0_7, %c0_8] : memref<4x2x512xbf16, #tpu.memory_space<vmem>>, vector<1x2x512xbf16>
    %13 = vector.shape_cast %12 : vector<1x2x512xbf16> to vector<2x512xbf16>
    %14 = arith.extf %13 : vector<2x512xbf16> to vector<2x512xf32>
    %c3_i32 = arith.constant 3 : i32
    %15 = arith.subi %c3_i32, %c0_i32_6 : i32
    %16 = arith.index_cast %15 : i32 to index
    %c0_9 = arith.constant 0 : index
    %c0_10 = arith.constant 0 : index
    %17 = vector.load %arg3[%16, %c0_9, %c0_10] : memref<4x2x512xbf16, #tpu.memory_space<vmem>>, vector<1x2x512xbf16>
    %18 = vector.shape_cast %17 : vector<1x2x512xbf16> to vector<2x512xbf16>
    %19 = arith.extf %18 : vector<2x512xbf16> to vector<2x512xf32>
    %c0_11 = arith.constant 0 : index
    %c0_12 = arith.constant 0 : index
    %20 = vector.load %arg4[%c0_11, %c0_12] : memref<256x1024xbf16, #tpu.memory_space<vmem>>, vector<256x1024xbf16>
    %cst = arith.constant dense<0.000000e+00> : vector<2x1024xf32>
    %21 = tpu.matmul %8, %20, %cst {dimension_numbers = #tpu.dot_dimension_numbers<[1], [0], [0], [1], [0, 0, 1, 1], [], []>} : vector<2x256xbf16>, vector<256x1024xbf16>, vector<2x1024xf32> -> vector<2x1024xf32>
    %22 = vector.extract_strided_slice %21 {offsets = [0, 0], sizes = [2, 512], strides = [1, 1]} : vector<2x1024xf32> to vector<2x512xf32>
    %23 = arith.addf %14, %22 : vector<2x512xf32>
    %24 = vector.extract_strided_slice %21 {offsets = [0, 512], sizes = [2, 512], strides = [1, 1]} : vector<2x1024xf32> to vector<2x512xf32>
    %25 = arith.addf %19, %24 : vector<2x512xf32>
    %26 = vector.extract_strided_slice %9 {offsets = [0, 0], sizes = [2, 128], strides = [1, 1]} : vector<2x256xf32> to vector<2x128xf32>
    %27 = vector.extract_strided_slice %23 {offsets = [0, 0], sizes = [2, 128], strides = [1, 1]} : vector<2x512xf32> to vector<2x128xf32>
    %28 = arith.negf %27 : vector<2x128xf32>
    %29 = math.exp %28 : vector<2x128xf32>
    %cst_13 = arith.constant 1.000000e+00 : f32
    %30 = vector.broadcast %cst_13 : f32 to vector<2x128xf32>
    %31 = arith.addf %30, %29 : vector<2x128xf32>
    %32 = arith.divf %30, %31 : vector<2x128xf32>
    %33 = vector.extract_strided_slice %23 {offsets = [0, 128], sizes = [2, 128], strides = [1, 1]} : vector<2x512xf32> to vector<2x128xf32>
    %34 = arith.negf %33 : vector<2x128xf32>
    %35 = math.exp %34 : vector<2x128xf32>
    %cst_14 = arith.constant 1.000000e+00 : f32
    %36 = vector.broadcast %cst_14 : f32 to vector<2x128xf32>
    %37 = arith.addf %36, %35 : vector<2x128xf32>
    %38 = arith.divf %36, %37 : vector<2x128xf32>
    %39 = vector.extract_strided_slice %23 {offsets = [0, 256], sizes = [2, 128], strides = [1, 1]} : vector<2x512xf32> to vector<2x128xf32>
    %40 = math.tanh %39 : vector<2x128xf32>
    %41 = vector.extract_strided_slice %23 {offsets = [0, 384], sizes = [2, 128], strides = [1, 1]} : vector<2x512xf32> to vector<2x128xf32>
    %42 = arith.negf %41 : vector<2x128xf32>
    %43 = math.exp %42 : vector<2x128xf32>
    %cst_15 = arith.constant 1.000000e+00 : f32
    %44 = vector.broadcast %cst_15 : f32 to vector<2x128xf32>
    %45 = arith.addf %44, %43 : vector<2x128xf32>
    %46 = arith.divf %44, %45 : vector<2x128xf32>
    %47 = arith.mulf %38, %26 : vector<2x128xf32>
    %48 = arith.mulf %32, %40 : vector<2x128xf32>
    %49 = arith.addf %47, %48 : vector<2x128xf32>
    %50 = math.tanh %49 : vector<2x128xf32>
    %51 = arith.mulf %46, %50 : vector<2x128xf32>
    %52 = vector.extract_strided_slice %9 {offsets = [0, 128], sizes = [2, 128], strides = [1, 1]} : vector<2x256xf32> to vector<2x128xf32>
    %53 = vector.extract_strided_slice %25 {offsets = [0, 0], sizes = [2, 128], strides = [1, 1]} : vector<2x512xf32> to vector<2x128xf32>
    %54 = arith.negf %53 : vector<2x128xf32>
    %55 = math.exp %54 : vector<2x128xf32>
    %cst_16 = arith.constant 1.000000e+00 : f32
    %56 = vector.broadcast %cst_16 : f32 to vector<2x128xf32>
    %57 = arith.addf %56, %55 : vector<2x128xf32>
    %58 = arith.divf %56, %57 : vector<2x128xf32>
    %59 = vector.extract_strided_slice %25 {offsets = [0, 128], sizes = [2, 128], strides = [1, 1]} : vector<2x512xf32> to vector<2x128xf32>
    %60 = arith.negf %59 : vector<2x128xf32>
    %61 = math.exp %60 : vector<2x128xf32>
    %cst_17 = arith.constant 1.000000e+00 : f32
    %62 = vector.broadcast %cst_17 : f32 to vector<2x128xf32>
    %63 = arith.addf %62, %61 : vector<2x128xf32>
    %64 = arith.divf %62, %63 : vector<2x128xf32>
    %65 = vector.extract_strided_slice %25 {offsets = [0, 256], sizes = [2, 128], strides = [1, 1]} : vector<2x512xf32> to vector<2x128xf32>
    %66 = math.tanh %65 : vector<2x128xf32>
    %67 = vector.extract_strided_slice %25 {offsets = [0, 384], sizes = [2, 128], strides = [1, 1]} : vector<2x512xf32> to vector<2x128xf32>
    %68 = arith.negf %67 : vector<2x128xf32>
    %69 = math.exp %68 : vector<2x128xf32>
    %cst_18 = arith.constant 1.000000e+00 : f32
    %70 = vector.broadcast %cst_18 : f32 to vector<2x128xf32>
    %71 = arith.addf %70, %69 : vector<2x128xf32>
    %72 = arith.divf %70, %71 : vector<2x128xf32>
    %73 = arith.mulf %64, %52 : vector<2x128xf32>
    %74 = arith.mulf %58, %66 : vector<2x128xf32>
    %75 = arith.addf %73, %74 : vector<2x128xf32>
    %76 = math.tanh %75 : vector<2x128xf32>
    %77 = arith.mulf %72, %76 : vector<2x128xf32>
    %78 = tpu.concatenate %51, %77 in 1 : vector<2x128xf32>, vector<2x128xf32> -> vector<2x256xf32>
    %79 = tpu.concatenate %49, %75 in 1 : vector<2x128xf32>, vector<2x128xf32> -> vector<2x256xf32>
    %c7_i32 = arith.constant 7 : i32
    %80 = arith.subi %c7_i32, %10 : i32
    %81 = vector.broadcast %10 : i32 to vector<1x256xi32>
    %82 = vector.broadcast %80 : i32 to vector<1x256xi32>
    %83 = arith.select %6, %81, %82 : vector<1x256xi1>, vector<1x256xi32>
    %84 = vector.broadcast %83 : vector<1x256xi32> to vector<2x256xi32>
    %85 = vector.broadcast %3 : vector<2x1xi32> to vector<2x256xi32>
    %86 = arith.cmpi slt, %84, %85 : vector<2x256xi32>
    %cst_19 = arith.constant 0.000000e+00 : f32
    %87 = vector.broadcast %cst_19 : f32 to vector<2x256xf32>
    %88 = arith.select %86, %78, %87 : vector<2x256xi1>, vector<2x256xf32>
    %89 = arith.truncf %78 : vector<2x256xf32> to vector<2x256xbf16>
    %90 = arith.select %86, %89, %8 : vector<2x256xi1>, vector<2x256xbf16>
    %91 = arith.select %86, %79, %9 : vector<2x256xi1>, vector<2x256xf32>
    %92 = vector.extract_strided_slice %88 {offsets = [0, 0], sizes = [2, 128], strides = [1, 1]} : vector<2x256xf32> to vector<2x128xf32>
    %93 = arith.truncf %92 : vector<2x128xf32> to vector<2x128xbf16>
    %94 = arith.index_cast %c0_i32_6 : i32 to index
    %c0_20 = arith.constant 0 : index
    %c0_21 = arith.constant 0 : index
    %95 = vector.load %arg6[%94, %c0_20, %c0_21] : memref<4x2x128xbf16, #tpu.memory_space<vmem>>, vector<1x2x128xbf16>
    %96 = vector.shape_cast %95 : vector<1x2x128xbf16> to vector<2x128xbf16>
    %97 = vector.shape_cast %93 : vector<2x128xbf16> to vector<1x2x128xbf16>
    tpu.vector_store %arg6[%94, %c0_20, %c0_21], %97 {strides = array<i32>} : memref<4x2x128xbf16, #tpu.memory_space<vmem>>, vector<1x2x128xbf16>,
    %98 = vector.extract_strided_slice %88 {offsets = [0, 128], sizes = [2, 128], strides = [1, 1]} : vector<2x256xf32> to vector<2x128xf32>
    %99 = arith.truncf %98 : vector<2x128xf32> to vector<2x128xbf16>
    %c3_i32_22 = arith.constant 3 : i32
    %100 = arith.subi %c3_i32_22, %c0_i32_6 : i32
    %101 = arith.index_cast %100 : i32 to index
    %c0_23 = arith.constant 0 : index
    %c0_24 = arith.constant 0 : index
    %102 = vector.load %arg7[%101, %c0_23, %c0_24] : memref<4x2x128xbf16, #tpu.memory_space<vmem>>, vector<1x2x128xbf16>
    %103 = vector.shape_cast %102 : vector<1x2x128xbf16> to vector<2x128xbf16>
    %104 = vector.shape_cast %99 : vector<2x128xbf16> to vector<1x2x128xbf16>
    tpu.vector_store %arg7[%101, %c0_23, %c0_24], %104 {strides = array<i32>} : memref<4x2x128xbf16, #tpu.memory_space<vmem>>, vector<1x2x128xbf16>,
    %c1_i32 = arith.constant 1 : i32
    %105 = arith.addi %7, %c1_i32 : i32
    %106 = arith.index_cast %c1_i32 : i32 to index
    %c0_25 = arith.constant 0 : index
    %c0_26 = arith.constant 0 : index
    %107 = vector.load %arg2[%106, %c0_25, %c0_26] : memref<4x2x512xbf16, #tpu.memory_space<vmem>>, vector<1x2x512xbf16>
    %108 = vector.shape_cast %107 : vector<1x2x512xbf16> to vector<2x512xbf16>
    %109 = arith.extf %108 : vector<2x512xbf16> to vector<2x512xf32>
    %c3_i32_27 = arith.constant 3 : i32
    %110 = arith.subi %c3_i32_27, %c1_i32 : i32
    %111 = arith.index_cast %110 : i32 to index
    %c0_28 = arith.constant 0 : index
    %c0_29 = arith.constant 0 : index
    %112 = vector.load %arg3[%111, %c0_28, %c0_29] : memref<4x2x512xbf16, #tpu.memory_space<vmem>>, vector<1x2x512xbf16>
    %113 = vector.shape_cast %112 : vector<1x2x512xbf16> to vector<2x512xbf16>
    %114 = arith.extf %113 : vector<2x512xbf16> to vector<2x512xf32>
    %c0_30 = arith.constant 0 : index
    %c0_31 = arith.constant 0 : index
    %115 = vector.load %arg4[%c0_30, %c0_31] : memref<256x1024xbf16, #tpu.memory_space<vmem>>, vector<256x1024xbf16>
    %cst_32 = arith.constant dense<0.000000e+00> : vector<2x1024xf32>
    %116 = tpu.matmul %90, %115, %cst_32 {dimension_numbers = #tpu.dot_dimension_numbers<[1], [0], [0], [1], [0, 0, 1, 1], [], []>} : vector<2x256xbf16>, vector<256x1024xbf16>, vector<2x1024xf32> -> vector<2x1024xf32>
    %117 = vector.extract_strided_slice %116 {offsets = [0, 0], sizes = [2, 512], strides = [1, 1]} : vector<2x1024xf32> to vector<2x512xf32>
    %118 = arith.addf %109, %117 : vector<2x512xf32>
    %119 = vector.extract_strided_slice %116 {offsets = [0, 512], sizes = [2, 512], strides = [1, 1]} : vector<2x1024xf32> to vector<2x512xf32>
    %120 = arith.addf %114, %119 : vector<2x512xf32>
    %121 = vector.extract_strided_slice %91 {offsets = [0, 0], sizes = [2, 128], strides = [1, 1]} : vector<2x256xf32> to vector<2x128xf32>
    %122 = vector.extract_strided_slice %118 {offsets = [0, 0], sizes = [2, 128], strides = [1, 1]} : vector<2x512xf32> to vector<2x128xf32>
    %123 = arith.negf %122 : vector<2x128xf32>
    %124 = math.exp %123 : vector<2x128xf32>
    %cst_33 = arith.constant 1.000000e+00 : f32
    %125 = vector.broadcast %cst_33 : f32 to vector<2x128xf32>
    %126 = arith.addf %125, %124 : vector<2x128xf32>
    %127 = arith.divf %125, %126 : vector<2x128xf32>
    %128 = vector.extract_strided_slice %118 {offsets = [0, 128], sizes = [2, 128], strides = [1, 1]} : vector<2x512xf32> to vector<2x128xf32>
    %129 = arith.negf %128 : vector<2x128xf32>
    %130 = math.exp %129 : vector<2x128xf32>
    %cst_34 = arith.constant 1.000000e+00 : f32
    %131 = vector.broadcast %cst_34 : f32 to vector<2x128xf32>
    %132 = arith.addf %131, %130 : vector<2x128xf32>
    %133 = arith.divf %131, %132 : vector<2x128xf32>
    %134 = vector.extract_strided_slice %118 {offsets = [0, 256], sizes = [2, 128], strides = [1, 1]} : vector<2x512xf32> to vector<2x128xf32>
    %135 = math.tanh %134 : vector<2x128xf32>
    %136 = vector.extract_strided_slice %118 {offsets = [0, 384], sizes = [2, 128], strides = [1, 1]} : vector<2x512xf32> to vector<2x128xf32>
    %137 = arith.negf %136 : vector<2x128xf32>
    %138 = math.exp %137 : vector<2x128xf32>
    %cst_35 = arith.constant 1.000000e+00 : f32
    %139 = vector.broadcast %cst_35 : f32 to vector<2x128xf32>
    %140 = arith.addf %139, %138 : vector<2x128xf32>
    %141 = arith.divf %139, %140 : vector<2x128xf32>
    %142 = arith.mulf %133, %121 : vector<2x128xf32>
    %143 = arith.mulf %127, %135 : vector<2x128xf32>
    %144 = arith.addf %142, %143 : vector<2x128xf32>
    %145 = math.tanh %144 : vector<2x128xf32>
    %146 = arith.mulf %141, %145 : vector<2x128xf32>
    %147 = vector.extract_strided_slice %91 {offsets = [0, 128], sizes = [2, 128], strides = [1, 1]} : vector<2x256xf32> to vector<2x128xf32>
    %148 = vector.extract_strided_slice %120 {offsets = [0, 0], sizes = [2, 128], strides = [1, 1]} : vector<2x512xf32> to vector<2x128xf32>
    %149 = arith.negf %148 : vector<2x128xf32>
    %150 = math.exp %149 : vector<2x128xf32>
    %cst_36 = arith.constant 1.000000e+00 : f32
    %151 = vector.broadcast %cst_36 : f32 to vector<2x128xf32>
    %152 = arith.addf %151, %150 : vector<2x128xf32>
    %153 = arith.divf %151, %152 : vector<2x128xf32>
    %154 = vector.extract_strided_slice %120 {offsets = [0, 128], sizes = [2, 128], strides = [1, 1]} : vector<2x512xf32> to vector<2x128xf32>
    %155 = arith.negf %154 : vector<2x128xf32>
    %156 = math.exp %155 : vector<2x128xf32>
    %cst_37 = arith.constant 1.000000e+00 : f32
    %157 = vector.broadcast %cst_37 : f32 to vector<2x128xf32>
    %158 = arith.addf %157, %156 : vector<2x128xf32>
    %159 = arith.divf %157, %158 : vector<2x128xf32>
    %160 = vector.extract_strided_slice %120 {offsets = [0, 256], sizes = [2, 128], strides = [1, 1]} : vector<2x512xf32> to vector<2x128xf32>
    %161 = math.tanh %160 : vector<2x128xf32>
    %162 = vector.extract_strided_slice %120 {offsets = [0, 384], sizes = [2, 128], strides = [1, 1]} : vector<2x512xf32> to vector<2x128xf32>
    %163 = arith.negf %162 : vector<2x128xf32>
    %164 = math.exp %163 : vector<2x128xf32>
    %cst_38 = arith.constant 1.000000e+00 : f32
    %165 = vector.broadcast %cst_38 : f32 to vector<2x128xf32>
    %166 = arith.addf %165, %164 : vector<2x128xf32>
    %167 = arith.divf %165, %166 : vector<2x128xf32>
    %168 = arith.mulf %159, %147 : vector<2x128xf32>
    %169 = arith.mulf %153, %161 : vector<2x128xf32>
    %170 = arith.addf %168, %169 : vector<2x128xf32>
    %171 = math.tanh %170 : vector<2x128xf32>
    %172 = arith.mulf %167, %171 : vector<2x128xf32>
    %173 = tpu.concatenate %146, %172 in 1 : vector<2x128xf32>, vector<2x128xf32> -> vector<2x256xf32>
    %174 = tpu.concatenate %144, %170 in 1 : vector<2x128xf32>, vector<2x128xf32> -> vector<2x256xf32>
    %c7_i32_39 = arith.constant 7 : i32
    %175 = arith.subi %c7_i32_39, %105 : i32
    %176 = vector.broadcast %105 : i32 to vector<1x256xi32>
    %177 = vector.broadcast %175 : i32 to vector<1x256xi32>
    %178 = arith.select %6, %176, %177 : vector<1x256xi1>, vector<1x256xi32>
    %179 = vector.broadcast %178 : vector<1x256xi32> to vector<2x256xi32>
    %180 = vector.broadcast %3 : vector<2x1xi32> to vector<2x256xi32>
    %181 = arith.cmpi slt, %179, %180 : vector<2x256xi32>
    %cst_40 = arith.constant 0.000000e+00 : f32
    %182 = vector.broadcast %cst_40 : f32 to vector<2x256xf32>
    %183 = arith.select %181, %173, %182 : vector<2x256xi1>, vector<2x256xf32>
    %184 = arith.truncf %173 : vector<2x256xf32> to vector<2x256xbf16>
    %185 = arith.select %181, %184, %90 : vector<2x256xi1>, vector<2x256xbf16>
    %186 = arith.select %181, %174, %91 : vector<2x256xi1>, vector<2x256xf32>
    %187 = vector.extract_strided_slice %183 {offsets = [0, 0], sizes = [2, 128], strides = [1, 1]} : vector<2x256xf32> to vector<2x128xf32>
    %188 = arith.truncf %187 : vector<2x128xf32> to vector<2x128xbf16>
    %189 = arith.index_cast %c1_i32 : i32 to index
    %c0_41 = arith.constant 0 : index
    %c0_42 = arith.constant 0 : index
    %190 = vector.load %arg6[%189, %c0_41, %c0_42] : memref<4x2x128xbf16, #tpu.memory_space<vmem>>, vector<1x2x128xbf16>
    %191 = vector.shape_cast %190 : vector<1x2x128xbf16> to vector<2x128xbf16>
    %192 = vector.shape_cast %188 : vector<2x128xbf16> to vector<1x2x128xbf16>
    tpu.vector_store %arg6[%189, %c0_41, %c0_42], %192 {strides = array<i32>} : memref<4x2x128xbf16, #tpu.memory_space<vmem>>, vector<1x2x128xbf16>,
    %193 = vector.extract_strided_slice %183 {offsets = [0, 128], sizes = [2, 128], strides = [1, 1]} : vector<2x256xf32> to vector<2x128xf32>
    %194 = arith.truncf %193 : vector<2x128xf32> to vector<2x128xbf16>
    %c3_i32_43 = arith.constant 3 : i32
    %195 = arith.subi %c3_i32_43, %c1_i32 : i32
    %196 = arith.index_cast %195 : i32 to index
    %c0_44 = arith.constant 0 : index
    %c0_45 = arith.constant 0 : index
    %197 = vector.load %arg7[%196, %c0_44, %c0_45] : memref<4x2x128xbf16, #tpu.memory_space<vmem>>, vector<1x2x128xbf16>
    %198 = vector.shape_cast %197 : vector<1x2x128xbf16> to vector<2x128xbf16>
    %199 = vector.shape_cast %194 : vector<2x128xbf16> to vector<1x2x128xbf16>
    tpu.vector_store %arg7[%196, %c0_44, %c0_45], %199 {strides = array<i32>} : memref<4x2x128xbf16, #tpu.memory_space<vmem>>, vector<1x2x128xbf16>,
    %c2_i32 = arith.constant 2 : i32
    %200 = arith.addi %7, %c2_i32 : i32
    %201 = arith.index_cast %c2_i32 : i32 to index
    %c0_46 = arith.constant 0 : index
    %c0_47 = arith.constant 0 : index
    %202 = vector.load %arg2[%201, %c0_46, %c0_47] : memref<4x2x512xbf16, #tpu.memory_space<vmem>>, vector<1x2x512xbf16>
    %203 = vector.shape_cast %202 : vector<1x2x512xbf16> to vector<2x512xbf16>
    %204 = arith.extf %203 : vector<2x512xbf16> to vector<2x512xf32>
    %c3_i32_48 = arith.constant 3 : i32
    %205 = arith.subi %c3_i32_48, %c2_i32 : i32
    %206 = arith.index_cast %205 : i32 to index
    %c0_49 = arith.constant 0 : index
    %c0_50 = arith.constant 0 : index
    %207 = vector.load %arg3[%206, %c0_49, %c0_50] : memref<4x2x512xbf16, #tpu.memory_space<vmem>>, vector<1x2x512xbf16>
    %208 = vector.shape_cast %207 : vector<1x2x512xbf16> to vector<2x512xbf16>
    %209 = arith.extf %208 : vector<2x512xbf16> to vector<2x512xf32>
    %c0_51 = arith.constant 0 : index
    %c0_52 = arith.constant 0 : index
    %210 = vector.load %arg4[%c0_51, %c0_52] : memref<256x1024xbf16, #tpu.memory_space<vmem>>, vector<256x1024xbf16>
    %cst_53 = arith.constant dense<0.000000e+00> : vector<2x1024xf32>
    %211 = tpu.matmul %185, %210, %cst_53 {dimension_numbers = #tpu.dot_dimension_numbers<[1], [0], [0], [1], [0, 0, 1, 1], [], []>} : vector<2x256xbf16>, vector<256x1024xbf16>, vector<2x1024xf32> -> vector<2x1024xf32>
    %212 = vector.extract_strided_slice %211 {offsets = [0, 0], sizes = [2, 512], strides = [1, 1]} : vector<2x1024xf32> to vector<2x512xf32>
    %213 = arith.addf %204, %212 : vector<2x512xf32>
    %214 = vector.extract_strided_slice %211 {offsets = [0, 512], sizes = [2, 512], strides = [1, 1]} : vector<2x1024xf32> to vector<2x512xf32>
    %215 = arith.addf %209, %214 : vector<2x512xf32>
    %216 = vector.extract_strided_slice %186 {offsets = [0, 0], sizes = [2, 128], strides = [1, 1]} : vector<2x256xf32> to vector<2x128xf32>
    %217 = vector.extract_strided_slice %213 {offsets = [0, 0], sizes = [2, 128], strides = [1, 1]} : vector<2x512xf32> to vector<2x128xf32>
    %218 = arith.negf %217 : vector<2x128xf32>
    %219 = math.exp %218 : vector<2x128xf32>
    %cst_54 = arith.constant 1.000000e+00 : f32
    %220 = vector.broadcast %cst_54 : f32 to vector<2x128xf32>
    %221 = arith.addf %220, %219 : vector<2x128xf32>
    %222 = arith.divf %220, %221 : vector<2x128xf32>
    %223 = vector.extract_strided_slice %213 {offsets = [0, 128], sizes = [2, 128], strides = [1, 1]} : vector<2x512xf32> to vector<2x128xf32>
    %224 = arith.negf %223 : vector<2x128xf32>
    %225 = math.exp %224 : vector<2x128xf32>
    %cst_55 = arith.constant 1.000000e+00 : f32
    %226 = vector.broadcast %cst_55 : f32 to vector<2x128xf32>
    %227 = arith.addf %226, %225 : vector<2x128xf32>
    %228 = arith.divf %226, %227 : vector<2x128xf32>
    %229 = vector.extract_strided_slice %213 {offsets = [0, 256], sizes = [2, 128], strides = [1, 1]} : vector<2x512xf32> to vector<2x128xf32>
    %230 = math.tanh %229 : vector<2x128xf32>
    %231 = vector.extract_strided_slice %213 {offsets = [0, 384], sizes = [2, 128], strides = [1, 1]} : vector<2x512xf32> to vector<2x128xf32>
    %232 = arith.negf %231 : vector<2x128xf32>
    %233 = math.exp %232 : vector<2x128xf32>
    %cst_56 = arith.constant 1.000000e+00 : f32
    %234 = vector.broadcast %cst_56 : f32 to vector<2x128xf32>
    %235 = arith.addf %234, %233 : vector<2x128xf32>
    %236 = arith.divf %234, %235 : vector<2x128xf32>
    %237 = arith.mulf %228, %216 : vector<2x128xf32>
    %238 = arith.mulf %222, %230 : vector<2x128xf32>
    %239 = arith.addf %237, %238 : vector<2x128xf32>
    %240 = math.tanh %239 : vector<2x128xf32>
    %241 = arith.mulf %236, %240 : vector<2x128xf32>
    %242 = vector.extract_strided_slice %186 {offsets = [0, 128], sizes = [2, 128], strides = [1, 1]} : vector<2x256xf32> to vector<2x128xf32>
    %243 = vector.extract_strided_slice %215 {offsets = [0, 0], sizes = [2, 128], strides = [1, 1]} : vector<2x512xf32> to vector<2x128xf32>
    %244 = arith.negf %243 : vector<2x128xf32>
    %245 = math.exp %244 : vector<2x128xf32>
    %cst_57 = arith.constant 1.000000e+00 : f32
    %246 = vector.broadcast %cst_57 : f32 to vector<2x128xf32>
    %247 = arith.addf %246, %245 : vector<2x128xf32>
    %248 = arith.divf %246, %247 : vector<2x128xf32>
    %249 = vector.extract_strided_slice %215 {offsets = [0, 128], sizes = [2, 128], strides = [1, 1]} : vector<2x512xf32> to vector<2x128xf32>
    %250 = arith.negf %249 : vector<2x128xf32>
    %251 = math.exp %250 : vector<2x128xf32>
    %cst_58 = arith.constant 1.000000e+00 : f32
    %252 = vector.broadcast %cst_58 : f32 to vector<2x128xf32>
    %253 = arith.addf %252, %251 : vector<2x128xf32>
    %254 = arith.divf %252, %253 : vector<2x128xf32>
    %255 = vector.extract_strided_slice %215 {offsets = [0, 256], sizes = [2, 128], strides = [1, 1]} : vector<2x512xf32> to vector<2x128xf32>
    %256 = math.tanh %255 : vector<2x128xf32>
    %257 = vector.extract_strided_slice %215 {offsets = [0, 384], sizes = [2, 128], strides = [1, 1]} : vector<2x512xf32> to vector<2x128xf32>
    %258 = arith.negf %257 : vector<2x128xf32>
    %259 = math.exp %258 : vector<2x128xf32>
    %cst_59 = arith.constant 1.000000e+00 : f32
    %260 = vector.broadcast %cst_59 : f32 to vector<2x128xf32>
    %261 = arith.addf %260, %259 : vector<2x128xf32>
    %262 = arith.divf %260, %261 : vector<2x128xf32>
    %263 = arith.mulf %254, %242 : vector<2x128xf32>
    %264 = arith.mulf %248, %256 : vector<2x128xf32>
    %265 = arith.addf %263, %264 : vector<2x128xf32>
    %266 = math.tanh %265 : vector<2x128xf32>
    %267 = arith.mulf %262, %266 : vector<2x128xf32>
    %268 = tpu.concatenate %241, %267 in 1 : vector<2x128xf32>, vector<2x128xf32> -> vector<2x256xf32>
    %269 = tpu.concatenate %239, %265 in 1 : vector<2x128xf32>, vector<2x128xf32> -> vector<2x256xf32>
    %c7_i32_60 = arith.constant 7 : i32
    %270 = arith.subi %c7_i32_60, %200 : i32
    %271 = vector.broadcast %200 : i32 to vector<1x256xi32>
    %272 = vector.broadcast %270 : i32 to vector<1x256xi32>
    %273 = arith.select %6, %271, %272 : vector<1x256xi1>, vector<1x256xi32>
    %274 = vector.broadcast %273 : vector<1x256xi32> to vector<2x256xi32>
    %275 = vector.broadcast %3 : vector<2x1xi32> to vector<2x256xi32>
    %276 = arith.cmpi slt, %274, %275 : vector<2x256xi32>
    %cst_61 = arith.constant 0.000000e+00 : f32
    %277 = vector.broadcast %cst_61 : f32 to vector<2x256xf32>
    %278 = arith.select %276, %268, %277 : vector<2x256xi1>, vector<2x256xf32>
    %279 = arith.truncf %268 : vector<2x256xf32> to vector<2x256xbf16>
    %280 = arith.select %276, %279, %185 : vector<2x256xi1>, vector<2x256xbf16>
    %281 = arith.select %276, %269, %186 : vector<2x256xi1>, vector<2x256xf32>
    %282 = vector.extract_strided_slice %278 {offsets = [0, 0], sizes = [2, 128], strides = [1, 1]} : vector<2x256xf32> to vector<2x128xf32>
    %283 = arith.truncf %282 : vector<2x128xf32> to vector<2x128xbf16>
    %284 = arith.index_cast %c2_i32 : i32 to index
    %c0_62 = arith.constant 0 : index
    %c0_63 = arith.constant 0 : index
    %285 = vector.load %arg6[%284, %c0_62, %c0_63] : memref<4x2x128xbf16, #tpu.memory_space<vmem>>, vector<1x2x128xbf16>
    %286 = vector.shape_cast %285 : vector<1x2x128xbf16> to vector<2x128xbf16>
    %287 = vector.shape_cast %283 : vector<2x128xbf16> to vector<1x2x128xbf16>
    tpu.vector_store %arg6[%284, %c0_62, %c0_63], %287 {strides = array<i32>} : memref<4x2x128xbf16, #tpu.memory_space<vmem>>, vector<1x2x128xbf16>,
    %288 = vector.extract_strided_slice %278 {offsets = [0, 128], sizes = [2, 128], strides = [1, 1]} : vector<2x256xf32> to vector<2x128xf32>
    %289 = arith.truncf %288 : vector<2x128xf32> to vector<2x128xbf16>
    %c3_i32_64 = arith.constant 3 : i32
    %290 = arith.subi %c3_i32_64, %c2_i32 : i32
    %291 = arith.index_cast %290 : i32 to index
    %c0_65 = arith.constant 0 : index
    %c0_66 = arith.constant 0 : index
    %292 = vector.load %arg7[%291, %c0_65, %c0_66] : memref<4x2x128xbf16, #tpu.memory_space<vmem>>, vector<1x2x128xbf16>
    %293 = vector.shape_cast %292 : vector<1x2x128xbf16> to vector<2x128xbf16>
    %294 = vector.shape_cast %289 : vector<2x128xbf16> to vector<1x2x128xbf16>
    tpu.vector_store %arg7[%291, %c0_65, %c0_66], %294 {strides = array<i32>} : memref<4x2x128xbf16, #tpu.memory_space<vmem>>, vector<1x2x128xbf16>,
    %c3_i32_67 = arith.constant 3 : i32
    %295 = arith.addi %7, %c3_i32_67 : i32
    %296 = arith.index_cast %c3_i32_67 : i32 to index
    %c0_68 = arith.constant 0 : index
    %c0_69 = arith.constant 0 : index
    %297 = vector.load %arg2[%296, %c0_68, %c0_69] : memref<4x2x512xbf16, #tpu.memory_space<vmem>>, vector<1x2x512xbf16>
    %298 = vector.shape_cast %297 : vector<1x2x512xbf16> to vector<2x512xbf16>
    %299 = arith.extf %298 : vector<2x512xbf16> to vector<2x512xf32>
    %c3_i32_70 = arith.constant 3 : i32
    %300 = arith.subi %c3_i32_70, %c3_i32_67 : i32
    %301 = arith.index_cast %300 : i32 to index
    %c0_71 = arith.constant 0 : index
    %c0_72 = arith.constant 0 : index
    %302 = vector.load %arg3[%301, %c0_71, %c0_72] : memref<4x2x512xbf16, #tpu.memory_space<vmem>>, vector<1x2x512xbf16>
    %303 = vector.shape_cast %302 : vector<1x2x512xbf16> to vector<2x512xbf16>
    %304 = arith.extf %303 : vector<2x512xbf16> to vector<2x512xf32>
    %c0_73 = arith.constant 0 : index
    %c0_74 = arith.constant 0 : index
    %305 = vector.load %arg4[%c0_73, %c0_74] : memref<256x1024xbf16, #tpu.memory_space<vmem>>, vector<256x1024xbf16>
    %cst_75 = arith.constant dense<0.000000e+00> : vector<2x1024xf32>
    %306 = tpu.matmul %280, %305, %cst_75 {dimension_numbers = #tpu.dot_dimension_numbers<[1], [0], [0], [1], [0, 0, 1, 1], [], []>} : vector<2x256xbf16>, vector<256x1024xbf16>, vector<2x1024xf32> -> vector<2x1024xf32>
    %307 = vector.extract_strided_slice %306 {offsets = [0, 0], sizes = [2, 512], strides = [1, 1]} : vector<2x1024xf32> to vector<2x512xf32>
    %308 = arith.addf %299, %307 : vector<2x512xf32>
    %309 = vector.extract_strided_slice %306 {offsets = [0, 512], sizes = [2, 512], strides = [1, 1]} : vector<2x1024xf32> to vector<2x512xf32>
    %310 = arith.addf %304, %309 : vector<2x512xf32>
    %311 = vector.extract_strided_slice %281 {offsets = [0, 0], sizes = [2, 128], strides = [1, 1]} : vector<2x256xf32> to vector<2x128xf32>
    %312 = vector.extract_strided_slice %308 {offsets = [0, 0], sizes = [2, 128], strides = [1, 1]} : vector<2x512xf32> to vector<2x128xf32>
    %313 = arith.negf %312 : vector<2x128xf32>
    %314 = math.exp %313 : vector<2x128xf32>
    %cst_76 = arith.constant 1.000000e+00 : f32
    %315 = vector.broadcast %cst_76 : f32 to vector<2x128xf32>
    %316 = arith.addf %315, %314 : vector<2x128xf32>
    %317 = arith.divf %315, %316 : vector<2x128xf32>
    %318 = vector.extract_strided_slice %308 {offsets = [0, 128], sizes = [2, 128], strides = [1, 1]} : vector<2x512xf32> to vector<2x128xf32>
    %319 = arith.negf %318 : vector<2x128xf32>
    %320 = math.exp %319 : vector<2x128xf32>
    %cst_77 = arith.constant 1.000000e+00 : f32
    %321 = vector.broadcast %cst_77 : f32 to vector<2x128xf32>
    %322 = arith.addf %321, %320 : vector<2x128xf32>
    %323 = arith.divf %321, %322 : vector<2x128xf32>
    %324 = vector.extract_strided_slice %308 {offsets = [0, 256], sizes = [2, 128], strides = [1, 1]} : vector<2x512xf32> to vector<2x128xf32>
    %325 = math.tanh %324 : vector<2x128xf32>
    %326 = vector.extract_strided_slice %308 {offsets = [0, 384], sizes = [2, 128], strides = [1, 1]} : vector<2x512xf32> to vector<2x128xf32>
    %327 = arith.negf %326 : vector<2x128xf32>
    %328 = math.exp %327 : vector<2x128xf32>
    %cst_78 = arith.constant 1.000000e+00 : f32
    %329 = vector.broadcast %cst_78 : f32 to vector<2x128xf32>
    %330 = arith.addf %329, %328 : vector<2x128xf32>
    %331 = arith.divf %329, %330 : vector<2x128xf32>
    %332 = arith.mulf %323, %311 : vector<2x128xf32>
    %333 = arith.mulf %317, %325 : vector<2x128xf32>
    %334 = arith.addf %332, %333 : vector<2x128xf32>
    %335 = math.tanh %334 : vector<2x128xf32>
    %336 = arith.mulf %331, %335 : vector<2x128xf32>
    %337 = vector.extract_strided_slice %281 {offsets = [0, 128], sizes = [2, 128], strides = [1, 1]} : vector<2x256xf32> to vector<2x128xf32>
    %338 = vector.extract_strided_slice %310 {offsets = [0, 0], sizes = [2, 128], strides = [1, 1]} : vector<2x512xf32> to vector<2x128xf32>
    %339 = arith.negf %338 : vector<2x128xf32>
    %340 = math.exp %339 : vector<2x128xf32>
    %cst_79 = arith.constant 1.000000e+00 : f32
    %341 = vector.broadcast %cst_79 : f32 to vector<2x128xf32>
    %342 = arith.addf %341, %340 : vector<2x128xf32>
    %343 = arith.divf %341, %342 : vector<2x128xf32>
    %344 = vector.extract_strided_slice %310 {offsets = [0, 128], sizes = [2, 128], strides = [1, 1]} : vector<2x512xf32> to vector<2x128xf32>
    %345 = arith.negf %344 : vector<2x128xf32>
    %346 = math.exp %345 : vector<2x128xf32>
    %cst_80 = arith.constant 1.000000e+00 : f32
    %347 = vector.broadcast %cst_80 : f32 to vector<2x128xf32>
    %348 = arith.addf %347, %346 : vector<2x128xf32>
    %349 = arith.divf %347, %348 : vector<2x128xf32>
    %350 = vector.extract_strided_slice %310 {offsets = [0, 256], sizes = [2, 128], strides = [1, 1]} : vector<2x512xf32> to vector<2x128xf32>
    %351 = math.tanh %350 : vector<2x128xf32>
    %352 = vector.extract_strided_slice %310 {offsets = [0, 384], sizes = [2, 128], strides = [1, 1]} : vector<2x512xf32> to vector<2x128xf32>
    %353 = arith.negf %352 : vector<2x128xf32>
    %354 = math.exp %353 : vector<2x128xf32>
    %cst_81 = arith.constant 1.000000e+00 : f32
    %355 = vector.broadcast %cst_81 : f32 to vector<2x128xf32>
    %356 = arith.addf %355, %354 : vector<2x128xf32>
    %357 = arith.divf %355, %356 : vector<2x128xf32>
    %358 = arith.mulf %349, %337 : vector<2x128xf32>
    %359 = arith.mulf %343, %351 : vector<2x128xf32>
    %360 = arith.addf %358, %359 : vector<2x128xf32>
    %361 = math.tanh %360 : vector<2x128xf32>
    %362 = arith.mulf %357, %361 : vector<2x128xf32>
    %363 = tpu.concatenate %336, %362 in 1 : vector<2x128xf32>, vector<2x128xf32> -> vector<2x256xf32>
    %364 = tpu.concatenate %334, %360 in 1 : vector<2x128xf32>, vector<2x128xf32> -> vector<2x256xf32>
    %c7_i32_82 = arith.constant 7 : i32
    %365 = arith.subi %c7_i32_82, %295 : i32
    %366 = vector.broadcast %295 : i32 to vector<1x256xi32>
    %367 = vector.broadcast %365 : i32 to vector<1x256xi32>
    %368 = arith.select %6, %366, %367 : vector<1x256xi1>, vector<1x256xi32>
    %369 = vector.broadcast %368 : vector<1x256xi32> to vector<2x256xi32>
    %370 = vector.broadcast %3 : vector<2x1xi32> to vector<2x256xi32>
    %371 = arith.cmpi slt, %369, %370 : vector<2x256xi32>
    %cst_83 = arith.constant 0.000000e+00 : f32
    %372 = vector.broadcast %cst_83 : f32 to vector<2x256xf32>
    %373 = arith.select %371, %363, %372 : vector<2x256xi1>, vector<2x256xf32>
    %374 = arith.truncf %363 : vector<2x256xf32> to vector<2x256xbf16>
    %375 = arith.select %371, %374, %280 : vector<2x256xi1>, vector<2x256xbf16>
    %376 = arith.select %371, %364, %281 : vector<2x256xi1>, vector<2x256xf32>
    %377 = vector.extract_strided_slice %373 {offsets = [0, 0], sizes = [2, 128], strides = [1, 1]} : vector<2x256xf32> to vector<2x128xf32>
    %378 = arith.truncf %377 : vector<2x128xf32> to vector<2x128xbf16>
    %379 = arith.index_cast %c3_i32_67 : i32 to index
    %c0_84 = arith.constant 0 : index
    %c0_85 = arith.constant 0 : index
    %380 = vector.load %arg6[%379, %c0_84, %c0_85] : memref<4x2x128xbf16, #tpu.memory_space<vmem>>, vector<1x2x128xbf16>
    %381 = vector.shape_cast %380 : vector<1x2x128xbf16> to vector<2x128xbf16>
    %382 = vector.shape_cast %378 : vector<2x128xbf16> to vector<1x2x128xbf16>
    tpu.vector_store %arg6[%379, %c0_84, %c0_85], %382 {strides = array<i32>} : memref<4x2x128xbf16, #tpu.memory_space<vmem>>, vector<1x2x128xbf16>,
    %383 = vector.extract_strided_slice %373 {offsets = [0, 128], sizes = [2, 128], strides = [1, 1]} : vector<2x256xf32> to vector<2x128xf32>
    %384 = arith.truncf %383 : vector<2x128xf32> to vector<2x128xbf16>
    %c3_i32_86 = arith.constant 3 : i32
    %385 = arith.subi %c3_i32_86, %c3_i32_67 : i32
    %386 = arith.index_cast %385 : i32 to index
    %c0_87 = arith.constant 0 : index
    %c0_88 = arith.constant 0 : index
    %387 = vector.load %arg7[%386, %c0_87, %c0_88] : memref<4x2x128xbf16, #tpu.memory_space<vmem>>, vector<1x2x128xbf16>
    %388 = vector.shape_cast %387 : vector<1x2x128xbf16> to vector<2x128xbf16>
    %389 = vector.shape_cast %384 : vector<2x128xbf16> to vector<1x2x128xbf16>
    tpu.vector_store %arg7[%386, %c0_87, %c0_88], %389 {strides = array<i32>} : memref<4x2x128xbf16, #tpu.memory_space<vmem>>, vector<1x2x128xbf16>,
    %c4_i32_89 = arith.constant 4 : i32
    %c0_90 = arith.constant 0 : index
    %c0_91 = arith.constant 0 : index
    %390 = vector.load %arg8[%c0_90, %c0_91] : memref<2x256xbf16, #tpu.memory_space<vmem>>, vector<2x256xbf16>
    tpu.vector_store %arg8[%c0_90, %c0_91], %375 {strides = array<i32>} : memref<2x256xbf16, #tpu.memory_space<vmem>>, vector<2x256xbf16>,
    %c0_92 = arith.constant 0 : index
    %c0_93 = arith.constant 0 : index
    %391 = vector.load %arg9[%c0_92, %c0_93] : memref<2x256xf32, #tpu.memory_space<vmem>>, vector<2x256xf32>
    tpu.vector_store %arg9[%c0_92, %c0_93], %376 {strides = array<i32>} : memref<2x256xf32, #tpu.memory_space<vmem>>, vector<2x256xf32>,
    return
  }
  func.func @transform_0(%arg0: i32, %arg1: i32) -> (i32, i32, i32) {
    %c0_i32 = arith.constant 0 : i32
    %c0_i32_0 = arith.constant 0 : i32
    return %arg1, %arg0, %c0_i32 : i32, i32, i32
  }
  func.func @transform_1(%arg0: i32, %arg1: i32) -> (i32, i32, i32) {
    %c1_i32 = arith.constant 1 : i32
    %0 = arith.subi %c1_i32, %arg1 : i32
    %c1_i32_0 = arith.constant 1 : i32
    %c0_i32 = arith.constant 0 : i32
    return %0, %arg0, %c1_i32_0 : i32, i32, i32
  }
  func.func @transform_2(%arg0: i32, %arg1: i32) -> (i32, i32) {
    %c0_i32 = arith.constant 0 : i32
    %c0_i32_0 = arith.constant 0 : i32
    %c0_i32_1 = arith.constant 0 : i32
    return %c0_i32, %c0_i32_0 : i32, i32
  }
  func.func @transform_3(%arg0: i32, %arg1: i32) -> (i32, i32) {
    %c0_i32 = arith.constant 0 : i32
    %c0_i32_0 = arith.constant 0 : i32
    return %arg0, %c0_i32 : i32, i32
  }
  func.func @transform_4(%arg0: i32, %arg1: i32) -> (i32, i32, i32) {
    %c0_i32 = arith.constant 0 : i32
    %c0_i32_0 = arith.constant 0 : i32
    return %arg1, %arg0, %c0_i32 : i32, i32, i32
  }
  func.func @transform_5(%arg0: i32, %arg1: i32) -> (i32, i32, i32) {
    %c1_i32 = arith.constant 1 : i32
    %0 = arith.subi %c1_i32, %arg1 : i32
    %c0_i32 = arith.constant 0 : i32
    %c0_i32_0 = arith.constant 0 : i32
    return %0, %arg0, %c0_i32 : i32, i32, i32
  }
}

module attributes {stable_mosaic.version = 11 : i64} {
  func.func @_input_proj_kernel(%arg0: i32, %arg1: memref<16x128xbf16, #tpu.memory_space<vmem>>, %arg2: memref<16x128xbf16, #tpu.memory_space<vmem>>, %arg3: memref<128x1024xbf16, #tpu.memory_space<vmem>>, %arg4: memref<128x1024xbf16, #tpu.memory_space<vmem>>, %arg5: memref<1x1024xf32, #tpu.memory_space<vmem>>, %arg6: memref<16x1024xbf16, #tpu.memory_space<vmem>>) attributes {dimension_semantics = [#tpu.dimension_semantics<parallel>], iteration_bounds = array<i64: 1>, scalar_prefetch = 0 : i64, scratch_operands = 0 : i64, tpu.core_type = #tpu.core_type<tc>, window_params = [{transform_indices = @transform_0, window_bounds = array<i64: 16, 128>}, {transform_indices = @transform_1, window_bounds = array<i64: 16, 128>}, {pipeline_mode = #tpu.pipeline_mode<synchronous>, transform_indices = @transform_2, window_bounds = array<i64: 128, 1024>}, {pipeline_mode = #tpu.pipeline_mode<synchronous>, transform_indices = @transform_3, window_bounds = array<i64: 128, 1024>}, {pipeline_mode = #tpu.pipeline_mode<synchronous>, transform_indices = @transform_4, window_bounds = array<i64: 1, 1024>}, {transform_indices = @transform_5, window_bounds = array<i64: 16, 1024>}]} {
    %c0 = arith.constant 0 : index
    %c0_0 = arith.constant 0 : index
    %0 = vector.load %arg1[%c0, %c0_0] : memref<16x128xbf16, #tpu.memory_space<vmem>>, vector<16x128xbf16>
    %c0_1 = arith.constant 0 : index
    %c0_2 = arith.constant 0 : index
    %1 = vector.load %arg3[%c0_1, %c0_2] : memref<128x1024xbf16, #tpu.memory_space<vmem>>, vector<128x1024xbf16>
    %cst = arith.constant dense<0.000000e+00> : vector<16x1024xf32>
    %2 = tpu.matmul %0, %1, %cst {dimension_numbers = #tpu.dot_dimension_numbers<[1], [0], [0], [1], [0, 0, 1, 1], [], []>} : vector<16x128xbf16>, vector<128x1024xbf16>, vector<16x1024xf32> -> vector<16x1024xf32>
    %c0_3 = arith.constant 0 : index
    %c0_4 = arith.constant 0 : index
    %3 = vector.load %arg2[%c0_3, %c0_4] : memref<16x128xbf16, #tpu.memory_space<vmem>>, vector<16x128xbf16>
    %c0_5 = arith.constant 0 : index
    %c0_6 = arith.constant 0 : index
    %4 = vector.load %arg4[%c0_5, %c0_6] : memref<128x1024xbf16, #tpu.memory_space<vmem>>, vector<128x1024xbf16>
    %cst_7 = arith.constant dense<0.000000e+00> : vector<16x1024xf32>
    %5 = tpu.matmul %3, %4, %cst_7 {dimension_numbers = #tpu.dot_dimension_numbers<[1], [0], [0], [1], [0, 0, 1, 1], [], []>} : vector<16x128xbf16>, vector<128x1024xbf16>, vector<16x1024xf32> -> vector<16x1024xf32>
    %6 = arith.addf %2, %5 : vector<16x1024xf32>
    %c0_8 = arith.constant 0 : index
    %c0_9 = arith.constant 0 : index
    %7 = vector.load %arg5[%c0_8, %c0_9] : memref<1x1024xf32, #tpu.memory_space<vmem>>, vector<1x1024xf32>
    %8 = vector.broadcast %7 : vector<1x1024xf32> to vector<16x1024xf32>
    %9 = arith.addf %6, %8 : vector<16x1024xf32>
    %10 = arith.truncf %9 : vector<16x1024xf32> to vector<16x1024xbf16>
    %c0_10 = arith.constant 0 : index
    %c0_11 = arith.constant 0 : index
    %11 = vector.load %arg6[%c0_10, %c0_11] : memref<16x1024xbf16, #tpu.memory_space<vmem>>, vector<16x1024xbf16>
    tpu.vector_store %arg6[%c0_10, %c0_11], %10 {strides = array<i32>} : memref<16x1024xbf16, #tpu.memory_space<vmem>>, vector<16x1024xbf16>,
    return
  }
  func.func @transform_0(%arg0: i32) -> (i32, i32) {
    %c0_i32 = arith.constant 0 : i32
    %c0_i32_0 = arith.constant 0 : i32
    return %arg0, %c0_i32 : i32, i32
  }
  func.func @transform_1(%arg0: i32) -> (i32, i32) {
    %c0_i32 = arith.constant 0 : i32
    %c0_i32_0 = arith.constant 0 : i32
    return %arg0, %c0_i32 : i32, i32
  }
  func.func @transform_2(%arg0: i32) -> (i32, i32) {
    %c0_i32 = arith.constant 0 : i32
    %c0_i32_0 = arith.constant 0 : i32
    %c0_i32_1 = arith.constant 0 : i32
    return %c0_i32, %c0_i32_0 : i32, i32
  }
  func.func @transform_3(%arg0: i32) -> (i32, i32) {
    %c0_i32 = arith.constant 0 : i32
    %c0_i32_0 = arith.constant 0 : i32
    %c0_i32_1 = arith.constant 0 : i32
    return %c0_i32, %c0_i32_0 : i32, i32
  }
  func.func @transform_4(%arg0: i32) -> (i32, i32) {
    %c0_i32 = arith.constant 0 : i32
    %c0_i32_0 = arith.constant 0 : i32
    %c0_i32_1 = arith.constant 0 : i32
    return %c0_i32, %c0_i32_0 : i32, i32
  }
  func.func @transform_5(%arg0: i32) -> (i32, i32) {
    %c0_i32 = arith.constant 0 : i32
    %c0_i32_0 = arith.constant 0 : i32
    return %arg0, %c0_i32 : i32, i32
  }
}

module attributes {stable_mosaic.version = 11 : i64} {
  func.func @_input_proj_kernel(%arg0: i32, %arg1: memref<16x32xbf16, #tpu.memory_space<vmem>>, %arg2: memref<32x1024xbf16, #tpu.memory_space<vmem>>, %arg3: memref<1x1024xf32, #tpu.memory_space<vmem>>, %arg4: memref<16x1024xbf16, #tpu.memory_space<vmem>>) attributes {dimension_semantics = [#tpu.dimension_semantics<parallel>], iteration_bounds = array<i64: 1>, scalar_prefetch = 0 : i64, scratch_operands = 0 : i64, tpu.core_type = #tpu.core_type<tc>, window_params = [{transform_indices = @transform_0, window_bounds = array<i64: 16, 32>}, {pipeline_mode = #tpu.pipeline_mode<synchronous>, transform_indices = @transform_1, window_bounds = array<i64: 32, 1024>}, {pipeline_mode = #tpu.pipeline_mode<synchronous>, transform_indices = @transform_2, window_bounds = array<i64: 1, 1024>}, {transform_indices = @transform_3, window_bounds = array<i64: 16, 1024>}]} {
    %c0 = arith.constant 0 : index
    %c0_0 = arith.constant 0 : index
    %0 = vector.load %arg1[%c0, %c0_0] : memref<16x32xbf16, #tpu.memory_space<vmem>>, vector<16x32xbf16>
    %c0_1 = arith.constant 0 : index
    %c0_2 = arith.constant 0 : index
    %1 = vector.load %arg2[%c0_1, %c0_2] : memref<32x1024xbf16, #tpu.memory_space<vmem>>, vector<32x1024xbf16>
    %cst = arith.constant dense<0.000000e+00> : vector<16x1024xf32>
    %2 = tpu.matmul %0, %1, %cst {dimension_numbers = #tpu.dot_dimension_numbers<[1], [0], [0], [1], [0, 0, 1, 1], [], []>} : vector<16x32xbf16>, vector<32x1024xbf16>, vector<16x1024xf32> -> vector<16x1024xf32>
    %c0_3 = arith.constant 0 : index
    %c0_4 = arith.constant 0 : index
    %3 = vector.load %arg3[%c0_3, %c0_4] : memref<1x1024xf32, #tpu.memory_space<vmem>>, vector<1x1024xf32>
    %4 = vector.broadcast %3 : vector<1x1024xf32> to vector<16x1024xf32>
    %5 = arith.addf %2, %4 : vector<16x1024xf32>
    %6 = arith.truncf %5 : vector<16x1024xf32> to vector<16x1024xbf16>
    %c0_5 = arith.constant 0 : index
    %c0_6 = arith.constant 0 : index
    %7 = vector.load %arg4[%c0_5, %c0_6] : memref<16x1024xbf16, #tpu.memory_space<vmem>>, vector<16x1024xbf16>
    tpu.vector_store %arg4[%c0_5, %c0_6], %6 {strides = array<i32>} : memref<16x1024xbf16, #tpu.memory_space<vmem>>, vector<16x1024xbf16>,
    return
  }
  func.func @transform_0(%arg0: i32) -> (i32, i32) {
    %c0_i32 = arith.constant 0 : i32
    %c0_i32_0 = arith.constant 0 : i32
    return %arg0, %c0_i32 : i32, i32
  }
  func.func @transform_1(%arg0: i32) -> (i32, i32) {
    %c0_i32 = arith.constant 0 : i32
    %c0_i32_0 = arith.constant 0 : i32
    %c0_i32_1 = arith.constant 0 : i32
    return %c0_i32, %c0_i32_0 : i32, i32
  }
  func.func @transform_2(%arg0: i32) -> (i32, i32) {
    %c0_i32 = arith.constant 0 : i32
    %c0_i32_0 = arith.constant 0 : i32
    %c0_i32_1 = arith.constant 0 : i32
    return %c0_i32, %c0_i32_0 : i32, i32
  }
  func.func @transform_3(%arg0: i32) -> (i32, i32) {
    %c0_i32 = arith.constant 0 : i32
    %c0_i32_0 = arith.constant 0 : i32
    return %arg0, %c0_i32 : i32, i32
  }
}

module attributes {stable_mosaic.version = 11 : i64} {
  func.func @_bilstm_recurrence_kernel(%arg0: i32, %arg1: i32, %arg2: memref<4x2x512xbf16, #tpu.memory_space<vmem>>, %arg3: memref<4x2x512xbf16, #tpu.memory_space<vmem>>, %arg4: memref<256x1024xbf16, #tpu.memory_space<vmem>>, %arg5: memref<2x1xi32, #tpu.memory_space<vmem>>, %arg6: memref<2x256xf32, #tpu.memory_space<vmem>>, %arg7: memref<2x256xbf16, #tpu.memory_space<vmem>>, %arg8: memref<2x256xf32, #tpu.memory_space<vmem>>) attributes {dimension_semantics = [#tpu.dimension_semantics<parallel>, #tpu.dimension_semantics<arbitrary>], iteration_bounds = array<i64: 1, 2>, scalar_prefetch = 0 : i64, scratch_operands = 2 : i64, tpu.core_type = #tpu.core_type<tc>, window_params = [{transform_indices = @transform_0, window_bounds = array<i64: 4, 2, 512>}, {transform_indices = @transform_1, window_bounds = array<i64: 4, 2, 512>}, {pipeline_mode = #tpu.pipeline_mode<synchronous>, transform_indices = @transform_2, window_bounds = array<i64: 256, 1024>}, {transform_indices = @transform_3, window_bounds = array<i64: 2, 1>}, {transform_indices = @transform_4, window_bounds = array<i64: 2, 256>}]} {
    %c0_i32 = arith.constant 0 : i32
    %0 = arith.cmpi eq, %arg1, %c0_i32 : i32
    %1 = arith.extui %0 : i1 to i32
    %c0_i32_0 = arith.constant 0 : i32
    %2 = arith.cmpi ne, %1, %c0_i32_0 : i32
    scf.if %2 {
      %cst_81 = arith.constant 0.000000e+00 : bf16
      %351 = vector.broadcast %cst_81 : bf16 to vector<2x256xbf16>
      %c0_82 = arith.constant 0 : index
      %c0_83 = arith.constant 0 : index
      %352 = vector.load %arg7[%c0_82, %c0_83] : memref<2x256xbf16, #tpu.memory_space<vmem>>, vector<2x256xbf16>
      tpu.vector_store %arg7[%c0_82, %c0_83], %351 {strides = array<i32>} : memref<2x256xbf16, #tpu.memory_space<vmem>>, vector<2x256xbf16>,
      %cst_84 = arith.constant 0.000000e+00 : f32
      %353 = vector.broadcast %cst_84 : f32 to vector<2x256xf32>
      %c0_85 = arith.constant 0 : index
      %c0_86 = arith.constant 0 : index
      %354 = vector.load %arg8[%c0_85, %c0_86] : memref<2x256xf32, #tpu.memory_space<vmem>>, vector<2x256xf32>
      tpu.vector_store %arg8[%c0_85, %c0_86], %353 {strides = array<i32>} : memref<2x256xf32, #tpu.memory_space<vmem>>, vector<2x256xf32>,
      %cst_87 = arith.constant 0.000000e+00 : f32
      %355 = vector.broadcast %cst_87 : f32 to vector<2x256xf32>
      %c0_88 = arith.constant 0 : index
      %c0_89 = arith.constant 0 : index
      %356 = vector.load %arg6[%c0_88, %c0_89] : memref<2x256xf32, #tpu.memory_space<vmem>>, vector<2x256xf32>
      tpu.vector_store %arg6[%c0_88, %c0_89], %355 {strides = array<i32>} : memref<2x256xf32, #tpu.memory_space<vmem>>, vector<2x256xf32>,
    } else {
    }
    %c0 = arith.constant 0 : index
    %c0_1 = arith.constant 0 : index
    %3 = vector.load %arg5[%c0, %c0_1] : memref<2x1xi32, #tpu.memory_space<vmem>>, vector<2x1xi32>
    %4 = tpu.iota {dimensions = array<i32: 1>} : vector<1x256xi32>
    %c128_i32 = arith.constant 128 : i32
    %5 = vector.broadcast %c128_i32 : i32 to vector<1x256xi32>
    %6 = arith.cmpi slt, %4, %5 : vector<1x256xi32>
    %c4_i32 = arith.constant 4 : i32
    %7 = arith.muli %arg1, %c4_i32 : i32
    %c0_2 = arith.constant 0 : index
    %c0_3 = arith.constant 0 : index
    %8 = vector.load %arg7[%c0_2, %c0_3] : memref<2x256xbf16, #tpu.memory_space<vmem>>, vector<2x256xbf16>
    %c0_4 = arith.constant 0 : index
    %c0_5 = arith.constant 0 : index
    %9 = vector.load %arg8[%c0_4, %c0_5] : memref<2x256xf32, #tpu.memory_space<vmem>>, vector<2x256xf32>
    %cst = arith.constant 0.000000e+00 : f32
    %10 = vector.broadcast %cst : f32 to vector<2x256xf32>
    %c0_i32_6 = arith.constant 0 : i32
    %11 = arith.addi %7, %c0_i32_6 : i32
    %12 = arith.index_cast %c0_i32_6 : i32 to index
    %c0_7 = arith.constant 0 : index
    %c0_8 = arith.constant 0 : index
    %13 = vector.load %arg2[%12, %c0_7, %c0_8] : memref<4x2x512xbf16, #tpu.memory_space<vmem>>, vector<1x2x512xbf16>
    %14 = vector.shape_cast %13 : vector<1x2x512xbf16> to vector<2x512xbf16>
    %15 = arith.extf %14 : vector<2x512xbf16> to vector<2x512xf32>
    %c3_i32 = arith.constant 3 : i32
    %16 = arith.subi %c3_i32, %c0_i32_6 : i32
    %17 = arith.index_cast %16 : i32 to index
    %c0_9 = arith.constant 0 : index
    %c0_10 = arith.constant 0 : index
    %18 = vector.load %arg3[%17, %c0_9, %c0_10] : memref<4x2x512xbf16, #tpu.memory_space<vmem>>, vector<1x2x512xbf16>
    %19 = vector.shape_cast %18 : vector<1x2x512xbf16> to vector<2x512xbf16>
    %20 = arith.extf %19 : vector<2x512xbf16> to vector<2x512xf32>
    %c0_11 = arith.constant 0 : index
    %c0_12 = arith.constant 0 : index
    %21 = vector.load %arg4[%c0_11, %c0_12] : memref<256x1024xbf16, #tpu.memory_space<vmem>>, vector<256x1024xbf16>
    %cst_13 = arith.constant dense<0.000000e+00> : vector<2x1024xf32>
    %22 = tpu.matmul %8, %21, %cst_13 {dimension_numbers = #tpu.dot_dimension_numbers<[1], [0], [0], [1], [0, 0, 1, 1], [], []>} : vector<2x256xbf16>, vector<256x1024xbf16>, vector<2x1024xf32> -> vector<2x1024xf32>
    %23 = vector.extract_strided_slice %22 {offsets = [0, 0], sizes = [2, 512], strides = [1, 1]} : vector<2x1024xf32> to vector<2x512xf32>
    %24 = arith.addf %15, %23 : vector<2x512xf32>
    %25 = vector.extract_strided_slice %22 {offsets = [0, 512], sizes = [2, 512], strides = [1, 1]} : vector<2x1024xf32> to vector<2x512xf32>
    %26 = arith.addf %20, %25 : vector<2x512xf32>
    %27 = vector.extract_strided_slice %9 {offsets = [0, 0], sizes = [2, 128], strides = [1, 1]} : vector<2x256xf32> to vector<2x128xf32>
    %28 = vector.extract_strided_slice %24 {offsets = [0, 0], sizes = [2, 128], strides = [1, 1]} : vector<2x512xf32> to vector<2x128xf32>
    %29 = arith.negf %28 : vector<2x128xf32>
    %30 = math.exp %29 : vector<2x128xf32>
    %cst_14 = arith.constant 1.000000e+00 : f32
    %31 = vector.broadcast %cst_14 : f32 to vector<2x128xf32>
    %32 = arith.addf %31, %30 : vector<2x128xf32>
    %33 = arith.divf %31, %32 : vector<2x128xf32>
    %34 = vector.extract_strided_slice %24 {offsets = [0, 128], sizes = [2, 128], strides = [1, 1]} : vector<2x512xf32> to vector<2x128xf32>
    %35 = arith.negf %34 : vector<2x128xf32>
    %36 = math.exp %35 : vector<2x128xf32>
    %cst_15 = arith.constant 1.000000e+00 : f32
    %37 = vector.broadcast %cst_15 : f32 to vector<2x128xf32>
    %38 = arith.addf %37, %36 : vector<2x128xf32>
    %39 = arith.divf %37, %38 : vector<2x128xf32>
    %40 = vector.extract_strided_slice %24 {offsets = [0, 256], sizes = [2, 128], strides = [1, 1]} : vector<2x512xf32> to vector<2x128xf32>
    %41 = math.tanh %40 : vector<2x128xf32>
    %42 = vector.extract_strided_slice %24 {offsets = [0, 384], sizes = [2, 128], strides = [1, 1]} : vector<2x512xf32> to vector<2x128xf32>
    %43 = arith.negf %42 : vector<2x128xf32>
    %44 = math.exp %43 : vector<2x128xf32>
    %cst_16 = arith.constant 1.000000e+00 : f32
    %45 = vector.broadcast %cst_16 : f32 to vector<2x128xf32>
    %46 = arith.addf %45, %44 : vector<2x128xf32>
    %47 = arith.divf %45, %46 : vector<2x128xf32>
    %48 = arith.mulf %39, %27 : vector<2x128xf32>
    %49 = arith.mulf %33, %41 : vector<2x128xf32>
    %50 = arith.addf %48, %49 : vector<2x128xf32>
    %51 = math.tanh %50 : vector<2x128xf32>
    %52 = arith.mulf %47, %51 : vector<2x128xf32>
    %53 = vector.extract_strided_slice %9 {offsets = [0, 128], sizes = [2, 128], strides = [1, 1]} : vector<2x256xf32> to vector<2x128xf32>
    %54 = vector.extract_strided_slice %26 {offsets = [0, 0], sizes = [2, 128], strides = [1, 1]} : vector<2x512xf32> to vector<2x128xf32>
    %55 = arith.negf %54 : vector<2x128xf32>
    %56 = math.exp %55 : vector<2x128xf32>
    %cst_17 = arith.constant 1.000000e+00 : f32
    %57 = vector.broadcast %cst_17 : f32 to vector<2x128xf32>
    %58 = arith.addf %57, %56 : vector<2x128xf32>
    %59 = arith.divf %57, %58 : vector<2x128xf32>
    %60 = vector.extract_strided_slice %26 {offsets = [0, 128], sizes = [2, 128], strides = [1, 1]} : vector<2x512xf32> to vector<2x128xf32>
    %61 = arith.negf %60 : vector<2x128xf32>
    %62 = math.exp %61 : vector<2x128xf32>
    %cst_18 = arith.constant 1.000000e+00 : f32
    %63 = vector.broadcast %cst_18 : f32 to vector<2x128xf32>
    %64 = arith.addf %63, %62 : vector<2x128xf32>
    %65 = arith.divf %63, %64 : vector<2x128xf32>
    %66 = vector.extract_strided_slice %26 {offsets = [0, 256], sizes = [2, 128], strides = [1, 1]} : vector<2x512xf32> to vector<2x128xf32>
    %67 = math.tanh %66 : vector<2x128xf32>
    %68 = vector.extract_strided_slice %26 {offsets = [0, 384], sizes = [2, 128], strides = [1, 1]} : vector<2x512xf32> to vector<2x128xf32>
    %69 = arith.negf %68 : vector<2x128xf32>
    %70 = math.exp %69 : vector<2x128xf32>
    %cst_19 = arith.constant 1.000000e+00 : f32
    %71 = vector.broadcast %cst_19 : f32 to vector<2x128xf32>
    %72 = arith.addf %71, %70 : vector<2x128xf32>
    %73 = arith.divf %71, %72 : vector<2x128xf32>
    %74 = arith.mulf %65, %53 : vector<2x128xf32>
    %75 = arith.mulf %59, %67 : vector<2x128xf32>
    %76 = arith.addf %74, %75 : vector<2x128xf32>
    %77 = math.tanh %76 : vector<2x128xf32>
    %78 = arith.mulf %73, %77 : vector<2x128xf32>
    %79 = tpu.concatenate %52, %78 in 1 : vector<2x128xf32>, vector<2x128xf32> -> vector<2x256xf32>
    %80 = tpu.concatenate %50, %76 in 1 : vector<2x128xf32>, vector<2x128xf32> -> vector<2x256xf32>
    %c7_i32 = arith.constant 7 : i32
    %81 = arith.subi %c7_i32, %11 : i32
    %82 = vector.broadcast %11 : i32 to vector<1x256xi32>
    %83 = vector.broadcast %81 : i32 to vector<1x256xi32>
    %84 = arith.select %6, %82, %83 : vector<1x256xi1>, vector<1x256xi32>
    %85 = vector.broadcast %84 : vector<1x256xi32> to vector<2x256xi32>
    %86 = vector.broadcast %3 : vector<2x1xi32> to vector<2x256xi32>
    %87 = arith.cmpi slt, %85, %86 : vector<2x256xi32>
    %cst_20 = arith.constant 0.000000e+00 : f32
    %88 = vector.broadcast %cst_20 : f32 to vector<2x256xf32>
    %89 = arith.select %87, %79, %88 : vector<2x256xi1>, vector<2x256xf32>
    %90 = arith.truncf %79 : vector<2x256xf32> to vector<2x256xbf16>
    %91 = arith.select %87, %90, %8 : vector<2x256xi1>, vector<2x256xbf16>
    %92 = arith.select %87, %80, %9 : vector<2x256xi1>, vector<2x256xf32>
    %93 = arith.addf %10, %89 : vector<2x256xf32>
    %c1_i32 = arith.constant 1 : i32
    %94 = arith.addi %7, %c1_i32 : i32
    %95 = arith.index_cast %c1_i32 : i32 to index
    %c0_21 = arith.constant 0 : index
    %c0_22 = arith.constant 0 : index
    %96 = vector.load %arg2[%95, %c0_21, %c0_22] : memref<4x2x512xbf16, #tpu.memory_space<vmem>>, vector<1x2x512xbf16>
    %97 = vector.shape_cast %96 : vector<1x2x512xbf16> to vector<2x512xbf16>
    %98 = arith.extf %97 : vector<2x512xbf16> to vector<2x512xf32>
    %c3_i32_23 = arith.constant 3 : i32
    %99 = arith.subi %c3_i32_23, %c1_i32 : i32
    %100 = arith.index_cast %99 : i32 to index
    %c0_24 = arith.constant 0 : index
    %c0_25 = arith.constant 0 : index
    %101 = vector.load %arg3[%100, %c0_24, %c0_25] : memref<4x2x512xbf16, #tpu.memory_space<vmem>>, vector<1x2x512xbf16>
    %102 = vector.shape_cast %101 : vector<1x2x512xbf16> to vector<2x512xbf16>
    %103 = arith.extf %102 : vector<2x512xbf16> to vector<2x512xf32>
    %c0_26 = arith.constant 0 : index
    %c0_27 = arith.constant 0 : index
    %104 = vector.load %arg4[%c0_26, %c0_27] : memref<256x1024xbf16, #tpu.memory_space<vmem>>, vector<256x1024xbf16>
    %cst_28 = arith.constant dense<0.000000e+00> : vector<2x1024xf32>
    %105 = tpu.matmul %91, %104, %cst_28 {dimension_numbers = #tpu.dot_dimension_numbers<[1], [0], [0], [1], [0, 0, 1, 1], [], []>} : vector<2x256xbf16>, vector<256x1024xbf16>, vector<2x1024xf32> -> vector<2x1024xf32>
    %106 = vector.extract_strided_slice %105 {offsets = [0, 0], sizes = [2, 512], strides = [1, 1]} : vector<2x1024xf32> to vector<2x512xf32>
    %107 = arith.addf %98, %106 : vector<2x512xf32>
    %108 = vector.extract_strided_slice %105 {offsets = [0, 512], sizes = [2, 512], strides = [1, 1]} : vector<2x1024xf32> to vector<2x512xf32>
    %109 = arith.addf %103, %108 : vector<2x512xf32>
    %110 = vector.extract_strided_slice %92 {offsets = [0, 0], sizes = [2, 128], strides = [1, 1]} : vector<2x256xf32> to vector<2x128xf32>
    %111 = vector.extract_strided_slice %107 {offsets = [0, 0], sizes = [2, 128], strides = [1, 1]} : vector<2x512xf32> to vector<2x128xf32>
    %112 = arith.negf %111 : vector<2x128xf32>
    %113 = math.exp %112 : vector<2x128xf32>
    %cst_29 = arith.constant 1.000000e+00 : f32
    %114 = vector.broadcast %cst_29 : f32 to vector<2x128xf32>
    %115 = arith.addf %114, %113 : vector<2x128xf32>
    %116 = arith.divf %114, %115 : vector<2x128xf32>
    %117 = vector.extract_strided_slice %107 {offsets = [0, 128], sizes = [2, 128], strides = [1, 1]} : vector<2x512xf32> to vector<2x128xf32>
    %118 = arith.negf %117 : vector<2x128xf32>
    %119 = math.exp %118 : vector<2x128xf32>
    %cst_30 = arith.constant 1.000000e+00 : f32
    %120 = vector.broadcast %cst_30 : f32 to vector<2x128xf32>
    %121 = arith.addf %120, %119 : vector<2x128xf32>
    %122 = arith.divf %120, %121 : vector<2x128xf32>
    %123 = vector.extract_strided_slice %107 {offsets = [0, 256], sizes = [2, 128], strides = [1, 1]} : vector<2x512xf32> to vector<2x128xf32>
    %124 = math.tanh %123 : vector<2x128xf32>
    %125 = vector.extract_strided_slice %107 {offsets = [0, 384], sizes = [2, 128], strides = [1, 1]} : vector<2x512xf32> to vector<2x128xf32>
    %126 = arith.negf %125 : vector<2x128xf32>
    %127 = math.exp %126 : vector<2x128xf32>
    %cst_31 = arith.constant 1.000000e+00 : f32
    %128 = vector.broadcast %cst_31 : f32 to vector<2x128xf32>
    %129 = arith.addf %128, %127 : vector<2x128xf32>
    %130 = arith.divf %128, %129 : vector<2x128xf32>
    %131 = arith.mulf %122, %110 : vector<2x128xf32>
    %132 = arith.mulf %116, %124 : vector<2x128xf32>
    %133 = arith.addf %131, %132 : vector<2x128xf32>
    %134 = math.tanh %133 : vector<2x128xf32>
    %135 = arith.mulf %130, %134 : vector<2x128xf32>
    %136 = vector.extract_strided_slice %92 {offsets = [0, 128], sizes = [2, 128], strides = [1, 1]} : vector<2x256xf32> to vector<2x128xf32>
    %137 = vector.extract_strided_slice %109 {offsets = [0, 0], sizes = [2, 128], strides = [1, 1]} : vector<2x512xf32> to vector<2x128xf32>
    %138 = arith.negf %137 : vector<2x128xf32>
    %139 = math.exp %138 : vector<2x128xf32>
    %cst_32 = arith.constant 1.000000e+00 : f32
    %140 = vector.broadcast %cst_32 : f32 to vector<2x128xf32>
    %141 = arith.addf %140, %139 : vector<2x128xf32>
    %142 = arith.divf %140, %141 : vector<2x128xf32>
    %143 = vector.extract_strided_slice %109 {offsets = [0, 128], sizes = [2, 128], strides = [1, 1]} : vector<2x512xf32> to vector<2x128xf32>
    %144 = arith.negf %143 : vector<2x128xf32>
    %145 = math.exp %144 : vector<2x128xf32>
    %cst_33 = arith.constant 1.000000e+00 : f32
    %146 = vector.broadcast %cst_33 : f32 to vector<2x128xf32>
    %147 = arith.addf %146, %145 : vector<2x128xf32>
    %148 = arith.divf %146, %147 : vector<2x128xf32>
    %149 = vector.extract_strided_slice %109 {offsets = [0, 256], sizes = [2, 128], strides = [1, 1]} : vector<2x512xf32> to vector<2x128xf32>
    %150 = math.tanh %149 : vector<2x128xf32>
    %151 = vector.extract_strided_slice %109 {offsets = [0, 384], sizes = [2, 128], strides = [1, 1]} : vector<2x512xf32> to vector<2x128xf32>
    %152 = arith.negf %151 : vector<2x128xf32>
    %153 = math.exp %152 : vector<2x128xf32>
    %cst_34 = arith.constant 1.000000e+00 : f32
    %154 = vector.broadcast %cst_34 : f32 to vector<2x128xf32>
    %155 = arith.addf %154, %153 : vector<2x128xf32>
    %156 = arith.divf %154, %155 : vector<2x128xf32>
    %157 = arith.mulf %148, %136 : vector<2x128xf32>
    %158 = arith.mulf %142, %150 : vector<2x128xf32>
    %159 = arith.addf %157, %158 : vector<2x128xf32>
    %160 = math.tanh %159 : vector<2x128xf32>
    %161 = arith.mulf %156, %160 : vector<2x128xf32>
    %162 = tpu.concatenate %135, %161 in 1 : vector<2x128xf32>, vector<2x128xf32> -> vector<2x256xf32>
    %163 = tpu.concatenate %133, %159 in 1 : vector<2x128xf32>, vector<2x128xf32> -> vector<2x256xf32>
    %c7_i32_35 = arith.constant 7 : i32
    %164 = arith.subi %c7_i32_35, %94 : i32
    %165 = vector.broadcast %94 : i32 to vector<1x256xi32>
    %166 = vector.broadcast %164 : i32 to vector<1x256xi32>
    %167 = arith.select %6, %165, %166 : vector<1x256xi1>, vector<1x256xi32>
    %168 = vector.broadcast %167 : vector<1x256xi32> to vector<2x256xi32>
    %169 = vector.broadcast %3 : vector<2x1xi32> to vector<2x256xi32>
    %170 = arith.cmpi slt, %168, %169 : vector<2x256xi32>
    %cst_36 = arith.constant 0.000000e+00 : f32
    %171 = vector.broadcast %cst_36 : f32 to vector<2x256xf32>
    %172 = arith.select %170, %162, %171 : vector<2x256xi1>, vector<2x256xf32>
    %173 = arith.truncf %162 : vector<2x256xf32> to vector<2x256xbf16>
    %174 = arith.select %170, %173, %91 : vector<2x256xi1>, vector<2x256xbf16>
    %175 = arith.select %170, %163, %92 : vector<2x256xi1>, vector<2x256xf32>
    %176 = arith.addf %93, %172 : vector<2x256xf32>
    %c2_i32 = arith.constant 2 : i32
    %177 = arith.addi %7, %c2_i32 : i32
    %178 = arith.index_cast %c2_i32 : i32 to index
    %c0_37 = arith.constant 0 : index
    %c0_38 = arith.constant 0 : index
    %179 = vector.load %arg2[%178, %c0_37, %c0_38] : memref<4x2x512xbf16, #tpu.memory_space<vmem>>, vector<1x2x512xbf16>
    %180 = vector.shape_cast %179 : vector<1x2x512xbf16> to vector<2x512xbf16>
    %181 = arith.extf %180 : vector<2x512xbf16> to vector<2x512xf32>
    %c3_i32_39 = arith.constant 3 : i32
    %182 = arith.subi %c3_i32_39, %c2_i32 : i32
    %183 = arith.index_cast %182 : i32 to index
    %c0_40 = arith.constant 0 : index
    %c0_41 = arith.constant 0 : index
    %184 = vector.load %arg3[%183, %c0_40, %c0_41] : memref<4x2x512xbf16, #tpu.memory_space<vmem>>, vector<1x2x512xbf16>
    %185 = vector.shape_cast %184 : vector<1x2x512xbf16> to vector<2x512xbf16>
    %186 = arith.extf %185 : vector<2x512xbf16> to vector<2x512xf32>
    %c0_42 = arith.constant 0 : index
    %c0_43 = arith.constant 0 : index
    %187 = vector.load %arg4[%c0_42, %c0_43] : memref<256x1024xbf16, #tpu.memory_space<vmem>>, vector<256x1024xbf16>
    %cst_44 = arith.constant dense<0.000000e+00> : vector<2x1024xf32>
    %188 = tpu.matmul %174, %187, %cst_44 {dimension_numbers = #tpu.dot_dimension_numbers<[1], [0], [0], [1], [0, 0, 1, 1], [], []>} : vector<2x256xbf16>, vector<256x1024xbf16>, vector<2x1024xf32> -> vector<2x1024xf32>
    %189 = vector.extract_strided_slice %188 {offsets = [0, 0], sizes = [2, 512], strides = [1, 1]} : vector<2x1024xf32> to vector<2x512xf32>
    %190 = arith.addf %181, %189 : vector<2x512xf32>
    %191 = vector.extract_strided_slice %188 {offsets = [0, 512], sizes = [2, 512], strides = [1, 1]} : vector<2x1024xf32> to vector<2x512xf32>
    %192 = arith.addf %186, %191 : vector<2x512xf32>
    %193 = vector.extract_strided_slice %175 {offsets = [0, 0], sizes = [2, 128], strides = [1, 1]} : vector<2x256xf32> to vector<2x128xf32>
    %194 = vector.extract_strided_slice %190 {offsets = [0, 0], sizes = [2, 128], strides = [1, 1]} : vector<2x512xf32> to vector<2x128xf32>
    %195 = arith.negf %194 : vector<2x128xf32>
    %196 = math.exp %195 : vector<2x128xf32>
    %cst_45 = arith.constant 1.000000e+00 : f32
    %197 = vector.broadcast %cst_45 : f32 to vector<2x128xf32>
    %198 = arith.addf %197, %196 : vector<2x128xf32>
    %199 = arith.divf %197, %198 : vector<2x128xf32>
    %200 = vector.extract_strided_slice %190 {offsets = [0, 128], sizes = [2, 128], strides = [1, 1]} : vector<2x512xf32> to vector<2x128xf32>
    %201 = arith.negf %200 : vector<2x128xf32>
    %202 = math.exp %201 : vector<2x128xf32>
    %cst_46 = arith.constant 1.000000e+00 : f32
    %203 = vector.broadcast %cst_46 : f32 to vector<2x128xf32>
    %204 = arith.addf %203, %202 : vector<2x128xf32>
    %205 = arith.divf %203, %204 : vector<2x128xf32>
    %206 = vector.extract_strided_slice %190 {offsets = [0, 256], sizes = [2, 128], strides = [1, 1]} : vector<2x512xf32> to vector<2x128xf32>
    %207 = math.tanh %206 : vector<2x128xf32>
    %208 = vector.extract_strided_slice %190 {offsets = [0, 384], sizes = [2, 128], strides = [1, 1]} : vector<2x512xf32> to vector<2x128xf32>
    %209 = arith.negf %208 : vector<2x128xf32>
    %210 = math.exp %209 : vector<2x128xf32>
    %cst_47 = arith.constant 1.000000e+00 : f32
    %211 = vector.broadcast %cst_47 : f32 to vector<2x128xf32>
    %212 = arith.addf %211, %210 : vector<2x128xf32>
    %213 = arith.divf %211, %212 : vector<2x128xf32>
    %214 = arith.mulf %205, %193 : vector<2x128xf32>
    %215 = arith.mulf %199, %207 : vector<2x128xf32>
    %216 = arith.addf %214, %215 : vector<2x128xf32>
    %217 = math.tanh %216 : vector<2x128xf32>
    %218 = arith.mulf %213, %217 : vector<2x128xf32>
    %219 = vector.extract_strided_slice %175 {offsets = [0, 128], sizes = [2, 128], strides = [1, 1]} : vector<2x256xf32> to vector<2x128xf32>
    %220 = vector.extract_strided_slice %192 {offsets = [0, 0], sizes = [2, 128], strides = [1, 1]} : vector<2x512xf32> to vector<2x128xf32>
    %221 = arith.negf %220 : vector<2x128xf32>
    %222 = math.exp %221 : vector<2x128xf32>
    %cst_48 = arith.constant 1.000000e+00 : f32
    %223 = vector.broadcast %cst_48 : f32 to vector<2x128xf32>
    %224 = arith.addf %223, %222 : vector<2x128xf32>
    %225 = arith.divf %223, %224 : vector<2x128xf32>
    %226 = vector.extract_strided_slice %192 {offsets = [0, 128], sizes = [2, 128], strides = [1, 1]} : vector<2x512xf32> to vector<2x128xf32>
    %227 = arith.negf %226 : vector<2x128xf32>
    %228 = math.exp %227 : vector<2x128xf32>
    %cst_49 = arith.constant 1.000000e+00 : f32
    %229 = vector.broadcast %cst_49 : f32 to vector<2x128xf32>
    %230 = arith.addf %229, %228 : vector<2x128xf32>
    %231 = arith.divf %229, %230 : vector<2x128xf32>
    %232 = vector.extract_strided_slice %192 {offsets = [0, 256], sizes = [2, 128], strides = [1, 1]} : vector<2x512xf32> to vector<2x128xf32>
    %233 = math.tanh %232 : vector<2x128xf32>
    %234 = vector.extract_strided_slice %192 {offsets = [0, 384], sizes = [2, 128], strides = [1, 1]} : vector<2x512xf32> to vector<2x128xf32>
    %235 = arith.negf %234 : vector<2x128xf32>
    %236 = math.exp %235 : vector<2x128xf32>
    %cst_50 = arith.constant 1.000000e+00 : f32
    %237 = vector.broadcast %cst_50 : f32 to vector<2x128xf32>
    %238 = arith.addf %237, %236 : vector<2x128xf32>
    %239 = arith.divf %237, %238 : vector<2x128xf32>
    %240 = arith.mulf %231, %219 : vector<2x128xf32>
    %241 = arith.mulf %225, %233 : vector<2x128xf32>
    %242 = arith.addf %240, %241 : vector<2x128xf32>
    %243 = math.tanh %242 : vector<2x128xf32>
    %244 = arith.mulf %239, %243 : vector<2x128xf32>
    %245 = tpu.concatenate %218, %244 in 1 : vector<2x128xf32>, vector<2x128xf32> -> vector<2x256xf32>
    %246 = tpu.concatenate %216, %242 in 1 : vector<2x128xf32>, vector<2x128xf32> -> vector<2x256xf32>
    %c7_i32_51 = arith.constant 7 : i32
    %247 = arith.subi %c7_i32_51, %177 : i32
    %248 = vector.broadcast %177 : i32 to vector<1x256xi32>
    %249 = vector.broadcast %247 : i32 to vector<1x256xi32>
    %250 = arith.select %6, %248, %249 : vector<1x256xi1>, vector<1x256xi32>
    %251 = vector.broadcast %250 : vector<1x256xi32> to vector<2x256xi32>
    %252 = vector.broadcast %3 : vector<2x1xi32> to vector<2x256xi32>
    %253 = arith.cmpi slt, %251, %252 : vector<2x256xi32>
    %cst_52 = arith.constant 0.000000e+00 : f32
    %254 = vector.broadcast %cst_52 : f32 to vector<2x256xf32>
    %255 = arith.select %253, %245, %254 : vector<2x256xi1>, vector<2x256xf32>
    %256 = arith.truncf %245 : vector<2x256xf32> to vector<2x256xbf16>
    %257 = arith.select %253, %256, %174 : vector<2x256xi1>, vector<2x256xbf16>
    %258 = arith.select %253, %246, %175 : vector<2x256xi1>, vector<2x256xf32>
    %259 = arith.addf %176, %255 : vector<2x256xf32>
    %c3_i32_53 = arith.constant 3 : i32
    %260 = arith.addi %7, %c3_i32_53 : i32
    %261 = arith.index_cast %c3_i32_53 : i32 to index
    %c0_54 = arith.constant 0 : index
    %c0_55 = arith.constant 0 : index
    %262 = vector.load %arg2[%261, %c0_54, %c0_55] : memref<4x2x512xbf16, #tpu.memory_space<vmem>>, vector<1x2x512xbf16>
    %263 = vector.shape_cast %262 : vector<1x2x512xbf16> to vector<2x512xbf16>
    %264 = arith.extf %263 : vector<2x512xbf16> to vector<2x512xf32>
    %c3_i32_56 = arith.constant 3 : i32
    %265 = arith.subi %c3_i32_56, %c3_i32_53 : i32
    %266 = arith.index_cast %265 : i32 to index
    %c0_57 = arith.constant 0 : index
    %c0_58 = arith.constant 0 : index
    %267 = vector.load %arg3[%266, %c0_57, %c0_58] : memref<4x2x512xbf16, #tpu.memory_space<vmem>>, vector<1x2x512xbf16>
    %268 = vector.shape_cast %267 : vector<1x2x512xbf16> to vector<2x512xbf16>
    %269 = arith.extf %268 : vector<2x512xbf16> to vector<2x512xf32>
    %c0_59 = arith.constant 0 : index
    %c0_60 = arith.constant 0 : index
    %270 = vector.load %arg4[%c0_59, %c0_60] : memref<256x1024xbf16, #tpu.memory_space<vmem>>, vector<256x1024xbf16>
    %cst_61 = arith.constant dense<0.000000e+00> : vector<2x1024xf32>
    %271 = tpu.matmul %257, %270, %cst_61 {dimension_numbers = #tpu.dot_dimension_numbers<[1], [0], [0], [1], [0, 0, 1, 1], [], []>} : vector<2x256xbf16>, vector<256x1024xbf16>, vector<2x1024xf32> -> vector<2x1024xf32>
    %272 = vector.extract_strided_slice %271 {offsets = [0, 0], sizes = [2, 512], strides = [1, 1]} : vector<2x1024xf32> to vector<2x512xf32>
    %273 = arith.addf %264, %272 : vector<2x512xf32>
    %274 = vector.extract_strided_slice %271 {offsets = [0, 512], sizes = [2, 512], strides = [1, 1]} : vector<2x1024xf32> to vector<2x512xf32>
    %275 = arith.addf %269, %274 : vector<2x512xf32>
    %276 = vector.extract_strided_slice %258 {offsets = [0, 0], sizes = [2, 128], strides = [1, 1]} : vector<2x256xf32> to vector<2x128xf32>
    %277 = vector.extract_strided_slice %273 {offsets = [0, 0], sizes = [2, 128], strides = [1, 1]} : vector<2x512xf32> to vector<2x128xf32>
    %278 = arith.negf %277 : vector<2x128xf32>
    %279 = math.exp %278 : vector<2x128xf32>
    %cst_62 = arith.constant 1.000000e+00 : f32
    %280 = vector.broadcast %cst_62 : f32 to vector<2x128xf32>
    %281 = arith.addf %280, %279 : vector<2x128xf32>
    %282 = arith.divf %280, %281 : vector<2x128xf32>
    %283 = vector.extract_strided_slice %273 {offsets = [0, 128], sizes = [2, 128], strides = [1, 1]} : vector<2x512xf32> to vector<2x128xf32>
    %284 = arith.negf %283 : vector<2x128xf32>
    %285 = math.exp %284 : vector<2x128xf32>
    %cst_63 = arith.constant 1.000000e+00 : f32
    %286 = vector.broadcast %cst_63 : f32 to vector<2x128xf32>
    %287 = arith.addf %286, %285 : vector<2x128xf32>
    %288 = arith.divf %286, %287 : vector<2x128xf32>
    %289 = vector.extract_strided_slice %273 {offsets = [0, 256], sizes = [2, 128], strides = [1, 1]} : vector<2x512xf32> to vector<2x128xf32>
    %290 = math.tanh %289 : vector<2x128xf32>
    %291 = vector.extract_strided_slice %273 {offsets = [0, 384], sizes = [2, 128], strides = [1, 1]} : vector<2x512xf32> to vector<2x128xf32>
    %292 = arith.negf %291 : vector<2x128xf32>
    %293 = math.exp %292 : vector<2x128xf32>
    %cst_64 = arith.constant 1.000000e+00 : f32
    %294 = vector.broadcast %cst_64 : f32 to vector<2x128xf32>
    %295 = arith.addf %294, %293 : vector<2x128xf32>
    %296 = arith.divf %294, %295 : vector<2x128xf32>
    %297 = arith.mulf %288, %276 : vector<2x128xf32>
    %298 = arith.mulf %282, %290 : vector<2x128xf32>
    %299 = arith.addf %297, %298 : vector<2x128xf32>
    %300 = math.tanh %299 : vector<2x128xf32>
    %301 = arith.mulf %296, %300 : vector<2x128xf32>
    %302 = vector.extract_strided_slice %258 {offsets = [0, 128], sizes = [2, 128], strides = [1, 1]} : vector<2x256xf32> to vector<2x128xf32>
    %303 = vector.extract_strided_slice %275 {offsets = [0, 0], sizes = [2, 128], strides = [1, 1]} : vector<2x512xf32> to vector<2x128xf32>
    %304 = arith.negf %303 : vector<2x128xf32>
    %305 = math.exp %304 : vector<2x128xf32>
    %cst_65 = arith.constant 1.000000e+00 : f32
    %306 = vector.broadcast %cst_65 : f32 to vector<2x128xf32>
    %307 = arith.addf %306, %305 : vector<2x128xf32>
    %308 = arith.divf %306, %307 : vector<2x128xf32>
    %309 = vector.extract_strided_slice %275 {offsets = [0, 128], sizes = [2, 128], strides = [1, 1]} : vector<2x512xf32> to vector<2x128xf32>
    %310 = arith.negf %309 : vector<2x128xf32>
    %311 = math.exp %310 : vector<2x128xf32>
    %cst_66 = arith.constant 1.000000e+00 : f32
    %312 = vector.broadcast %cst_66 : f32 to vector<2x128xf32>
    %313 = arith.addf %312, %311 : vector<2x128xf32>
    %314 = arith.divf %312, %313 : vector<2x128xf32>
    %315 = vector.extract_strided_slice %275 {offsets = [0, 256], sizes = [2, 128], strides = [1, 1]} : vector<2x512xf32> to vector<2x128xf32>
    %316 = math.tanh %315 : vector<2x128xf32>
    %317 = vector.extract_strided_slice %275 {offsets = [0, 384], sizes = [2, 128], strides = [1, 1]} : vector<2x512xf32> to vector<2x128xf32>
    %318 = arith.negf %317 : vector<2x128xf32>
    %319 = math.exp %318 : vector<2x128xf32>
    %cst_67 = arith.constant 1.000000e+00 : f32
    %320 = vector.broadcast %cst_67 : f32 to vector<2x128xf32>
    %321 = arith.addf %320, %319 : vector<2x128xf32>
    %322 = arith.divf %320, %321 : vector<2x128xf32>
    %323 = arith.mulf %314, %302 : vector<2x128xf32>
    %324 = arith.mulf %308, %316 : vector<2x128xf32>
    %325 = arith.addf %323, %324 : vector<2x128xf32>
    %326 = math.tanh %325 : vector<2x128xf32>
    %327 = arith.mulf %322, %326 : vector<2x128xf32>
    %328 = tpu.concatenate %301, %327 in 1 : vector<2x128xf32>, vector<2x128xf32> -> vector<2x256xf32>
    %329 = tpu.concatenate %299, %325 in 1 : vector<2x128xf32>, vector<2x128xf32> -> vector<2x256xf32>
    %c7_i32_68 = arith.constant 7 : i32
    %330 = arith.subi %c7_i32_68, %260 : i32
    %331 = vector.broadcast %260 : i32 to vector<1x256xi32>
    %332 = vector.broadcast %330 : i32 to vector<1x256xi32>
    %333 = arith.select %6, %331, %332 : vector<1x256xi1>, vector<1x256xi32>
    %334 = vector.broadcast %333 : vector<1x256xi32> to vector<2x256xi32>
    %335 = vector.broadcast %3 : vector<2x1xi32> to vector<2x256xi32>
    %336 = arith.cmpi slt, %334, %335 : vector<2x256xi32>
    %cst_69 = arith.constant 0.000000e+00 : f32
    %337 = vector.broadcast %cst_69 : f32 to vector<2x256xf32>
    %338 = arith.select %336, %328, %337 : vector<2x256xi1>, vector<2x256xf32>
    %339 = arith.truncf %328 : vector<2x256xf32> to vector<2x256xbf16>
    %340 = arith.select %336, %339, %257 : vector<2x256xi1>, vector<2x256xbf16>
    %341 = arith.select %336, %329, %258 : vector<2x256xi1>, vector<2x256xf32>
    %342 = arith.addf %259, %338 : vector<2x256xf32>
    %c4_i32_70 = arith.constant 4 : i32
    %c0_71 = arith.constant 0 : index
    %c0_72 = arith.constant 0 : index
    %343 = vector.load %arg6[%c0_71, %c0_72] : memref<2x256xf32, #tpu.memory_space<vmem>>, vector<2x256xf32>
    %344 = arith.addf %343, %342 : vector<2x256xf32>
    %c0_73 = arith.constant 0 : index
    %c0_74 = arith.constant 0 : index
    %345 = vector.load %arg6[%c0_73, %c0_74] : memref<2x256xf32, #tpu.memory_space<vmem>>, vector<2x256xf32>
    tpu.vector_store %arg6[%c0_73, %c0_74], %344 {strides = array<i32>} : memref<2x256xf32, #tpu.memory_space<vmem>>, vector<2x256xf32>,
    %c1_i32_75 = arith.constant 1 : i32
    %346 = arith.cmpi eq, %arg1, %c1_i32_75 : i32
    %347 = arith.extui %346 : i1 to i32
    %c0_i32_76 = arith.constant 0 : i32
    %348 = arith.cmpi ne, %347, %c0_i32_76 : i32
    scf.if %348 {
      %c1_i32_81 = arith.constant 1 : i32
      %351 = vector.broadcast %c1_i32_81 : i32 to vector<2x1xi32>
      %352 = arith.maxsi %3, %351 : vector<2x1xi32>
      %353 = arith.sitofp %352 : vector<2x1xi32> to vector<2x1xf32>
      %354 = tpu.reciprocal %353 {approx = true} : vector<2x1xf32> -> vector<2x1xf32>
      %c0_82 = arith.constant 0 : index
      %c0_83 = arith.constant 0 : index
      %355 = vector.load %arg6[%c0_82, %c0_83] : memref<2x256xf32, #tpu.memory_space<vmem>>, vector<2x256xf32>
      %356 = vector.broadcast %354 : vector<2x1xf32> to vector<2x256xf32>
      %357 = arith.mulf %355, %356 : vector<2x256xf32>
      %c0_84 = arith.constant 0 : index
      %c0_85 = arith.constant 0 : index
      %358 = vector.load %arg6[%c0_84, %c0_85] : memref<2x256xf32, #tpu.memory_space<vmem>>, vector<2x256xf32>
      tpu.vector_store %arg6[%c0_84, %c0_85], %357 {strides = array<i32>} : memref<2x256xf32, #tpu.memory_space<vmem>>, vector<2x256xf32>,
    } else {
    }
    %c0_77 = arith.constant 0 : index
    %c0_78 = arith.constant 0 : index
    %349 = vector.load %arg7[%c0_77, %c0_78] : memref<2x256xbf16, #tpu.memory_space<vmem>>, vector<2x256xbf16>
    tpu.vector_store %arg7[%c0_77, %c0_78], %340 {strides = array<i32>} : memref<2x256xbf16, #tpu.memory_space<vmem>>, vector<2x256xbf16>,
    %c0_79 = arith.constant 0 : index
    %c0_80 = arith.constant 0 : index
    %350 = vector.load %arg8[%c0_79, %c0_80] : memref<2x256xf32, #tpu.memory_space<vmem>>, vector<2x256xf32>
    tpu.vector_store %arg8[%c0_79, %c0_80], %341 {strides = array<i32>} : memref<2x256xf32, #tpu.memory_space<vmem>>, vector<2x256xf32>,
    return
  }
  func.func @transform_0(%arg0: i32, %arg1: i32) -> (i32, i32, i32) {
    %c0_i32 = arith.constant 0 : i32
    %c0_i32_0 = arith.constant 0 : i32
    return %arg1, %arg0, %c0_i32 : i32, i32, i32
  }
  func.func @transform_1(%arg0: i32, %arg1: i32) -> (i32, i32, i32) {
    %c1_i32 = arith.constant 1 : i32
    %0 = arith.subi %c1_i32, %arg1 : i32
    %c1_i32_0 = arith.constant 1 : i32
    %c0_i32 = arith.constant 0 : i32
    return %0, %arg0, %c1_i32_0 : i32, i32, i32
  }
  func.func @transform_2(%arg0: i32, %arg1: i32) -> (i32, i32) {
    %c0_i32 = arith.constant 0 : i32
    %c0_i32_0 = arith.constant 0 : i32
    %c0_i32_1 = arith.constant 0 : i32
    return %c0_i32, %c0_i32_0 : i32, i32
  }
  func.func @transform_3(%arg0: i32, %arg1: i32) -> (i32, i32) {
    %c0_i32 = arith.constant 0 : i32
    %c0_i32_0 = arith.constant 0 : i32
    return %arg0, %c0_i32 : i32, i32
  }
  func.func @transform_4(%arg0: i32, %arg1: i32) -> (i32, i32) {
    %c0_i32 = arith.constant 0 : i32
    %c0_i32_0 = arith.constant 0 : i32
    return %arg0, %c0_i32 : i32, i32
  }
}

</mosaic_0001>

<llo_original>
// kernel: rnn_forward.4
$region0: #{rnn_forward.4}
  #allocation0 [shape = 'u32[]', space=smem, size = 0x4, offset = 0x4, fixed_abs, tag = 'smem constant byte address 0x4 - core index']
  #allocation1 [shape = 'u32[144,128]{1,0:T(1,128)}', space=vmem, size = 0x12000, scoped, tag = 'internal scratch']
  %s0 = inlined_call_operand.vmem [shape: bf16[16,32], index: 0, kind: input, shape index: {}]
  %s1 = inlined_call_operand.vmem [shape: bf16[32,1024], index: 1, kind: input, shape index: {}]
  %s2 = inlined_call_operand.vmem [shape: f32[1,1024], index: 2, kind: input, shape index: {}]
  %s3 = inlined_call_operand.vmem [shape: bf16[16,1024], index: 3, kind: output, shape index: {}]
  %s4 = sld [smem:[#allocation0]]
  $region22: #{rnn_forward.4} parent=0
    _
  %s6 = ssub.s32 1, %s4
  %s7 = scalar_select 0, %s6, %s4
  // Predicated region
  $region2: #{rnn_forward.4} parent=0 // pred_check
    _
  $region3: #{rnn_forward.4} parent=0 // pred_check_branch
    %9 = sbr.rel (0) target = $region5
  $region4: #{rnn_forward.4} parent=0 // pred_region
    _
  $region5: #{rnn_forward.4} parent=0 // pred_fallthru
    _
  // Predicated region
  $region6: #{rnn_forward.4} parent=0 // pred_check
    _
  $region7: #{rnn_forward.4} parent=0 // pred_check_branch
    %11 = sbr.rel (0) target = $region9
  $region8: #{rnn_forward.4} parent=0 // pred_region
    _
  $region9: #{rnn_forward.4} parent=0 // pred_fallthru
    _
  // Predicated region
  $region10: #{rnn_forward.4} parent=0 // pred_check
    _
  $region11: #{rnn_forward.4} parent=0 // pred_check_branch
    %13 = sbr.rel (0) target = $region13
  $region12: #{rnn_forward.4} parent=0 // pred_region
    _
  $region13: #{rnn_forward.4} parent=0 // pred_fallthru
    _
  %v15 = vld [vmem:[%s0] sm:$0xf]
  %v16 = vld [vmem:[%s0 + $0x4] sm:$0xf]
  %v17 = vld [vmem:[%s1] sm:$0xff]
  %v18 = vld [vmem:[%s1 + $0x8] sm:$0xff]
  %v19 = vld [vmem:[%s1 + $0x10] sm:$0xff]
  %v20 = vld [vmem:[%s1 + $0x18] sm:$0xff]
  %v21 = vld [vmem:[%s1 + $0x20] sm:$0xff]
  %v22 = vld [vmem:[%s1 + $0x28] sm:$0xff]
  %v23 = vld [vmem:[%s1 + $0x30] sm:$0xff]
  %v24 = vld [vmem:[%s1 + $0x38] sm:$0xff]
  %v25 = vld [vmem:[%s1 + $0x40] sm:$0xff]
  %v26 = vld [vmem:[%s1 + $0x48] sm:$0xff]
  %v27 = vld [vmem:[%s1 + $0x50] sm:$0xff]
  %v28 = vld [vmem:[%s1 + $0x58] sm:$0xff]
  %v29 = vld [vmem:[%s1 + $0x60] sm:$0xff]
  %v30 = vld [vmem:[%s1 + $0x68] sm:$0xff]
  %v31 = vld [vmem:[%s1 + $0x70] sm:$0xff]
  %v32 = vld [vmem:[%s1 + $0x78] sm:$0xff]
  %v33 = vld [vmem:[%s2] sm:$0xff]
  %v35 = vlaneseq
  %v36 = vshrl.u32 %v35, 7
  %v37 = vsub.s32 0, %v36
  %v38 = vrot.slane %v33, %v37
  %v39 = vlaneseq
  %v40 = vshrl.u32 %v39, 7
  %v41 = vsub.s32 1, %v40
  %v42 = vrot.slane %v33, %v41
  %v43 = vlaneseq
  %v44 = vshrl.u32 %v43, 7
  %v45 = vsub.s32 2, %v44
  %v46 = vrot.slane %v33, %v45
  %v47 = vlaneseq
  %v48 = vshrl.u32 %v47, 7
  %v49 = vsub.s32 3, %v48
  %v50 = vrot.slane %v33, %v49
  %v51 = vlaneseq
  %v52 = vshrl.u32 %v51, 7
  %v53 = vsub.s32 4, %v52
  %v54 = vrot.slane %v33, %v53
  %v55 = vlaneseq
  %v56 = vshrl.u32 %v55, 7
  %v57 = vsub.s32 5, %v56
  %v58 = vrot.slane %v33, %v57
  %v59 = vlaneseq
  %v60 = vshrl.u32 %v59, 7
  %v61 = vsub.s32 6, %v60
  %v62 = vrot.slane %v33, %v61
  %v63 = vlaneseq
  %v64 = vshrl.u32 %v63, 7
  %v65 = vsub.s32 7, %v64
  %v66 = vrot.slane %v33, %v65
  %v77 = vunpack.c.l.b16 %v15
  %v78 = vunpack.c.l.b16 %v16
  %v79 = vpack.c.b16 %v78, %v77
  %v96 = vunpack.c.l.b16 %v17
  %v97 = vunpack.c.h.b16 %v17
  %v98 = vunpack.c.l.b16 %v18
  %v99 = vunpack.c.h.b16 %v18
  %v100 = vunpack.c.l.b16 %v19
  %v101 = vunpack.c.h.b16 %v19
  %v102 = vunpack.c.l.b16 %v20
  %v103 = vunpack.c.h.b16 %v20
  %v104 = vunpack.c.l.b16 %v21
  %v105 = vunpack.c.h.b16 %v21
  %v106 = vunpack.c.l.b16 %v22
  %v107 = vunpack.c.h.b16 %v22
  %v108 = vunpack.c.l.b16 %v23
  %v109 = vunpack.c.h.b16 %v23
  %v110 = vunpack.c.l.b16 %v24
  %v111 = vunpack.c.h.b16 %v24
  %v112 = vunpack.c.l.b16 %v25
  %v113 = vunpack.c.h.b16 %v25
  %v114 = vunpack.c.l.b16 %v26
  %v115 = vunpack.c.h.b16 %v26
  %v116 = vunpack.c.l.b16 %v27
  %v117 = vunpack.c.h.b16 %v27
  %v118 = vunpack.c.l.b16 %v28
  %v119 = vunpack.c.h.b16 %v28
  %v120 = vunpack.c.l.b16 %v29
  %v121 = vunpack.c.h.b16 %v29
  %v122 = vunpack.c.l.b16 %v30
  %v123 = vunpack.c.h.b16 %v30
  %v124 = vunpack.c.l.b16 %v31
  %v125 = vunpack.c.h.b16 %v31
  %v126 = vunpack.c.l.b16 %v32
  %v127 = vunpack.c.h.b16 %v32
  %v128 = vpack.c.b16 %v104, %v96
  %v129 = vpack.c.b16 %v105, %v97
  %v130 = vpack.c.b16 %v106, %v98
  %v131 = vpack.c.b16 %v107, %v99
  %v132 = vpack.c.b16 %v108, %v100
  %v133 = vpack.c.b16 %v109, %v101
  %v134 = vpack.c.b16 %v110, %v102
  %v135 = vpack.c.b16 %v111, %v103
  %v136 = vpack.c.b16 %v120, %v112
  %v137 = vpack.c.b16 %v121, %v113
  %v138 = vpack.c.b16 %v122, %v114
  %v139 = vpack.c.b16 %v123, %v115
  %v140 = vpack.c.b16 %v124, %v116
  %v141 = vpack.c.b16 %v125, %v117
  %v142 = vpack.c.b16 %v126, %v118
  %v143 = vpack.c.b16 %v127, %v119
  %vm160 = vcmask 261120
  %v162 = vsel %vm160, %v79, 0
  %164 = vmatprep.subr.bf16.mxu0 %v129
  %165 = vmatpush1.bf16.msra.mxu0 %v128
  %166 = vmatprep.subr.bf16.mxu0 %v137
  %167 = vmatpush1.bf16.msra.mxu0 %v136
  %168 = vmatprep.subr.bf16.mxu0 0
  %169 = vmatpush1.bf16.msra.mxu0 0
  %170 = vmatprep.subr.bf16.mxu0 0
  %171 = vmatpush1.bf16.msra.mxu0 0
  %172 = vmatprep.subr.bf16.mxu0 0
  %173 = vmatpush1.bf16.msra.mxu0 0
  %174 = vmatprep.subr.bf16.mxu0 0
  %175 = vmatpush1.bf16.msra.mxu0 0
  %176 = vmatprep.subr.bf16.mxu0 0
  %177 = vmatpush1.bf16.msra.mxu0 0
  %178 = vmatprep.subr.bf16.mxu0 0
  %179 = vmatpush1.bf16.msra.mxu0 0
  %180 = vmatprep.subr.bf16.mxu0 0
  %181 = vmatpush1.bf16.msra.mxu0 0
  %182 = vmatprep.subr.bf16.mxu0 0
  %183 = vmatpush1.bf16.msra.mxu0 0
  %184 = vmatprep.subr.bf16.mxu0 0
  %185 = vmatpush1.bf16.msra.mxu0 0
  %186 = vmatprep.subr.bf16.mxu0 0
  %187 = vmatpush1.bf16.msra.mxu0 0
  %188 = vmatprep.subr.bf16.mxu0 0
  %189 = vmatpush1.bf16.msra.mxu0 0
  %190 = vmatprep.subr.bf16.mxu0 0
  %191 = vmatpush1.bf16.msra.mxu0 0
  %192 = vmatprep.subr.bf16.mxu0 0
  %193 = vmatpush1.bf16.msra.mxu0 0
  %194 = vmatprep.subr.bf16.mxu0 0
  %195 = vmatpush1.bf16.msra.mxu0 0
  %196 = vmatprep.mubr.bf16.mxu0 0
  %197 = vmatmul.mubr.bf16.gmra.mrb[0].mxu0 %v162
  %v198 = vpop.f32.mrb[0].mxu0
  %v199 = vadd.f32 %v38, %v198
  %v200 = vpop.f32.mrb[0].mxu0
  %v201 = vadd.f32 %v42, %v200
  %v202 = vpop.f32.mrb[0].mxu0
  %v203 = vadd.f32 %v38, %v202
  %v204 = vpop.f32.mrb[0].mxu0
  %v205 = vadd.f32 %v42, %v204
  %206 = vdwg.mxu0
  %207 = vmatprep.subr.bf16.mxu0 %v131
  %208 = vmatpush1.bf16.msra.mxu0 %v130
  %209 = vmatprep.subr.bf16.mxu0 %v139
  %210 = vmatpush1.bf16.msra.mxu0 %v138
  %211 = vmatprep.subr.bf16.mxu0 0
  %212 = vmatpush1.bf16.msra.mxu0 0
  %213 = vmatprep.subr.bf16.mxu0 0
  %214 = vmatpush1.bf16.msra.mxu0 0
  %215 = vmatprep.subr.bf16.mxu0 0
  %216 = vmatpush1.bf16.msra.mxu0 0
  %217 = vmatprep.subr.bf16.mxu0 0
  %218 = vmatpush1.bf16.msra.mxu0 0
  %219 = vmatprep.subr.bf16.mxu0 0
  %220 = vmatpush1.bf16.msra.mxu0 0
  %221 = vmatprep.subr.bf16.mxu0 0
  %222 = vmatpush1.bf16.msra.mxu0 0
  %223 = vmatprep.subr.bf16.mxu0 0
  %224 = vmatpush1.bf16.msra.mxu0 0
  %225 = vmatprep.subr.bf16.mxu0 0
  %226 = vmatpush1.bf16.msra.mxu0 0
  %227 = vmatprep.subr.bf16.mxu0 0
  %228 = vmatpush1.bf16.msra.mxu0 0
  %229 = vmatprep.subr.bf16.mxu0 0
  %230 = vmatpush1.bf16.msra.mxu0 0
  %231 = vmatprep.subr.bf16.mxu0 0
  %232 = vmatpush1.bf16.msra.mxu0 0
  %233 = vmatprep.subr.bf16.mxu0 0
  %234 = vmatpush1.bf16.msra.mxu0 0
  %235 = vmatprep.subr.bf16.mxu0 0
  %236 = vmatpush1.bf16.msra.mxu0 0
  %237 = vmatprep.subr.bf16.mxu0 0
  %238 = vmatpush1.bf16.msra.mxu0 0
  %239 = vmatprep.mubr.bf16.mxu0 0
  %240 = vmatmul.mubr.bf16.gmra.mrb[0].mxu0 %v162
  %v241 = vpop.f32.mrb[0].mxu0
  %v242 = vadd.f32 %v46, %v241
  %v243 = vpop.f32.mrb[0].mxu0
  %v244 = vadd.f32 %v50, %v243
  %v245 = vpop.f32.mrb[0].mxu0
  %v246 = vadd.f32 %v46, %v245
  %v247 = vpop.f32.mrb[0].mxu0
  %v248 = vadd.f32 %v50, %v247
  %249 = vdwg.mxu0
  %250 = vmatprep.subr.bf16.mxu0 %v133
  %251 = vmatpush1.bf16.msra.mxu0 %v132
  %252 = vmatprep.subr.bf16.mxu0 %v141
  %253 = vmatpush1.bf16.msra.mxu0 %v140
  %254 = vmatprep.subr.bf16.mxu0 0
  %255 = vmatpush1.bf16.msra.mxu0 0
  %256 = vmatprep.subr.bf16.mxu0 0
  %257 = vmatpush1.bf16.msra.mxu0 0
  %258 = vmatprep.subr.bf16.mxu0 0
  %259 = vmatpush1.bf16.msra.mxu0 0
  %260 = vmatprep.subr.bf16.mxu0 0
  %261 = vmatpush1.bf16.msra.mxu0 0
  %262 = vmatprep.subr.bf16.mxu0 0
  %263 = vmatpush1.bf16.msra.mxu0 0
  %264 = vmatprep.subr.bf16.mxu0 0
  %265 = vmatpush1.bf16.msra.mxu0 0
  %266 = vmatprep.subr.bf16.mxu0 0
  %267 = vmatpush1.bf16.msra.mxu0 0
  %268 = vmatprep.subr.bf16.mxu0 0
  %269 = vmatpush1.bf16.msra.mxu0 0
  %270 = vmatprep.subr.bf16.mxu0 0
  %271 = vmatpush1.bf16.msra.mxu0 0
  %272 = vmatprep.subr.bf16.mxu0 0
  %273 = vmatpush1.bf16.msra.mxu0 0
  %274 = vmatprep.subr.bf16.mxu0 0
  %275 = vmatpush1.bf16.msra.mxu0 0
  %276 = vmatprep.subr.bf16.mxu0 0
  %277 = vmatpush1.bf16.msra.mxu0 0
  %278 = vmatprep.subr.bf16.mxu0 0
  %279 = vmatpush1.bf16.msra.mxu0 0
  %280 = vmatprep.subr.bf16.mxu0 0
  %281 = vmatpush1.bf16.msra.mxu0 0
  %282 = vmatprep.mubr.bf16.mxu0 0
  %283 = vmatmul.mubr.bf16.gmra.mrb[0].mxu0 %v162
  %v284 = vpop.f32.mrb[0].mxu0
  %v285 = vadd.f32 %v54, %v284
  %v286 = vpop.f32.mrb[0].mxu0
  %v287 = vadd.f32 %v58, %v286
  %v288 = vpop.f32.mrb[0].mxu0
  %v289 = vadd.f32 %v54, %v288
  %v290 = vpop.f32.mrb[0].mxu0
  %v291 = vadd.f32 %v58, %v290
  %292 = vdwg.mxu0
  %293 = vmatprep.subr.bf16.mxu0 %v135
  %294 = vmatpush1.bf16.msra.mxu0 %v134
  %295 = vmatprep.subr.bf16.mxu0 %v143
  %296 = vmatpush1.bf16.msra.mxu0 %v142
  %297 = vmatprep.subr.bf16.mxu0 0
  %298 = vmatpush1.bf16.msra.mxu0 0
  %299 = vmatprep.subr.bf16.mxu0 0
  %300 = vmatpush1.bf16.msra.mxu0 0
  %301 = vmatprep.subr.bf16.mxu0 0
  %302 = vmatpush1.bf16.msra.mxu0 0
  %303 = vmatprep.subr.bf16.mxu0 0
  %304 = vmatpush1.bf16.msra.mxu0 0
  %305 = vmatprep.subr.bf16.mxu0 0
  %306 = vmatpush1.bf16.msra.mxu0 0
  %307 = vmatprep.subr.bf16.mxu0 0
  %308 = vmatpush1.bf16.msra.mxu0 0
  %309 = vmatprep.subr.bf16.mxu0 0
  %310 = vmatpush1.bf16.msra.mxu0 0
  %311 = vmatprep.subr.bf16.mxu0 0
  %312 = vmatpush1.bf16.msra.mxu0 0
  %313 = vmatprep.subr.bf16.mxu0 0
  %314 = vmatpush1.bf16.msra.mxu0 0
  %315 = vmatprep.subr.bf16.mxu0 0
  %316 = vmatpush1.bf16.msra.mxu0 0
  %317 = vmatprep.subr.bf16.mxu0 0
  %318 = vmatpush1.bf16.msra.mxu0 0
  %319 = vmatprep.subr.bf16.mxu0 0
  %320 = vmatpush1.bf16.msra.mxu0 0
  %321 = vmatprep.subr.bf16.mxu0 0
  %322 = vmatpush1.bf16.msra.mxu0 0
  %323 = vmatprep.subr.bf16.mxu0 0
  %324 = vmatpush1.bf16.msra.mxu0 0
  %325 = vmatprep.mubr.bf16.mxu0 0
  %326 = vmatmul.mubr.bf16.gmra.mrb[0].mxu0 %v162
  %v327 = vpop.f32.mrb[0].mxu0
  %v328 = vadd.f32 %v62, %v327
  %v329 = vpop.f32.mrb[0].mxu0
  %v330 = vadd.f32 %v66, %v329
  %v331 = vpop.f32.mrb[0].mxu0
  %v332 = vadd.f32 %v62, %v331
  %v333 = vpop.f32.mrb[0].mxu0
  %v334 = vadd.f32 %v66, %v333
  %335 = vdwg.mxu0
  %v336 = vpack.c.bf16 %v203, %v199
  %v337 = vpack.c.bf16 %v205, %v201
  %v338 = vpack.c.bf16 %v246, %v242
  %v339 = vpack.c.bf16 %v248, %v244
  %v340 = vpack.c.bf16 %v289, %v285
  %v341 = vpack.c.bf16 %v291, %v287
  %v342 = vpack.c.bf16 %v332, %v328
  %v343 = vpack.c.bf16 %v334, %v330
  %v352 = vunpack.c.l.b16 %v336
  %v353 = vunpack.c.l.b16 %v337
  %v354 = vunpack.c.l.b16 %v338
  %v355 = vunpack.c.l.b16 %v339
  %v356 = vunpack.c.l.b16 %v340
  %v357 = vunpack.c.l.b16 %v341
  %v358 = vunpack.c.l.b16 %v342
  %v359 = vunpack.c.l.b16 %v343
  %v360 = vunpack.c.h.b16 %v336
  %v361 = vunpack.c.h.b16 %v337
  %v362 = vunpack.c.h.b16 %v338
  %v363 = vunpack.c.h.b16 %v339
  %v364 = vunpack.c.h.b16 %v340
  %v365 = vunpack.c.h.b16 %v341
  %v366 = vunpack.c.h.b16 %v342
  %v367 = vunpack.c.h.b16 %v343
  %v368 = vpack.c.b16 %v353, %v352
  %v369 = vpack.c.b16 %v355, %v354
  %v370 = vpack.c.b16 %v357, %v356
  %v371 = vpack.c.b16 %v359, %v358
  %v372 = vpack.c.b16 %v361, %v360
  %v373 = vpack.c.b16 %v363, %v362
  %v374 = vpack.c.b16 %v365, %v364
  %v375 = vpack.c.b16 %v367, %v366
  %384 = vst [vmem:[%s3] sm:$0xff] %v368
  %385 = vst [vmem:[%s3 + $0x8] sm:$0xff] %v369
  %386 = vst [vmem:[%s3 + $0x10] sm:$0xff] %v370
  %387 = vst [vmem:[%s3 + $0x18] sm:$0xff] %v371
  %388 = vst [vmem:[%s3 + $0x20] sm:$0xff] %v372
  %389 = vst [vmem:[%s3 + $0x28] sm:$0xff] %v373
  %390 = vst [vmem:[%s3 + $0x30] sm:$0xff] %v374
  %391 = vst [vmem:[%s3 + $0x38] sm:$0xff] %v375
  // Predicated region
  $region14: #{rnn_forward.4} parent=0 // pred_check
    _
  $region15: #{rnn_forward.4} parent=0 // pred_check_branch
    %393 = sbr.rel (0) target = $region17
  $region16: #{rnn_forward.4} parent=0 // pred_region
    _
  $region17: #{rnn_forward.4} parent=0 // pred_fallthru
    _
  // Predicated region
  $region18: #{rnn_forward.4} parent=0 // pred_check
    _
  $region19: #{rnn_forward.4} parent=0 // pred_check_branch
    %395 = sbr.rel (0) target = $region21
  $region20: #{rnn_forward.4} parent=0 // pred_region
    _
  $region21: #{rnn_forward.4} parent=0 // pred_fallthru
    _

// kernel: rnn_forward.6
$region0: #{rnn_forward.6}
  #allocation0 [shape = 'u32[]', space=smem, size = 0x4, offset = 0x4, fixed_abs, tag = 'smem constant byte address 0x4 - core index']
  #allocation1 [shape = 'u32[144,128]{1,0:T(1,128)}', space=vmem, size = 0x12000, scoped, tag = 'internal scratch']
  %s0 = inlined_call_operand.vmem [shape: bf16[16,128], index: 0, kind: input, shape index: {}]
  %s1 = inlined_call_operand.vmem [shape: bf16[16,128], index: 1, kind: input, shape index: {}]
  %s2 = inlined_call_operand.vmem [shape: bf16[128,1024], index: 2, kind: input, shape index: {}]
  %s3 = inlined_call_operand.vmem [shape: bf16[128,1024], index: 3, kind: input, shape index: {}]
  %s4 = inlined_call_operand.vmem [shape: f32[1,1024], index: 4, kind: input, shape index: {}]
  %s5 = inlined_call_operand.vmem [shape: bf16[16,1024], index: 5, kind: output, shape index: {}]
  %s6 = sld [smem:[#allocation0]]
  $region30: #{rnn_forward.6} parent=0
    _
  %s8 = ssub.s32 1, %s6
  %s9 = scalar_select 0, %s8, %s6
  // Predicated region
  $region2: #{rnn_forward.6} parent=0 // pred_check
    _
  $region3: #{rnn_forward.6} parent=0 // pred_check_branch
    %11 = sbr.rel (0) target = $region5
  $region4: #{rnn_forward.6} parent=0 // pred_region
    _
  $region5: #{rnn_forward.6} parent=0 // pred_fallthru
    _
  // Predicated region
  $region6: #{rnn_forward.6} parent=0 // pred_check
    _
  $region7: #{rnn_forward.6} parent=0 // pred_check_branch
    %13 = sbr.rel (0) target = $region9
  $region8: #{rnn_forward.6} parent=0 // pred_region
    _
  $region9: #{rnn_forward.6} parent=0 // pred_fallthru
    _
  // Predicated region
  $region10: #{rnn_forward.6} parent=0 // pred_check
    _
  $region11: #{rnn_forward.6} parent=0 // pred_check_branch
    %15 = sbr.rel (0) target = $region13
  $region12: #{rnn_forward.6} parent=0 // pred_region
    _
  $region13: #{rnn_forward.6} parent=0 // pred_fallthru
    _
  // Predicated region
  $region14: #{rnn_forward.6} parent=0 // pred_check
    _
  $region15: #{rnn_forward.6} parent=0 // pred_check_branch
    %17 = sbr.rel (0) target = $region17
  $region16: #{rnn_forward.6} parent=0 // pred_region
    _
  $region17: #{rnn_forward.6} parent=0 // pred_fallthru
    _
  // Predicated region
  $region18: #{rnn_forward.6} parent=0 // pred_check
    _
  $region19: #{rnn_forward.6} parent=0 // pred_check_branch
    %19 = sbr.rel (0) target = $region21
  $region20: #{rnn_forward.6} parent=0 // pred_region
    _
  $region21: #{rnn_forward.6} parent=0 // pred_fallthru
    _
  %v21 = vld [vmem:[%s0] sm:$0xf]
  %v22 = vld [vmem:[%s0 + $0x4] sm:$0xf]
  %v23 = vld [vmem:[%s2] sm:$0xff]
  %v24 = vld [vmem:[%s2 + $0x8] sm:$0xff]
  %v25 = vld [vmem:[%s2 + $0x10] sm:$0xff]
  %v26 = vld [vmem:[%s2 + $0x18] sm:$0xff]
  %v27 = vld [vmem:[%s2 + $0x20] sm:$0xff]
  %v28 = vld [vmem:[%s2 + $0x28] sm:$0xff]
  %v29 = vld [vmem:[%s2 + $0x30] sm:$0xff]
  %v30 = vld [vmem:[%s2 + $0x38] sm:$0xff]
  %v31 = vld [vmem:[%s2 + $0x40] sm:$0xff]
  %v32 = vld [vmem:[%s2 + $0x48] sm:$0xff]
  %v33 = vld [vmem:[%s2 + $0x50] sm:$0xff]
  %v34 = vld [vmem:[%s2 + $0x58] sm:$0xff]
  %v35 = vld [vmem:[%s2 + $0x60] sm:$0xff]
  %v36 = vld [vmem:[%s2 + $0x68] sm:$0xff]
  %v37 = vld [vmem:[%s2 + $0x70] sm:$0xff]
  %v38 = vld [vmem:[%s2 + $0x78] sm:$0xff]
  %v39 = vld [vmem:[%s2 + $0x80] sm:$0xff]
  %v40 = vld [vmem:[%s2 + $0x88] sm:$0xff]
  %v41 = vld [vmem:[%s2 + $0x90] sm:$0xff]
  %v42 = vld [vmem:[%s2 + $0x98] sm:$0xff]
  %v43 = vld [vmem:[%s2 + $0xa0] sm:$0xff]
  %v44 = vld [vmem:[%s2 + $0xa8] sm:$0xff]
  %v45 = vld [vmem:[%s2 + $0xb0] sm:$0xff]
  %v46 = vld [vmem:[%s2 + $0xb8] sm:$0xff]
  %v47 = vld [vmem:[%s2 + $0xc0] sm:$0xff]
  %v48 = vld [vmem:[%s2 + $0xc8] sm:$0xff]
  %v49 = vld [vmem:[%s2 + $0xd0] sm:$0xff]
  %v50 = vld [vmem:[%s2 + $0xd8] sm:$0xff]
  %v51 = vld [vmem:[%s2 + $0xe0] sm:$0xff]
  %v52 = vld [vmem:[%s2 + $0xe8] sm:$0xff]
  %v53 = vld [vmem:[%s2 + $0xf0] sm:$0xff]
  %v54 = vld [vmem:[%s2 + $0xf8] sm:$0xff]
  %v55 = vld [vmem:[%s2 + $0x100] sm:$0xff]
  %v56 = vld [vmem:[%s2 + $0x108] sm:$0xff]
  %v57 = vld [vmem:[%s2 + $0x110] sm:$0xff]
  %v58 = vld [vmem:[%s2 + $0x118] sm:$0xff]
  %v59 = vld [vmem:[%s2 + $0x120] sm:$0xff]
  %v60 = vld [vmem:[%s2 + $0x128] sm:$0xff]
  %v61 = vld [vmem:[%s2 + $0x130] sm:$0xff]
  %v62 = vld [vmem:[%s2 + $0x138] sm:$0xff]
  %v63 = vld [vmem:[%s2 + $0x140] sm:$0xff]
  %v64 = vld [vmem:[%s2 + $0x148] sm:$0xff]
  %v65 = vld [vmem:[%s2 + $0x150] sm:$0xff]
  %v66 = vld [vmem:[%s2 + $0x158] sm:$0xff]
  %v67 = vld [vmem:[%s2 + $0x160] sm:$0xff]
  %v68 = vld [vmem:[%s2 + $0x168] sm:$0xff]
  %v69 = vld [vmem:[%s2 + $0x170] sm:$0xff]
  %v70 = vld [vmem:[%s2 + $0x178] sm:$0xff]
  %v71 = vld [vmem:[%s2 + $0x180] sm:$0xff]
  %v72 = vld [vmem:[%s2 + $0x188] sm:$0xff]
  %v73 = vld [vmem:[%s2 + $0x190] sm:$0xff]
  %v74 = vld [vmem:[%s2 + $0x198] sm:$0xff]
  %v75 = vld [vmem:[%s2 + $0x1a0] sm:$0xff]
  %v76 = vld [vmem:[%s2 + $0x1a8] sm:$0xff]
  %v77 = vld [vmem:[%s2 + $0x1b0] sm:$0xff]
  %v78 = vld [vmem:[%s2 + $0x1b8] sm:$0xff]
  %v79 = vld [vmem:[%s2 + $0x1c0] sm:$0xff]
  %v80 = vld [vmem:[%s2 + $0x1c8] sm:$0xff]
  %v81 = vld [vmem:[%s2 + $0x1d0] sm:$0xff]
  %v82 = vld [vmem:[%s2 + $0x1d8] sm:$0xff]
  %v83 = vld [vmem:[%s2 + $0x1e0] sm:$0xff]
  %v84 = vld [vmem:[%s2 + $0x1e8] sm:$0xff]
  %v85 = vld [vmem:[%s2 + $0x1f0] sm:$0xff]
  %v86 = vld [vmem:[%s2 + $0x1f8] sm:$0xff]
  %v87 = vld [vmem:[%s1] sm:$0xf]
  %v88 = vld [vmem:[%s1 + $0x4] sm:$0xf]
  %v89 = vld [vmem:[%s3] sm:$0xff]
  %v90 = vld [vmem:[%s3 + $0x8] sm:$0xff]
  %v91 = vld [vmem:[%s3 + $0x10] sm:$0xff]
  %v92 = vld [vmem:[%s3 + $0x18] sm:$0xff]
  %v93 = vld [vmem:[%s3 + $0x20] sm:$0xff]
  %v94 = vld [vmem:[%s3 + $0x28] sm:$0xff]
  %v95 = vld [vmem:[%s3 + $0x30] sm:$0xff]
  %v96 = vld [vmem:[%s3 + $0x38] sm:$0xff]
  %v97 = vld [vmem:[%s3 + $0x40] sm:$0xff]
  %v98 = vld [vmem:[%s3 + $0x48] sm:$0xff]
  %v99 = vld [vmem:[%s3 + $0x50] sm:$0xff]
  %v100 = vld [vmem:[%s3 + $0x58] sm:$0xff]
  %v101 = vld [vmem:[%s3 + $0x60] sm:$0xff]
  %v102 = vld [vmem:[%s3 + $0x68] sm:$0xff]
  %v103 = vld [vmem:[%s3 + $0x70] sm:$0xff]
  %v104 = vld [vmem:[%s3 + $0x78] sm:$0xff]
  %v105 = vld [vmem:[%s3 + $0x80] sm:$0xff]
  %v106 = vld [vmem:[%s3 + $0x88] sm:$0xff]
  %v107 = vld [vmem:[%s3 + $0x90] sm:$0xff]
  %v108 = vld [vmem:[%s3 + $0x98] sm:$0xff]
  %v109 = vld [vmem:[%s3 + $0xa0] sm:$0xff]
  %v110 = vld [vmem:[%s3 + $0xa8] sm:$0xff]
  %v111 = vld [vmem:[%s3 + $0xb0] sm:$0xff]
  %v112 = vld [vmem:[%s3 + $0xb8] sm:$0xff]
  %v113 = vld [vmem:[%s3 + $0xc0] sm:$0xff]
  %v114 = vld [vmem:[%s3 + $0xc8] sm:$0xff]
  %v115 = vld [vmem:[%s3 + $0xd0] sm:$0xff]
  %v116 = vld [vmem:[%s3 + $0xd8] sm:$0xff]
  %v117 = vld [vmem:[%s3 + $0xe0] sm:$0xff]
  %v118 = vld [vmem:[%s3 + $0xe8] sm:$0xff]
  %v119 = vld [vmem:[%s3 + $0xf0] sm:$0xff]
  %v120 = vld [vmem:[%s3 + $0xf8] sm:$0xff]
  %v121 = vld [vmem:[%s3 + $0x100] sm:$0xff]
  %v122 = vld [vmem:[%s3 + $0x108] sm:$0xff]
  %v123 = vld [vmem:[%s3 + $0x110] sm:$0xff]
  %v124 = vld [vmem:[%s3 + $0x118] sm:$0xff]
  %v125 = vld [vmem:[%s3 + $0x120] sm:$0xff]
  %v126 = vld [vmem:[%s3 + $0x128] sm:$0xff]
  %v127 = vld [vmem:[%s3 + $0x130] sm:$0xff]
  %v128 = vld [vmem:[%s3 + $0x138] sm:$0xff]
  %v129 = vld [vmem:[%s3 + $0x140] sm:$0xff]
  %v130 = vld [vmem:[%s3 + $0x148] sm:$0xff]
  %v131 = vld [vmem:[%s3 + $0x150] sm:$0xff]
  %v132 = vld [vmem:[%s3 + $0x158] sm:$0xff]
  %v133 = vld [vmem:[%s3 + $0x160] sm:$0xff]
  %v134 = vld [vmem:[%s3 + $0x168] sm:$0xff]
  %v135 = vld [vmem:[%s3 + $0x170] sm:$0xff]
  %v136 = vld [vmem:[%s3 + $0x178] sm:$0xff]
  %v137 = vld [vmem:[%s3 + $0x180] sm:$0xff]
  %v138 = vld [vmem:[%s3 + $0x188] sm:$0xff]
  %v139 = vld [vmem:[%s3 + $0x190] sm:$0xff]
  %v140 = vld [vmem:[%s3 + $0x198] sm:$0xff]
  %v141 = vld [vmem:[%s3 + $0x1a0] sm:$0xff]
  %v142 = vld [vmem:[%s3 + $0x1a8] sm:$0xff]
  %v143 = vld [vmem:[%s3 + $0x1b0] sm:$0xff]
  %v144 = vld [vmem:[%s3 + $0x1b8] sm:$0xff]
  %v145 = vld [vmem:[%s3 + $0x1c0] sm:$0xff]
  %v146 = vld [vmem:[%s3 + $0x1c8] sm:$0xff]
  %v147 = vld [vmem:[%s3 + $0x1d0] sm:$0xff]
  %v148 = vld [vmem:[%s3 + $0x1d8] sm:$0xff]
  %v149 = vld [vmem:[%s3 + $0x1e0] sm:$0xff]
  %v150 = vld [vmem:[%s3 + $0x1e8] sm:$0xff]
  %v151 = vld [vmem:[%s3 + $0x1f0] sm:$0xff]
  %v152 = vld [vmem:[%s3 + $0x1f8] sm:$0xff]
  %v155 = vunpack.c.l.b16 %v87
  %v156 = vunpack.c.l.b16 %v88
  %v157 = vpack.c.b16 %v156, %v155
  %v223 = vunpack.c.l.b16 %v89
  %v224 = vunpack.c.h.b16 %v89
  %v225 = vunpack.c.l.b16 %v90
  %v226 = vunpack.c.h.b16 %v90
  %v227 = vunpack.c.l.b16 %v91
  %v228 = vunpack.c.h.b16 %v91
  %v229 = vunpack.c.l.b16 %v92
  %v230 = vunpack.c.h.b16 %v92
  %v231 = vunpack.c.l.b16 %v93
  %v232 = vunpack.c.h.b16 %v93
  %v233 = vunpack.c.l.b16 %v94
  %v234 = vunpack.c.h.b16 %v94
  %v235 = vunpack.c.l.b16 %v95
  %v236 = vunpack.c.h.b16 %v95
  %v237 = vunpack.c.l.b16 %v96
  %v238 = vunpack.c.h.b16 %v96
  %v239 = vunpack.c.l.b16 %v97
  %v240 = vunpack.c.h.b16 %v97
  %v241 = vunpack.c.l.b16 %v98
  %v242 = vunpack.c.h.b16 %v98
  %v243 = vunpack.c.l.b16 %v99
  %v244 = vunpack.c.h.b16 %v99
  %v245 = vunpack.c.l.b16 %v100
  %v246 = vunpack.c.h.b16 %v100
  %v247 = vunpack.c.l.b16 %v101
  %v248 = vunpack.c.h.b16 %v101
  %v249 = vunpack.c.l.b16 %v102
  %v250 = vunpack.c.h.b16 %v102
  %v251 = vunpack.c.l.b16 %v103
  %v252 = vunpack.c.h.b16 %v103
  %v253 = vunpack.c.l.b16 %v104
  %v254 = vunpack.c.h.b16 %v104
  %v255 = vunpack.c.l.b16 %v105
  %v256 = vunpack.c.h.b16 %v105
  %v257 = vunpack.c.l.b16 %v106
  %v258 = vunpack.c.h.b16 %v106
  %v259 = vunpack.c.l.b16 %v107
  %v260 = vunpack.c.h.b16 %v107
  %v261 = vunpack.c.l.b16 %v108
  %v262 = vunpack.c.h.b16 %v108
  %v263 = vunpack.c.l.b16 %v109
  %v264 = vunpack.c.h.b16 %v109
  %v265 = vunpack.c.l.b16 %v110
  %v266 = vunpack.c.h.b16 %v110
  %v267 = vunpack.c.l.b16 %v111
  %v268 = vunpack.c.h.b16 %v111
  %v269 = vunpack.c.l.b16 %v112
  %v270 = vunpack.c.h.b16 %v112
  %v271 = vunpack.c.l.b16 %v113
  %v272 = vunpack.c.h.b16 %v113
  %v273 = vunpack.c.l.b16 %v114
  %v274 = vunpack.c.h.b16 %v114
  %v275 = vunpack.c.l.b16 %v115
  %v276 = vunpack.c.h.b16 %v115
  %v277 = vunpack.c.l.b16 %v116
  %v278 = vunpack.c.h.b16 %v116
  %v279 = vunpack.c.l.b16 %v117
  %v280 = vunpack.c.h.b16 %v117
  %v281 = vunpack.c.l.b16 %v118
  %v282 = vunpack.c.h.b16 %v118
  %v283 = vunpack.c.l.b16 %v119
  %v284 = vunpack.c.h.b16 %v119
  %v285 = vunpack.c.l.b16 %v120
  %v286 = vunpack.c.h.b16 %v120
  %v287 = vunpack.c.l.b16 %v121
  %v288 = vunpack.c.h.b16 %v121
  %v289 = vunpack.c.l.b16 %v122
  %v290 = vunpack.c.h.b16 %v122
  %v291 = vunpack.c.l.b16 %v123
  %v292 = vunpack.c.h.b16 %v123
  %v293 = vunpack.c.l.b16 %v124
  %v294 = vunpack.c.h.b16 %v124
  %v295 = vunpack.c.l.b16 %v125
  %v296 = vunpack.c.h.b16 %v125
  %v297 = vunpack.c.l.b16 %v126
  %v298 = vunpack.c.h.b16 %v126
  %v299 = vunpack.c.l.b16 %v127
  %v300 = vunpack.c.h.b16 %v127
  %v301 = vunpack.c.l.b16 %v128
  %v302 = vunpack.c.h.b16 %v128
  %v303 = vunpack.c.l.b16 %v129
  %v304 = vunpack.c.h.b16 %v129
  %v305 = vunpack.c.l.b16 %v130
  %v306 = vunpack.c.h.b16 %v130
  %v307 = vunpack.c.l.b16 %v131
  %v308 = vunpack.c.h.b16 %v131
  %v309 = vunpack.c.l.b16 %v132
  %v310 = vunpack.c.h.b16 %v132
  %v311 = vunpack.c.l.b16 %v133
  %v312 = vunpack.c.h.b16 %v133
  %v313 = vunpack.c.l.b16 %v134
  %v314 = vunpack.c.h.b16 %v134
  %v315 = vunpack.c.l.b16 %v135
  %v316 = vunpack.c.h.b16 %v135
  %v317 = vunpack.c.l.b16 %v136
  %v318 = vunpack.c.h.b16 %v136
  %v319 = vunpack.c.l.b16 %v137
  %v320 = vunpack.c.h.b16 %v137
  %v321 = vunpack.c.l.b16 %v138
  %v322 = vunpack.c.h.b16 %v138
  %v323 = vunpack.c.l.b16 %v139
  %v324 = vunpack.c.h.b16 %v139
  %v325 = vunpack.c.l.b16 %v140
  %v326 = vunpack.c.h.b16 %v140
  %v327 = vunpack.c.l.b16 %v141
  %v328 = vunpack.c.h.b16 %v141
  %v329 = vunpack.c.l.b16 %v142
  %v330 = vunpack.c.h.b16 %v142
  %v331 = vunpack.c.l.b16 %v143
  %v332 = vunpack.c.h.b16 %v143
  %v333 = vunpack.c.l.b16 %v144
  %v334 = vunpack.c.h.b16 %v144
  %v335 = vunpack.c.l.b16 %v145
  %v336 = vunpack.c.h.b16 %v145
  %v337 = vunpack.c.l.b16 %v146
  %v338 = vunpack.c.h.b16 %v146
  %v339 = vunpack.c.l.b16 %v147
  %v340 = vunpack.c.h.b16 %v147
  %v341 = vunpack.c.l.b16 %v148
  %v342 = vunpack.c.h.b16 %v148
  %v343 = vunpack.c.l.b16 %v149
  %v344 = vunpack.c.h.b16 %v149
  %v345 = vunpack.c.l.b16 %v150
  %v346 = vunpack.c.h.b16 %v150
  %v347 = vunpack.c.l.b16 %v151
  %v348 = vunpack.c.h.b16 %v151
  %v349 = vunpack.c.l.b16 %v152
  %v350 = vunpack.c.h.b16 %v152
  %v351 = vpack.c.b16 %v231, %v223
  %v352 = vpack.c.b16 %v232, %v224
  %v353 = vpack.c.b16 %v233, %v225
  %v354 = vpack.c.b16 %v234, %v226
  %v355 = vpack.c.b16 %v235, %v227
  %v356 = vpack.c.b16 %v236, %v228
  %v357 = vpack.c.b16 %v237, %v229
  %v358 = vpack.c.b16 %v238, %v230
  %v359 = vpack.c.b16 %v247, %v239
  %v360 = vpack.c.b16 %v248, %v240
  %v361 = vpack.c.b16 %v249, %v241
  %v362 = vpack.c.b16 %v250, %v242
  %v363 = vpack.c.b16 %v251, %v243
  %v364 = vpack.c.b16 %v252, %v244
  %v365 = vpack.c.b16 %v253, %v245
  %v366 = vpack.c.b16 %v254, %v246
  %v367 = vpack.c.b16 %v263, %v255
  %v368 = vpack.c.b16 %v264, %v256
  %v369 = vpack.c.b16 %v265, %v257
  %v370 = vpack.c.b16 %v266, %v258
  %v371 = vpack.c.b16 %v267, %v259
  %v372 = vpack.c.b16 %v268, %v260
  %v373 = vpack.c.b16 %v269, %v261
  %v374 = vpack.c.b16 %v270, %v262
  %v375 = vpack.c.b16 %v279, %v271
  %v376 = vpack.c.b16 %v280, %v272
  %v377 = vpack.c.b16 %v281, %v273
  %v378 = vpack.c.b16 %v282, %v274
  %v379 = vpack.c.b16 %v283, %v275
  %v380 = vpack.c.b16 %v284, %v276
  %v381 = vpack.c.b16 %v285, %v277
  %v382 = vpack.c.b16 %v286, %v278
  %v383 = vpack.c.b16 %v295, %v287
  %v384 = vpack.c.b16 %v296, %v288
  %v385 = vpack.c.b16 %v297, %v289
  %v386 = vpack.c.b16 %v298, %v290
  %v387 = vpack.c.b16 %v299, %v291
  %v388 = vpack.c.b16 %v300, %v292
  %v389 = vpack.c.b16 %v301, %v293
  %v390 = vpack.c.b16 %v302, %v294
  %v391 = vpack.c.b16 %v311, %v303
  %v392 = vpack.c.b16 %v312, %v304
  %v393 = vpack.c.b16 %v313, %v305
  %v394 = vpack.c.b16 %v314, %v306
  %v395 = vpack.c.b16 %v315, %v307
  %v396 = vpack.c.b16 %v316, %v308
  %v397 = vpack.c.b16 %v317, %v309
  %v398 = vpack.c.b16 %v318, %v310
  %v399 = vpack.c.b16 %v327, %v319
  %v400 = vpack.c.b16 %v328, %v320
  %v401 = vpack.c.b16 %v329, %v321
  %v402 = vpack.c.b16 %v330, %v322
  %v403 = vpack.c.b16 %v331, %v323
  %v404 = vpack.c.b16 %v332, %v324
  %v405 = vpack.c.b16 %v333, %v325
  %v406 = vpack.c.b16 %v334, %v326
  %v407 = vpack.c.b16 %v343, %v335
  %v408 = vpack.c.b16 %v344, %v336
  %v409 = vpack.c.b16 %v345, %v337
  %v410 = vpack.c.b16 %v346, %v338
  %v411 = vpack.c.b16 %v347, %v339
  %v412 = vpack.c.b16 %v348, %v340
  %v413 = vpack.c.b16 %v349, %v341
  %v414 = vpack.c.b16 %v350, %v342
  %479 = vmatprep.subr.bf16.mxu0 %v352
  %480 = vmatpush1.bf16.msra.mxu0 %v351
  %481 = vmatprep.subr.bf16.mxu0 %v360
  %482 = vmatpush1.bf16.msra.mxu0 %v359
  %483 = vmatprep.subr.bf16.mxu0 %v368
  %484 = vmatpush1.bf16.msra.mxu0 %v367
  %485 = vmatprep.subr.bf16.mxu0 %v376
  %486 = vmatpush1.bf16.msra.mxu0 %v375
  %487 = vmatprep.subr.bf16.mxu0 %v384
  %488 = vmatpush1.bf16.msra.mxu0 %v383
  %489 = vmatprep.subr.bf16.mxu0 %v392
  %490 = vmatpush1.bf16.msra.mxu0 %v391
  %491 = vmatprep.subr.bf16.mxu0 %v400
  %492 = vmatpush1.bf16.msra.mxu0 %v399
  %493 = vmatprep.subr.bf16.mxu0 %v408
  %494 = vmatpush1.bf16.msra.mxu0 %v407
  %495 = vmatprep.subr.bf16.mxu0 0
  %496 = vmatpush1.bf16.msra.mxu0 0
  %497 = vmatprep.subr.bf16.mxu0 0
  %498 = vmatpush1.bf16.msra.mxu0 0
  %499 = vmatprep.subr.bf16.mxu0 0
  %500 = vmatpush1.bf16.msra.mxu0 0
  %501 = vmatprep.subr.bf16.mxu0 0
  %502 = vmatpush1.bf16.msra.mxu0 0
  %503 = vmatprep.subr.bf16.mxu0 0
  %504 = vmatpush1.bf16.msra.mxu0 0
  %505 = vmatprep.subr.bf16.mxu0 0
  %506 = vmatpush1.bf16.msra.mxu0 0
  %507 = vmatprep.subr.bf16.mxu0 0
  %508 = vmatpush1.bf16.msra.mxu0 0
  %509 = vmatprep.subr.bf16.mxu0 0
  %510 = vmatpush1.bf16.msra.mxu0 0
  %511 = vmatprep.mubr.bf16.mxu0 0
  %512 = vmatmul.mubr.bf16.gmra.mrb[0].mxu0 %v157
  %v513 = vpop.f32.mrb[0].mxu0
  %v514 = vadd.f32 0.0, %v513
  %v515 = vpop.f32.mrb[0].mxu0
  %v516 = vadd.f32 0.0, %v515
  %v517 = vpop.f32.mrb[0].mxu0
  %v518 = vadd.f32 0.0, %v517
  %v519 = vpop.f32.mrb[0].mxu0
  %v520 = vadd.f32 0.0, %v519
  %521 = vdwg.mxu0
  %522 = vmatprep.subr.bf16.mxu0 %v354
  %523 = vmatpush1.bf16.msra.mxu0 %v353
  %524 = vmatprep.subr.bf16.mxu0 %v362
  %525 = vmatpush1.bf16.msra.mxu0 %v361
  %526 = vmatprep.subr.bf16.mxu0 %v370
  %527 = vmatpush1.bf16.msra.mxu0 %v369
  %528 = vmatprep.subr.bf16.mxu0 %v378
  %529 = vmatpush1.bf16.msra.mxu0 %v377
  %530 = vmatprep.subr.bf16.mxu0 %v386
  %531 = vmatpush1.bf16.msra.mxu0 %v385
  %532 = vmatprep.subr.bf16.mxu0 %v394
  %533 = vmatpush1.bf16.msra.mxu0 %v393
  %534 = vmatprep.subr.bf16.mxu0 %v402
  %535 = vmatpush1.bf16.msra.mxu0 %v401
  %536 = vmatprep.subr.bf16.mxu0 %v410
  %537 = vmatpush1.bf16.msra.mxu0 %v409
  %538 = vmatprep.subr.bf16.mxu0 0
  %539 = vmatpush1.bf16.msra.mxu0 0
  %540 = vmatprep.subr.bf16.mxu0 0
  %541 = vmatpush1.bf16.msra.mxu0 0
  %542 = vmatprep.subr.bf16.mxu0 0
  %543 = vmatpush1.bf16.msra.mxu0 0
  %544 = vmatprep.subr.bf16.mxu0 0
  %545 = vmatpush1.bf16.msra.mxu0 0
  %546 = vmatprep.subr.bf16.mxu0 0
  %547 = vmatpush1.bf16.msra.mxu0 0
  %548 = vmatprep.subr.bf16.mxu0 0
  %549 = vmatpush1.bf16.msra.mxu0 0
  %550 = vmatprep.subr.bf16.mxu0 0
  %551 = vmatpush1.bf16.msra.mxu0 0
  %552 = vmatprep.subr.bf16.mxu0 0
  %553 = vmatpush1.bf16.msra.mxu0 0
  %554 = vmatprep.mubr.bf16.mxu0 0
  %555 = vmatmul.mubr.bf16.gmra.mrb[0].mxu0 %v157
  %v556 = vpop.f32.mrb[0].mxu0
  %v557 = vadd.f32 0.0, %v556
  %v558 = vpop.f32.mrb[0].mxu0
  %v559 = vadd.f32 0.0, %v558
  %v560 = vpop.f32.mrb[0].mxu0
  %v561 = vadd.f32 0.0, %v560
  %v562 = vpop.f32.mrb[0].mxu0
  %v563 = vadd.f32 0.0, %v562
  %564 = vdwg.mxu0
  %565 = vmatprep.subr.bf16.mxu0 %v356
  %566 = vmatpush1.bf16.msra.mxu0 %v355
  %567 = vmatprep.subr.bf16.mxu0 %v364
  %568 = vmatpush1.bf16.msra.mxu0 %v363
  %569 = vmatprep.subr.bf16.mxu0 %v372
  %570 = vmatpush1.bf16.msra.mxu0 %v371
  %571 = vmatprep.subr.bf16.mxu0 %v380
  %572 = vmatpush1.bf16.msra.mxu0 %v379
  %573 = vmatprep.subr.bf16.mxu0 %v388
  %574 = vmatpush1.bf16.msra.mxu0 %v387
  %575 = vmatprep.subr.bf16.mxu0 %v396
  %576 = vmatpush1.bf16.msra.mxu0 %v395
  %577 = vmatprep.subr.bf16.mxu0 %v404
  %578 = vmatpush1.bf16.msra.mxu0 %v403
  %579 = vmatprep.subr.bf16.mxu0 %v412
  %580 = vmatpush1.bf16.msra.mxu0 %v411
  %581 = vmatprep.subr.bf16.mxu0 0
  %582 = vmatpush1.bf16.msra.mxu0 0
  %583 = vmatprep.subr.bf16.mxu0 0
  %584 = vmatpush1.bf16.msra.mxu0 0
  %585 = vmatprep.subr.bf16.mxu0 0
  %586 = vmatpush1.bf16.msra.mxu0 0
  %587 = vmatprep.subr.bf16.mxu0 0
  %588 = vmatpush1.bf16.msra.mxu0 0
  %589 = vmatprep.subr.bf16.mxu0 0
  %590 = vmatpush1.bf16.msra.mxu0 0
  %591 = vmatprep.subr.bf16.mxu0 0
  %592 = vmatpush1.bf16.msra.mxu0 0
  %593 = vmatprep.subr.bf16.mxu0 0
  %594 = vmatpush1.bf16.msra.mxu0 0
  %595 = vmatprep.subr.bf16.mxu0 0
  %596 = vmatpush1.bf16.msra.mxu0 0
  %597 = vmatprep.mubr.bf16.mxu0 0
  %598 = vmatmul.mubr.bf16.gmra.mrb[0].mxu0 %v157
  %v599 = vpop.f32.mrb[0].mxu0
  %v600 = vadd.f32 0.0, %v599
  %v601 = vpop.f32.mrb[0].mxu0
  %v602 = vadd.f32 0.0, %v601
  %v603 = vpop.f32.mrb[0].mxu0
  %v604 = vadd.f32 0.0, %v603
  %v605 = vpop.f32.mrb[0].mxu0
  %v606 = vadd.f32 0.0, %v605
  %607 = vdwg.mxu0
  %608 = vmatprep.subr.bf16.mxu0 %v358
  %609 = vmatpush1.bf16.msra.mxu0 %v357
  %610 = vmatprep.subr.bf16.mxu0 %v366
  %611 = vmatpush1.bf16.msra.mxu0 %v365
  %612 = vmatprep.subr.bf16.mxu0 %v374
  %613 = vmatpush1.bf16.msra.mxu0 %v373
  %614 = vmatprep.subr.bf16.mxu0 %v382
  %615 = vmatpush1.bf16.msra.mxu0 %v381
  %616 = vmatprep.subr.bf16.mxu0 %v390
  %617 = vmatpush1.bf16.msra.mxu0 %v389
  %618 = vmatprep.subr.bf16.mxu0 %v398
  %619 = vmatpush1.bf16.msra.mxu0 %v397
  %620 = vmatprep.subr.bf16.mxu0 %v406
  %621 = vmatpush1.bf16.msra.mxu0 %v405
  %622 = vmatprep.subr.bf16.mxu0 %v414
  %623 = vmatpush1.bf16.msra.mxu0 %v413
  %624 = vmatprep.subr.bf16.mxu0 0
  %625 = vmatpush1.bf16.msra.mxu0 0
  %626 = vmatprep.subr.bf16.mxu0 0
  %627 = vmatpush1.bf16.msra.mxu0 0
  %628 = vmatprep.subr.bf16.mxu0 0
  %629 = vmatpush1.bf16.msra.mxu0 0
  %630 = vmatprep.subr.bf16.mxu0 0
  %631 = vmatpush1.bf16.msra.mxu0 0
  %632 = vmatprep.subr.bf16.mxu0 0
  %633 = vmatpush1.bf16.msra.mxu0 0
  %634 = vmatprep.subr.bf16.mxu0 0
  %635 = vmatpush1.bf16.msra.mxu0 0
  %636 = vmatprep.subr.bf16.mxu0 0
  %637 = vmatpush1.bf16.msra.mxu0 0
  %638 = vmatprep.subr.bf16.mxu0 0
  %639 = vmatpush1.bf16.msra.mxu0 0
  %640 = vmatprep.mubr.bf16.mxu0 0
  %641 = vmatmul.mubr.bf16.gmra.mrb[0].mxu0 %v157
  %v642 = vpop.f32.mrb[0].mxu0
  %v643 = vadd.f32 0.0, %v642
  %v644 = vpop.f32.mrb[0].mxu0
  %v645 = vadd.f32 0.0, %v644
  %v646 = vpop.f32.mrb[0].mxu0
  %v647 = vadd.f32 0.0, %v646
  %v648 = vpop.f32.mrb[0].mxu0
  %v649 = vadd.f32 0.0, %v648
  %650 = vdwg.mxu0
  %v653 = vunpack.c.l.b16 %v21
  %v654 = vunpack.c.l.b16 %v22
  %v655 = vpack.c.b16 %v654, %v653
  %v721 = vunpack.c.l.b16 %v23
  %v722 = vunpack.c.h.b16 %v23
  %v723 = vunpack.c.l.b16 %v24
  %v724 = vunpack.c.h.b16 %v24
  %v725 = vunpack.c.l.b16 %v25
  %v726 = vunpack.c.h.b16 %v25
  %v727 = vunpack.c.l.b16 %v26
  %v728 = vunpack.c.h.b16 %v26
  %v729 = vunpack.c.l.b16 %v27
  %v730 = vunpack.c.h.b16 %v27
  %v731 = vunpack.c.l.b16 %v28
  %v732 = vunpack.c.h.b16 %v28
  %v733 = vunpack.c.l.b16 %v29
  %v734 = vunpack.c.h.b16 %v29
  %v735 = vunpack.c.l.b16 %v30
  %v736 = vunpack.c.h.b16 %v30
  %v737 = vunpack.c.l.b16 %v31
  %v738 = vunpack.c.h.b16 %v31
  %v739 = vunpack.c.l.b16 %v32
  %v740 = vunpack.c.h.b16 %v32
  %v741 = vunpack.c.l.b16 %v33
  %v742 = vunpack.c.h.b16 %v33
  %v743 = vunpack.c.l.b16 %v34
  %v744 = vunpack.c.h.b16 %v34
  %v745 = vunpack.c.l.b16 %v35
  %v746 = vunpack.c.h.b16 %v35
  %v747 = vunpack.c.l.b16 %v36
  %v748 = vunpack.c.h.b16 %v36
  %v749 = vunpack.c.l.b16 %v37
  %v750 = vunpack.c.h.b16 %v37
  %v751 = vunpack.c.l.b16 %v38
  %v752 = vunpack.c.h.b16 %v38
  %v753 = vunpack.c.l.b16 %v39
  %v754 = vunpack.c.h.b16 %v39
  %v755 = vunpack.c.l.b16 %v40
  %v756 = vunpack.c.h.b16 %v40
  %v757 = vunpack.c.l.b16 %v41
  %v758 = vunpack.c.h.b16 %v41
  %v759 = vunpack.c.l.b16 %v42
  %v760 = vunpack.c.h.b16 %v42
  %v761 = vunpack.c.l.b16 %v43
  %v762 = vunpack.c.h.b16 %v43
  %v763 = vunpack.c.l.b16 %v44
  %v764 = vunpack.c.h.b16 %v44
  %v765 = vunpack.c.l.b16 %v45
  %v766 = vunpack.c.h.b16 %v45
  %v767 = vunpack.c.l.b16 %v46
  %v768 = vunpack.c.h.b16 %v46
  %v769 = vunpack.c.l.b16 %v47
  %v770 = vunpack.c.h.b16 %v47
  %v771 = vunpack.c.l.b16 %v48
  %v772 = vunpack.c.h.b16 %v48
  %v773 = vunpack.c.l.b16 %v49
  %v774 = vunpack.c.h.b16 %v49
  %v775 = vunpack.c.l.b16 %v50
  %v776 = vunpack.c.h.b16 %v50
  %v777 = vunpack.c.l.b16 %v51
  %v778 = vunpack.c.h.b16 %v51
  %v779 = vunpack.c.l.b16 %v52
  %v780 = vunpack.c.h.b16 %v52
  %v781 = vunpack.c.l.b16 %v53
  %v782 = vunpack.c.h.b16 %v53
  %v783 = vunpack.c.l.b16 %v54
  %v784 = vunpack.c.h.b16 %v54
  %v785 = vunpack.c.l.b16 %v55
  %v786 = vunpack.c.h.b16 %v55
  %v787 = vunpack.c.l.b16 %v56
  %v788 = vunpack.c.h.b16 %v56
  %v789 = vunpack.c.l.b16 %v57
  %v790 = vunpack.c.h.b16 %v57
  %v791 = vunpack.c.l.b16 %v58
  %v792 = vunpack.c.h.b16 %v58
  %v793 = vunpack.c.l.b16 %v59
  %v794 = vunpack.c.h.b16 %v59
  %v795 = vunpack.c.l.b16 %v60
  %v796 = vunpack.c.h.b16 %v60
  %v797 = vunpack.c.l.b16 %v61
  %v798 = vunpack.c.h.b16 %v61
  %v799 = vunpack.c.l.b16 %v62
  %v800 = vunpack.c.h.b16 %v62
  %v801 = vunpack.c.l.b16 %v63
  %v802 = vunpack.c.h.b16 %v63
  %v803 = vunpack.c.l.b16 %v64
  %v804 = vunpack.c.h.b16 %v64
  %v805 = vunpack.c.l.b16 %v65
  %v806 = vunpack.c.h.b16 %v65
  %v807 = vunpack.c.l.b16 %v66
  %v808 = vunpack.c.h.b16 %v66
  %v809 = vunpack.c.l.b16 %v67
  %v810 = vunpack.c.h.b16 %v67
  %v811 = vunpack.c.l.b16 %v68
  %v812 = vunpack.c.h.b16 %v68
  %v813 = vunpack.c.l.b16 %v69
  %v814 = vunpack.c.h.b16 %v69
  %v815 = vunpack.c.l.b16 %v70
  %v816 = vunpack.c.h.b16 %v70
  %v817 = vunpack.c.l.b16 %v71
  %v818 = vunpack.c.h.b16 %v71
  %v819 = vunpack.c.l.b16 %v72
  %v820 = vunpack.c.h.b16 %v72
  %v821 = vunpack.c.l.b16 %v73
  %v822 = vunpack.c.h.b16 %v73
  %v823 = vunpack.c.l.b16 %v74
  %v824 = vunpack.c.h.b16 %v74
  %v825 = vunpack.c.l.b16 %v75
  %v826 = vunpack.c.h.b16 %v75
  %v827 = vunpack.c.l.b16 %v76
  %v828 = vunpack.c.h.b16 %v76
  %v829 = vunpack.c.l.b16 %v77
  %v830 = vunpack.c.h.b16 %v77
  %v831 = vunpack.c.l.b16 %v78
  %v832 = vunpack.c.h.b16 %v78
  %v833 = vunpack.c.l.b16 %v79
  %v834 = vunpack.c.h.b16 %v79
  %v835 = vunpack.c.l.b16 %v80
  %v836 = vunpack.c.h.b16 %v80
  %v837 = vunpack.c.l.b16 %v81
  %v838 = vunpack.c.h.b16 %v81
  %v839 = vunpack.c.l.b16 %v82
  %v840 = vunpack.c.h.b16 %v82
  %v841 = vunpack.c.l.b16 %v83
  %v842 = vunpack.c.h.b16 %v83
  %v843 = vunpack.c.l.b16 %v84
  %v844 = vunpack.c.h.b16 %v84
  %v845 = vunpack.c.l.b16 %v85
  %v846 = vunpack.c.h.b16 %v85
  %v847 = vunpack.c.l.b16 %v86
  %v848 = vunpack.c.h.b16 %v86
  %v849 = vpack.c.b16 %v729, %v721
  %v850 = vpack.c.b16 %v730, %v722
  %v851 = vpack.c.b16 %v731, %v723
  %v852 = vpack.c.b16 %v732, %v724
  %v853 = vpack.c.b16 %v733, %v725
  %v854 = vpack.c.b16 %v734, %v726
  %v855 = vpack.c.b16 %v735, %v727
  %v856 = vpack.c.b16 %v736, %v728
  %v857 = vpack.c.b16 %v745, %v737
  %v858 = vpack.c.b16 %v746, %v738
  %v859 = vpack.c.b16 %v747, %v739
  %v860 = vpack.c.b16 %v748, %v740
  %v861 = vpack.c.b16 %v749, %v741
  %v862 = vpack.c.b16 %v750, %v742
  %v863 = vpack.c.b16 %v751, %v743
  %v864 = vpack.c.b16 %v752, %v744
  %v865 = vpack.c.b16 %v761, %v753
  %v866 = vpack.c.b16 %v762, %v754
  %v867 = vpack.c.b16 %v763, %v755
  %v868 = vpack.c.b16 %v764, %v756
  %v869 = vpack.c.b16 %v765, %v757
  %v870 = vpack.c.b16 %v766, %v758
  %v871 = vpack.c.b16 %v767, %v759
  %v872 = vpack.c.b16 %v768, %v760
  %v873 = vpack.c.b16 %v777, %v769
  %v874 = vpack.c.b16 %v778, %v770
  %v875 = vpack.c.b16 %v779, %v771
  %v876 = vpack.c.b16 %v780, %v772
  %v877 = vpack.c.b16 %v781, %v773
  %v878 = vpack.c.b16 %v782, %v774
  %v879 = vpack.c.b16 %v783, %v775
  %v880 = vpack.c.b16 %v784, %v776
  %v881 = vpack.c.b16 %v793, %v785
  %v882 = vpack.c.b16 %v794, %v786
  %v883 = vpack.c.b16 %v795, %v787
  %v884 = vpack.c.b16 %v796, %v788
  %v885 = vpack.c.b16 %v797, %v789
  %v886 = vpack.c.b16 %v798, %v790
  %v887 = vpack.c.b16 %v799, %v791
  %v888 = vpack.c.b16 %v800, %v792
  %v889 = vpack.c.b16 %v809, %v801
  %v890 = vpack.c.b16 %v810, %v802
  %v891 = vpack.c.b16 %v811, %v803
  %v892 = vpack.c.b16 %v812, %v804
  %v893 = vpack.c.b16 %v813, %v805
  %v894 = vpack.c.b16 %v814, %v806
  %v895 = vpack.c.b16 %v815, %v807
  %v896 = vpack.c.b16 %v816, %v808
  %v897 = vpack.c.b16 %v825, %v817
  %v898 = vpack.c.b16 %v826, %v818
  %v899 = vpack.c.b16 %v827, %v819
  %v900 = vpack.c.b16 %v828, %v820
  %v901 = vpack.c.b16 %v829, %v821
  %v902 = vpack.c.b16 %v830, %v822
  %v903 = vpack.c.b16 %v831, %v823
  %v904 = vpack.c.b16 %v832, %v824
  %v905 = vpack.c.b16 %v841, %v833
  %v906 = vpack.c.b16 %v842, %v834
  %v907 = vpack.c.b16 %v843, %v835
  %v908 = vpack.c.b16 %v844, %v836
  %v909 = vpack.c.b16 %v845, %v837
  %v910 = vpack.c.b16 %v846, %v838
  %v911 = vpack.c.b16 %v847, %v839
  %v912 = vpack.c.b16 %v848, %v840
  %977 = vmatprep.subr.bf16.mxu0 %v850
  %978 = vmatpush1.bf16.msra.mxu0 %v849
  %979 = vmatprep.subr.bf16.mxu0 %v858
  %980 = vmatpush1.bf16.msra.mxu0 %v857
  %981 = vmatprep.subr.bf16.mxu0 %v866
  %982 = vmatpush1.bf16.msra.mxu0 %v865
  %983 = vmatprep.subr.bf16.mxu0 %v874
  %984 = vmatpush1.bf16.msra.mxu0 %v873
  %985 = vmatprep.subr.bf16.mxu0 %v882
  %986 = vmatpush1.bf16.msra.mxu0 %v881
  %987 = vmatprep.subr.bf16.mxu0 %v890
  %988 = vmatpush1.bf16.msra.mxu0 %v889
  %989 = vmatprep.subr.bf16.mxu0 %v898
  %990 = vmatpush1.bf16.msra.mxu0 %v897
  %991 = vmatprep.subr.bf16.mxu0 %v906
  %992 = vmatpush1.bf16.msra.mxu0 %v905
  %993 = vmatprep.subr.bf16.mxu0 0
  %994 = vmatpush1.bf16.msra.mxu0 0
  %995 = vmatprep.subr.bf16.mxu0 0
  %996 = vmatpush1.bf16.msra.mxu0 0
  %997 = vmatprep.subr.bf16.mxu0 0
  %998 = vmatpush1.bf16.msra.mxu0 0
  %999 = vmatprep.subr.bf16.mxu0 0
  %1000 = vmatpush1.bf16.msra.mxu0 0
  %1001 = vmatprep.subr.bf16.mxu0 0
  %1002 = vmatpush1.bf16.msra.mxu0 0
  %1003 = vmatprep.subr.bf16.mxu0 0
  %1004 = vmatpush1.bf16.msra.mxu0 0
  %1005 = vmatprep.subr.bf16.mxu0 0
  %1006 = vmatpush1.bf16.msra.mxu0 0
  %1007 = vmatprep.subr.bf16.mxu0 0
  %1008 = vmatpush1.bf16.msra.mxu0 0
  %1009 = vmatprep.mubr.bf16.mxu0 0
  %1010 = vmatmul.mubr.bf16.gmra.mrb[0].mxu0 %v655
  %v1011 = vpop.f32.mrb[0].mxu0
  %v1012 = vadd.f32 %v514, %v1011
  %v1013 = vpop.f32.mrb[0].mxu0
  %v1014 = vadd.f32 %v516, %v1013
  %v1015 = vpop.f32.mrb[0].mxu0
  %v1016 = vadd.f32 %v518, %v1015
  %v1017 = vpop.f32.mrb[0].mxu0
  %v1018 = vadd.f32 %v520, %v1017
  %1019 = vdwg.mxu0
  %1020 = vmatprep.subr.bf16.mxu0 %v852
  %1021 = vmatpush1.bf16.msra.mxu0 %v851
  %1022 = vmatprep.subr.bf16.mxu0 %v860
  %1023 = vmatpush1.bf16.msra.mxu0 %v859
  %1024 = vmatprep.subr.bf16.mxu0 %v868
  %1025 = vmatpush1.bf16.msra.mxu0 %v867
  %1026 = vmatprep.subr.bf16.mxu0 %v876
  %1027 = vmatpush1.bf16.msra.mxu0 %v875
  %1028 = vmatprep.subr.bf16.mxu0 %v884
  %1029 = vmatpush1.bf16.msra.mxu0 %v883
  %1030 = vmatprep.subr.bf16.mxu0 %v892
  %1031 = vmatpush1.bf16.msra.mxu0 %v891
  %1032 = vmatprep.subr.bf16.mxu0 %v900
  %1033 = vmatpush1.bf16.msra.mxu0 %v899
  %1034 = vmatprep.subr.bf16.mxu0 %v908
  %1035 = vmatpush1.bf16.msra.mxu0 %v907
  %1036 = vmatprep.subr.bf16.mxu0 0
  %1037 = vmatpush1.bf16.msra.mxu0 0
  %1038 = vmatprep.subr.bf16.mxu0 0
  %1039 = vmatpush1.bf16.msra.mxu0 0
  %1040 = vmatprep.subr.bf16.mxu0 0
  %1041 = vmatpush1.bf16.msra.mxu0 0
  %1042 = vmatprep.subr.bf16.mxu0 0
  %1043 = vmatpush1.bf16.msra.mxu0 0
  %1044 = vmatprep.subr.bf16.mxu0 0
  %1045 = vmatpush1.bf16.msra.mxu0 0
  %1046 = vmatprep.subr.bf16.mxu0 0
  %1047 = vmatpush1.bf16.msra.mxu0 0
  %1048 = vmatprep.subr.bf16.mxu0 0
  %1049 = vmatpush1.bf16.msra.mxu0 0
  %1050 = vmatprep.subr.bf16.mxu0 0
  %1051 = vmatpush1.bf16.msra.mxu0 0
  %1052 = vmatprep.mubr.bf16.mxu0 0
  %1053 = vmatmul.mubr.bf16.gmra.mrb[0].mxu0 %v655
  %v1054 = vpop.f32.mrb[0].mxu0
  %v1055 = vadd.f32 %v557, %v1054
  %v1056 = vpop.f32.mrb[0].mxu0
  %v1057 = vadd.f32 %v559, %v1056
  %v1058 = vpop.f32.mrb[0].mxu0
  %v1059 = vadd.f32 %v561, %v1058
  %v1060 = vpop.f32.mrb[0].mxu0
  %v1061 = vadd.f32 %v563, %v1060
  %1062 = vdwg.mxu0
  %1063 = vmatprep.subr.bf16.mxu0 %v854
  %1064 = vmatpush1.bf16.msra.mxu0 %v853
  %1065 = vmatprep.subr.bf16.mxu0 %v862
  %1066 = vmatpush1.bf16.msra.mxu0 %v861
  %1067 = vmatprep.subr.bf16.mxu0 %v870
  %1068 = vmatpush1.bf16.msra.mxu0 %v869
  %1069 = vmatprep.subr.bf16.mxu0 %v878
  %1070 = vmatpush1.bf16.msra.mxu0 %v877
  %1071 = vmatprep.subr.bf16.mxu0 %v886
  %1072 = vmatpush1.bf16.msra.mxu0 %v885
  %1073 = vmatprep.subr.bf16.mxu0 %v894
  %1074 = vmatpush1.bf16.msra.mxu0 %v893
  %1075 = vmatprep.subr.bf16.mxu0 %v902
  %1076 = vmatpush1.bf16.msra.mxu0 %v901
  %1077 = vmatprep.subr.bf16.mxu0 %v910
  %1078 = vmatpush1.bf16.msra.mxu0 %v909
  %1079 = vmatprep.subr.bf16.mxu0 0
  %1080 = vmatpush1.bf16.msra.mxu0 0
  %1081 = vmatprep.subr.bf16.mxu0 0
  %1082 = vmatpush1.bf16.msra.mxu0 0
  %1083 = vmatprep.subr.bf16.mxu0 0
  %1084 = vmatpush1.bf16.msra.mxu0 0
  %1085 = vmatprep.subr.bf16.mxu0 0
  %1086 = vmatpush1.bf16.msra.mxu0 0
  %1087 = vmatprep.subr.bf16.mxu0 0
  %1088 = vmatpush1.bf16.msra.mxu0 0
  %1089 = vmatprep.subr.bf16.mxu0 0
  %1090 = vmatpush1.bf16.msra.mxu0 0
  %1091 = vmatprep.subr.bf16.mxu0 0
  %1092 = vmatpush1.bf16.msra.mxu0 0
  %1093 = vmatprep.subr.bf16.mxu0 0
  %1094 = vmatpush1.bf16.msra.mxu0 0
  %1095 = vmatprep.mubr.bf16.mxu0 0
  %1096 = vmatmul.mubr.bf16.gmra.mrb[0].mxu0 %v655
  %v1097 = vpop.f32.mrb[0].mxu0
  %v1098 = vadd.f32 %v600, %v1097
  %v1099 = vpop.f32.mrb[0].mxu0
  %v1100 = vadd.f32 %v602, %v1099
  %v1101 = vpop.f32.mrb[0].mxu0
  %v1102 = vadd.f32 %v604, %v1101
  %v1103 = vpop.f32.mrb[0].mxu0
  %v1104 = vadd.f32 %v606, %v1103
  %1105 = vdwg.mxu0
  %1106 = vmatprep.subr.bf16.mxu0 %v856
  %1107 = vmatpush1.bf16.msra.mxu0 %v855
  %1108 = vmatprep.subr.bf16.mxu0 %v864
  %1109 = vmatpush1.bf16.msra.mxu0 %v863
  %1110 = vmatprep.subr.bf16.mxu0 %v872
  %1111 = vmatpush1.bf16.msra.mxu0 %v871
  %1112 = vmatprep.subr.bf16.mxu0 %v880
  %1113 = vmatpush1.bf16.msra.mxu0 %v879
  %1114 = vmatprep.subr.bf16.mxu0 %v888
  %1115 = vmatpush1.bf16.msra.mxu0 %v887
  %1116 = vmatprep.subr.bf16.mxu0 %v896
  %1117 = vmatpush1.bf16.msra.mxu0 %v895
  %1118 = vmatprep.subr.bf16.mxu0 %v904
  %1119 = vmatpush1.bf16.msra.mxu0 %v903
  %1120 = vmatprep.subr.bf16.mxu0 %v912
  %1121 = vmatpush1.bf16.msra.mxu0 %v911
  %1122 = vmatprep.subr.bf16.mxu0 0
  %1123 = vmatpush1.bf16.msra.mxu0 0
  %1124 = vmatprep.subr.bf16.mxu0 0
  %1125 = vmatpush1.bf16.msra.mxu0 0
  %1126 = vmatprep.subr.bf16.mxu0 0
  %1127 = vmatpush1.bf16.msra.mxu0 0
  %1128 = vmatprep.subr.bf16.mxu0 0
  %1129 = vmatpush1.bf16.msra.mxu0 0
  %1130 = vmatprep.subr.bf16.mxu0 0
  %1131 = vmatpush1.bf16.msra.mxu0 0
  %1132 = vmatprep.subr.bf16.mxu0 0
  %1133 = vmatpush1.bf16.msra.mxu0 0
  %1134 = vmatprep.subr.bf16.mxu0 0
  %1135 = vmatpush1.bf16.msra.mxu0 0
  %1136 = vmatprep.subr.bf16.mxu0 0
  %1137 = vmatpush1.bf16.msra.mxu0 0
  %1138 = vmatprep.mubr.bf16.mxu0 0
  %1139 = vmatmul.mubr.bf16.gmra.mrb[0].mxu0 %v655
  %v1140 = vpop.f32.mrb[0].mxu0
  %v1141 = vadd.f32 %v643, %v1140
  %v1142 = vpop.f32.mrb[0].mxu0
  %v1143 = vadd.f32 %v645, %v1142
  %v1144 = vpop.f32.mrb[0].mxu0
  %v1145 = vadd.f32 %v647, %v1144
  %v1146 = vpop.f32.mrb[0].mxu0
  %v1147 = vadd.f32 %v649, %v1146
  %1148 = vdwg.mxu0
  %v1149 = vld [vmem:[%s4] sm:$0xff]
  %v1151 = vlaneseq
  %v1152 = vshrl.u32 %v1151, 7
  %v1153 = vsub.s32 0, %v1152
  %v1154 = vrot.slane %v1149, %v1153
  %v1155 = vlaneseq
  %v1156 = vshrl.u32 %v1155, 7
  %v1157 = vsub.s32 1, %v1156
  %v1158 = vrot.slane %v1149, %v1157
  %v1159 = vlaneseq
  %v1160 = vshrl.u32 %v1159, 7
  %v1161 = vsub.s32 2, %v1160
  %v1162 = vrot.slane %v1149, %v1161
  %v1163 = vlaneseq
  %v1164 = vshrl.u32 %v1163, 7
  %v1165 = vsub.s32 3, %v1164
  %v1166 = vrot.slane %v1149, %v1165
  %v1167 = vlaneseq
  %v1168 = vshrl.u32 %v1167, 7
  %v1169 = vsub.s32 4, %v1168
  %v1170 = vrot.slane %v1149, %v1169
  %v1171 = vlaneseq
  %v1172 = vshrl.u32 %v1171, 7
  %v1173 = vsub.s32 5, %v1172
  %v1174 = vrot.slane %v1149, %v1173
  %v1175 = vlaneseq
  %v1176 = vshrl.u32 %v1175, 7
  %v1177 = vsub.s32 6, %v1176
  %v1178 = vrot.slane %v1149, %v1177
  %v1179 = vlaneseq
  %v1180 = vshrl.u32 %v1179, 7
  %v1181 = vsub.s32 7, %v1180
  %v1182 = vrot.slane %v1149, %v1181
  %v1191 = vadd.f32 %v1012, %v1154
  %v1192 = vadd.f32 %v1014, %v1158
  %v1193 = vadd.f32 %v1055, %v1162
  %v1194 = vadd.f32 %v1057, %v1166
  %v1195 = vadd.f32 %v1098, %v1170
  %v1196 = vadd.f32 %v1100, %v1174
  %v1197 = vadd.f32 %v1141, %v1178
  %v1198 = vadd.f32 %v1143, %v1182
  %v1199 = vadd.f32 %v1016, %v1154
  %v1200 = vadd.f32 %v1018, %v1158
  %v1201 = vadd.f32 %v1059, %v1162
  %v1202 = vadd.f32 %v1061, %v1166
  %v1203 = vadd.f32 %v1102, %v1170
  %v1204 = vadd.f32 %v1104, %v1174
  %v1205 = vadd.f32 %v1145, %v1178
  %v1206 = vadd.f32 %v1147, %v1182
  %v1207 = vpack.c.bf16 %v1199, %v1191
  %v1208 = vpack.c.bf16 %v1200, %v1192
  %v1209 = vpack.c.bf16 %v1201, %v1193
  %v1210 = vpack.c.bf16 %v1202, %v1194
  %v1211 = vpack.c.bf16 %v1203, %v1195
  %v1212 = vpack.c.bf16 %v1204, %v1196
  %v1213 = vpack.c.bf16 %v1205, %v1197
  %v1214 = vpack.c.bf16 %v1206, %v1198
  %v1223 = vunpack.c.l.b16 %v1207
  %v1224 = vunpack.c.l.b16 %v1208
  %v1225 = vunpack.c.l.b16 %v1209
  %v1226 = vunpack.c.l.b16 %v1210
  %v1227 = vunpack.c.l.b16 %v1211
  %v1228 = vunpack.c.l.b16 %v1212
  %v1229 = vunpack.c.l.b16 %v1213
  %v1230 = vunpack.c.l.b16 %v1214
  %v1231 = vunpack.c.h.b16 %v1207
  %v1232 = vunpack.c.h.b16 %v1208
  %v1233 = vunpack.c.h.b16 %v1209
  %v1234 = vunpack.c.h.b16 %v1210
  %v1235 = vunpack.c.h.b16 %v1211
  %v1236 = vunpack.c.h.b16 %v1212
  %v1237 = vunpack.c.h.b16 %v1213
  %v1238 = vunpack.c.h.b16 %v1214
  %v1239 = vpack.c.b16 %v1224, %v1223
  %v1240 = vpack.c.b16 %v1226, %v1225
  %v1241 = vpack.c.b16 %v1228, %v1227
  %v1242 = vpack.c.b16 %v1230, %v1229
  %v1243 = vpack.c.b16 %v1232, %v1231
  %v1244 = vpack.c.b16 %v1234, %v1233
  %v1245 = vpack.c.b16 %v1236, %v1235
  %v1246 = vpack.c.b16 %v1238, %v1237
  %1255 = vst [vmem:[%s5] sm:$0xff] %v1239
  %1256 = vst [vmem:[%s5 + $0x8] sm:$0xff] %v1240
  %1257 = vst [vmem:[%s5 + $0x10] sm:$0xff] %v1241
  %1258 = vst [vmem:[%s5 + $0x18] sm:$0xff] %v1242
  %1259 = vst [vmem:[%s5 + $0x20] sm:$0xff] %v1243
  %1260 = vst [vmem:[%s5 + $0x28] sm:$0xff] %v1244
  %1261 = vst [vmem:[%s5 + $0x30] sm:$0xff] %v1245
  %1262 = vst [vmem:[%s5 + $0x38] sm:$0xff] %v1246
  // Predicated region
  $region22: #{rnn_forward.6} parent=0 // pred_check
    _
  $region23: #{rnn_forward.6} parent=0 // pred_check_branch
    %1264 = sbr.rel (0) target = $region25
  $region24: #{rnn_forward.6} parent=0 // pred_region
    _
  $region25: #{rnn_forward.6} parent=0 // pred_fallthru
    _
  // Predicated region
  $region26: #{rnn_forward.6} parent=0 // pred_check
    _
  $region27: #{rnn_forward.6} parent=0 // pred_check_branch
    %1266 = sbr.rel (0) target = $region29
  $region28: #{rnn_forward.6} parent=0 // pred_region
    _
  $region29: #{rnn_forward.6} parent=0 // pred_fallthru
    _

// kernel: rnn_forward.7
$region0: #{rnn_forward.7}
  #allocation0 [shape = 'u32[]', space=smem, size = 0x4, offset = 0x4, fixed_abs, tag = 'smem constant byte address 0x4 - core index']
  #allocation1 [shape = 'u32[144,128]{1,0:T(1,128)}', space=vmem, size = 0x12000, scoped, tag = 'internal scratch']
  #allocation2 [shape = 'bf16[2,256]{1,0:T(2,128)(2,1)}', space=vmem, size = 0x400, scoped, tag = 'scratch operand']
  #allocation3 [shape = 'f32[2,256]{1,0:T(2,128)}', space=vmem, size = 0x800, scoped, tag = 'scratch operand']
  %s0 = inlined_call_operand.vmem [shape: bf16[8,2,1024], index: 0, kind: input, shape index: {}, may-alias: {0,1}]
  %s1 = inlined_call_operand.vmem [shape: bf16[8,2,1024], index: 1, kind: input, shape index: {}, may-alias: {0,1}]
  %s2 = inlined_call_operand.vmem [shape: bf16[256,1024], index: 2, kind: input, shape index: {}]
  %s3 = inlined_call_operand.vmem [shape: s32[2,1], index: 3, kind: input, shape index: {}]
  %s4 = inlined_call_operand.vmem [shape: f32[2,256], index: 4, kind: output, shape index: {}]
  %s5 = sld [smem:[#allocation0]]
  $region139: #{rnn_forward.7} parent=0
    _
  %s7 = ssub.s32 1, %s5
  %s8 = scalar_select 0, %s7, %s5
  $region1: #{rnn_forward.7} parent=0
    #allocation4 [shape = 'u8[16384]{0}', space=vmem, size = 0x4000, scoped, tag = 'input window, operand 0']
    #allocation5 [shape = 'u8[16384]{0}', space=vmem, size = 0x4000, scoped, tag = 'input window, operand 1']
    loop: start=0, step=1, limit=4
    $region2: #{rnn_forward.7} parent=1 // loop_pre_header
      _
    $region3: #{rnn_forward.7} parent=1 // loop_header
      %s10 = sphi 0, %s14
      %p11 = scmp.ge.s32.totalorder %s10, 4
      %s17 = sphi 0, %s29
      %s18 = sphi 0, %s25
      %s19 = sphi 0, %s17
      %s20 = sphi 0, %s18
      %s21 = sphi 0, %s19
      %s22 = sphi 0, %s20
      %s34 = sphi 0, %s36
      %s37 = sphi 0, %s34
      %s38 = sphi 0, %s37
      %s54 = sphi 0, %s38
      %s64 = sphi 0, %s66
      %s67 = sphi 0, %s64
      %s68 = sphi 0, %s67
      %s84 = sphi 0, %s68
      %s88 = sphi 0, %s88
      %s90 = sphi 0, %s88
      %s91 = sphi 0, %s90
      %s105 = sphi 0, %s91
      %s111 = sphi 0, %s113
      %s114 = sphi 0, %s111
      %s115 = sphi 0, %s114
      %s131 = sphi 0, %s115
      %s137 = sphi 0, %s139
      %s140 = sphi 0, %s137
      %s141 = sphi 0, %s140
      %s157 = sphi 0, %s141
    $region4: #{rnn_forward.7} parent=1 // loop_header_branch
      %13 = sbr.rel (%p11) target = $region8
    $region5: #{rnn_forward.7} parent=1 // loop_body
      %s15 = ssub.s32 %s10, 1
      %s16 = ssub.s32 %s10, 2
      %s23 = sadd.s32 1, %s18
      %p24 = scmp.ge.s32.totalorder %s23, 2
      %s25 = scalar_select %p24, 0, %s23
      %s26 = sadd.s32 1, %s17
      %s27 = scalar_select %p24, %s26, %s17
      %p28 = scmp.ge.s32.totalorder %s27, 1
      %s29 = scalar_select %p28, 0, %s27
      %s30 = ssub.s32 %s18, %s25
      %s31 = ssub.s32 %s17, %s29
      %s32 = sor.u32 %s30, %s31
      %p33 = scmp.eq.s32.totalorder %s32, 0
      %s35 = sadd.s32 %s34, 1
      %s36 = scalar_select %p33, %s34, %s35
      %p39 = pneg %p33
      %p40 = scmp.eq.s32.totalorder %s10, 1
      %p41 = por %p39, %p40
      %p42 = scmp.ne.s32.totalorder %s34, %s37
      %p43 = scmp.eq.s32.totalorder %s10, 0
      %p44 = por %p42, %p43
      %p45 = scmp.ne.s32.totalorder %s34, %s37
      %p46 = scmp.eq.s32.totalorder %s15, 1
      %p47 = por %p45, %p46
      %p48 = scmp.ne.s32.totalorder %s37, %s38
      %p49 = scmp.eq.s32.totalorder %s15, 0
      %p50 = por %p48, %p49
      %p51 = scmp.ne.s32.totalorder %s37, %s38
      %p52 = scmp.eq.s32.totalorder %s16, 1
      %p53 = por %p51, %p52
      %p55 = scmp.ne.s32.totalorder %s38, %s54
      %p56 = scmp.eq.s32.totalorder %s16, 0
      %p57 = por %p55, %p56
      %s58 = ssub.s32 1, %s18
      %s59 = ssub.s32 1, %s25
      %s60 = ssub.s32 %s58, %s59
      %s61 = ssub.s32 %s17, %s29
      %s62 = sor.u32 %s60, %s61
      %p63 = scmp.eq.s32.totalorder %s62, 0
      %s65 = sadd.s32 %s64, 1
      %s66 = scalar_select %p63, %s64, %s65
      %p69 = pneg %p63
      %p70 = scmp.eq.s32.totalorder %s10, 1
      %p71 = por %p69, %p70
      %p72 = scmp.ne.s32.totalorder %s64, %s67
      %p73 = scmp.eq.s32.totalorder %s10, 0
      %p74 = por %p72, %p73
      %p75 = scmp.ne.s32.totalorder %s64, %s67
      %p76 = scmp.eq.s32.totalorder %s15, 1
      %p77 = por %p75, %p76
      %p78 = scmp.ne.s32.totalorder %s67, %s68
      %p79 = scmp.eq.s32.totalorder %s15, 0
      %p80 = por %p78, %p79
      %p81 = scmp.ne.s32.totalorder %s67, %s68
      %p82 = scmp.eq.s32.totalorder %s16, 1
      %p83 = por %p81, %p82
      %p85 = scmp.ne.s32.totalorder %s68, %s84
      %p86 = scmp.eq.s32.totalorder %s16, 0
      %p87 = por %p85, %p86
      %s89 = sadd.s32 %s88, 1
      %p92 = scmp.eq.s32.totalorder %s10, 1
      %p93 = scmp.ne.s32.totalorder %s88, %s90
      %p94 = scmp.eq.s32.totalorder %s10, 0
      %p95 = por %p93, %p94
      %p96 = scmp.ne.s32.totalorder %s88, %s90
      %p97 = scmp.eq.s32.totalorder %s15, 1
      %p98 = por %p96, %p97
      %p99 = scmp.ne.s32.totalorder %s90, %s91
      %p100 = scmp.eq.s32.totalorder %s15, 0
      %p101 = por %p99, %p100
      %p102 = scmp.ne.s32.totalorder %s90, %s91
      %p103 = scmp.eq.s32.totalorder %s16, 1
      %p104 = por %p102, %p103
      %p106 = scmp.ne.s32.totalorder %s91, %s105
      %p107 = scmp.eq.s32.totalorder %s16, 0
      %p108 = por %p106, %p107
      %s109 = ssub.s32 %s17, %s29
      %p110 = scmp.eq.s32.totalorder %s109, 0
      %s112 = sadd.s32 %s111, 1
      %s113 = scalar_select %p110, %s111, %s112
      %p116 = pneg %p110
      %p117 = scmp.eq.s32.totalorder %s10, 1
      %p118 = por %p116, %p117
      %p119 = scmp.ne.s32.totalorder %s111, %s114
      %p120 = scmp.eq.s32.totalorder %s10, 0
      %p121 = por %p119, %p120
      %p122 = scmp.ne.s32.totalorder %s111, %s114
      %p123 = scmp.eq.s32.totalorder %s15, 1
      %p124 = por %p122, %p123
      %p125 = scmp.ne.s32.totalorder %s114, %s115
      %p126 = scmp.eq.s32.totalorder %s15, 0
      %p127 = por %p125, %p126
      %p128 = scmp.ne.s32.totalorder %s114, %s115
      %p129 = scmp.eq.s32.totalorder %s16, 1
      %p130 = por %p128, %p129
      %p132 = scmp.ne.s32.totalorder %s115, %s131
      %p133 = scmp.eq.s32.totalorder %s16, 0
      %p134 = por %p132, %p133
      %s135 = ssub.s32 %s17, %s29
      %p136 = scmp.eq.s32.totalorder %s135, 0
      %s138 = sadd.s32 %s137, 1
      %s139 = scalar_select %p136, %s137, %s138
      %p142 = pneg %p136
      %p143 = scmp.eq.s32.totalorder %s10, 1
      %p144 = por %p142, %p143
      %p145 = scmp.ne.s32.totalorder %s137, %s140
      %p146 = scmp.eq.s32.totalorder %s10, 0
      %p147 = por %p145, %p146
      %p148 = scmp.ne.s32.totalorder %s137, %s140
      %p149 = scmp.eq.s32.totalorder %s15, 1
      %p150 = por %p148, %p149
      %p151 = scmp.ne.s32.totalorder %s140, %s141
      %p152 = scmp.eq.s32.totalorder %s15, 0
      %p153 = por %p151, %p152
      %p154 = scmp.ne.s32.totalorder %s140, %s141
      %p155 = scmp.eq.s32.totalorder %s16, 1
      %p156 = por %p154, %p155
      %p158 = scmp.ne.s32.totalorder %s141, %s157
      %p159 = scmp.eq.s32.totalorder %s16, 0
      %p160 = por %p158, %p159
      %p161 = scmp.le.s32.totalorder 1, %s10
      %p162 = scmp.lt.s32.totalorder %s10, 3
      %p163 = pnand %p161, %p162
      %p164 = pneg %p163
      // Predicated region
      $region9: #{rnn_forward.7} parent=5 // pred_check
        _
      $region10: #{rnn_forward.7} parent=5 // pred_check_branch
        %166 = sbr.rel (%p163) target = $region12
      $region11: #{rnn_forward.7} parent=5 // pred_region
        %s167 = ssub.s32 %s10, 1
        // Predicated region
        $region13: #{rnn_forward.7} parent=11 // pred_check
          %p168 = pneg %p101
        $region14: #{rnn_forward.7} parent=11 // pred_check_branch
          %170 = sbr.rel (%p168) target = $region16
        $region15: #{rnn_forward.7} parent=11 // pred_region
          _
        $region16: #{rnn_forward.7} parent=11 // pred_fallthru
          _
        // Predicated region
        $region17: #{rnn_forward.7} parent=11 // pred_check
          %p171 = pneg %p127
        $region18: #{rnn_forward.7} parent=11 // pred_check_branch
          %173 = sbr.rel (%p171) target = $region20
        $region19: #{rnn_forward.7} parent=11 // pred_region
          %p174 = scmp.lt.s32.totalorder %s19, 0
          %s175 = scalar_select %p174, %s19, 0
          %s176 = smul.addr %s175, 2
          %s177 = scalar_lea.vmem %s3, %s176
        $region20: #{rnn_forward.7} parent=11 // pred_fallthru
          _
      $region12: #{rnn_forward.7} parent=5 // pred_fallthru
        _
      %p178 = scmp.lt.s32.totalorder %s10, 2
      // Predicated region
      $region21: #{rnn_forward.7} parent=5 // pred_check
        %p179 = pneg %p178
      $region22: #{rnn_forward.7} parent=5 // pred_check_branch
        %181 = sbr.rel (%p179) target = $region24
      $region23: #{rnn_forward.7} parent=5 // pred_region
        // Predicated region
        $region25: #{rnn_forward.7} parent=23 // pred_check
          %p182 = pneg %p44
        $region26: #{rnn_forward.7} parent=23 // pred_check_branch
          %184 = sbr.rel (%p182) target = $region28
        $region27: #{rnn_forward.7} parent=23 // pred_region
          %s185 = sand.u32 %s34, 1
          %s186 = sand.u32 %s34, 1
          %s187 = smul.addr %s186, 16
          %s188 = scalar_lea.vmem [#allocation4], %s187
          %s189 = smul.u32 4, %s18
          %s190 = smul.addr %s17, 8
          %s191 = smul.addr %s189, 8
          %s192 = sadd.s32 %s190, %s191
          %s193 = scalar_lea.vmem %s0, %s192
          // Predicated region
          $region29: #{rnn_forward.7} parent=27 // pred_check
            _
          $region30: #{rnn_forward.7} parent=27 // pred_check_branch
            %195 = sbr.rel (0) target = $region32
          $region31: #{rnn_forward.7} parent=27 // pred_region
            // Predicated region
            $region33: #{rnn_forward.7} parent=31 // pred_check
              _
            $region34: #{rnn_forward.7} parent=31 // pred_check_branch
              %197 = sbr.rel target = $region36
            $region35: #{rnn_forward.7} parent=31 // pred_region
              // Predicated region
              $region48: #{rnn_forward.7} parent=35 // pred_check
                _
              $region49: #{rnn_forward.7} parent=35 // pred_check_branch
                %218 = sbr.rel (0) target = $region51
              $region50: #{rnn_forward.7} parent=35 // pred_region
                loop: start=0, step=1, limit=1
                $region52: #{rnn_forward.7} parent=50 // loop_pre_header
                  _
                $region53: #{rnn_forward.7} parent=50 // loop_header
                  %s220 = sphi 0, %s224
                  %p221 = scmp.ge.s32.totalorder %s220, 1
                  %s225 = sphi %s193, %s193
                  %s226 = sphi %s188, %s188
                $region54: #{rnn_forward.7} parent=50 // loop_header_branch
                  %223 = sbr.rel (%p221) target = $region58
                $region55: #{rnn_forward.7} parent=50 // loop_body
                  _
                $region56: #{rnn_forward.7} parent=50 // loop_footer
                  %s224 = sadd.s32 1, %s220
                $region57: #{rnn_forward.7} parent=50 // loop_footer_branch
                  %219 = sbr.rel target = $region53
                $region58: #{rnn_forward.7} parent=50 // loop_exit
                  _
                loop: start=0, step=1, limit=1
                $region59: #{rnn_forward.7} parent=50 // loop_pre_header
                  _
                $region60: #{rnn_forward.7} parent=50 // loop_header
                  %s229 = sphi 0, %s233
                  %p230 = scmp.ge.s32.totalorder %s229, 1
                  %s234 = sphi %s193, %s193
                  %s235 = sphi %s188, %s188
                $region61: #{rnn_forward.7} parent=50 // loop_header_branch
                  %232 = sbr.rel (%p230) target = $region65
                $region62: #{rnn_forward.7} parent=50 // loop_body
                  %v236 = vld [vmem:[%s234] sm:$0xf]
                  %237 = vst [vmem:[%s235] sm:$0xf] %v236
                  %v238 = vld [vmem:[%s234 + $0x8] sm:$0xf]
                  %239 = vst [vmem:[%s235 + $0x4] sm:$0xf] %v238
                  %v240 = vld [vmem:[%s234 + $0x10] sm:$0xf]
                  %241 = vst [vmem:[%s235 + $0x8] sm:$0xf] %v240
                  %v242 = vld [vmem:[%s234 + $0x18] sm:$0xf]
                  %243 = vst [vmem:[%s235 + $0xc] sm:$0xf] %v242
                $region63: #{rnn_forward.7} parent=50 // loop_footer
                  %s233 = sadd.s32 1, %s229
                $region64: #{rnn_forward.7} parent=50 // loop_footer_branch
                  %228 = sbr.rel target = $region60
                $region65: #{rnn_forward.7} parent=50 // loop_exit
                  _
              $region51: #{rnn_forward.7} parent=35 // pred_fallthru
                _
            $region36: #{rnn_forward.7} parent=31 // pred_fallthru
              _
            // Predicated region
            $region37: #{rnn_forward.7} parent=31 // pred_check
              _
            $region38: #{rnn_forward.7} parent=31 // pred_check_branch
              %199 = sbr.rel (0) target = $region40
            $region39: #{rnn_forward.7} parent=31 // pred_region
              loop: start=0, step=1, limit=1
              $region41: #{rnn_forward.7} parent=39 // loop_pre_header
                _
              $region42: #{rnn_forward.7} parent=39 // loop_header
                %s202 = sphi 0, %s206
                %p203 = scmp.ge.s32.totalorder %s202, 1
                %s207 = sphi %s193, %s193
                %s208 = sphi %s188, %s188
              $region43: #{rnn_forward.7} parent=39 // loop_header_branch
                %205 = sbr.rel (%p203) target = $region47
              $region44: #{rnn_forward.7} parent=39 // loop_body
                %v209 = vld [vmem:[%s207] sm:$0xf]
                %210 = vst [vmem:[%s208] sm:$0xf] %v209
                %v211 = vld [vmem:[%s207 + $0x8] sm:$0xf]
                %212 = vst [vmem:[%s208 + $0x4] sm:$0xf] %v211
                %v213 = vld [vmem:[%s207 + $0x10] sm:$0xf]
                %214 = vst [vmem:[%s208 + $0x8] sm:$0xf] %v213
                %v215 = vld [vmem:[%s207 + $0x18] sm:$0xf]
                %216 = vst [vmem:[%s208 + $0xc] sm:$0xf] %v215
              $region45: #{rnn_forward.7} parent=39 // loop_footer
                %s206 = sadd.s32 1, %s202
              $region46: #{rnn_forward.7} parent=39 // loop_footer_branch
                %201 = sbr.rel target = $region42
              $region47: #{rnn_forward.7} parent=39 // loop_exit
                _
            $region40: #{rnn_forward.7} parent=31 // pred_fallthru
              _
          $region32: #{rnn_forward.7} parent=27 // pred_fallthru
            _
          %244 = vnop
        $region28: #{rnn_forward.7} parent=23 // pred_fallthru
          _
        // Predicated region
        $region66: #{rnn_forward.7} parent=23 // pred_check
          %p245 = pneg %p74
        $region67: #{rnn_forward.7} parent=23 // pred_check_branch
          %247 = sbr.rel (%p245) target = $region69
        $region68: #{rnn_forward.7} parent=23 // pred_region
          %s248 = sand.u32 %s64, 1
          %s249 = sand.u32 %s64, 1
          %s250 = smul.addr %s249, 16
          %s251 = scalar_lea.vmem [#allocation5], %s250
          %s252 = ssub.s32 1, %s18
          %s253 = smul.u32 4, %s252
          %s254 = smul.addr %s17, 8
          %s255 = sadd.s32 4, %s254
          %s256 = smul.addr %s253, 8
          %s257 = sadd.s32 %s255, %s256
          %s258 = scalar_lea.vmem %s1, %s257
          // Predicated region
          $region70: #{rnn_forward.7} parent=68 // pred_check
            _
          $region71: #{rnn_forward.7} parent=68 // pred_check_branch
            %260 = sbr.rel (0) target = $region73
          $region72: #{rnn_forward.7} parent=68 // pred_region
            // Predicated region
            $region74: #{rnn_forward.7} parent=72 // pred_check
              _
            $region75: #{rnn_forward.7} parent=72 // pred_check_branch
              %262 = sbr.rel target = $region77
            $region76: #{rnn_forward.7} parent=72 // pred_region
              // Predicated region
              $region89: #{rnn_forward.7} parent=76 // pred_check
                _
              $region90: #{rnn_forward.7} parent=76 // pred_check_branch
                %283 = sbr.rel (0) target = $region92
              $region91: #{rnn_forward.7} parent=76 // pred_region
                loop: start=0, step=1, limit=1
                $region93: #{rnn_forward.7} parent=91 // loop_pre_header
                  _
                $region94: #{rnn_forward.7} parent=91 // loop_header
                  %s285 = sphi 0, %s289
                  %p286 = scmp.ge.s32.totalorder %s285, 1
                  %s290 = sphi %s258, %s258
                  %s291 = sphi %s251, %s251
                $region95: #{rnn_forward.7} parent=91 // loop_header_branch
                  %288 = sbr.rel (%p286) target = $region99
                $region96: #{rnn_forward.7} parent=91 // loop_body
                  _
                $region97: #{rnn_forward.7} parent=91 // loop_footer
                  %s289 = sadd.s32 1, %s285
                $region98: #{rnn_forward.7} parent=91 // loop_footer_branch
                  %284 = sbr.rel target = $region94
                $region99: #{rnn_forward.7} parent=91 // loop_exit
                  _
                loop: start=0, step=1, limit=1
                $region100: #{rnn_forward.7} parent=91 // loop_pre_header
                  _
                $region101: #{rnn_forward.7} parent=91 // loop_header
                  %s294 = sphi 0, %s298
                  %p295 = scmp.ge.s32.totalorder %s294, 1
                  %s299 = sphi %s258, %s258
                  %s300 = sphi %s251, %s251
                $region102: #{rnn_forward.7} parent=91 // loop_header_branch
                  %297 = sbr.rel (%p295) target = $region106
                $region103: #{rnn_forward.7} parent=91 // loop_body
                  %v301 = vld [vmem:[%s299] sm:$0xf]
                  %302 = vst [vmem:[%s300] sm:$0xf] %v301
                  %v303 = vld [vmem:[%s299 + $0x8] sm:$0xf]
                  %304 = vst [vmem:[%s300 + $0x4] sm:$0xf] %v303
                  %v305 = vld [vmem:[%s299 + $0x10] sm:$0xf]
                  %306 = vst [vmem:[%s300 + $0x8] sm:$0xf] %v305
                  %v307 = vld [vmem:[%s299 + $0x18] sm:$0xf]
                  %308 = vst [vmem:[%s300 + $0xc] sm:$0xf] %v307
                $region104: #{rnn_forward.7} parent=91 // loop_footer
                  %s298 = sadd.s32 1, %s294
                $region105: #{rnn_forward.7} parent=91 // loop_footer_branch
                  %293 = sbr.rel target = $region101
                $region106: #{rnn_forward.7} parent=91 // loop_exit
                  _
              $region92: #{rnn_forward.7} parent=76 // pred_fallthru
                _
            $region77: #{rnn_forward.7} parent=72 // pred_fallthru
              _
            // Predicated region
            $region78: #{rnn_forward.7} parent=72 // pred_check
              _
            $region79: #{rnn_forward.7} parent=72 // pred_check_branch
              %264 = sbr.rel (0) target = $region81
            $region80: #{rnn_forward.7} parent=72 // pred_region
              loop: start=0, step=1, limit=1
              $region82: #{rnn_forward.7} parent=80 // loop_pre_header
                _
              $region83: #{rnn_forward.7} parent=80 // loop_header
                %s267 = sphi 0, %s271
                %p268 = scmp.ge.s32.totalorder %s267, 1
                %s272 = sphi %s258, %s258
                %s273 = sphi %s251, %s251
              $region84: #{rnn_forward.7} parent=80 // loop_header_branch
                %270 = sbr.rel (%p268) target = $region88
              $region85: #{rnn_forward.7} parent=80 // loop_body
                %v274 = vld [vmem:[%s272] sm:$0xf]
                %275 = vst [vmem:[%s273] sm:$0xf] %v274
                %v276 = vld [vmem:[%s272 + $0x8] sm:$0xf]
                %277 = vst [vmem:[%s273 + $0x4] sm:$0xf] %v276
                %v278 = vld [vmem:[%s272 + $0x10] sm:$0xf]
                %279 = vst [vmem:[%s273 + $0x8] sm:$0xf] %v278
                %v280 = vld [vmem:[%s272 + $0x18] sm:$0xf]
                %281 = vst [vmem:[%s273 + $0xc] sm:$0xf] %v280
              $region86: #{rnn_forward.7} parent=80 // loop_footer
                %s271 = sadd.s32 1, %s267
              $region87: #{rnn_forward.7} parent=80 // loop_footer_branch
                %266 = sbr.rel target = $region83
              $region88: #{rnn_forward.7} parent=80 // loop_exit
                _
            $region81: #{rnn_forward.7} parent=72 // pred_fallthru
              _
          $region73: #{rnn_forward.7} parent=68 // pred_fallthru
            _
          %309 = vnop
        $region69: #{rnn_forward.7} parent=23 // pred_fallthru
          _
      $region24: #{rnn_forward.7} parent=5 // pred_fallthru
        _
      %p310 = scmp.le.s32.totalorder 1, %s10
      %p311 = scmp.lt.s32.totalorder %s10, 3
      %p312 = pnand %p310, %p311
      %p313 = pneg %p312
      // Predicated region
      $region107: #{rnn_forward.7} parent=5 // pred_check
        _
      $region108: #{rnn_forward.7} parent=5 // pred_check_branch
        %315 = sbr.rel (%p312) target = $region110
      $region109: #{rnn_forward.7} parent=5 // pred_region
        %s316 = ssub.s32 %s10, 1
        %s317 = sand.u32 %s37, 1
        %s318 = sand.u32 %s37, 1
        %s319 = smul.addr %s318, 16
        %s320 = scalar_lea.vmem [#allocation4], %s319
        // Predicated region
        $region111: #{rnn_forward.7} parent=109 // pred_check
          %p321 = pneg %p50
        $region112: #{rnn_forward.7} parent=109 // pred_check_branch
          %323 = sbr.rel (%p321) target = $region114
        $region113: #{rnn_forward.7} parent=109 // pred_region
          _
        $region114: #{rnn_forward.7} parent=109 // pred_fallthru
          _
        %s324 = sand.u32 %s67, 1
        %s325 = sand.u32 %s67, 1
        %s326 = smul.addr %s325, 16
        %s327 = scalar_lea.vmem [#allocation5], %s326
        // Predicated region
        $region115: #{rnn_forward.7} parent=109 // pred_check
          %p328 = pneg %p80
        $region116: #{rnn_forward.7} parent=109 // pred_check_branch
          %330 = sbr.rel (%p328) target = $region118
        $region117: #{rnn_forward.7} parent=109 // pred_region
          _
        $region118: #{rnn_forward.7} parent=109 // pred_fallthru
          _
        %s331 = sand.u32 %s37, 1
        %s332 = sand.u32 %s37, 1
        %s333 = smul.addr %s332, 16
        %s334 = scalar_lea.vmem [#allocation4], %s333
        %p335 = pneg %p50
        %p336 = pneg %p47
        %s337 = sand.u32 %s67, 1
        %s338 = sand.u32 %s67, 1
        %s339 = smul.addr %s338, 16
        %s340 = scalar_lea.vmem [#allocation5], %s339
        %p341 = pneg %p80
        %p342 = pneg %p77
        %p343 = pneg %p101
        %p344 = pneg %p98
        %p345 = scmp.lt.s32.totalorder %s19, 0
        %s346 = scalar_select %p345, %s19, 0
        %s347 = smul.addr %s346, 2
        %s348 = scalar_lea.vmem %s3, %s347
        %p349 = pneg %p127
        %p350 = pneg %p124
        %p351 = pneg %p153
        %p352 = pneg %p150
        %p353 = scmp.lt.s32.totalorder %s19, 0
        %s354 = scalar_select %p353, %s19, 0
        %s355 = smul.addr %s354, 2
        %s356 = smul.addr %s355, 2
        %s357 = scalar_lea.vmem %s4, %s356
        %s358 = smul.u32 4, %s20
        %s359 = ssub.s32 1, %s20
        %s360 = smul.u32 4, %s359
        %p361 = scmp.lt.s32.totalorder %s19, 0
        %s362 = scalar_select %p361, %s19, 0
        %s363 = smul.addr %s362, 2
        %s364 = scalar_lea.vmem %s3, %s363
        %p365 = scmp.lt.s32.totalorder %s19, 0
        %s366 = scalar_select %p365, %s19, 0
        %s367 = smul.addr %s366, 2
        %s368 = smul.addr %s367, 2
        %s369 = scalar_lea.vmem %s4, %s368
        %p371 = scmp.eq.s32.totalorder %s20, 0
        // Predicated region
        $region119: #{rnn_forward.7} parent=109 // pred_check
          %p372 = pneg %p371
        $region120: #{rnn_forward.7} parent=109 // pred_check_branch
          %374 = sbr.rel (%p372) target = $region122
        $region121: #{rnn_forward.7} parent=109 // pred_region
          %375 = vst [vmem:[#allocation2] sm:$0x3] 0
          %376 = vst [vmem:[#allocation3] sm:$0xf] 0.0
          %377 = vst [vmem:[%s369] sm:$0xf] 0.0
        $region122: #{rnn_forward.7} parent=109 // pred_fallthru
          _
        %v378 = vld [vmem:[%s364] sm:$0x3]
        %v379 = vlaneseq
        %v380 = vand.u32 %v379, 127
        %v381 = vadd.s32 %v380, 128
        %vm382 = vcmp.lt.s32.totalorder %v380, 128
        %vm383 = vcmp.lt.s32.totalorder %v381, 128
        %s384 = smul.u32 %s20, 4
        %v385 = vld [vmem:[#allocation2] sm:$0x3]
        %v386 = vld [vmem:[#allocation3] sm:$0xf]
        %v387 = vld [vmem:[%s320] sm:$0xf]
        %v388 = vunpack.c.l.bf16 %v387
        %s389 = scalar_lea.vmem %s327, 12 [#allocation5]
        %v390 = vld [vmem:[%s389] sm:$0xf]
        %v391 = vunpack.c.l.bf16 %v390
        %v392 = vld [vmem:[%s2] sm:$0xff]
        %v393 = vld [vmem:[%s2 + $0x8] sm:$0xff]
        %v394 = vld [vmem:[%s2 + $0x10] sm:$0xff]
        %v395 = vld [vmem:[%s2 + $0x18] sm:$0xff]
        %v396 = vld [vmem:[%s2 + $0x20] sm:$0xff]
        %v397 = vld [vmem:[%s2 + $0x28] sm:$0xff]
        %v398 = vld [vmem:[%s2 + $0x30] sm:$0xff]
        %v399 = vld [vmem:[%s2 + $0x38] sm:$0xff]
        %v400 = vld [vmem:[%s2 + $0x40] sm:$0xff]
        %v401 = vld [vmem:[%s2 + $0x48] sm:$0xff]
        %v402 = vld [vmem:[%s2 + $0x50] sm:$0xff]
        %v403 = vld [vmem:[%s2 + $0x58] sm:$0xff]
        %v404 = vld [vmem:[%s2 + $0x60] sm:$0xff]
        %v405 = vld [vmem:[%s2 + $0x68] sm:$0xff]
        %v406 = vld [vmem:[%s2 + $0x70] sm:$0xff]
        %v407 = vld [vmem:[%s2 + $0x78] sm:$0xff]
        %v408 = vld [vmem:[%s2 + $0x80] sm:$0xff]
        %v409 = vld [vmem:[%s2 + $0x88] sm:$0xff]
        %v410 = vld [vmem:[%s2 + $0x90] sm:$0xff]
        %v411 = vld [vmem:[%s2 + $0x98] sm:$0xff]
        %v412 = vld [vmem:[%s2 + $0xa0] sm:$0xff]
        %v413 = vld [vmem:[%s2 + $0xa8] sm:$0xff]
        %v414 = vld [vmem:[%s2 + $0xb0] sm:$0xff]
        %v415 = vld [vmem:[%s2 + $0xb8] sm:$0xff]
        %v416 = vld [vmem:[%s2 + $0xc0] sm:$0xff]
        %v417 = vld [vmem:[%s2 + $0xc8] sm:$0xff]
        %v418 = vld [vmem:[%s2 + $0xd0] sm:$0xff]
        %v419 = vld [vmem:[%s2 + $0xd8] sm:$0xff]
        %v420 = vld [vmem:[%s2 + $0xe0] sm:$0xff]
        %v421 = vld [vmem:[%s2 + $0xe8] sm:$0xff]
        %v422 = vld [vmem:[%s2 + $0xf0] sm:$0xff]
        %v423 = vld [vmem:[%s2 + $0xf8] sm:$0xff]
        %v424 = vld [vmem:[%s2 + $0x100] sm:$0xff]
        %v425 = vld [vmem:[%s2 + $0x108] sm:$0xff]
        %v426 = vld [vmem:[%s2 + $0x110] sm:$0xff]
        %v427 = vld [vmem:[%s2 + $0x118] sm:$0xff]
        %v428 = vld [vmem:[%s2 + $0x120] sm:$0xff]
        %v429 = vld [vmem:[%s2 + $0x128] sm:$0xff]
        %v430 = vld [vmem:[%s2 + $0x130] sm:$0xff]
        %v431 = vld [vmem:[%s2 + $0x138] sm:$0xff]
        %v432 = vld [vmem:[%s2 + $0x140] sm:$0xff]
        %v433 = vld [vmem:[%s2 + $0x148] sm:$0xff]
        %v434 = vld [vmem:[%s2 + $0x150] sm:$0xff]
        %v435 = vld [vmem:[%s2 + $0x158] sm:$0xff]
        %v436 = vld [vmem:[%s2 + $0x160] sm:$0xff]
        %v437 = vld [vmem:[%s2 + $0x168] sm:$0xff]
        %v438 = vld [vmem:[%s2 + $0x170] sm:$0xff]
        %v439 = vld [vmem:[%s2 + $0x178] sm:$0xff]
        %v440 = vld [vmem:[%s2 + $0x180] sm:$0xff]
        %v441 = vld [vmem:[%s2 + $0x188] sm:$0xff]
        %v442 = vld [vmem:[%s2 + $0x190] sm:$0xff]
        %v443 = vld [vmem:[%s2 + $0x198] sm:$0xff]
        %v444 = vld [vmem:[%s2 + $0x1a0] sm:$0xff]
        %v445 = vld [vmem:[%s2 + $0x1a8] sm:$0xff]
        %v446 = vld [vmem:[%s2 + $0x1b0] sm:$0xff]
        %v447 = vld [vmem:[%s2 + $0x1b8] sm:$0xff]
        %v448 = vld [vmem:[%s2 + $0x1c0] sm:$0xff]
        %v449 = vld [vmem:[%s2 + $0x1c8] sm:$0xff]
        %v450 = vld [vmem:[%s2 + $0x1d0] sm:$0xff]
        %v451 = vld [vmem:[%s2 + $0x1d8] sm:$0xff]
        %v452 = vld [vmem:[%s2 + $0x1e0] sm:$0xff]
        %v453 = vld [vmem:[%s2 + $0x1e8] sm:$0xff]
        %v454 = vld [vmem:[%s2 + $0x1f0] sm:$0xff]
        %v455 = vld [vmem:[%s2 + $0x1f8] sm:$0xff]
        %v456 = vld [vmem:[%s2 + $0x200] sm:$0xff]
        %v457 = vld [vmem:[%s2 + $0x208] sm:$0xff]
        %v458 = vld [vmem:[%s2 + $0x210] sm:$0xff]
        %v459 = vld [vmem:[%s2 + $0x218] sm:$0xff]
        %v460 = vld [vmem:[%s2 + $0x220] sm:$0xff]
        %v461 = vld [vmem:[%s2 + $0x228] sm:$0xff]
        %v462 = vld [vmem:[%s2 + $0x230] sm:$0xff]
        %v463 = vld [vmem:[%s2 + $0x238] sm:$0xff]
        %v464 = vld [vmem:[%s2 + $0x240] sm:$0xff]
        %v465 = vld [vmem:[%s2 + $0x248] sm:$0xff]
        %v466 = vld [vmem:[%s2 + $0x250] sm:$0xff]
        %v467 = vld [vmem:[%s2 + $0x258] sm:$0xff]
        %v468 = vld [vmem:[%s2 + $0x260] sm:$0xff]
        %v469 = vld [vmem:[%s2 + $0x268] sm:$0xff]
        %v470 = vld [vmem:[%s2 + $0x270] sm:$0xff]
        %v471 = vld [vmem:[%s2 + $0x278] sm:$0xff]
        %v472 = vld [vmem:[%s2 + $0x280] sm:$0xff]
        %v473 = vld [vmem:[%s2 + $0x288] sm:$0xff]
        %v474 = vld [vmem:[%s2 + $0x290] sm:$0xff]
        %v475 = vld [vmem:[%s2 + $0x298] sm:$0xff]
        %v476 = vld [vmem:[%s2 + $0x2a0] sm:$0xff]
        %v477 = vld [vmem:[%s2 + $0x2a8] sm:$0xff]
        %v478 = vld [vmem:[%s2 + $0x2b0] sm:$0xff]
        %v479 = vld [vmem:[%s2 + $0x2b8] sm:$0xff]
        %v480 = vld [vmem:[%s2 + $0x2c0] sm:$0xff]
        %v481 = vld [vmem:[%s2 + $0x2c8] sm:$0xff]
        %v482 = vld [vmem:[%s2 + $0x2d0] sm:$0xff]
        %v483 = vld [vmem:[%s2 + $0x2d8] sm:$0xff]
        %v484 = vld [vmem:[%s2 + $0x2e0] sm:$0xff]
        %v485 = vld [vmem:[%s2 + $0x2e8] sm:$0xff]
        %v486 = vld [vmem:[%s2 + $0x2f0] sm:$0xff]
        %v487 = vld [vmem:[%s2 + $0x2f8] sm:$0xff]
        %v488 = vld [vmem:[%s2 + $0x300] sm:$0xff]
        %v489 = vld [vmem:[%s2 + $0x308] sm:$0xff]
        %v490 = vld [vmem:[%s2 + $0x310] sm:$0xff]
        %v491 = vld [vmem:[%s2 + $0x318] sm:$0xff]
        %v492 = vld [vmem:[%s2 + $0x320] sm:$0xff]
        %v493 = vld [vmem:[%s2 + $0x328] sm:$0xff]
        %v494 = vld [vmem:[%s2 + $0x330] sm:$0xff]
        %v495 = vld [vmem:[%s2 + $0x338] sm:$0xff]
        %v496 = vld [vmem:[%s2 + $0x340] sm:$0xff]
        %v497 = vld [vmem:[%s2 + $0x348] sm:$0xff]
        %v498 = vld [vmem:[%s2 + $0x350] sm:$0xff]
        %v499 = vld [vmem:[%s2 + $0x358] sm:$0xff]
        %v500 = vld [vmem:[%s2 + $0x360] sm:$0xff]
        %v501 = vld [vmem:[%s2 + $0x368] sm:$0xff]
        %v502 = vld [vmem:[%s2 + $0x370] sm:$0xff]
        %v503 = vld [vmem:[%s2 + $0x378] sm:$0xff]
        %v504 = vld [vmem:[%s2 + $0x380] sm:$0xff]
        %v505 = vld [vmem:[%s2 + $0x388] sm:$0xff]
        %v506 = vld [vmem:[%s2 + $0x390] sm:$0xff]
        %v507 = vld [vmem:[%s2 + $0x398] sm:$0xff]
        %v508 = vld [vmem:[%s2 + $0x3a0] sm:$0xff]
        %v509 = vld [vmem:[%s2 + $0x3a8] sm:$0xff]
        %v510 = vld [vmem:[%s2 + $0x3b0] sm:$0xff]
        %v511 = vld [vmem:[%s2 + $0x3b8] sm:$0xff]
        %v512 = vld [vmem:[%s2 + $0x3c0] sm:$0xff]
        %v513 = vld [vmem:[%s2 + $0x3c8] sm:$0xff]
        %v514 = vld [vmem:[%s2 + $0x3d0] sm:$0xff]
        %v515 = vld [vmem:[%s2 + $0x3d8] sm:$0xff]
        %v516 = vld [vmem:[%s2 + $0x3e0] sm:$0xff]
        %v517 = vld [vmem:[%s2 + $0x3e8] sm:$0xff]
        %v518 = vld [vmem:[%s2 + $0x3f0] sm:$0xff]
        %v519 = vld [vmem:[%s2 + $0x3f8] sm:$0xff]
        %v522 = vunpack.c.l.s4 1966171168
        %v523 = vunpack.c.0.s8 %v522
        %v524 = vlaneseq
        %v525 = vshrl.u32 %v524, 7
        %v526 = vsub.s32 %v523, %v525
        %v527 = vrot.slane %v385, %v526
        %v528 = vcombine.high %v527, %v527
        %v530 = vunpack.c.l.s4 1966171168
        %v531 = vunpack.c.0.s8 %v530
        %v532 = vlaneseq
        %v533 = vshrl.u32 %v532, 7
        %v534 = vsub.s32 %v531, %v533
        %v535 = vrot.slane %v527, %v534
        %v537 = vunpack.c.l.s4 1966171168
        %v538 = vunpack.c.0.s8 %v537
        %v539 = vlaneseq
        %v540 = vshrl.u32 %v539, 7
        %v541 = vsub.s32 %v538, %v540
        %v542 = vrot.slane %v528, %v541
        %v673 = vunpack.c.l.b16 %v392
        %v674 = vunpack.c.h.b16 %v392
        %v675 = vunpack.c.l.b16 %v393
        %v676 = vunpack.c.h.b16 %v393
        %v677 = vunpack.c.l.b16 %v394
        %v678 = vunpack.c.h.b16 %v394
        %v679 = vunpack.c.l.b16 %v395
        %v680 = vunpack.c.h.b16 %v395
        %v681 = vunpack.c.l.b16 %v396
        %v682 = vunpack.c.h.b16 %v396
        %v683 = vunpack.c.l.b16 %v397
        %v684 = vunpack.c.h.b16 %v397
        %v685 = vunpack.c.l.b16 %v398
        %v686 = vunpack.c.h.b16 %v398
        %v687 = vunpack.c.l.b16 %v399
        %v688 = vunpack.c.h.b16 %v399
        %v689 = vunpack.c.l.b16 %v400
        %v690 = vunpack.c.h.b16 %v400
        %v691 = vunpack.c.l.b16 %v401
        %v692 = vunpack.c.h.b16 %v401
        %v693 = vunpack.c.l.b16 %v402
        %v694 = vunpack.c.h.b16 %v402
        %v695 = vunpack.c.l.b16 %v403
        %v696 = vunpack.c.h.b16 %v403
        %v697 = vunpack.c.l.b16 %v404
        %v698 = vunpack.c.h.b16 %v404
        %v699 = vunpack.c.l.b16 %v405
        %v700 = vunpack.c.h.b16 %v405
        %v701 = vunpack.c.l.b16 %v406
        %v702 = vunpack.c.h.b16 %v406
        %v703 = vunpack.c.l.b16 %v407
        %v704 = vunpack.c.h.b16 %v407
        %v705 = vunpack.c.l.b16 %v408
        %v706 = vunpack.c.h.b16 %v408
        %v707 = vunpack.c.l.b16 %v409
        %v708 = vunpack.c.h.b16 %v409
        %v709 = vunpack.c.l.b16 %v410
        %v710 = vunpack.c.h.b16 %v410
        %v711 = vunpack.c.l.b16 %v411
        %v712 = vunpack.c.h.b16 %v411
        %v713 = vunpack.c.l.b16 %v412
        %v714 = vunpack.c.h.b16 %v412
        %v715 = vunpack.c.l.b16 %v413
        %v716 = vunpack.c.h.b16 %v413
        %v717 = vunpack.c.l.b16 %v414
        %v718 = vunpack.c.h.b16 %v414
        %v719 = vunpack.c.l.b16 %v415
        %v720 = vunpack.c.h.b16 %v415
        %v721 = vunpack.c.l.b16 %v416
        %v722 = vunpack.c.h.b16 %v416
        %v723 = vunpack.c.l.b16 %v417
        %v724 = vunpack.c.h.b16 %v417
        %v725 = vunpack.c.l.b16 %v418
        %v726 = vunpack.c.h.b16 %v418
        %v727 = vunpack.c.l.b16 %v419
        %v728 = vunpack.c.h.b16 %v419
        %v729 = vunpack.c.l.b16 %v420
        %v730 = vunpack.c.h.b16 %v420
        %v731 = vunpack.c.l.b16 %v421
        %v732 = vunpack.c.h.b16 %v421
        %v733 = vunpack.c.l.b16 %v422
        %v734 = vunpack.c.h.b16 %v422
        %v735 = vunpack.c.l.b16 %v423
        %v736 = vunpack.c.h.b16 %v423
        %v737 = vunpack.c.l.b16 %v424
        %v738 = vunpack.c.h.b16 %v424
        %v739 = vunpack.c.l.b16 %v425
        %v740 = vunpack.c.h.b16 %v425
        %v741 = vunpack.c.l.b16 %v426
        %v742 = vunpack.c.h.b16 %v426
        %v743 = vunpack.c.l.b16 %v427
        %v744 = vunpack.c.h.b16 %v427
        %v745 = vunpack.c.l.b16 %v428
        %v746 = vunpack.c.h.b16 %v428
        %v747 = vunpack.c.l.b16 %v429
        %v748 = vunpack.c.h.b16 %v429
        %v749 = vunpack.c.l.b16 %v430
        %v750 = vunpack.c.h.b16 %v430
        %v751 = vunpack.c.l.b16 %v431
        %v752 = vunpack.c.h.b16 %v431
        %v753 = vunpack.c.l.b16 %v432
        %v754 = vunpack.c.h.b16 %v432
        %v755 = vunpack.c.l.b16 %v433
        %v756 = vunpack.c.h.b16 %v433
        %v757 = vunpack.c.l.b16 %v434
        %v758 = vunpack.c.h.b16 %v434
        %v759 = vunpack.c.l.b16 %v435
        %v760 = vunpack.c.h.b16 %v435
        %v761 = vunpack.c.l.b16 %v436
        %v762 = vunpack.c.h.b16 %v436
        %v763 = vunpack.c.l.b16 %v437
        %v764 = vunpack.c.h.b16 %v437
        %v765 = vunpack.c.l.b16 %v438
        %v766 = vunpack.c.h.b16 %v438
        %v767 = vunpack.c.l.b16 %v439
        %v768 = vunpack.c.h.b16 %v439
        %v769 = vunpack.c.l.b16 %v440
        %v770 = vunpack.c.h.b16 %v440
        %v771 = vunpack.c.l.b16 %v441
        %v772 = vunpack.c.h.b16 %v441
        %v773 = vunpack.c.l.b16 %v442
        %v774 = vunpack.c.h.b16 %v442
        %v775 = vunpack.c.l.b16 %v443
        %v776 = vunpack.c.h.b16 %v443
        %v777 = vunpack.c.l.b16 %v444
        %v778 = vunpack.c.h.b16 %v444
        %v779 = vunpack.c.l.b16 %v445
        %v780 = vunpack.c.h.b16 %v445
        %v781 = vunpack.c.l.b16 %v446
        %v782 = vunpack.c.h.b16 %v446
        %v783 = vunpack.c.l.b16 %v447
        %v784 = vunpack.c.h.b16 %v447
        %v785 = vunpack.c.l.b16 %v448
        %v786 = vunpack.c.h.b16 %v448
        %v787 = vunpack.c.l.b16 %v449
        %v788 = vunpack.c.h.b16 %v449
        %v789 = vunpack.c.l.b16 %v450
        %v790 = vunpack.c.h.b16 %v450
        %v791 = vunpack.c.l.b16 %v451
        %v792 = vunpack.c.h.b16 %v451
        %v793 = vunpack.c.l.b16 %v452
        %v794 = vunpack.c.h.b16 %v452
        %v795 = vunpack.c.l.b16 %v453
        %v796 = vunpack.c.h.b16 %v453
        %v797 = vunpack.c.l.b16 %v454
        %v798 = vunpack.c.h.b16 %v454
        %v799 = vunpack.c.l.b16 %v455
        %v800 = vunpack.c.h.b16 %v455
        %v801 = vunpack.c.l.b16 %v456
        %v802 = vunpack.c.h.b16 %v456
        %v803 = vunpack.c.l.b16 %v457
        %v804 = vunpack.c.h.b16 %v457
        %v805 = vunpack.c.l.b16 %v458
        %v806 = vunpack.c.h.b16 %v458
        %v807 = vunpack.c.l.b16 %v459
        %v808 = vunpack.c.h.b16 %v459
        %v809 = vunpack.c.l.b16 %v460
        %v810 = vunpack.c.h.b16 %v460
        %v811 = vunpack.c.l.b16 %v461
        %v812 = vunpack.c.h.b16 %v461
        %v813 = vunpack.c.l.b16 %v462
        %v814 = vunpack.c.h.b16 %v462
        %v815 = vunpack.c.l.b16 %v463
        %v816 = vunpack.c.h.b16 %v463
        %v817 = vunpack.c.l.b16 %v464
        %v818 = vunpack.c.h.b16 %v464
        %v819 = vunpack.c.l.b16 %v465
        %v820 = vunpack.c.h.b16 %v465
        %v821 = vunpack.c.l.b16 %v466
        %v822 = vunpack.c.h.b16 %v466
        %v823 = vunpack.c.l.b16 %v467
        %v824 = vunpack.c.h.b16 %v467
        %v825 = vunpack.c.l.b16 %v468
        %v826 = vunpack.c.h.b16 %v468
        %v827 = vunpack.c.l.b16 %v469
        %v828 = vunpack.c.h.b16 %v469
        %v829 = vunpack.c.l.b16 %v470
        %v830 = vunpack.c.h.b16 %v470
        %v831 = vunpack.c.l.b16 %v471
        %v832 = vunpack.c.h.b16 %v471
        %v833 = vunpack.c.l.b16 %v472
        %v834 = vunpack.c.h.b16 %v472
        %v835 = vunpack.c.l.b16 %v473
        %v836 = vunpack.c.h.b16 %v473
        %v837 = vunpack.c.l.b16 %v474
        %v838 = vunpack.c.h.b16 %v474
        %v839 = vunpack.c.l.b16 %v475
        %v840 = vunpack.c.h.b16 %v475
        %v841 = vunpack.c.l.b16 %v476
        %v842 = vunpack.c.h.b16 %v476
        %v843 = vunpack.c.l.b16 %v477
        %v844 = vunpack.c.h.b16 %v477
        %v845 = vunpack.c.l.b16 %v478
        %v846 = vunpack.c.h.b16 %v478
        %v847 = vunpack.c.l.b16 %v479
        %v848 = vunpack.c.h.b16 %v479
        %v849 = vunpack.c.l.b16 %v480
        %v850 = vunpack.c.h.b16 %v480
        %v851 = vunpack.c.l.b16 %v481
        %v852 = vunpack.c.h.b16 %v481
        %v853 = vunpack.c.l.b16 %v482
        %v854 = vunpack.c.h.b16 %v482
        %v855 = vunpack.c.l.b16 %v483
        %v856 = vunpack.c.h.b16 %v483
        %v857 = vunpack.c.l.b16 %v484
        %v858 = vunpack.c.h.b16 %v484
        %v859 = vunpack.c.l.b16 %v485
        %v860 = vunpack.c.h.b16 %v485
        %v861 = vunpack.c.l.b16 %v486
        %v862 = vunpack.c.h.b16 %v486
        %v863 = vunpack.c.l.b16 %v487
        %v864 = vunpack.c.h.b16 %v487
        %v865 = vunpack.c.l.b16 %v488
        %v866 = vunpack.c.h.b16 %v488
        %v867 = vunpack.c.l.b16 %v489
        %v868 = vunpack.c.h.b16 %v489
        %v869 = vunpack.c.l.b16 %v490
        %v870 = vunpack.c.h.b16 %v490
        %v871 = vunpack.c.l.b16 %v491
        %v872 = vunpack.c.h.b16 %v491
        %v873 = vunpack.c.l.b16 %v492
        %v874 = vunpack.c.h.b16 %v492
        %v875 = vunpack.c.l.b16 %v493
        %v876 = vunpack.c.h.b16 %v493
        %v877 = vunpack.c.l.b16 %v494
        %v878 = vunpack.c.h.b16 %v494
        %v879 = vunpack.c.l.b16 %v495
        %v880 = vunpack.c.h.b16 %v495
        %v881 = vunpack.c.l.b16 %v496
        %v882 = vunpack.c.h.b16 %v496
        %v883 = vunpack.c.l.b16 %v497
        %v884 = vunpack.c.h.b16 %v497
        %v885 = vunpack.c.l.b16 %v498
        %v886 = vunpack.c.h.b16 %v498
        %v887 = vunpack.c.l.b16 %v499
        %v888 = vunpack.c.h.b16 %v499
        %v889 = vunpack.c.l.b16 %v500
        %v890 = vunpack.c.h.b16 %v500
        %v891 = vunpack.c.l.b16 %v501
        %v892 = vunpack.c.h.b16 %v501
        %v893 = vunpack.c.l.b16 %v502
        %v894 = vunpack.c.h.b16 %v502
        %v895 = vunpack.c.l.b16 %v503
        %v896 = vunpack.c.h.b16 %v503
        %v897 = vunpack.c.l.b16 %v504
        %v898 = vunpack.c.h.b16 %v504
        %v899 = vunpack.c.l.b16 %v505
        %v900 = vunpack.c.h.b16 %v505
        %v901 = vunpack.c.l.b16 %v506
        %v902 = vunpack.c.h.b16 %v506
        %v903 = vunpack.c.l.b16 %v507
        %v904 = vunpack.c.h.b16 %v507
        %v905 = vunpack.c.l.b16 %v508
        %v906 = vunpack.c.h.b16 %v508
        %v907 = vunpack.c.l.b16 %v509
        %v908 = vunpack.c.h.b16 %v509
        %v909 = vunpack.c.l.b16 %v510
        %v910 = vunpack.c.h.b16 %v510
        %v911 = vunpack.c.l.b16 %v511
        %v912 = vunpack.c.h.b16 %v511
        %v913 = vunpack.c.l.b16 %v512
        %v914 = vunpack.c.h.b16 %v512
        %v915 = vunpack.c.l.b16 %v513
        %v916 = vunpack.c.h.b16 %v513
        %v917 = vunpack.c.l.b16 %v514
        %v918 = vunpack.c.h.b16 %v514
        %v919 = vunpack.c.l.b16 %v515
        %v920 = vunpack.c.h.b16 %v515
        %v921 = vunpack.c.l.b16 %v516
        %v922 = vunpack.c.h.b16 %v516
        %v923 = vunpack.c.l.b16 %v517
        %v924 = vunpack.c.h.b16 %v517
        %v925 = vunpack.c.l.b16 %v518
        %v926 = vunpack.c.h.b16 %v518
        %v927 = vunpack.c.l.b16 %v519
        %v928 = vunpack.c.h.b16 %v519
        %v929 = vpack.c.b16 %v681, %v673
        %v930 = vpack.c.b16 %v682, %v674
        %v931 = vpack.c.b16 %v683, %v675
        %v932 = vpack.c.b16 %v684, %v676
        %v933 = vpack.c.b16 %v685, %v677
        %v934 = vpack.c.b16 %v686, %v678
        %v935 = vpack.c.b16 %v687, %v679
        %v936 = vpack.c.b16 %v688, %v680
        %v937 = vpack.c.b16 %v697, %v689
        %v938 = vpack.c.b16 %v698, %v690
        %v939 = vpack.c.b16 %v699, %v691
        %v940 = vpack.c.b16 %v700, %v692
        %v941 = vpack.c.b16 %v701, %v693
        %v942 = vpack.c.b16 %v702, %v694
        %v943 = vpack.c.b16 %v703, %v695
        %v944 = vpack.c.b16 %v704, %v696
        %v945 = vpack.c.b16 %v713, %v705
        %v946 = vpack.c.b16 %v714, %v706
        %v947 = vpack.c.b16 %v715, %v707
        %v948 = vpack.c.b16 %v716, %v708
        %v949 = vpack.c.b16 %v717, %v709
        %v950 = vpack.c.b16 %v718, %v710
        %v951 = vpack.c.b16 %v719, %v711
        %v952 = vpack.c.b16 %v720, %v712
        %v953 = vpack.c.b16 %v729, %v721
        %v954 = vpack.c.b16 %v730, %v722
        %v955 = vpack.c.b16 %v731, %v723
        %v956 = vpack.c.b16 %v732, %v724
        %v957 = vpack.c.b16 %v733, %v725
        %v958 = vpack.c.b16 %v734, %v726
        %v959 = vpack.c.b16 %v735, %v727
        %v960 = vpack.c.b16 %v736, %v728
        %v961 = vpack.c.b16 %v745, %v737
        %v962 = vpack.c.b16 %v746, %v738
        %v963 = vpack.c.b16 %v747, %v739
        %v964 = vpack.c.b16 %v748, %v740
        %v965 = vpack.c.b16 %v749, %v741
        %v966 = vpack.c.b16 %v750, %v742
        %v967 = vpack.c.b16 %v751, %v743
        %v968 = vpack.c.b16 %v752, %v744
        %v969 = vpack.c.b16 %v761, %v753
        %v970 = vpack.c.b16 %v762, %v754
        %v971 = vpack.c.b16 %v763, %v755
        %v972 = vpack.c.b16 %v764, %v756
        %v973 = vpack.c.b16 %v765, %v757
        %v974 = vpack.c.b16 %v766, %v758
        %v975 = vpack.c.b16 %v767, %v759
        %v976 = vpack.c.b16 %v768, %v760
        %v977 = vpack.c.b16 %v777, %v769
        %v978 = vpack.c.b16 %v778, %v770
        %v979 = vpack.c.b16 %v779, %v771
        %v980 = vpack.c.b16 %v780, %v772
        %v981 = vpack.c.b16 %v781, %v773
        %v982 = vpack.c.b16 %v782, %v774
        %v983 = vpack.c.b16 %v783, %v775
        %v984 = vpack.c.b16 %v784, %v776
        %v985 = vpack.c.b16 %v793, %v785
        %v986 = vpack.c.b16 %v794, %v786
        %v987 = vpack.c.b16 %v795, %v787
        %v988 = vpack.c.b16 %v796, %v788
        %v989 = vpack.c.b16 %v797, %v789
        %v990 = vpack.c.b16 %v798, %v790
        %v991 = vpack.c.b16 %v799, %v791
        %v992 = vpack.c.b16 %v800, %v792
        %v993 = vpack.c.b16 %v809, %v801
        %v994 = vpack.c.b16 %v810, %v802
        %v995 = vpack.c.b16 %v811, %v803
        %v996 = vpack.c.b16 %v812, %v804
        %v997 = vpack.c.b16 %v813, %v805
        %v998 = vpack.c.b16 %v814, %v806
        %v999 = vpack.c.b16 %v815, %v807
        %v1000 = vpack.c.b16 %v816, %v808
        %v1001 = vpack.c.b16 %v825, %v817
        %v1002 = vpack.c.b16 %v826, %v818
        %v1003 = vpack.c.b16 %v827, %v819
        %v1004 = vpack.c.b16 %v828, %v820
        %v1005 = vpack.c.b16 %v829, %v821
        %v1006 = vpack.c.b16 %v830, %v822
        %v1007 = vpack.c.b16 %v831, %v823
        %v1008 = vpack.c.b16 %v832, %v824
        %v1009 = vpack.c.b16 %v841, %v833
        %v1010 = vpack.c.b16 %v842, %v834
        %v1011 = vpack.c.b16 %v843, %v835
        %v1012 = vpack.c.b16 %v844, %v836
        %v1013 = vpack.c.b16 %v845, %v837
        %v1014 = vpack.c.b16 %v846, %v838
        %v1015 = vpack.c.b16 %v847, %v839
        %v1016 = vpack.c.b16 %v848, %v840
        %v1017 = vpack.c.b16 %v857, %v849
        %v1018 = vpack.c.b16 %v858, %v850
        %v1019 = vpack.c.b16 %v859, %v851
        %v1020 = vpack.c.b16 %v860, %v852
        %v1021 = vpack.c.b16 %v861, %v853
        %v1022 = vpack.c.b16 %v862, %v854
        %v1023 = vpack.c.b16 %v863, %v855
        %v1024 = vpack.c.b16 %v864, %v856
        %v1025 = vpack.c.b16 %v873, %v865
        %v1026 = vpack.c.b16 %v874, %v866
        %v1027 = vpack.c.b16 %v875, %v867
        %v1028 = vpack.c.b16 %v876, %v868
        %v1029 = vpack.c.b16 %v877, %v869
        %v1030 = vpack.c.b16 %v878, %v870
        %v1031 = vpack.c.b16 %v879, %v871
        %v1032 = vpack.c.b16 %v880, %v872
        %v1033 = vpack.c.b16 %v889, %v881
        %v1034 = vpack.c.b16 %v890, %v882
        %v1035 = vpack.c.b16 %v891, %v883
        %v1036 = vpack.c.b16 %v892, %v884
        %v1037 = vpack.c.b16 %v893, %v885
        %v1038 = vpack.c.b16 %v894, %v886
        %v1039 = vpack.c.b16 %v895, %v887
        %v1040 = vpack.c.b16 %v896, %v888
        %v1041 = vpack.c.b16 %v905, %v897
        %v1042 = vpack.c.b16 %v906, %v898
        %v1043 = vpack.c.b16 %v907, %v899
        %v1044 = vpack.c.b16 %v908, %v900
        %v1045 = vpack.c.b16 %v909, %v901
        %v1046 = vpack.c.b16 %v910, %v902
        %v1047 = vpack.c.b16 %v911, %v903
        %v1048 = vpack.c.b16 %v912, %v904
        %v1049 = vpack.c.b16 %v921, %v913
        %v1050 = vpack.c.b16 %v922, %v914
        %v1051 = vpack.c.b16 %v923, %v915
        %v1052 = vpack.c.b16 %v924, %v916
        %v1053 = vpack.c.b16 %v925, %v917
        %v1054 = vpack.c.b16 %v926, %v918
        %v1055 = vpack.c.b16 %v927, %v919
        %v1056 = vpack.c.b16 %v928, %v920
        %1185 = vmatprep.subr.bf16.mxu0 %v930
        %1186 = vmatpush1.bf16.msra.mxu0 %v929
        %1187 = vmatprep.subr.bf16.mxu0 %v938
        %1188 = vmatpush1.bf16.msra.mxu0 %v937
        %1189 = vmatprep.subr.bf16.mxu0 %v946
        %1190 = vmatpush1.bf16.msra.mxu0 %v945
        %1191 = vmatprep.subr.bf16.mxu0 %v954
        %1192 = vmatpush1.bf16.msra.mxu0 %v953
        %1193 = vmatprep.subr.bf16.mxu0 %v962
        %1194 = vmatpush1.bf16.msra.mxu0 %v961
        %1195 = vmatprep.subr.bf16.mxu0 %v970
        %1196 = vmatpush1.bf16.msra.mxu0 %v969
        %1197 = vmatprep.subr.bf16.mxu0 %v978
        %1198 = vmatpush1.bf16.msra.mxu0 %v977
        %1199 = vmatprep.subr.bf16.mxu0 %v986
        %1200 = vmatpush1.bf16.msra.mxu0 %v985
        %1201 = vmatprep.subr.bf16.mxu0 %v994
        %1202 = vmatpush1.bf16.msra.mxu0 %v993
        %1203 = vmatprep.subr.bf16.mxu0 %v1002
        %1204 = vmatpush1.bf16.msra.mxu0 %v1001
        %1205 = vmatprep.subr.bf16.mxu0 %v1010
        %1206 = vmatpush1.bf16.msra.mxu0 %v1009
        %1207 = vmatprep.subr.bf16.mxu0 %v1018
        %1208 = vmatpush1.bf16.msra.mxu0 %v1017
        %1209 = vmatprep.subr.bf16.mxu0 %v1026
        %1210 = vmatpush1.bf16.msra.mxu0 %v1025
        %1211 = vmatprep.subr.bf16.mxu0 %v1034
        %1212 = vmatpush1.bf16.msra.mxu0 %v1033
        %1213 = vmatprep.subr.bf16.mxu0 %v1042
        %1214 = vmatpush1.bf16.msra.mxu0 %v1041
        %1215 = vmatprep.subr.bf16.mxu0 %v1050
        %1216 = vmatpush1.bf16.msra.mxu0 %v1049
        %1217 = vmatprep.mubr.bf16.mxu0 %v542
        %1218 = vmatmul.mubr.bf16.gmra.mrb[0].mxu0 %v535
        %v1219 = vpop.f32.mrb[0].mxu0
        %v1220 = vadd.f32 0.0, %v1219
        %v1221 = vpop.f32.mrb[0].mxu0
        %v1222 = vadd.f32 0.0, %v1221
        %v1223 = vpop.f32.mrb[0].mxu0
        %v1224 = vpop.f32.mrb[0].mxu0
        %1225 = vdwg.mxu0
        %1226 = vmatprep.subr.bf16.mxu0 %v932
        %1227 = vmatpush1.bf16.msra.mxu0 %v931
        %1228 = vmatprep.subr.bf16.mxu0 %v940
        %1229 = vmatpush1.bf16.msra.mxu0 %v939
        %1230 = vmatprep.subr.bf16.mxu0 %v948
        %1231 = vmatpush1.bf16.msra.mxu0 %v947
        %1232 = vmatprep.subr.bf16.mxu0 %v956
        %1233 = vmatpush1.bf16.msra.mxu0 %v955
        %1234 = vmatprep.subr.bf16.mxu0 %v964
        %1235 = vmatpush1.bf16.msra.mxu0 %v963
        %1236 = vmatprep.subr.bf16.mxu0 %v972
        %1237 = vmatpush1.bf16.msra.mxu0 %v971
        %1238 = vmatprep.subr.bf16.mxu0 %v980
        %1239 = vmatpush1.bf16.msra.mxu0 %v979
        %1240 = vmatprep.subr.bf16.mxu0 %v988
        %1241 = vmatpush1.bf16.msra.mxu0 %v987
        %1242 = vmatprep.subr.bf16.mxu0 %v996
        %1243 = vmatpush1.bf16.msra.mxu0 %v995
        %1244 = vmatprep.subr.bf16.mxu0 %v1004
        %1245 = vmatpush1.bf16.msra.mxu0 %v1003
        %1246 = vmatprep.subr.bf16.mxu0 %v1012
        %1247 = vmatpush1.bf16.msra.mxu0 %v1011
        %1248 = vmatprep.subr.bf16.mxu0 %v1020
        %1249 = vmatpush1.bf16.msra.mxu0 %v1019
        %1250 = vmatprep.subr.bf16.mxu0 %v1028
        %1251 = vmatpush1.bf16.msra.mxu0 %v1027
        %1252 = vmatprep.subr.bf16.mxu0 %v1036
        %1253 = vmatpush1.bf16.msra.mxu0 %v1035
        %1254 = vmatprep.subr.bf16.mxu0 %v1044
        %1255 = vmatpush1.bf16.msra.mxu0 %v1043
        %1256 = vmatprep.subr.bf16.mxu0 %v1052
        %1257 = vmatpush1.bf16.msra.mxu0 %v1051
        %1258 = vmatprep.mubr.bf16.mxu0 %v542
        %1259 = vmatmul.mubr.bf16.gmra.mrb[0].mxu0 %v535
        %v1260 = vpop.f32.mrb[0].mxu0
        %v1261 = vadd.f32 0.0, %v1260
        %v1262 = vpop.f32.mrb[0].mxu0
        %v1263 = vadd.f32 0.0, %v1262
        %v1264 = vpop.f32.mrb[0].mxu0
        %v1265 = vpop.f32.mrb[0].mxu0
        %1266 = vdwg.mxu0
        %1267 = vmatprep.subr.bf16.mxu0 %v934
        %1268 = vmatpush1.bf16.msra.mxu0 %v933
        %1269 = vmatprep.subr.bf16.mxu0 %v942
        %1270 = vmatpush1.bf16.msra.mxu0 %v941
        %1271 = vmatprep.subr.bf16.mxu0 %v950
        %1272 = vmatpush1.bf16.msra.mxu0 %v949
        %1273 = vmatprep.subr.bf16.mxu0 %v958
        %1274 = vmatpush1.bf16.msra.mxu0 %v957
        %1275 = vmatprep.subr.bf16.mxu0 %v966
        %1276 = vmatpush1.bf16.msra.mxu0 %v965
        %1277 = vmatprep.subr.bf16.mxu0 %v974
        %1278 = vmatpush1.bf16.msra.mxu0 %v973
        %1279 = vmatprep.subr.bf16.mxu0 %v982
        %1280 = vmatpush1.bf16.msra.mxu0 %v981
        %1281 = vmatprep.subr.bf16.mxu0 %v990
        %1282 = vmatpush1.bf16.msra.mxu0 %v989
        %1283 = vmatprep.subr.bf16.mxu0 %v998
        %1284 = vmatpush1.bf16.msra.mxu0 %v997
        %1285 = vmatprep.subr.bf16.mxu0 %v1006
        %1286 = vmatpush1.bf16.msra.mxu0 %v1005
        %1287 = vmatprep.subr.bf16.mxu0 %v1014
        %1288 = vmatpush1.bf16.msra.mxu0 %v1013
        %1289 = vmatprep.subr.bf16.mxu0 %v1022
        %1290 = vmatpush1.bf16.msra.mxu0 %v1021
        %1291 = vmatprep.subr.bf16.mxu0 %v1030
        %1292 = vmatpush1.bf16.msra.mxu0 %v1029
        %1293 = vmatprep.subr.bf16.mxu0 %v1038
        %1294 = vmatpush1.bf16.msra.mxu0 %v1037
        %1295 = vmatprep.subr.bf16.mxu0 %v1046
        %1296 = vmatpush1.bf16.msra.mxu0 %v1045
        %1297 = vmatprep.subr.bf16.mxu0 %v1054
        %1298 = vmatpush1.bf16.msra.mxu0 %v1053
        %1299 = vmatprep.mubr.bf16.mxu0 %v542
        %1300 = vmatmul.mubr.bf16.gmra.mrb[0].mxu0 %v535
        %v1301 = vpop.f32.mrb[0].mxu0
        %v1302 = vadd.f32 0.0, %v1301
        %v1303 = vpop.f32.mrb[0].mxu0
        %v1304 = vadd.f32 0.0, %v1303
        %v1305 = vpop.f32.mrb[0].mxu0
        %v1306 = vpop.f32.mrb[0].mxu0
        %1307 = vdwg.mxu0
        %1308 = vmatprep.subr.bf16.mxu0 %v936
        %1309 = vmatpush1.bf16.msra.mxu0 %v935
        %1310 = vmatprep.subr.bf16.mxu0 %v944
        %1311 = vmatpush1.bf16.msra.mxu0 %v943
        %1312 = vmatprep.subr.bf16.mxu0 %v952
        %1313 = vmatpush1.bf16.msra.mxu0 %v951
        %1314 = vmatprep.subr.bf16.mxu0 %v960
        %1315 = vmatpush1.bf16.msra.mxu0 %v959
        %1316 = vmatprep.subr.bf16.mxu0 %v968
        %1317 = vmatpush1.bf16.msra.mxu0 %v967
        %1318 = vmatprep.subr.bf16.mxu0 %v976
        %1319 = vmatpush1.bf16.msra.mxu0 %v975
        %1320 = vmatprep.subr.bf16.mxu0 %v984
        %1321 = vmatpush1.bf16.msra.mxu0 %v983
        %1322 = vmatprep.subr.bf16.mxu0 %v992
        %1323 = vmatpush1.bf16.msra.mxu0 %v991
        %1324 = vmatprep.subr.bf16.mxu0 %v1000
        %1325 = vmatpush1.bf16.msra.mxu0 %v999
        %1326 = vmatprep.subr.bf16.mxu0 %v1008
        %1327 = vmatpush1.bf16.msra.mxu0 %v1007
        %1328 = vmatprep.subr.bf16.mxu0 %v1016
        %1329 = vmatpush1.bf16.msra.mxu0 %v1015
        %1330 = vmatprep.subr.bf16.mxu0 %v1024
        %1331 = vmatpush1.bf16.msra.mxu0 %v1023
        %1332 = vmatprep.subr.bf16.mxu0 %v1032
        %1333 = vmatpush1.bf16.msra.mxu0 %v1031
        %1334 = vmatprep.subr.bf16.mxu0 %v1040
        %1335 = vmatpush1.bf16.msra.mxu0 %v1039
        %1336 = vmatprep.subr.bf16.mxu0 %v1048
        %1337 = vmatpush1.bf16.msra.mxu0 %v1047
        %1338 = vmatprep.subr.bf16.mxu0 %v1056
        %1339 = vmatpush1.bf16.msra.mxu0 %v1055
        %1340 = vmatprep.mubr.bf16.mxu0 %v542
        %1341 = vmatmul.mubr.bf16.gmra.mrb[0].mxu0 %v535
        %v1342 = vpop.f32.mrb[0].mxu0
        %v1343 = vadd.f32 0.0, %v1342
        %v1344 = vpop.f32.mrb[0].mxu0
        %v1345 = vadd.f32 0.0, %v1344
        %v1346 = vpop.f32.mrb[0].mxu0
        %v1347 = vpop.f32.mrb[0].mxu0
        %1348 = vdwg.mxu0
        %v1353 = vcombine.low %v1220, %v1222
        %v1354 = vcombine.low %v1261, %v1263
        %v1356 = vunpack.c.l.s4 1983009808
        %v1357 = vunpack.c.0.s8 %v1356
        %v1358 = vlaneseq
        %v1359 = vshrl.u32 %v1358, 7
        %v1360 = vsub.s32 %v1357, %v1359
        %v1361 = vrot.slane %v1353, %v1360
        %v1363 = vunpack.c.l.s4 1983009808
        %v1364 = vunpack.c.0.s8 %v1363
        %v1365 = vlaneseq
        %v1366 = vshrl.u32 %v1365, 7
        %v1367 = vsub.s32 %v1364, %v1366
        %v1368 = vrot.slane %v1354, %v1367
        %v1369 = vcombine.low %v1361, %v1368
        %v1371 = vadd.f32 %v388, %v1369
        %v1376 = vcombine.low %v1302, %v1304
        %v1377 = vcombine.low %v1343, %v1345
        %v1379 = vunpack.c.l.s4 1983009808
        %v1380 = vunpack.c.0.s8 %v1379
        %v1381 = vlaneseq
        %v1382 = vshrl.u32 %v1381, 7
        %v1383 = vsub.s32 %v1380, %v1382
        %v1384 = vrot.slane %v1376, %v1383
        %v1386 = vunpack.c.l.s4 1983009808
        %v1387 = vunpack.c.0.s8 %v1386
        %v1388 = vlaneseq
        %v1389 = vshrl.u32 %v1388, 7
        %v1390 = vsub.s32 %v1387, %v1389
        %v1391 = vrot.slane %v1377, %v1390
        %v1392 = vcombine.low %v1384, %v1391
        %v1394 = vadd.f32 %v391, %v1392
        %v1395 = vxor.u32 %v1371, 2147483648
        %v1396 = vmul.f32 %v1395, 1.442695
        %v1397 = vpow.pop %v1396
        %v1398 = vadd.f32 %v1397, 1.0
        %v1399 = vrcp.pop %v1398
        %v1400 = vmul.f32 1.0, %v1399
        %v1402 = vrot.slane %v1371, 2
        %v1404 = vxor.u32 %v1402, 2147483648
        %v1405 = vmul.f32 %v1404, 1.442695
        %v1406 = vpow.pop %v1405
        %v1407 = vadd.f32 %v1406, 1.0
        %v1408 = vrcp.pop %v1407
        %v1409 = vmul.f32 1.0, %v1408
        %v1410 = vrot.slane %v1371, 4
        %v1412 = vtanh.pop %v1410
        %v1413 = vrot.slane %v1371, 6
        %v1415 = vxor.u32 %v1413, 2147483648
        %v1416 = vmul.f32 %v1415, 1.442695
        %v1417 = vpow.pop %v1416
        %v1418 = vadd.f32 %v1417, 1.0
        %v1419 = vrcp.pop %v1418
        %v1420 = vmul.f32 1.0, %v1419
        %v1421 = vmul.f32 %v1409, %v386
        %v1422 = vmul.f32 %v1400, %v1412
        %v1423 = vadd.f32 %v1421, %v1422
        %v1424 = vtanh.pop %v1423
        %v1425 = vmul.f32 %v1420, %v1424
        %v1426 = vxor.u32 %v1394, 2147483648
        %v1427 = vmul.f32 %v1426, 1.442695
        %v1428 = vpow.pop %v1427
        %v1429 = vadd.f32 %v1428, 1.0
        %v1430 = vrcp.pop %v1429
        %v1431 = vmul.f32 1.0, %v1430
        %v1433 = vrot.slane %v1394, 2
        %v1435 = vxor.u32 %v1433, 2147483648
        %v1436 = vmul.f32 %v1435, 1.442695
        %v1437 = vpow.pop %v1436
        %v1438 = vadd.f32 %v1437, 1.0
        %v1439 = vrcp.pop %v1438
        %v1440 = vmul.f32 1.0, %v1439
        %v1441 = vrot.slane %v1394, 4
        %v1443 = vtanh.pop %v1441
        %v1444 = vrot.slane %v1394, 6
        %v1446 = vxor.u32 %v1444, 2147483648
        %v1447 = vmul.f32 %v1446, 1.442695
        %v1448 = vpow.pop %v1447
        %v1449 = vadd.f32 %v1448, 1.0
        %v1450 = vrcp.pop %v1449
        %v1451 = vmul.f32 1.0, %v1450
        %v1453 = vrot.slane %v386, 2
        %v1455 = vmul.f32 %v1440, %v1453
        %v1456 = vmul.f32 %v1431, %v1443
        %v1457 = vadd.f32 %v1455, %v1456
        %v1458 = vtanh.pop %v1457
        %v1459 = vmul.f32 %v1451, %v1458
        %s1460 = ssub.s32 7, %s384
        %v1461 = vstv %s384
        %v1462 = vstv %s1460
        %v1463 = vsel %vm382, %v1461, %v1462
        %v1464 = vsel %vm383, %v1461, %v1462
        %1465 = vset.pattern.permute.xlu0 0
        %1466 = vperm.xlu0 %1465, %v378
        %v1467 = vpop.permute.xlu0 %1466
        %vm1468 = vcmp.lt.s32.totalorder %v1463, %v1467
        %vm1469 = vcmp.lt.s32.totalorder %v1464, %v1467
        %v1470 = vsel %vm1468, %v1425, 0.0
        %v1471 = vsel %vm1469, %v1459, 0.0
        %v1472 = vpack.c.bf16 %v1425, %v1425
        %v1473 = vpack.c.bf16 %v1459, %v1459
        %vm1474 = vmpackc.low %vm1468, %vm1468
        %vm1475 = vmpackc.low %vm1469, %vm1469
        %v1476 = vsel %vm1474, %v1472, %v535
        %v1477 = vsel %vm1475, %v1473, %v542
        %v1479 = vunpack.c.l.s4 1983009808
        %v1480 = vunpack.c.0.s8 %v1479
        %v1481 = vlaneseq
        %v1482 = vshrl.u32 %v1481, 7
        %v1483 = vsub.s32 %v1480, %v1482
        %v1484 = vrot.slane %v386, %v1483
        %v1485 = vcombine.high %v1484, %v1484
        %v1488 = vsel %vm1468, %v1423, %v1484
        %v1489 = vsel %vm1469, %v1457, %v1485
        %v1490 = vadd.f32 %v1470, 0.0
        %v1491 = vadd.f32 %v1471, 0.0
        %s1492 = sadd.s32 %s384, 1
        %s1493 = scalar_lea.vmem %s320, 4 [#allocation4]
        %v1494 = vld [vmem:[%s1493] sm:$0xf]
        %v1495 = vunpack.c.l.bf16 %v1494
        %s1496 = scalar_lea.vmem %s327, 8 [#allocation5]
        %v1497 = vld [vmem:[%s1496] sm:$0xf]
        %v1498 = vunpack.c.l.bf16 %v1497
        %1499 = vmatprep.subr.bf16.mxu0 %v930
        %1500 = vmatpush1.bf16.msra.mxu0 %v929
        %1501 = vmatprep.subr.bf16.mxu0 %v938
        %1502 = vmatpush1.bf16.msra.mxu0 %v937
        %1503 = vmatprep.subr.bf16.mxu0 %v946
        %1504 = vmatpush1.bf16.msra.mxu0 %v945
        %1505 = vmatprep.subr.bf16.mxu0 %v954
        %1506 = vmatpush1.bf16.msra.mxu0 %v953
        %1507 = vmatprep.subr.bf16.mxu0 %v962
        %1508 = vmatpush1.bf16.msra.mxu0 %v961
        %1509 = vmatprep.subr.bf16.mxu0 %v970
        %1510 = vmatpush1.bf16.msra.mxu0 %v969
        %1511 = vmatprep.subr.bf16.mxu0 %v978
        %1512 = vmatpush1.bf16.msra.mxu0 %v977
        %1513 = vmatprep.subr.bf16.mxu0 %v986
        %1514 = vmatpush1.bf16.msra.mxu0 %v985
        %1515 = vmatprep.subr.bf16.mxu0 %v994
        %1516 = vmatpush1.bf16.msra.mxu0 %v993
        %1517 = vmatprep.subr.bf16.mxu0 %v1002
        %1518 = vmatpush1.bf16.msra.mxu0 %v1001
        %1519 = vmatprep.subr.bf16.mxu0 %v1010
        %1520 = vmatpush1.bf16.msra.mxu0 %v1009
        %1521 = vmatprep.subr.bf16.mxu0 %v1018
        %1522 = vmatpush1.bf16.msra.mxu0 %v1017
        %1523 = vmatprep.subr.bf16.mxu0 %v1026
        %1524 = vmatpush1.bf16.msra.mxu0 %v1025
        %1525 = vmatprep.subr.bf16.mxu0 %v1034
        %1526 = vmatpush1.bf16.msra.mxu0 %v1033
        %1527 = vmatprep.subr.bf16.mxu0 %v1042
        %1528 = vmatpush1.bf16.msra.mxu0 %v1041
        %1529 = vmatprep.subr.bf16.mxu0 %v1050
        %1530 = vmatpush1.bf16.msra.mxu0 %v1049
        %1531 = vmatprep.mubr.bf16.mxu0 %v1477
        %1532 = vmatmul.mubr.bf16.gmra.mrb[0].mxu0 %v1476
        %v1533 = vpop.f32.mrb[0].mxu0
        %v1534 = vadd.f32 0.0, %v1533
        %v1535 = vpop.f32.mrb[0].mxu0
        %v1536 = vadd.f32 0.0, %v1535
        %v1537 = vpop.f32.mrb[0].mxu0
        %v1538 = vpop.f32.mrb[0].mxu0
        %1539 = vdwg.mxu0
        %1540 = vmatprep.subr.bf16.mxu0 %v932
        %1541 = vmatpush1.bf16.msra.mxu0 %v931
        %1542 = vmatprep.subr.bf16.mxu0 %v940
        %1543 = vmatpush1.bf16.msra.mxu0 %v939
        %1544 = vmatprep.subr.bf16.mxu0 %v948
        %1545 = vmatpush1.bf16.msra.mxu0 %v947
        %1546 = vmatprep.subr.bf16.mxu0 %v956
        %1547 = vmatpush1.bf16.msra.mxu0 %v955
        %1548 = vmatprep.subr.bf16.mxu0 %v964
        %1549 = vmatpush1.bf16.msra.mxu0 %v963
        %1550 = vmatprep.subr.bf16.mxu0 %v972
        %1551 = vmatpush1.bf16.msra.mxu0 %v971
        %1552 = vmatprep.subr.bf16.mxu0 %v980
        %1553 = vmatpush1.bf16.msra.mxu0 %v979
        %1554 = vmatprep.subr.bf16.mxu0 %v988
        %1555 = vmatpush1.bf16.msra.mxu0 %v987
        %1556 = vmatprep.subr.bf16.mxu0 %v996
        %1557 = vmatpush1.bf16.msra.mxu0 %v995
        %1558 = vmatprep.subr.bf16.mxu0 %v1004
        %1559 = vmatpush1.bf16.msra.mxu0 %v1003
        %1560 = vmatprep.subr.bf16.mxu0 %v1012
        %1561 = vmatpush1.bf16.msra.mxu0 %v1011
        %1562 = vmatprep.subr.bf16.mxu0 %v1020
        %1563 = vmatpush1.bf16.msra.mxu0 %v1019
        %1564 = vmatprep.subr.bf16.mxu0 %v1028
        %1565 = vmatpush1.bf16.msra.mxu0 %v1027
        %1566 = vmatprep.subr.bf16.mxu0 %v1036
        %1567 = vmatpush1.bf16.msra.mxu0 %v1035
        %1568 = vmatprep.subr.bf16.mxu0 %v1044
        %1569 = vmatpush1.bf16.msra.mxu0 %v1043
        %1570 = vmatprep.subr.bf16.mxu0 %v1052
        %1571 = vmatpush1.bf16.msra.mxu0 %v1051
        %1572 = vmatprep.mubr.bf16.mxu0 %v1477
        %1573 = vmatmul.mubr.bf16.gmra.mrb[0].mxu0 %v1476
        %v1574 = vpop.f32.mrb[0].mxu0
        %v1575 = vadd.f32 0.0, %v1574
        %v1576 = vpop.f32.mrb[0].mxu0
        %v1577 = vadd.f32 0.0, %v1576
        %v1578 = vpop.f32.mrb[0].mxu0
        %v1579 = vpop.f32.mrb[0].mxu0
        %1580 = vdwg.mxu0
        %1581 = vmatprep.subr.bf16.mxu0 %v934
        %1582 = vmatpush1.bf16.msra.mxu0 %v933
        %1583 = vmatprep.subr.bf16.mxu0 %v942
        %1584 = vmatpush1.bf16.msra.mxu0 %v941
        %1585 = vmatprep.subr.bf16.mxu0 %v950
        %1586 = vmatpush1.bf16.msra.mxu0 %v949
        %1587 = vmatprep.subr.bf16.mxu0 %v958
        %1588 = vmatpush1.bf16.msra.mxu0 %v957
        %1589 = vmatprep.subr.bf16.mxu0 %v966
        %1590 = vmatpush1.bf16.msra.mxu0 %v965
        %1591 = vmatprep.subr.bf16.mxu0 %v974
        %1592 = vmatpush1.bf16.msra.mxu0 %v973
        %1593 = vmatprep.subr.bf16.mxu0 %v982
        %1594 = vmatpush1.bf16.msra.mxu0 %v981
        %1595 = vmatprep.subr.bf16.mxu0 %v990
        %1596 = vmatpush1.bf16.msra.mxu0 %v989
        %1597 = vmatprep.subr.bf16.mxu0 %v998
        %1598 = vmatpush1.bf16.msra.mxu0 %v997
        %1599 = vmatprep.subr.bf16.mxu0 %v1006
        %1600 = vmatpush1.bf16.msra.mxu0 %v1005
        %1601 = vmatprep.subr.bf16.mxu0 %v1014
        %1602 = vmatpush1.bf16.msra.mxu0 %v1013
        %1603 = vmatprep.subr.bf16.mxu0 %v1022
        %1604 = vmatpush1.bf16.msra.mxu0 %v1021
        %1605 = vmatprep.subr.bf16.mxu0 %v1030
        %1606 = vmatpush1.bf16.msra.mxu0 %v1029
        %1607 = vmatprep.subr.bf16.mxu0 %v1038
        %1608 = vmatpush1.bf16.msra.mxu0 %v1037
        %1609 = vmatprep.subr.bf16.mxu0 %v1046
        %1610 = vmatpush1.bf16.msra.mxu0 %v1045
        %1611 = vmatprep.subr.bf16.mxu0 %v1054
        %1612 = vmatpush1.bf16.msra.mxu0 %v1053
        %1613 = vmatprep.mubr.bf16.mxu0 %v1477
        %1614 = vmatmul.mubr.bf16.gmra.mrb[0].mxu0 %v1476
        %v1615 = vpop.f32.mrb[0].mxu0
        %v1616 = vadd.f32 0.0, %v1615
        %v1617 = vpop.f32.mrb[0].mxu0
        %v1618 = vadd.f32 0.0, %v1617
        %v1619 = vpop.f32.mrb[0].mxu0
        %v1620 = vpop.f32.mrb[0].mxu0
        %1621 = vdwg.mxu0
        %1622 = vmatprep.subr.bf16.mxu0 %v936
        %1623 = vmatpush1.bf16.msra.mxu0 %v935
        %1624 = vmatprep.subr.bf16.mxu0 %v944
        %1625 = vmatpush1.bf16.msra.mxu0 %v943
        %1626 = vmatprep.subr.bf16.mxu0 %v952
        %1627 = vmatpush1.bf16.msra.mxu0 %v951
        %1628 = vmatprep.subr.bf16.mxu0 %v960
        %1629 = vmatpush1.bf16.msra.mxu0 %v959
        %1630 = vmatprep.subr.bf16.mxu0 %v968
        %1631 = vmatpush1.bf16.msra.mxu0 %v967
        %1632 = vmatprep.subr.bf16.mxu0 %v976
        %1633 = vmatpush1.bf16.msra.mxu0 %v975
        %1634 = vmatprep.subr.bf16.mxu0 %v984
        %1635 = vmatpush1.bf16.msra.mxu0 %v983
        %1636 = vmatprep.subr.bf16.mxu0 %v992
        %1637 = vmatpush1.bf16.msra.mxu0 %v991
        %1638 = vmatprep.subr.bf16.mxu0 %v1000
        %1639 = vmatpush1.bf16.msra.mxu0 %v999
        %1640 = vmatprep.subr.bf16.mxu0 %v1008
        %1641 = vmatpush1.bf16.msra.mxu0 %v1007
        %1642 = vmatprep.subr.bf16.mxu0 %v1016
        %1643 = vmatpush1.bf16.msra.mxu0 %v1015
        %1644 = vmatprep.subr.bf16.mxu0 %v1024
        %1645 = vmatpush1.bf16.msra.mxu0 %v1023
        %1646 = vmatprep.subr.bf16.mxu0 %v1032
        %1647 = vmatpush1.bf16.msra.mxu0 %v1031
        %1648 = vmatprep.subr.bf16.mxu0 %v1040
        %1649 = vmatpush1.bf16.msra.mxu0 %v1039
        %1650 = vmatprep.subr.bf16.mxu0 %v1048
        %1651 = vmatpush1.bf16.msra.mxu0 %v1047
        %1652 = vmatprep.subr.bf16.mxu0 %v1056
        %1653 = vmatpush1.bf16.msra.mxu0 %v1055
        %1654 = vmatprep.mubr.bf16.mxu0 %v1477
        %1655 = vmatmul.mubr.bf16.gmra.mrb[0].mxu0 %v1476
        %v1656 = vpop.f32.mrb[0].mxu0
        %v1657 = vadd.f32 0.0, %v1656
        %v1658 = vpop.f32.mrb[0].mxu0
        %v1659 = vadd.f32 0.0, %v1658
        %v1660 = vpop.f32.mrb[0].mxu0
        %v1661 = vpop.f32.mrb[0].mxu0
        %1662 = vdwg.mxu0
        %v1667 = vcombine.low %v1534, %v1536
        %v1668 = vcombine.low %v1575, %v1577
        %v1670 = vunpack.c.l.s4 1983009808
        %v1671 = vunpack.c.0.s8 %v1670
        %v1672 = vlaneseq
        %v1673 = vshrl.u32 %v1672, 7
        %v1674 = vsub.s32 %v1671, %v1673
        %v1675 = vrot.slane %v1667, %v1674
        %v1677 = vunpack.c.l.s4 1983009808
        %v1678 = vunpack.c.0.s8 %v1677
        %v1679 = vlaneseq
        %v1680 = vshrl.u32 %v1679, 7
        %v1681 = vsub.s32 %v1678, %v1680
        %v1682 = vrot.slane %v1668, %v1681
        %v1683 = vcombine.low %v1675, %v1682
        %v1685 = vadd.f32 %v1495, %v1683
        %v1690 = vcombine.low %v1616, %v1618
        %v1691 = vcombine.low %v1657, %v1659
        %v1693 = vunpack.c.l.s4 1983009808
        %v1694 = vunpack.c.0.s8 %v1693
        %v1695 = vlaneseq
        %v1696 = vshrl.u32 %v1695, 7
        %v1697 = vsub.s32 %v1694, %v1696
        %v1698 = vrot.slane %v1690, %v1697
        %v1700 = vunpack.c.l.s4 1983009808
        %v1701 = vunpack.c.0.s8 %v1700
        %v1702 = vlaneseq
        %v1703 = vshrl.u32 %v1702, 7
        %v1704 = vsub.s32 %v1701, %v1703
        %v1705 = vrot.slane %v1691, %v1704
        %v1706 = vcombine.low %v1698, %v1705
        %v1708 = vadd.f32 %v1498, %v1706
        %v1709 = vxor.u32 %v1685, 2147483648
        %v1710 = vmul.f32 %v1709, 1.442695
        %v1711 = vpow.pop %v1710
        %v1712 = vadd.f32 %v1711, 1.0
        %v1713 = vrcp.pop %v1712
        %v1714 = vmul.f32 1.0, %v1713
        %v1716 = vrot.slane %v1685, 2
        %v1718 = vxor.u32 %v1716, 2147483648
        %v1719 = vmul.f32 %v1718, 1.442695
        %v1720 = vpow.pop %v1719
        %v1721 = vadd.f32 %v1720, 1.0
        %v1722 = vrcp.pop %v1721
        %v1723 = vmul.f32 1.0, %v1722
        %v1724 = vrot.slane %v1685, 4
        %v1726 = vtanh.pop %v1724
        %v1727 = vrot.slane %v1685, 6
        %v1729 = vxor.u32 %v1727, 2147483648
        %v1730 = vmul.f32 %v1729, 1.442695
        %v1731 = vpow.pop %v1730
        %v1732 = vadd.f32 %v1731, 1.0
        %v1733 = vrcp.pop %v1732
        %v1734 = vmul.f32 1.0, %v1733
        %v1735 = vmul.f32 %v1723, %v1488
        %v1736 = vmul.f32 %v1714, %v1726
        %v1737 = vadd.f32 %v1735, %v1736
        %v1738 = vtanh.pop %v1737
        %v1739 = vmul.f32 %v1734, %v1738
        %v1740 = vxor.u32 %v1708, 2147483648
        %v1741 = vmul.f32 %v1740, 1.442695
        %v1742 = vpow.pop %v1741
        %v1743 = vadd.f32 %v1742, 1.0
        %v1744 = vrcp.pop %v1743
        %v1745 = vmul.f32 1.0, %v1744
        %v1747 = vrot.slane %v1708, 2
        %v1749 = vxor.u32 %v1747, 2147483648
        %v1750 = vmul.f32 %v1749, 1.442695
        %v1751 = vpow.pop %v1750
        %v1752 = vadd.f32 %v1751, 1.0
        %v1753 = vrcp.pop %v1752
        %v1754 = vmul.f32 1.0, %v1753
        %v1755 = vrot.slane %v1708, 4
        %v1757 = vtanh.pop %v1755
        %v1758 = vrot.slane %v1708, 6
        %v1760 = vxor.u32 %v1758, 2147483648
        %v1761 = vmul.f32 %v1760, 1.442695
        %v1762 = vpow.pop %v1761
        %v1763 = vadd.f32 %v1762, 1.0
        %v1764 = vrcp.pop %v1763
        %v1765 = vmul.f32 1.0, %v1764
        %v1766 = vmul.f32 %v1754, %v1489
        %v1767 = vmul.f32 %v1745, %v1757
        %v1768 = vadd.f32 %v1766, %v1767
        %v1769 = vtanh.pop %v1768
        %v1770 = vmul.f32 %v1765, %v1769
        %s1771 = ssub.s32 6, %s384
        %v1772 = vstv %s1492
        %v1773 = vstv %s1771
        %v1774 = vsel %vm382, %v1772, %v1773
        %v1775 = vsel %vm383, %v1772, %v1773
        %vm1776 = vcmp.lt.s32.totalorder %v1774, %v1467
        %vm1777 = vcmp.lt.s32.totalorder %v1775, %v1467
        %v1778 = vsel %vm1776, %v1739, 0.0
        %v1779 = vsel %vm1777, %v1770, 0.0
        %v1780 = vpack.c.bf16 %v1739, %v1739
        %v1781 = vpack.c.bf16 %v1770, %v1770
        %vm1782 = vmpackc.low %vm1776, %vm1776
        %vm1783 = vmpackc.low %vm1777, %vm1777
        %v1784 = vsel %vm1782, %v1780, %v1476
        %v1785 = vsel %vm1783, %v1781, %v1477
        %v1786 = vsel %vm1776, %v1737, %v1488
        %v1787 = vsel %vm1777, %v1768, %v1489
        %v1788 = vadd.f32 %v1490, %v1778
        %v1789 = vadd.f32 %v1491, %v1779
        %s1790 = sadd.s32 %s384, 2
        %s1791 = scalar_lea.vmem %s320, 8 [#allocation4]
        %v1792 = vld [vmem:[%s1791] sm:$0xf]
        %v1793 = vunpack.c.l.bf16 %v1792
        %s1794 = scalar_lea.vmem %s327, 4 [#allocation5]
        %v1795 = vld [vmem:[%s1794] sm:$0xf]
        %v1796 = vunpack.c.l.bf16 %v1795
        %1797 = vmatprep.subr.bf16.mxu0 %v930
        %1798 = vmatpush1.bf16.msra.mxu0 %v929
        %1799 = vmatprep.subr.bf16.mxu0 %v938
        %1800 = vmatpush1.bf16.msra.mxu0 %v937
        %1801 = vmatprep.subr.bf16.mxu0 %v946
        %1802 = vmatpush1.bf16.msra.mxu0 %v945
        %1803 = vmatprep.subr.bf16.mxu0 %v954
        %1804 = vmatpush1.bf16.msra.mxu0 %v953
        %1805 = vmatprep.subr.bf16.mxu0 %v962
        %1806 = vmatpush1.bf16.msra.mxu0 %v961
        %1807 = vmatprep.subr.bf16.mxu0 %v970
        %1808 = vmatpush1.bf16.msra.mxu0 %v969
        %1809 = vmatprep.subr.bf16.mxu0 %v978
        %1810 = vmatpush1.bf16.msra.mxu0 %v977
        %1811 = vmatprep.subr.bf16.mxu0 %v986
        %1812 = vmatpush1.bf16.msra.mxu0 %v985
        %1813 = vmatprep.subr.bf16.mxu0 %v994
        %1814 = vmatpush1.bf16.msra.mxu0 %v993
        %1815 = vmatprep.subr.bf16.mxu0 %v1002
        %1816 = vmatpush1.bf16.msra.mxu0 %v1001
        %1817 = vmatprep.subr.bf16.mxu0 %v1010
        %1818 = vmatpush1.bf16.msra.mxu0 %v1009
        %1819 = vmatprep.subr.bf16.mxu0 %v1018
        %1820 = vmatpush1.bf16.msra.mxu0 %v1017
        %1821 = vmatprep.subr.bf16.mxu0 %v1026
        %1822 = vmatpush1.bf16.msra.mxu0 %v1025
        %1823 = vmatprep.subr.bf16.mxu0 %v1034
        %1824 = vmatpush1.bf16.msra.mxu0 %v1033
        %1825 = vmatprep.subr.bf16.mxu0 %v1042
        %1826 = vmatpush1.bf16.msra.mxu0 %v1041
        %1827 = vmatprep.subr.bf16.mxu0 %v1050
        %1828 = vmatpush1.bf16.msra.mxu0 %v1049
        %1829 = vmatprep.mubr.bf16.mxu0 %v1785
        %1830 = vmatmul.mubr.bf16.gmra.mrb[0].mxu0 %v1784
        %v1831 = vpop.f32.mrb[0].mxu0
        %v1832 = vadd.f32 0.0, %v1831
        %v1833 = vpop.f32.mrb[0].mxu0
        %v1834 = vadd.f32 0.0, %v1833
        %v1835 = vpop.f32.mrb[0].mxu0
        %v1836 = vpop.f32.mrb[0].mxu0
        %1837 = vdwg.mxu0
        %1838 = vmatprep.subr.bf16.mxu0 %v932
        %1839 = vmatpush1.bf16.msra.mxu0 %v931
        %1840 = vmatprep.subr.bf16.mxu0 %v940
        %1841 = vmatpush1.bf16.msra.mxu0 %v939
        %1842 = vmatprep.subr.bf16.mxu0 %v948
        %1843 = vmatpush1.bf16.msra.mxu0 %v947
        %1844 = vmatprep.subr.bf16.mxu0 %v956
        %1845 = vmatpush1.bf16.msra.mxu0 %v955
        %1846 = vmatprep.subr.bf16.mxu0 %v964
        %1847 = vmatpush1.bf16.msra.mxu0 %v963
        %1848 = vmatprep.subr.bf16.mxu0 %v972
        %1849 = vmatpush1.bf16.msra.mxu0 %v971
        %1850 = vmatprep.subr.bf16.mxu0 %v980
        %1851 = vmatpush1.bf16.msra.mxu0 %v979
        %1852 = vmatprep.subr.bf16.mxu0 %v988
        %1853 = vmatpush1.bf16.msra.mxu0 %v987
        %1854 = vmatprep.subr.bf16.mxu0 %v996
        %1855 = vmatpush1.bf16.msra.mxu0 %v995
        %1856 = vmatprep.subr.bf16.mxu0 %v1004
        %1857 = vmatpush1.bf16.msra.mxu0 %v1003
        %1858 = vmatprep.subr.bf16.mxu0 %v1012
        %1859 = vmatpush1.bf16.msra.mxu0 %v1011
        %1860 = vmatprep.subr.bf16.mxu0 %v1020
        %1861 = vmatpush1.bf16.msra.mxu0 %v1019
        %1862 = vmatprep.subr.bf16.mxu0 %v1028
        %1863 = vmatpush1.bf16.msra.mxu0 %v1027
        %1864 = vmatprep.subr.bf16.mxu0 %v1036
        %1865 = vmatpush1.bf16.msra.mxu0 %v1035
        %1866 = vmatprep.subr.bf16.mxu0 %v1044
        %1867 = vmatpush1.bf16.msra.mxu0 %v1043
        %1868 = vmatprep.subr.bf16.mxu0 %v1052
        %1869 = vmatpush1.bf16.msra.mxu0 %v1051
        %1870 = vmatprep.mubr.bf16.mxu0 %v1785
        %1871 = vmatmul.mubr.bf16.gmra.mrb[0].mxu0 %v1784
        %v1872 = vpop.f32.mrb[0].mxu0
        %v1873 = vadd.f32 0.0, %v1872
        %v1874 = vpop.f32.mrb[0].mxu0
        %v1875 = vadd.f32 0.0, %v1874
        %v1876 = vpop.f32.mrb[0].mxu0
        %v1877 = vpop.f32.mrb[0].mxu0
        %1878 = vdwg.mxu0
        %1879 = vmatprep.subr.bf16.mxu0 %v934
        %1880 = vmatpush1.bf16.msra.mxu0 %v933
        %1881 = vmatprep.subr.bf16.mxu0 %v942
        %1882 = vmatpush1.bf16.msra.mxu0 %v941
        %1883 = vmatprep.subr.bf16.mxu0 %v950
        %1884 = vmatpush1.bf16.msra.mxu0 %v949
        %1885 = vmatprep.subr.bf16.mxu0 %v958
        %1886 = vmatpush1.bf16.msra.mxu0 %v957
        %1887 = vmatprep.subr.bf16.mxu0 %v966
        %1888 = vmatpush1.bf16.msra.mxu0 %v965
        %1889 = vmatprep.subr.bf16.mxu0 %v974
        %1890 = vmatpush1.bf16.msra.mxu0 %v973
        %1891 = vmatprep.subr.bf16.mxu0 %v982
        %1892 = vmatpush1.bf16.msra.mxu0 %v981
        %1893 = vmatprep.subr.bf16.mxu0 %v990
        %1894 = vmatpush1.bf16.msra.mxu0 %v989
        %1895 = vmatprep.subr.bf16.mxu0 %v998
        %1896 = vmatpush1.bf16.msra.mxu0 %v997
        %1897 = vmatprep.subr.bf16.mxu0 %v1006
        %1898 = vmatpush1.bf16.msra.mxu0 %v1005
        %1899 = vmatprep.subr.bf16.mxu0 %v1014
        %1900 = vmatpush1.bf16.msra.mxu0 %v1013
        %1901 = vmatprep.subr.bf16.mxu0 %v1022
        %1902 = vmatpush1.bf16.msra.mxu0 %v1021
        %1903 = vmatprep.subr.bf16.mxu0 %v1030
        %1904 = vmatpush1.bf16.msra.mxu0 %v1029
        %1905 = vmatprep.subr.bf16.mxu0 %v1038
        %1906 = vmatpush1.bf16.msra.mxu0 %v1037
        %1907 = vmatprep.subr.bf16.mxu0 %v1046
        %1908 = vmatpush1.bf16.msra.mxu0 %v1045
        %1909 = vmatprep.subr.bf16.mxu0 %v1054
        %1910 = vmatpush1.bf16.msra.mxu0 %v1053
        %1911 = vmatprep.mubr.bf16.mxu0 %v1785
        %1912 = vmatmul.mubr.bf16.gmra.mrb[0].mxu0 %v1784
        %v1913 = vpop.f32.mrb[0].mxu0
        %v1914 = vadd.f32 0.0, %v1913
        %v1915 = vpop.f32.mrb[0].mxu0
        %v1916 = vadd.f32 0.0, %v1915
        %v1917 = vpop.f32.mrb[0].mxu0
        %v1918 = vpop.f32.mrb[0].mxu0
        %1919 = vdwg.mxu0
        %1920 = vmatprep.subr.bf16.mxu0 %v936
        %1921 = vmatpush1.bf16.msra.mxu0 %v935
        %1922 = vmatprep.subr.bf16.mxu0 %v944
        %1923 = vmatpush1.bf16.msra.mxu0 %v943
        %1924 = vmatprep.subr.bf16.mxu0 %v952
        %1925 = vmatpush1.bf16.msra.mxu0 %v951
        %1926 = vmatprep.subr.bf16.mxu0 %v960
        %1927 = vmatpush1.bf16.msra.mxu0 %v959
        %1928 = vmatprep.subr.bf16.mxu0 %v968
        %1929 = vmatpush1.bf16.msra.mxu0 %v967
        %1930 = vmatprep.subr.bf16.mxu0 %v976
        %1931 = vmatpush1.bf16.msra.mxu0 %v975
        %1932 = vmatprep.subr.bf16.mxu0 %v984
        %1933 = vmatpush1.bf16.msra.mxu0 %v983
        %1934 = vmatprep.subr.bf16.mxu0 %v992
        %1935 = vmatpush1.bf16.msra.mxu0 %v991
        %1936 = vmatprep.subr.bf16.mxu0 %v1000
        %1937 = vmatpush1.bf16.msra.mxu0 %v999
        %1938 = vmatprep.subr.bf16.mxu0 %v1008
        %1939 = vmatpush1.bf16.msra.mxu0 %v1007
        %1940 = vmatprep.subr.bf16.mxu0 %v1016
        %1941 = vmatpush1.bf16.msra.mxu0 %v1015
        %1942 = vmatprep.subr.bf16.mxu0 %v1024
        %1943 = vmatpush1.bf16.msra.mxu0 %v1023
        %1944 = vmatprep.subr.bf16.mxu0 %v1032
        %1945 = vmatpush1.bf16.msra.mxu0 %v1031
        %1946 = vmatprep.subr.bf16.mxu0 %v1040
        %1947 = vmatpush1.bf16.msra.mxu0 %v1039
        %1948 = vmatprep.subr.bf16.mxu0 %v1048
        %1949 = vmatpush1.bf16.msra.mxu0 %v1047
        %1950 = vmatprep.subr.bf16.mxu0 %v1056
        %1951 = vmatpush1.bf16.msra.mxu0 %v1055
        %1952 = vmatprep.mubr.bf16.mxu0 %v1785
        %1953 = vmatmul.mubr.bf16.gmra.mrb[0].mxu0 %v1784
        %v1954 = vpop.f32.mrb[0].mxu0
        %v1955 = vadd.f32 0.0, %v1954
        %v1956 = vpop.f32.mrb[0].mxu0
        %v1957 = vadd.f32 0.0, %v1956
        %v1958 = vpop.f32.mrb[0].mxu0
        %v1959 = vpop.f32.mrb[0].mxu0
        %1960 = vdwg.mxu0
        %v1965 = vcombine.low %v1832, %v1834
        %v1966 = vcombine.low %v1873, %v1875
        %v1968 = vunpack.c.l.s4 1983009808
        %v1969 = vunpack.c.0.s8 %v1968
        %v1970 = vlaneseq
        %v1971 = vshrl.u32 %v1970, 7
        %v1972 = vsub.s32 %v1969, %v1971
        %v1973 = vrot.slane %v1965, %v1972
        %v1975 = vunpack.c.l.s4 1983009808
        %v1976 = vunpack.c.0.s8 %v1975
        %v1977 = vlaneseq
        %v1978 = vshrl.u32 %v1977, 7
        %v1979 = vsub.s32 %v1976, %v1978
        %v1980 = vrot.slane %v1966, %v1979
        %v1981 = vcombine.low %v1973, %v1980
        %v1983 = vadd.f32 %v1793, %v1981
        %v1988 = vcombine.low %v1914, %v1916
        %v1989 = vcombine.low %v1955, %v1957
        %v1991 = vunpack.c.l.s4 1983009808
        %v1992 = vunpack.c.0.s8 %v1991
        %v1993 = vlaneseq
        %v1994 = vshrl.u32 %v1993, 7
        %v1995 = vsub.s32 %v1992, %v1994
        %v1996 = vrot.slane %v1988, %v1995
        %v1998 = vunpack.c.l.s4 1983009808
        %v1999 = vunpack.c.0.s8 %v1998
        %v2000 = vlaneseq
        %v2001 = vshrl.u32 %v2000, 7
        %v2002 = vsub.s32 %v1999, %v2001
        %v2003 = vrot.slane %v1989, %v2002
        %v2004 = vcombine.low %v1996, %v2003
        %v2006 = vadd.f32 %v1796, %v2004
        %v2007 = vxor.u32 %v1983, 2147483648
        %v2008 = vmul.f32 %v2007, 1.442695
        %v2009 = vpow.pop %v2008
        %v2010 = vadd.f32 %v2009, 1.0
        %v2011 = vrcp.pop %v2010
        %v2012 = vmul.f32 1.0, %v2011
        %v2014 = vrot.slane %v1983, 2
        %v2016 = vxor.u32 %v2014, 2147483648
        %v2017 = vmul.f32 %v2016, 1.442695
        %v2018 = vpow.pop %v2017
        %v2019 = vadd.f32 %v2018, 1.0
        %v2020 = vrcp.pop %v2019
        %v2021 = vmul.f32 1.0, %v2020
        %v2022 = vrot.slane %v1983, 4
        %v2024 = vtanh.pop %v2022
        %v2025 = vrot.slane %v1983, 6
        %v2027 = vxor.u32 %v2025, 2147483648
        %v2028 = vmul.f32 %v2027, 1.442695
        %v2029 = vpow.pop %v2028
        %v2030 = vadd.f32 %v2029, 1.0
        %v2031 = vrcp.pop %v2030
        %v2032 = vmul.f32 1.0, %v2031
        %v2033 = vmul.f32 %v2021, %v1786
        %v2034 = vmul.f32 %v2012, %v2024
        %v2035 = vadd.f32 %v2033, %v2034
        %v2036 = vtanh.pop %v2035
        %v2037 = vmul.f32 %v2032, %v2036
        %v2038 = vxor.u32 %v2006, 2147483648
        %v2039 = vmul.f32 %v2038, 1.442695
        %v2040 = vpow.pop %v2039
        %v2041 = vadd.f32 %v2040, 1.0
        %v2042 = vrcp.pop %v2041
        %v2043 = vmul.f32 1.0, %v2042
        %v2045 = vrot.slane %v2006, 2
        %v2047 = vxor.u32 %v2045, 2147483648
        %v2048 = vmul.f32 %v2047, 1.442695
        %v2049 = vpow.pop %v2048
        %v2050 = vadd.f32 %v2049, 1.0
        %v2051 = vrcp.pop %v2050
        %v2052 = vmul.f32 1.0, %v2051
        %v2053 = vrot.slane %v2006, 4
        %v2055 = vtanh.pop %v2053
        %v2056 = vrot.slane %v2006, 6
        %v2058 = vxor.u32 %v2056, 2147483648
        %v2059 = vmul.f32 %v2058, 1.442695
        %v2060 = vpow.pop %v2059
        %v2061 = vadd.f32 %v2060, 1.0
        %v2062 = vrcp.pop %v2061
        %v2063 = vmul.f32 1.0, %v2062
        %v2064 = vmul.f32 %v2052, %v1787
        %v2065 = vmul.f32 %v2043, %v2055
        %v2066 = vadd.f32 %v2064, %v2065
        %v2067 = vtanh.pop %v2066
        %v2068 = vmul.f32 %v2063, %v2067
        %s2069 = ssub.s32 5, %s384
        %v2070 = vstv %s1790
        %v2071 = vstv %s2069
        %v2072 = vsel %vm382, %v2070, %v2071
        %v2073 = vsel %vm383, %v2070, %v2071
        %vm2074 = vcmp.lt.s32.totalorder %v2072, %v1467
        %vm2075 = vcmp.lt.s32.totalorder %v2073, %v1467
        %v2076 = vsel %vm2074, %v2037, 0.0
        %v2077 = vsel %vm2075, %v2068, 0.0
        %v2078 = vpack.c.bf16 %v2037, %v2037
        %v2079 = vpack.c.bf16 %v2068, %v2068
        %vm2080 = vmpackc.low %vm2074, %vm2074
        %vm2081 = vmpackc.low %vm2075, %vm2075
        %v2082 = vsel %vm2080, %v2078, %v1784
        %v2083 = vsel %vm2081, %v2079, %v1785
        %v2084 = vsel %vm2074, %v2035, %v1786
        %v2085 = vsel %vm2075, %v2066, %v1787
        %v2086 = vadd.f32 %v1788, %v2076
        %v2087 = vadd.f32 %v1789, %v2077
        %s2088 = sadd.s32 %s384, 3
        %s2089 = scalar_lea.vmem %s320, 12 [#allocation4]
        %v2090 = vld [vmem:[%s2089] sm:$0xf]
        %v2091 = vunpack.c.l.bf16 %v2090
        %v2092 = vld [vmem:[%s327] sm:$0xf]
        %v2093 = vunpack.c.l.bf16 %v2092
        %2094 = vmatprep.subr.bf16.mxu0 %v930
        %2095 = vmatpush1.bf16.msra.mxu0 %v929
        %2096 = vmatprep.subr.bf16.mxu0 %v938
        %2097 = vmatpush1.bf16.msra.mxu0 %v937
        %2098 = vmatprep.subr.bf16.mxu0 %v946
        %2099 = vmatpush1.bf16.msra.mxu0 %v945
        %2100 = vmatprep.subr.bf16.mxu0 %v954
        %2101 = vmatpush1.bf16.msra.mxu0 %v953
        %2102 = vmatprep.subr.bf16.mxu0 %v962
        %2103 = vmatpush1.bf16.msra.mxu0 %v961
        %2104 = vmatprep.subr.bf16.mxu0 %v970
        %2105 = vmatpush1.bf16.msra.mxu0 %v969
        %2106 = vmatprep.subr.bf16.mxu0 %v978
        %2107 = vmatpush1.bf16.msra.mxu0 %v977
        %2108 = vmatprep.subr.bf16.mxu0 %v986
        %2109 = vmatpush1.bf16.msra.mxu0 %v985
        %2110 = vmatprep.subr.bf16.mxu0 %v994
        %2111 = vmatpush1.bf16.msra.mxu0 %v993
        %2112 = vmatprep.subr.bf16.mxu0 %v1002
        %2113 = vmatpush1.bf16.msra.mxu0 %v1001
        %2114 = vmatprep.subr.bf16.mxu0 %v1010
        %2115 = vmatpush1.bf16.msra.mxu0 %v1009
        %2116 = vmatprep.subr.bf16.mxu0 %v1018
        %2117 = vmatpush1.bf16.msra.mxu0 %v1017
        %2118 = vmatprep.subr.bf16.mxu0 %v1026
        %2119 = vmatpush1.bf16.msra.mxu0 %v1025
        %2120 = vmatprep.subr.bf16.mxu0 %v1034
        %2121 = vmatpush1.bf16.msra.mxu0 %v1033
        %2122 = vmatprep.subr.bf16.mxu0 %v1042
        %2123 = vmatpush1.bf16.msra.mxu0 %v1041
        %2124 = vmatprep.subr.bf16.mxu0 %v1050
        %2125 = vmatpush1.bf16.msra.mxu0 %v1049
        %2126 = vmatprep.mubr.bf16.mxu0 %v2083
        %2127 = vmatmul.mubr.bf16.gmra.mrb[0].mxu0 %v2082
        %v2128 = vpop.f32.mrb[0].mxu0
        %v2129 = vadd.f32 0.0, %v2128
        %v2130 = vpop.f32.mrb[0].mxu0
        %v2131 = vadd.f32 0.0, %v2130
        %v2132 = vpop.f32.mrb[0].mxu0
        %v2133 = vpop.f32.mrb[0].mxu0
        %2134 = vdwg.mxu0
        %2135 = vmatprep.subr.bf16.mxu0 %v932
        %2136 = vmatpush1.bf16.msra.mxu0 %v931
        %2137 = vmatprep.subr.bf16.mxu0 %v940
        %2138 = vmatpush1.bf16.msra.mxu0 %v939
        %2139 = vmatprep.subr.bf16.mxu0 %v948
        %2140 = vmatpush1.bf16.msra.mxu0 %v947
        %2141 = vmatprep.subr.bf16.mxu0 %v956
        %2142 = vmatpush1.bf16.msra.mxu0 %v955
        %2143 = vmatprep.subr.bf16.mxu0 %v964
        %2144 = vmatpush1.bf16.msra.mxu0 %v963
        %2145 = vmatprep.subr.bf16.mxu0 %v972
        %2146 = vmatpush1.bf16.msra.mxu0 %v971
        %2147 = vmatprep.subr.bf16.mxu0 %v980
        %2148 = vmatpush1.bf16.msra.mxu0 %v979
        %2149 = vmatprep.subr.bf16.mxu0 %v988
        %2150 = vmatpush1.bf16.msra.mxu0 %v987
        %2151 = vmatprep.subr.bf16.mxu0 %v996
        %2152 = vmatpush1.bf16.msra.mxu0 %v995
        %2153 = vmatprep.subr.bf16.mxu0 %v1004
        %2154 = vmatpush1.bf16.msra.mxu0 %v1003
        %2155 = vmatprep.subr.bf16.mxu0 %v1012
        %2156 = vmatpush1.bf16.msra.mxu0 %v1011
        %2157 = vmatprep.subr.bf16.mxu0 %v1020
        %2158 = vmatpush1.bf16.msra.mxu0 %v1019
        %2159 = vmatprep.subr.bf16.mxu0 %v1028
        %2160 = vmatpush1.bf16.msra.mxu0 %v1027
        %2161 = vmatprep.subr.bf16.mxu0 %v1036
        %2162 = vmatpush1.bf16.msra.mxu0 %v1035
        %2163 = vmatprep.subr.bf16.mxu0 %v1044
        %2164 = vmatpush1.bf16.msra.mxu0 %v1043
        %2165 = vmatprep.subr.bf16.mxu0 %v1052
        %2166 = vmatpush1.bf16.msra.mxu0 %v1051
        %2167 = vmatprep.mubr.bf16.mxu0 %v2083
        %2168 = vmatmul.mubr.bf16.gmra.mrb[0].mxu0 %v2082
        %v2169 = vpop.f32.mrb[0].mxu0
        %v2170 = vadd.f32 0.0, %v2169
        %v2171 = vpop.f32.mrb[0].mxu0
        %v2172 = vadd.f32 0.0, %v2171
        %v2173 = vpop.f32.mrb[0].mxu0
        %v2174 = vpop.f32.mrb[0].mxu0
        %2175 = vdwg.mxu0
        %2176 = vmatprep.subr.bf16.mxu0 %v934
        %2177 = vmatpush1.bf16.msra.mxu0 %v933
        %2178 = vmatprep.subr.bf16.mxu0 %v942
        %2179 = vmatpush1.bf16.msra.mxu0 %v941
        %2180 = vmatprep.subr.bf16.mxu0 %v950
        %2181 = vmatpush1.bf16.msra.mxu0 %v949
        %2182 = vmatprep.subr.bf16.mxu0 %v958
        %2183 = vmatpush1.bf16.msra.mxu0 %v957
        %2184 = vmatprep.subr.bf16.mxu0 %v966
        %2185 = vmatpush1.bf16.msra.mxu0 %v965
        %2186 = vmatprep.subr.bf16.mxu0 %v974
        %2187 = vmatpush1.bf16.msra.mxu0 %v973
        %2188 = vmatprep.subr.bf16.mxu0 %v982
        %2189 = vmatpush1.bf16.msra.mxu0 %v981
        %2190 = vmatprep.subr.bf16.mxu0 %v990
        %2191 = vmatpush1.bf16.msra.mxu0 %v989
        %2192 = vmatprep.subr.bf16.mxu0 %v998
        %2193 = vmatpush1.bf16.msra.mxu0 %v997
        %2194 = vmatprep.subr.bf16.mxu0 %v1006
        %2195 = vmatpush1.bf16.msra.mxu0 %v1005
        %2196 = vmatprep.subr.bf16.mxu0 %v1014
        %2197 = vmatpush1.bf16.msra.mxu0 %v1013
        %2198 = vmatprep.subr.bf16.mxu0 %v1022
        %2199 = vmatpush1.bf16.msra.mxu0 %v1021
        %2200 = vmatprep.subr.bf16.mxu0 %v1030
        %2201 = vmatpush1.bf16.msra.mxu0 %v1029
        %2202 = vmatprep.subr.bf16.mxu0 %v1038
        %2203 = vmatpush1.bf16.msra.mxu0 %v1037
        %2204 = vmatprep.subr.bf16.mxu0 %v1046
        %2205 = vmatpush1.bf16.msra.mxu0 %v1045
        %2206 = vmatprep.subr.bf16.mxu0 %v1054
        %2207 = vmatpush1.bf16.msra.mxu0 %v1053
        %2208 = vmatprep.mubr.bf16.mxu0 %v2083
        %2209 = vmatmul.mubr.bf16.gmra.mrb[0].mxu0 %v2082
        %v2210 = vpop.f32.mrb[0].mxu0
        %v2211 = vadd.f32 0.0, %v2210
        %v2212 = vpop.f32.mrb[0].mxu0
        %v2213 = vadd.f32 0.0, %v2212
        %v2214 = vpop.f32.mrb[0].mxu0
        %v2215 = vpop.f32.mrb[0].mxu0
        %2216 = vdwg.mxu0
        %2217 = vmatprep.subr.bf16.mxu0 %v936
        %2218 = vmatpush1.bf16.msra.mxu0 %v935
        %2219 = vmatprep.subr.bf16.mxu0 %v944
        %2220 = vmatpush1.bf16.msra.mxu0 %v943
        %2221 = vmatprep.subr.bf16.mxu0 %v952
        %2222 = vmatpush1.bf16.msra.mxu0 %v951
        %2223 = vmatprep.subr.bf16.mxu0 %v960
        %2224 = vmatpush1.bf16.msra.mxu0 %v959
        %2225 = vmatprep.subr.bf16.mxu0 %v968
        %2226 = vmatpush1.bf16.msra.mxu0 %v967
        %2227 = vmatprep.subr.bf16.mxu0 %v976
        %2228 = vmatpush1.bf16.msra.mxu0 %v975
        %2229 = vmatprep.subr.bf16.mxu0 %v984
        %2230 = vmatpush1.bf16.msra.mxu0 %v983
        %2231 = vmatprep.subr.bf16.mxu0 %v992
        %2232 = vmatpush1.bf16.msra.mxu0 %v991
        %2233 = vmatprep.subr.bf16.mxu0 %v1000
        %2234 = vmatpush1.bf16.msra.mxu0 %v999
        %2235 = vmatprep.subr.bf16.mxu0 %v1008
        %2236 = vmatpush1.bf16.msra.mxu0 %v1007
        %2237 = vmatprep.subr.bf16.mxu0 %v1016
        %2238 = vmatpush1.bf16.msra.mxu0 %v1015
        %2239 = vmatprep.subr.bf16.mxu0 %v1024
        %2240 = vmatpush1.bf16.msra.mxu0 %v1023
        %2241 = vmatprep.subr.bf16.mxu0 %v1032
        %2242 = vmatpush1.bf16.msra.mxu0 %v1031
        %2243 = vmatprep.subr.bf16.mxu0 %v1040
        %2244 = vmatpush1.bf16.msra.mxu0 %v1039
        %2245 = vmatprep.subr.bf16.mxu0 %v1048
        %2246 = vmatpush1.bf16.msra.mxu0 %v1047
        %2247 = vmatprep.subr.bf16.mxu0 %v1056
        %2248 = vmatpush1.bf16.msra.mxu0 %v1055
        %2249 = vmatprep.mubr.bf16.mxu0 %v2083
        %2250 = vmatmul.mubr.bf16.gmra.mrb[0].mxu0 %v2082
        %v2251 = vpop.f32.mrb[0].mxu0
        %v2252 = vadd.f32 0.0, %v2251
        %v2253 = vpop.f32.mrb[0].mxu0
        %v2254 = vadd.f32 0.0, %v2253
        %v2255 = vpop.f32.mrb[0].mxu0
        %v2256 = vpop.f32.mrb[0].mxu0
        %2257 = vdwg.mxu0
        %v2262 = vcombine.low %v2129, %v2131
        %v2263 = vcombine.low %v2170, %v2172
        %v2265 = vunpack.c.l.s4 1983009808
        %v2266 = vunpack.c.0.s8 %v2265
        %v2267 = vlaneseq
        %v2268 = vshrl.u32 %v2267, 7
        %v2269 = vsub.s32 %v2266, %v2268
        %v2270 = vrot.slane %v2262, %v2269
        %v2272 = vunpack.c.l.s4 1983009808
        %v2273 = vunpack.c.0.s8 %v2272
        %v2274 = vlaneseq
        %v2275 = vshrl.u32 %v2274, 7
        %v2276 = vsub.s32 %v2273, %v2275
        %v2277 = vrot.slane %v2263, %v2276
        %v2278 = vcombine.low %v2270, %v2277
        %v2280 = vadd.f32 %v2091, %v2278
        %v2285 = vcombine.low %v2211, %v2213
        %v2286 = vcombine.low %v2252, %v2254
        %v2288 = vunpack.c.l.s4 1983009808
        %v2289 = vunpack.c.0.s8 %v2288
        %v2290 = vlaneseq
        %v2291 = vshrl.u32 %v2290, 7
        %v2292 = vsub.s32 %v2289, %v2291
        %v2293 = vrot.slane %v2285, %v2292
        %v2295 = vunpack.c.l.s4 1983009808
        %v2296 = vunpack.c.0.s8 %v2295
        %v2297 = vlaneseq
        %v2298 = vshrl.u32 %v2297, 7
        %v2299 = vsub.s32 %v2296, %v2298
        %v2300 = vrot.slane %v2286, %v2299
        %v2301 = vcombine.low %v2293, %v2300
        %v2303 = vadd.f32 %v2093, %v2301
        %v2304 = vxor.u32 %v2280, 2147483648
        %v2305 = vmul.f32 %v2304, 1.442695
        %v2306 = vpow.pop %v2305
        %v2307 = vadd.f32 %v2306, 1.0
        %v2308 = vrcp.pop %v2307
        %v2309 = vmul.f32 1.0, %v2308
        %v2311 = vrot.slane %v2280, 2
        %v2313 = vxor.u32 %v2311, 2147483648
        %v2314 = vmul.f32 %v2313, 1.442695
        %v2315 = vpow.pop %v2314
        %v2316 = vadd.f32 %v2315, 1.0
        %v2317 = vrcp.pop %v2316
        %v2318 = vmul.f32 1.0, %v2317
        %v2319 = vrot.slane %v2280, 4
        %v2321 = vtanh.pop %v2319
        %v2322 = vrot.slane %v2280, 6
        %v2324 = vxor.u32 %v2322, 2147483648
        %v2325 = vmul.f32 %v2324, 1.442695
        %v2326 = vpow.pop %v2325
        %v2327 = vadd.f32 %v2326, 1.0
        %v2328 = vrcp.pop %v2327
        %v2329 = vmul.f32 1.0, %v2328
        %v2330 = vmul.f32 %v2318, %v2084
        %v2331 = vmul.f32 %v2309, %v2321
        %v2332 = vadd.f32 %v2330, %v2331
        %v2333 = vtanh.pop %v2332
        %v2334 = vmul.f32 %v2329, %v2333
        %v2335 = vxor.u32 %v2303, 2147483648
        %v2336 = vmul.f32 %v2335, 1.442695
        %v2337 = vpow.pop %v2336
        %v2338 = vadd.f32 %v2337, 1.0
        %v2339 = vrcp.pop %v2338
        %v2340 = vmul.f32 1.0, %v2339
        %v2342 = vrot.slane %v2303, 2
        %v2344 = vxor.u32 %v2342, 2147483648
        %v2345 = vmul.f32 %v2344, 1.442695
        %v2346 = vpow.pop %v2345
        %v2347 = vadd.f32 %v2346, 1.0
        %v2348 = vrcp.pop %v2347
        %v2349 = vmul.f32 1.0, %v2348
        %v2350 = vrot.slane %v2303, 4
        %v2352 = vtanh.pop %v2350
        %v2353 = vrot.slane %v2303, 6
        %v2355 = vxor.u32 %v2353, 2147483648
        %v2356 = vmul.f32 %v2355, 1.442695
        %v2357 = vpow.pop %v2356
        %v2358 = vadd.f32 %v2357, 1.0
        %v2359 = vrcp.pop %v2358
        %v2360 = vmul.f32 1.0, %v2359
        %v2361 = vmul.f32 %v2349, %v2085
        %v2362 = vmul.f32 %v2340, %v2352
        %v2363 = vadd.f32 %v2361, %v2362
        %v2364 = vtanh.pop %v2363
        %v2365 = vmul.f32 %v2360, %v2364
        %s2366 = ssub.s32 4, %s384
        %v2367 = vstv %s2088
        %v2368 = vstv %s2366
        %v2369 = vsel %vm382, %v2367, %v2368
        %v2370 = vsel %vm383, %v2367, %v2368
        %vm2371 = vcmp.lt.s32.totalorder %v2369, %v1467
        %vm2372 = vcmp.lt.s32.totalorder %v2370, %v1467
        %v2373 = vsel %vm2371, %v2334, 0.0
        %v2374 = vsel %vm2372, %v2365, 0.0
        %v2375 = vpack.c.bf16 %v2334, %v2334
        %v2376 = vpack.c.bf16 %v2365, %v2365
        %vm2377 = vmpackc.low %vm2371, %vm2371
        %vm2378 = vmpackc.low %vm2372, %vm2372
        %v2379 = vsel %vm2377, %v2375, %v2082
        %v2380 = vsel %vm2378, %v2376, %v2083
        %v2381 = vsel %vm2371, %v2332, %v2084
        %v2382 = vsel %vm2372, %v2363, %v2085
        %v2383 = vadd.f32 %v2086, %v2373
        %v2384 = vadd.f32 %v2087, %v2374
        %v2385 = vld [vmem:[%s369] sm:$0xf]
        %v2388 = vcombine.low %v2383, %v2384
        %v2390 = vunpack.c.l.s4 1983009808
        %v2391 = vunpack.c.0.s8 %v2390
        %v2392 = vlaneseq
        %v2393 = vshrl.u32 %v2392, 7
        %v2394 = vsub.s32 %v2391, %v2393
        %v2395 = vrot.slane %v2388, %v2394
        %v2397 = vadd.f32 %v2385, %v2395
        %2398 = vst [vmem:[%s369] sm:$0xf] %v2397
        %p2399 = scmp.eq.s32.totalorder %s20, 1
        // Predicated region
        $region123: #{rnn_forward.7} parent=109 // pred_check
          %p2400 = pneg %p2399
        $region124: #{rnn_forward.7} parent=109 // pred_check_branch
          %2402 = sbr.rel (%p2400) target = $region126
        $region125: #{rnn_forward.7} parent=109 // pred_region
          %vm2403 = vcmp.gt.s32.totalorder %v378, 1
          %v2404 = vsel %vm2403, %v378, 1
          %v2405 = vcvt.s32.f32 %v2404
          %v2406 = vrcp.pop %v2405
          %v2407 = vld [vmem:[%s369] sm:$0xf]
          %2409 = vset.pattern.permute.xlu0 0
          %2410 = vperm.xlu0 %2409, %v2406
          %v2411 = vpop.permute.xlu0 %2410
          %v2413 = vunpack.c.l.s4 269488144
          %v2414 = vunpack.c.0.s8 %v2413
          %v2415 = vlaneseq
          %v2416 = vshrl.u32 %v2415, 7
          %v2417 = vsub.s32 %v2414, %v2416
          %v2418 = vrot.slane %v2411, %v2417
          %v2420 = vmul.f32 %v2407, %v2418
          %2421 = vst [vmem:[%s369] sm:$0xf] %v2420
        $region126: #{rnn_forward.7} parent=109 // pred_fallthru
          _
        %v2424 = vcombine.low %v2379, %v2380
        %v2426 = vunpack.c.l.s4 1966171168
        %v2427 = vunpack.c.0.s8 %v2426
        %v2428 = vlaneseq
        %v2429 = vshrl.u32 %v2428, 7
        %v2430 = vsub.s32 %v2427, %v2429
        %v2431 = vrot.slane %v2424, %v2430
        %v2433 = vunpack.c.l.s4 1966171168
        %v2434 = vunpack.c.0.s8 %v2433
        %v2435 = vlaneseq
        %v2436 = vshrl.u32 %v2435, 7
        %v2437 = vsub.s32 %v2434, %v2436
        %v2438 = vrot.slane %v2431, %v2437
        %2440 = vst [vmem:[#allocation2] sm:$0x3] %v2438
        %v2443 = vcombine.low %v2381, %v2382
        %v2445 = vunpack.c.l.s4 1983009808
        %v2446 = vunpack.c.0.s8 %v2445
        %v2447 = vlaneseq
        %v2448 = vshrl.u32 %v2447, 7
        %v2449 = vsub.s32 %v2446, %v2448
        %v2450 = vrot.slane %v2443, %v2449
        %2452 = vst [vmem:[#allocation3] sm:$0xf] %v2450
        %p2453 = scmp.lt.s32.totalorder %s19, 0
        %s2454 = scalar_select %p2453, %s19, 0
        %s2455 = smul.addr %s2454, 2
        %s2456 = smul.addr %s2455, 2
        %s2457 = scalar_lea.vmem %s4, %s2456
        // Predicated region
        $region127: #{rnn_forward.7} parent=109 // pred_check
          %p2458 = pneg %p150
        $region128: #{rnn_forward.7} parent=109 // pred_check_branch
          %2460 = sbr.rel (%p2458) target = $region130
        $region129: #{rnn_forward.7} parent=109 // pred_region
          _
        $region130: #{rnn_forward.7} parent=109 // pred_fallthru
          _
        // Predicated region
        $region131: #{rnn_forward.7} parent=109 // pred_check
          %p2461 = pneg %p150
        $region132: #{rnn_forward.7} parent=109 // pred_check_branch
          %2463 = sbr.rel (%p2461) target = $region134
        $region133: #{rnn_forward.7} parent=109 // pred_region
          %p2464 = scmp.lt.s32.totalorder %s19, 0
          %s2465 = scalar_select %p2464, %s19, 0
          %s2466 = smul.addr %s2465, 2
          %s2467 = smul.addr %s2466, 2
          %s2468 = scalar_lea.vmem %s4, %s2467
        $region134: #{rnn_forward.7} parent=109 // pred_fallthru
          _
      $region110: #{rnn_forward.7} parent=5 // pred_fallthru
        _
      %p2469 = scmp.le.s32.totalorder 2, %s10
      // Predicated region
      $region135: #{rnn_forward.7} parent=5 // pred_check
        %p2470 = pneg %p2469
      $region136: #{rnn_forward.7} parent=5 // pred_check_branch
        %2472 = sbr.rel (%p2470) target = $region138
      $region137: #{rnn_forward.7} parent=5 // pred_region
        %s2473 = ssub.s32 %s10, 2
      $region138: #{rnn_forward.7} parent=5 // pred_fallthru
        _
    $region6: #{rnn_forward.7} parent=1 // loop_footer
      %s14 = sadd.s32 1, %s10
    $region7: #{rnn_forward.7} parent=1 // loop_footer_branch
      %9 = sbr.rel target = $region3
    $region8: #{rnn_forward.7} parent=1 // loop_exit
      _

// kernel: rnn_forward.5
$region0: #{rnn_forward.5}
  #allocation0 [shape = 'u32[]', space=smem, size = 0x4, offset = 0x4, fixed_abs, tag = 'smem constant byte address 0x4 - core index']
  #allocation1 [shape = 'u32[144,128]{1,0:T(1,128)}', space=vmem, size = 0x12000, scoped, tag = 'internal scratch']
  #allocation2 [shape = 'bf16[2,256]{1,0:T(2,128)(2,1)}', space=vmem, size = 0x400, scoped, tag = 'scratch operand']
  #allocation3 [shape = 'f32[2,256]{1,0:T(2,128)}', space=vmem, size = 0x800, scoped, tag = 'scratch operand']
  %s0 = inlined_call_operand.vmem [shape: bf16[8,2,1024], index: 0, kind: input, shape index: {}, may-alias: {0,1}]
  %s1 = inlined_call_operand.vmem [shape: bf16[8,2,1024], index: 1, kind: input, shape index: {}, may-alias: {0,1}]
  %s2 = inlined_call_operand.hbm [shape: bf16[256,1024], index: 2, kind: input, shape index: {}]
  %s3 = inlined_call_operand.vmem [shape: s32[2,1], index: 3, kind: input, shape index: {}]
  %s4 = inlined_call_operand.vmem [shape: bf16[8,2,128], index: 4, kind: output, shape index: {0}]
  %s5 = inlined_call_operand.vmem [shape: bf16[8,2,128], index: 5, kind: output, shape index: {1}]
  %6 = xla_tuple %s4, %s5
  %s7 = sld [smem:[#allocation0]]
  $region147: #{rnn_forward.5} parent=0
    _
  %s9 = ssub.s32 1, %s7
  %s10 = scalar_select 0, %s9, %s7
  $region1: #{rnn_forward.5} parent=0
    #allocation4 [shape = 'u8[16384]{0}', space=vmem, size = 0x4000, scoped, tag = 'input window, operand 0']
    #allocation5 [shape = 'u8[16384]{0}', space=vmem, size = 0x4000, scoped, tag = 'input window, operand 1']
    #allocation6 [shape = 'u8[524288]{0}', space=vmem, size = 0x80000, scoped, tag = 'input window, operand 2, single buffered']
    #allocation7 [shape = 's32[2]{0}', space=sflag, size = 0x8, scoped, tag = 'scoped memory for rnn_forward.5']
    %11 = vsyncpa [#allocation7], 0
    loop: start=0, step=1, limit=4
    $region2: #{rnn_forward.5} parent=1 // loop_pre_header
      _
    $region3: #{rnn_forward.5} parent=1 // loop_header
      %s13 = sphi 0, %s17
      %p14 = scmp.ge.s32.totalorder %s13, 4
      %s20 = sphi 0, %s32
      %s21 = sphi 0, %s28
      %s22 = sphi 0, %s20
      %s23 = sphi 0, %s21
      %s24 = sphi 0, %s22
      %s25 = sphi 0, %s23
      %s37 = sphi 0, %s39
      %s40 = sphi 0, %s37
      %s41 = sphi 0, %s40
      %s57 = sphi 0, %s41
      %s67 = sphi 0, %s69
      %s70 = sphi 0, %s67
      %s71 = sphi 0, %s70
      %s87 = sphi 0, %s71
      %s91 = sphi 0, %s91
      %s93 = sphi 0, %s91
      %s94 = sphi 0, %s93
      %s108 = sphi 0, %s94
      %s114 = sphi 0, %s116
      %s117 = sphi 0, %s114
      %s118 = sphi 0, %s117
      %s134 = sphi 0, %s118
      %s142 = sphi 0, %s144
      %s145 = sphi 0, %s142
      %s146 = sphi 0, %s145
      %s162 = sphi 0, %s146
      %s172 = sphi 0, %s174
      %s175 = sphi 0, %s172
      %s176 = sphi 0, %s175
      %s192 = sphi 0, %s176
    $region4: #{rnn_forward.5} parent=1 // loop_header_branch
      %16 = sbr.rel (%p14) target = $region8
    $region5: #{rnn_forward.5} parent=1 // loop_body
      %s18 = ssub.s32 %s13, 1
      %s19 = ssub.s32 %s13, 2
      %s26 = sadd.s32 1, %s21
      %p27 = scmp.ge.s32.totalorder %s26, 2
      %s28 = scalar_select %p27, 0, %s26
      %s29 = sadd.s32 1, %s20
      %s30 = scalar_select %p27, %s29, %s20
      %p31 = scmp.ge.s32.totalorder %s30, 1
      %s32 = scalar_select %p31, 0, %s30
      %s33 = ssub.s32 %s21, %s28
      %s34 = ssub.s32 %s20, %s32
      %s35 = sor.u32 %s33, %s34
      %p36 = scmp.eq.s32.totalorder %s35, 0
      %s38 = sadd.s32 %s37, 1
      %s39 = scalar_select %p36, %s37, %s38
      %p42 = pneg %p36
      %p43 = scmp.eq.s32.totalorder %s13, 1
      %p44 = por %p42, %p43
      %p45 = scmp.ne.s32.totalorder %s37, %s40
      %p46 = scmp.eq.s32.totalorder %s13, 0
      %p47 = por %p45, %p46
      %p48 = scmp.ne.s32.totalorder %s37, %s40
      %p49 = scmp.eq.s32.totalorder %s18, 1
      %p50 = por %p48, %p49
      %p51 = scmp.ne.s32.totalorder %s40, %s41
      %p52 = scmp.eq.s32.totalorder %s18, 0
      %p53 = por %p51, %p52
      %p54 = scmp.ne.s32.totalorder %s40, %s41
      %p55 = scmp.eq.s32.totalorder %s19, 1
      %p56 = por %p54, %p55
      %p58 = scmp.ne.s32.totalorder %s41, %s57
      %p59 = scmp.eq.s32.totalorder %s19, 0
      %p60 = por %p58, %p59
      %s61 = ssub.s32 1, %s21
      %s62 = ssub.s32 1, %s28
      %s63 = ssub.s32 %s61, %s62
      %s64 = ssub.s32 %s20, %s32
      %s65 = sor.u32 %s63, %s64
      %p66 = scmp.eq.s32.totalorder %s65, 0
      %s68 = sadd.s32 %s67, 1
      %s69 = scalar_select %p66, %s67, %s68
      %p72 = pneg %p66
      %p73 = scmp.eq.s32.totalorder %s13, 1
      %p74 = por %p72, %p73
      %p75 = scmp.ne.s32.totalorder %s67, %s70
      %p76 = scmp.eq.s32.totalorder %s13, 0
      %p77 = por %p75, %p76
      %p78 = scmp.ne.s32.totalorder %s67, %s70
      %p79 = scmp.eq.s32.totalorder %s18, 1
      %p80 = por %p78, %p79
      %p81 = scmp.ne.s32.totalorder %s70, %s71
      %p82 = scmp.eq.s32.totalorder %s18, 0
      %p83 = por %p81, %p82
      %p84 = scmp.ne.s32.totalorder %s70, %s71
      %p85 = scmp.eq.s32.totalorder %s19, 1
      %p86 = por %p84, %p85
      %p88 = scmp.ne.s32.totalorder %s71, %s87
      %p89 = scmp.eq.s32.totalorder %s19, 0
      %p90 = por %p88, %p89
      %s92 = sadd.s32 %s91, 1
      %p95 = scmp.eq.s32.totalorder %s13, 1
      %p96 = scmp.ne.s32.totalorder %s91, %s93
      %p97 = scmp.eq.s32.totalorder %s13, 0
      %p98 = por %p96, %p97
      %p99 = scmp.ne.s32.totalorder %s91, %s93
      %p100 = scmp.eq.s32.totalorder %s18, 1
      %p101 = por %p99, %p100
      %p102 = scmp.ne.s32.totalorder %s93, %s94
      %p103 = scmp.eq.s32.totalorder %s18, 0
      %p104 = por %p102, %p103
      %p105 = scmp.ne.s32.totalorder %s93, %s94
      %p106 = scmp.eq.s32.totalorder %s19, 1
      %p107 = por %p105, %p106
      %p109 = scmp.ne.s32.totalorder %s94, %s108
      %p110 = scmp.eq.s32.totalorder %s19, 0
      %p111 = por %p109, %p110
      %s112 = ssub.s32 %s20, %s32
      %p113 = scmp.eq.s32.totalorder %s112, 0
      %s115 = sadd.s32 %s114, 1
      %s116 = scalar_select %p113, %s114, %s115
      %p119 = pneg %p113
      %p120 = scmp.eq.s32.totalorder %s13, 1
      %p121 = por %p119, %p120
      %p122 = scmp.ne.s32.totalorder %s114, %s117
      %p123 = scmp.eq.s32.totalorder %s13, 0
      %p124 = por %p122, %p123
      %p125 = scmp.ne.s32.totalorder %s114, %s117
      %p126 = scmp.eq.s32.totalorder %s18, 1
      %p127 = por %p125, %p126
      %p128 = scmp.ne.s32.totalorder %s117, %s118
      %p129 = scmp.eq.s32.totalorder %s18, 0
      %p130 = por %p128, %p129
      %p131 = scmp.ne.s32.totalorder %s117, %s118
      %p132 = scmp.eq.s32.totalorder %s19, 1
      %p133 = por %p131, %p132
      %p135 = scmp.ne.s32.totalorder %s118, %s134
      %p136 = scmp.eq.s32.totalorder %s19, 0
      %p137 = por %p135, %p136
      %s138 = ssub.s32 %s21, %s28
      %s139 = ssub.s32 %s20, %s32
      %s140 = sor.u32 %s138, %s139
      %p141 = scmp.eq.s32.totalorder %s140, 0
      %s143 = sadd.s32 %s142, 1
      %s144 = scalar_select %p141, %s142, %s143
      %p147 = pneg %p141
      %p148 = scmp.eq.s32.totalorder %s13, 1
      %p149 = por %p147, %p148
      %p150 = scmp.ne.s32.totalorder %s142, %s145
      %p151 = scmp.eq.s32.totalorder %s13, 0
      %p152 = por %p150, %p151
      %p153 = scmp.ne.s32.totalorder %s142, %s145
      %p154 = scmp.eq.s32.totalorder %s18, 1
      %p155 = por %p153, %p154
      %p156 = scmp.ne.s32.totalorder %s145, %s146
      %p157 = scmp.eq.s32.totalorder %s18, 0
      %p158 = por %p156, %p157
      %p159 = scmp.ne.s32.totalorder %s145, %s146
      %p160 = scmp.eq.s32.totalorder %s19, 1
      %p161 = por %p159, %p160
      %p163 = scmp.ne.s32.totalorder %s146, %s162
      %p164 = scmp.eq.s32.totalorder %s19, 0
      %p165 = por %p163, %p164
      %s166 = ssub.s32 1, %s21
      %s167 = ssub.s32 1, %s28
      %s168 = ssub.s32 %s166, %s167
      %s169 = ssub.s32 %s20, %s32
      %s170 = sor.u32 %s168, %s169
      %p171 = scmp.eq.s32.totalorder %s170, 0
      %s173 = sadd.s32 %s172, 1
      %s174 = scalar_select %p171, %s172, %s173
      %p177 = pneg %p171
      %p178 = scmp.eq.s32.totalorder %s13, 1
      %p179 = por %p177, %p178
      %p180 = scmp.ne.s32.totalorder %s172, %s175
      %p181 = scmp.eq.s32.totalorder %s13, 0
      %p182 = por %p180, %p181
      %p183 = scmp.ne.s32.totalorder %s172, %s175
      %p184 = scmp.eq.s32.totalorder %s18, 1
      %p185 = por %p183, %p184
      %p186 = scmp.ne.s32.totalorder %s175, %s176
      %p187 = scmp.eq.s32.totalorder %s18, 0
      %p188 = por %p186, %p187
      %p189 = scmp.ne.s32.totalorder %s175, %s176
      %p190 = scmp.eq.s32.totalorder %s19, 1
      %p191 = por %p189, %p190
      %p193 = scmp.ne.s32.totalorder %s176, %s192
      %p194 = scmp.eq.s32.totalorder %s19, 0
      %p195 = por %p193, %p194
      %p196 = scmp.le.s32.totalorder 1, %s13
      %p197 = scmp.lt.s32.totalorder %s13, 3
      %p198 = pnand %p196, %p197
      %p199 = pneg %p198
      // Predicated region
      $region9: #{rnn_forward.5} parent=5 // pred_check
        _
      $region10: #{rnn_forward.5} parent=5 // pred_check_branch
        %201 = sbr.rel (%p198) target = $region12
      $region11: #{rnn_forward.5} parent=5 // pred_region
        %s202 = ssub.s32 %s13, 1
        // Predicated region
        $region13: #{rnn_forward.5} parent=11 // pred_check
          %p203 = pneg %p104
        $region14: #{rnn_forward.5} parent=11 // pred_check_branch
          %205 = sbr.rel (%p203) target = $region16
        $region15: #{rnn_forward.5} parent=11 // pred_region
          %s207 = ssub.s32 16384, 16384
          %208 = vsyncadd [#allocation7], %s207
          %s209 = sshll.u32 [#allocation6], 4
          %s210 = int_to_ptr.vmem [resolvable:$true] %s209
          %215 = dma.hbm_to_vmem [thread:$0]  %s2, 16384, %s210, [#allocation7], 512, 512, 32
        $region16: #{rnn_forward.5} parent=11 // pred_fallthru
          _
        // Predicated region
        $region17: #{rnn_forward.5} parent=11 // pred_check
          %p216 = pneg %p130
        $region18: #{rnn_forward.5} parent=11 // pred_check_branch
          %218 = sbr.rel (%p216) target = $region20
        $region19: #{rnn_forward.5} parent=11 // pred_region
          %p219 = scmp.lt.s32.totalorder %s22, 0
          %s220 = scalar_select %p219, %s22, 0
          %s221 = smul.addr %s220, 2
          %s222 = scalar_lea.vmem %s3, %s221
        $region20: #{rnn_forward.5} parent=11 // pred_fallthru
          _
      $region12: #{rnn_forward.5} parent=5 // pred_fallthru
        _
      %p223 = scmp.lt.s32.totalorder %s13, 2
      // Predicated region
      $region21: #{rnn_forward.5} parent=5 // pred_check
        %p224 = pneg %p223
      $region22: #{rnn_forward.5} parent=5 // pred_check_branch
        %226 = sbr.rel (%p224) target = $region24
      $region23: #{rnn_forward.5} parent=5 // pred_region
        // Predicated region
        $region25: #{rnn_forward.5} parent=23 // pred_check
          %p227 = pneg %p47
        $region26: #{rnn_forward.5} parent=23 // pred_check_branch
          %229 = sbr.rel (%p227) target = $region28
        $region27: #{rnn_forward.5} parent=23 // pred_region
          %s230 = sand.u32 %s37, 1
          %s231 = sand.u32 %s37, 1
          %s232 = smul.addr %s231, 16
          %s233 = scalar_lea.vmem [#allocation4], %s232
          %s234 = smul.u32 4, %s21
          %s235 = smul.addr %s20, 8
          %s236 = smul.addr %s234, 8
          %s237 = sadd.s32 %s235, %s236
          %s238 = scalar_lea.vmem %s0, %s237
          // Predicated region
          $region29: #{rnn_forward.5} parent=27 // pred_check
            _
          $region30: #{rnn_forward.5} parent=27 // pred_check_branch
            %240 = sbr.rel (0) target = $region32
          $region31: #{rnn_forward.5} parent=27 // pred_region
            // Predicated region
            $region33: #{rnn_forward.5} parent=31 // pred_check
              _
            $region34: #{rnn_forward.5} parent=31 // pred_check_branch
              %242 = sbr.rel target = $region36
            $region35: #{rnn_forward.5} parent=31 // pred_region
              // Predicated region
              $region48: #{rnn_forward.5} parent=35 // pred_check
                _
              $region49: #{rnn_forward.5} parent=35 // pred_check_branch
                %263 = sbr.rel (0) target = $region51
              $region50: #{rnn_forward.5} parent=35 // pred_region
                loop: start=0, step=1, limit=1
                $region52: #{rnn_forward.5} parent=50 // loop_pre_header
                  _
                $region53: #{rnn_forward.5} parent=50 // loop_header
                  %s265 = sphi 0, %s269
                  %p266 = scmp.ge.s32.totalorder %s265, 1
                  %s270 = sphi %s238, %s238
                  %s271 = sphi %s233, %s233
                $region54: #{rnn_forward.5} parent=50 // loop_header_branch
                  %268 = sbr.rel (%p266) target = $region58
                $region55: #{rnn_forward.5} parent=50 // loop_body
                  _
                $region56: #{rnn_forward.5} parent=50 // loop_footer
                  %s269 = sadd.s32 1, %s265
                $region57: #{rnn_forward.5} parent=50 // loop_footer_branch
                  %264 = sbr.rel target = $region53
                $region58: #{rnn_forward.5} parent=50 // loop_exit
                  _
                loop: start=0, step=1, limit=1
                $region59: #{rnn_forward.5} parent=50 // loop_pre_header
                  _
                $region60: #{rnn_forward.5} parent=50 // loop_header
                  %s274 = sphi 0, %s278
                  %p275 = scmp.ge.s32.totalorder %s274, 1
                  %s279 = sphi %s238, %s238
                  %s280 = sphi %s233, %s233
                $region61: #{rnn_forward.5} parent=50 // loop_header_branch
                  %277 = sbr.rel (%p275) target = $region65
                $region62: #{rnn_forward.5} parent=50 // loop_body
                  %v281 = vld [vmem:[%s279] sm:$0xf]
                  %282 = vst [vmem:[%s280] sm:$0xf] %v281
                  %v283 = vld [vmem:[%s279 + $0x8] sm:$0xf]
                  %284 = vst [vmem:[%s280 + $0x4] sm:$0xf] %v283
                  %v285 = vld [vmem:[%s279 + $0x10] sm:$0xf]
                  %286 = vst [vmem:[%s280 + $0x8] sm:$0xf] %v285
                  %v287 = vld [vmem:[%s279 + $0x18] sm:$0xf]
                  %288 = vst [vmem:[%s280 + $0xc] sm:$0xf] %v287
                $region63: #{rnn_forward.5} parent=50 // loop_footer
                  %s278 = sadd.s32 1, %s274
                $region64: #{rnn_forward.5} parent=50 // loop_footer_branch
                  %273 = sbr.rel target = $region60
                $region65: #{rnn_forward.5} parent=50 // loop_exit
                  _
              $region51: #{rnn_forward.5} parent=35 // pred_fallthru
                _
            $region36: #{rnn_forward.5} parent=31 // pred_fallthru
              _
            // Predicated region
            $region37: #{rnn_forward.5} parent=31 // pred_check
              _
            $region38: #{rnn_forward.5} parent=31 // pred_check_branch
              %244 = sbr.rel (0) target = $region40
            $region39: #{rnn_forward.5} parent=31 // pred_region
              loop: start=0, step=1, limit=1
              $region41: #{rnn_forward.5} parent=39 // loop_pre_header
                _
              $region42: #{rnn_forward.5} parent=39 // loop_header
                %s247 = sphi 0, %s251
                %p248 = scmp.ge.s32.totalorder %s247, 1
                %s252 = sphi %s238, %s238
                %s253 = sphi %s233, %s233
              $region43: #{rnn_forward.5} parent=39 // loop_header_branch
                %250 = sbr.rel (%p248) target = $region47
              $region44: #{rnn_forward.5} parent=39 // loop_body
                %v254 = vld [vmem:[%s252] sm:$0xf]
                %255 = vst [vmem:[%s253] sm:$0xf] %v254
                %v256 = vld [vmem:[%s252 + $0x8] sm:$0xf]
                %257 = vst [vmem:[%s253 + $0x4] sm:$0xf] %v256
                %v258 = vld [vmem:[%s252 + $0x10] sm:$0xf]
                %259 = vst [vmem:[%s253 + $0x8] sm:$0xf] %v258
                %v260 = vld [vmem:[%s252 + $0x18] sm:$0xf]
                %261 = vst [vmem:[%s253 + $0xc] sm:$0xf] %v260
              $region45: #{rnn_forward.5} parent=39 // loop_footer
                %s251 = sadd.s32 1, %s247
              $region46: #{rnn_forward.5} parent=39 // loop_footer_branch
                %246 = sbr.rel target = $region42
              $region47: #{rnn_forward.5} parent=39 // loop_exit
                _
            $region40: #{rnn_forward.5} parent=31 // pred_fallthru
              _
          $region32: #{rnn_forward.5} parent=27 // pred_fallthru
            _
          %289 = vnop
        $region28: #{rnn_forward.5} parent=23 // pred_fallthru
          _
        // Predicated region
        $region66: #{rnn_forward.5} parent=23 // pred_check
          %p290 = pneg %p77
        $region67: #{rnn_forward.5} parent=23 // pred_check_branch
          %292 = sbr.rel (%p290) target = $region69
        $region68: #{rnn_forward.5} parent=23 // pred_region
          %s293 = sand.u32 %s67, 1
          %s294 = sand.u32 %s67, 1
          %s295 = smul.addr %s294, 16
          %s296 = scalar_lea.vmem [#allocation5], %s295
          %s297 = ssub.s32 1, %s21
          %s298 = smul.u32 4, %s297
          %s299 = smul.addr %s20, 8
          %s300 = sadd.s32 4, %s299
          %s301 = smul.addr %s298, 8
          %s302 = sadd.s32 %s300, %s301
          %s303 = scalar_lea.vmem %s1, %s302
          // Predicated region
          $region70: #{rnn_forward.5} parent=68 // pred_check
            _
          $region71: #{rnn_forward.5} parent=68 // pred_check_branch
            %305 = sbr.rel (0) target = $region73
          $region72: #{rnn_forward.5} parent=68 // pred_region
            // Predicated region
            $region74: #{rnn_forward.5} parent=72 // pred_check
              _
            $region75: #{rnn_forward.5} parent=72 // pred_check_branch
              %307 = sbr.rel target = $region77
            $region76: #{rnn_forward.5} parent=72 // pred_region
              // Predicated region
              $region89: #{rnn_forward.5} parent=76 // pred_check
                _
              $region90: #{rnn_forward.5} parent=76 // pred_check_branch
                %328 = sbr.rel (0) target = $region92
              $region91: #{rnn_forward.5} parent=76 // pred_region
                loop: start=0, step=1, limit=1
                $region93: #{rnn_forward.5} parent=91 // loop_pre_header
                  _
                $region94: #{rnn_forward.5} parent=91 // loop_header
                  %s330 = sphi 0, %s334
                  %p331 = scmp.ge.s32.totalorder %s330, 1
                  %s335 = sphi %s303, %s303
                  %s336 = sphi %s296, %s296
                $region95: #{rnn_forward.5} parent=91 // loop_header_branch
                  %333 = sbr.rel (%p331) target = $region99
                $region96: #{rnn_forward.5} parent=91 // loop_body
                  _
                $region97: #{rnn_forward.5} parent=91 // loop_footer
                  %s334 = sadd.s32 1, %s330
                $region98: #{rnn_forward.5} parent=91 // loop_footer_branch
                  %329 = sbr.rel target = $region94
                $region99: #{rnn_forward.5} parent=91 // loop_exit
                  _
                loop: start=0, step=1, limit=1
                $region100: #{rnn_forward.5} parent=91 // loop_pre_header
                  _
                $region101: #{rnn_forward.5} parent=91 // loop_header
                  %s339 = sphi 0, %s343
                  %p340 = scmp.ge.s32.totalorder %s339, 1
                  %s344 = sphi %s303, %s303
                  %s345 = sphi %s296, %s296
                $region102: #{rnn_forward.5} parent=91 // loop_header_branch
                  %342 = sbr.rel (%p340) target = $region106
                $region103: #{rnn_forward.5} parent=91 // loop_body
                  %v346 = vld [vmem:[%s344] sm:$0xf]
                  %347 = vst [vmem:[%s345] sm:$0xf] %v346
                  %v348 = vld [vmem:[%s344 + $0x8] sm:$0xf]
                  %349 = vst [vmem:[%s345 + $0x4] sm:$0xf] %v348
                  %v350 = vld [vmem:[%s344 + $0x10] sm:$0xf]
                  %351 = vst [vmem:[%s345 + $0x8] sm:$0xf] %v350
                  %v352 = vld [vmem:[%s344 + $0x18] sm:$0xf]
                  %353 = vst [vmem:[%s345 + $0xc] sm:$0xf] %v352
                $region104: #{rnn_forward.5} parent=91 // loop_footer
                  %s343 = sadd.s32 1, %s339
                $region105: #{rnn_forward.5} parent=91 // loop_footer_branch
                  %338 = sbr.rel target = $region101
                $region106: #{rnn_forward.5} parent=91 // loop_exit
                  _
              $region92: #{rnn_forward.5} parent=76 // pred_fallthru
                _
            $region77: #{rnn_forward.5} parent=72 // pred_fallthru
              _
            // Predicated region
            $region78: #{rnn_forward.5} parent=72 // pred_check
              _
            $region79: #{rnn_forward.5} parent=72 // pred_check_branch
              %309 = sbr.rel (0) target = $region81
            $region80: #{rnn_forward.5} parent=72 // pred_region
              loop: start=0, step=1, limit=1
              $region82: #{rnn_forward.5} parent=80 // loop_pre_header
                _
              $region83: #{rnn_forward.5} parent=80 // loop_header
                %s312 = sphi 0, %s316
                %p313 = scmp.ge.s32.totalorder %s312, 1
                %s317 = sphi %s303, %s303
                %s318 = sphi %s296, %s296
              $region84: #{rnn_forward.5} parent=80 // loop_header_branch
                %315 = sbr.rel (%p313) target = $region88
              $region85: #{rnn_forward.5} parent=80 // loop_body
                %v319 = vld [vmem:[%s317] sm:$0xf]
                %320 = vst [vmem:[%s318] sm:$0xf] %v319
                %v321 = vld [vmem:[%s317 + $0x8] sm:$0xf]
                %322 = vst [vmem:[%s318 + $0x4] sm:$0xf] %v321
                %v323 = vld [vmem:[%s317 + $0x10] sm:$0xf]
                %324 = vst [vmem:[%s318 + $0x8] sm:$0xf] %v323
                %v325 = vld [vmem:[%s317 + $0x18] sm:$0xf]
                %326 = vst [vmem:[%s318 + $0xc] sm:$0xf] %v325
              $region86: #{rnn_forward.5} parent=80 // loop_footer
                %s316 = sadd.s32 1, %s312
              $region87: #{rnn_forward.5} parent=80 // loop_footer_branch
                %311 = sbr.rel target = $region83
              $region88: #{rnn_forward.5} parent=80 // loop_exit
                _
            $region81: #{rnn_forward.5} parent=72 // pred_fallthru
              _
          $region73: #{rnn_forward.5} parent=68 // pred_fallthru
            _
          %354 = vnop
        $region69: #{rnn_forward.5} parent=23 // pred_fallthru
          _
      $region24: #{rnn_forward.5} parent=5 // pred_fallthru
        _
      %p355 = scmp.le.s32.totalorder 1, %s13
      %p356 = scmp.lt.s32.totalorder %s13, 3
      %p357 = pnand %p355, %p356
      %p358 = pneg %p357
      // Predicated region
      $region107: #{rnn_forward.5} parent=5 // pred_check
        _
      $region108: #{rnn_forward.5} parent=5 // pred_check_branch
        %360 = sbr.rel (%p357) target = $region110
      $region109: #{rnn_forward.5} parent=5 // pred_region
        %s361 = ssub.s32 %s13, 1
        %s362 = sand.u32 %s40, 1
        %s363 = sand.u32 %s40, 1
        %s364 = smul.addr %s363, 16
        %s365 = scalar_lea.vmem [#allocation4], %s364
        // Predicated region
        $region111: #{rnn_forward.5} parent=109 // pred_check
          %p366 = pneg %p53
        $region112: #{rnn_forward.5} parent=109 // pred_check_branch
          %368 = sbr.rel (%p366) target = $region114
        $region113: #{rnn_forward.5} parent=109 // pred_region
          _
        $region114: #{rnn_forward.5} parent=109 // pred_fallthru
          _
        %s369 = sand.u32 %s70, 1
        %s370 = sand.u32 %s70, 1
        %s371 = smul.addr %s370, 16
        %s372 = scalar_lea.vmem [#allocation5], %s371
        // Predicated region
        $region115: #{rnn_forward.5} parent=109 // pred_check
          %p373 = pneg %p83
        $region116: #{rnn_forward.5} parent=109 // pred_check_branch
          %375 = sbr.rel (%p373) target = $region118
        $region117: #{rnn_forward.5} parent=109 // pred_region
          _
        $region118: #{rnn_forward.5} parent=109 // pred_fallthru
          _
        // Predicated region
        $region119: #{rnn_forward.5} parent=109 // pred_check
          %p376 = pneg %p104
        $region120: #{rnn_forward.5} parent=109 // pred_check_branch
          %378 = sbr.rel (%p376) target = $region122
        $region121: #{rnn_forward.5} parent=109 // pred_region
          %379 = dma.done [#allocation7], 16384
        $region122: #{rnn_forward.5} parent=109 // pred_fallthru
          _
        %s380 = sand.u32 %s40, 1
        %s381 = sand.u32 %s40, 1
        %s382 = smul.addr %s381, 16
        %s383 = scalar_lea.vmem [#allocation4], %s382
        %p384 = pneg %p53
        %p385 = pneg %p50
        %s386 = sand.u32 %s70, 1
        %s387 = sand.u32 %s70, 1
        %s388 = smul.addr %s387, 16
        %s389 = scalar_lea.vmem [#allocation5], %s388
        %p390 = pneg %p83
        %p391 = pneg %p80
        %p392 = pneg %p104
        %p393 = pneg %p101
        %p394 = scmp.lt.s32.totalorder %s22, 0
        %s395 = scalar_select %p394, %s22, 0
        %s396 = smul.addr %s395, 2
        %s397 = scalar_lea.vmem %s3, %s396
        %p398 = pneg %p130
        %p399 = pneg %p127
        %p400 = pneg %p158
        %p401 = pneg %p155
        %s402 = smul.u32 4, %s23
        %p403 = scmp.lt.s32.totalorder %s402, 7
        %s404 = scalar_select %p403, %s402, 7
        %p405 = scmp.lt.s32.totalorder %s22, 0
        %s406 = scalar_select %p405, %s22, 0
        %s407 = sadd.s32 %s406, %s404
        %s408 = scalar_lea.vmem %s4, %s407
        %p409 = pneg %p188
        %p410 = pneg %p185
        %s411 = ssub.s32 1, %s23
        %s412 = smul.u32 4, %s411
        %p413 = scmp.lt.s32.totalorder %s412, 7
        %s414 = scalar_select %p413, %s412, 7
        %p415 = scmp.lt.s32.totalorder %s22, 0
        %s416 = scalar_select %p415, %s22, 0
        %s417 = sadd.s32 %s416, %s414
        %s418 = scalar_lea.vmem %s5, %s417
        %s419 = smul.u32 4, %s23
        %s420 = ssub.s32 1, %s23
        %s421 = smul.u32 4, %s420
        %p422 = scmp.lt.s32.totalorder %s22, 0
        %s423 = scalar_select %p422, %s22, 0
        %s424 = smul.addr %s423, 2
        %s425 = scalar_lea.vmem %s3, %s424
        %s426 = smul.u32 4, %s23
        %p427 = scmp.lt.s32.totalorder %s426, 7
        %s428 = scalar_select %p427, %s426, 7
        %p429 = scmp.lt.s32.totalorder %s22, 0
        %s430 = scalar_select %p429, %s22, 0
        %s431 = sadd.s32 %s430, %s428
        %s432 = scalar_lea.vmem %s4, %s431
        %s433 = smul.u32 4, %s23
        %s434 = ssub.s32 1, %s23
        %s435 = smul.u32 4, %s434
        %p436 = scmp.lt.s32.totalorder %s435, 7
        %s437 = scalar_select %p436, %s435, 7
        %p438 = scmp.lt.s32.totalorder %s22, 0
        %s439 = scalar_select %p438, %s22, 0
        %s440 = sadd.s32 %s439, %s437
        %s441 = scalar_lea.vmem %s5, %s440
        %s442 = ssub.s32 1, %s23
        %s443 = smul.u32 4, %s442
        %p445 = scmp.eq.s32.totalorder %s23, 0
        // Predicated region
        $region123: #{rnn_forward.5} parent=109 // pred_check
          %p446 = pneg %p445
        $region124: #{rnn_forward.5} parent=109 // pred_check_branch
          %448 = sbr.rel (%p446) target = $region126
        $region125: #{rnn_forward.5} parent=109 // pred_region
          %449 = vst [vmem:[#allocation2] sm:$0x3] 0
          %450 = vst [vmem:[#allocation3] sm:$0xf] 0.0
        $region126: #{rnn_forward.5} parent=109 // pred_fallthru
          _
        %v451 = vld [vmem:[%s425] sm:$0x3]
        %v452 = vlaneseq
        %v453 = vand.u32 %v452, 127
        %v454 = vadd.s32 %v453, 128
        %vm455 = vcmp.lt.s32.totalorder %v453, 128
        %vm456 = vcmp.lt.s32.totalorder %v454, 128
        %s457 = smul.u32 %s23, 4
        %v458 = vld [vmem:[#allocation2] sm:$0x3]
        %v459 = vld [vmem:[#allocation3] sm:$0xf]
        %v460 = vld [vmem:[%s365] sm:$0xf]
        %v461 = vunpack.c.l.bf16 %v460
        %s462 = scalar_lea.vmem %s372, 12 [#allocation5]
        %v463 = vld [vmem:[%s462] sm:$0xf]
        %v464 = vunpack.c.l.bf16 %v463
        %v465 = vld [vmem:[#allocation6] sm:$0xff]
        %v466 = vld [vmem:[#allocation6 + $0x8] sm:$0xff]
        %v467 = vld [vmem:[#allocation6 + $0x10] sm:$0xff]
        %v468 = vld [vmem:[#allocation6 + $0x18] sm:$0xff]
        %v469 = vld [vmem:[#allocation6 + $0x20] sm:$0xff]
        %v470 = vld [vmem:[#allocation6 + $0x28] sm:$0xff]
        %v471 = vld [vmem:[#allocation6 + $0x30] sm:$0xff]
        %v472 = vld [vmem:[#allocation6 + $0x38] sm:$0xff]
        %v473 = vld [vmem:[#allocation6 + $0x40] sm:$0xff]
        %v474 = vld [vmem:[#allocation6 + $0x48] sm:$0xff]
        %v475 = vld [vmem:[#allocation6 + $0x50] sm:$0xff]
        %v476 = vld [vmem:[#allocation6 + $0x58] sm:$0xff]
        %v477 = vld [vmem:[#allocation6 + $0x60] sm:$0xff]
        %v478 = vld [vmem:[#allocation6 + $0x68] sm:$0xff]
        %v479 = vld [vmem:[#allocation6 + $0x70] sm:$0xff]
        %v480 = vld [vmem:[#allocation6 + $0x78] sm:$0xff]
        %v481 = vld [vmem:[#allocation6 + $0x80] sm:$0xff]
        %v482 = vld [vmem:[#allocation6 + $0x88] sm:$0xff]
        %v483 = vld [vmem:[#allocation6 + $0x90] sm:$0xff]
        %v484 = vld [vmem:[#allocation6 + $0x98] sm:$0xff]
        %v485 = vld [vmem:[#allocation6 + $0xa0] sm:$0xff]
        %v486 = vld [vmem:[#allocation6 + $0xa8] sm:$0xff]
        %v487 = vld [vmem:[#allocation6 + $0xb0] sm:$0xff]
        %v488 = vld [vmem:[#allocation6 + $0xb8] sm:$0xff]
        %v489 = vld [vmem:[#allocation6 + $0xc0] sm:$0xff]
        %v490 = vld [vmem:[#allocation6 + $0xc8] sm:$0xff]
        %v491 = vld [vmem:[#allocation6 + $0xd0] sm:$0xff]
        %v492 = vld [vmem:[#allocation6 + $0xd8] sm:$0xff]
        %v493 = vld [vmem:[#allocation6 + $0xe0] sm:$0xff]
        %v494 = vld [vmem:[#allocation6 + $0xe8] sm:$0xff]
        %v495 = vld [vmem:[#allocation6 + $0xf0] sm:$0xff]
        %v496 = vld [vmem:[#allocation6 + $0xf8] sm:$0xff]
        %v497 = vld [vmem:[#allocation6 + $0x100] sm:$0xff]
        %v498 = vld [vmem:[#allocation6 + $0x108] sm:$0xff]
        %v499 = vld [vmem:[#allocation6 + $0x110] sm:$0xff]
        %v500 = vld [vmem:[#allocation6 + $0x118] sm:$0xff]
        %v501 = vld [vmem:[#allocation6 + $0x120] sm:$0xff]
        %v502 = vld [vmem:[#allocation6 + $0x128] sm:$0xff]
        %v503 = vld [vmem:[#allocation6 + $0x130] sm:$0xff]
        %v504 = vld [vmem:[#allocation6 + $0x138] sm:$0xff]
        %v505 = vld [vmem:[#allocation6 + $0x140] sm:$0xff]
        %v506 = vld [vmem:[#allocation6 + $0x148] sm:$0xff]
        %v507 = vld [vmem:[#allocation6 + $0x150] sm:$0xff]
        %v508 = vld [vmem:[#allocation6 + $0x158] sm:$0xff]
        %v509 = vld [vmem:[#allocation6 + $0x160] sm:$0xff]
        %v510 = vld [vmem:[#allocation6 + $0x168] sm:$0xff]
        %v511 = vld [vmem:[#allocation6 + $0x170] sm:$0xff]
        %v512 = vld [vmem:[#allocation6 + $0x178] sm:$0xff]
        %v513 = vld [vmem:[#allocation6 + $0x180] sm:$0xff]
        %v514 = vld [vmem:[#allocation6 + $0x188] sm:$0xff]
        %v515 = vld [vmem:[#allocation6 + $0x190] sm:$0xff]
        %v516 = vld [vmem:[#allocation6 + $0x198] sm:$0xff]
        %v517 = vld [vmem:[#allocation6 + $0x1a0] sm:$0xff]
        %v518 = vld [vmem:[#allocation6 + $0x1a8] sm:$0xff]
        %v519 = vld [vmem:[#allocation6 + $0x1b0] sm:$0xff]
        %v520 = vld [vmem:[#allocation6 + $0x1b8] sm:$0xff]
        %v521 = vld [vmem:[#allocation6 + $0x1c0] sm:$0xff]
        %v522 = vld [vmem:[#allocation6 + $0x1c8] sm:$0xff]
        %v523 = vld [vmem:[#allocation6 + $0x1d0] sm:$0xff]
        %v524 = vld [vmem:[#allocation6 + $0x1d8] sm:$0xff]
        %v525 = vld [vmem:[#allocation6 + $0x1e0] sm:$0xff]
        %v526 = vld [vmem:[#allocation6 + $0x1e8] sm:$0xff]
        %v527 = vld [vmem:[#allocation6 + $0x1f0] sm:$0xff]
        %v528 = vld [vmem:[#allocation6 + $0x1f8] sm:$0xff]
        %v529 = vld [vmem:[#allocation6 + $0x200] sm:$0xff]
        %v530 = vld [vmem:[#allocation6 + $0x208] sm:$0xff]
        %v531 = vld [vmem:[#allocation6 + $0x210] sm:$0xff]
        %v532 = vld [vmem:[#allocation6 + $0x218] sm:$0xff]
        %v533 = vld [vmem:[#allocation6 + $0x220] sm:$0xff]
        %v534 = vld [vmem:[#allocation6 + $0x228] sm:$0xff]
        %v535 = vld [vmem:[#allocation6 + $0x230] sm:$0xff]
        %v536 = vld [vmem:[#allocation6 + $0x238] sm:$0xff]
        %v537 = vld [vmem:[#allocation6 + $0x240] sm:$0xff]
        %v538 = vld [vmem:[#allocation6 + $0x248] sm:$0xff]
        %v539 = vld [vmem:[#allocation6 + $0x250] sm:$0xff]
        %v540 = vld [vmem:[#allocation6 + $0x258] sm:$0xff]
        %v541 = vld [vmem:[#allocation6 + $0x260] sm:$0xff]
        %v542 = vld [vmem:[#allocation6 + $0x268] sm:$0xff]
        %v543 = vld [vmem:[#allocation6 + $0x270] sm:$0xff]
        %v544 = vld [vmem:[#allocation6 + $0x278] sm:$0xff]
        %v545 = vld [vmem:[#allocation6 + $0x280] sm:$0xff]
        %v546 = vld [vmem:[#allocation6 + $0x288] sm:$0xff]
        %v547 = vld [vmem:[#allocation6 + $0x290] sm:$0xff]
        %v548 = vld [vmem:[#allocation6 + $0x298] sm:$0xff]
        %v549 = vld [vmem:[#allocation6 + $0x2a0] sm:$0xff]
        %v550 = vld [vmem:[#allocation6 + $0x2a8] sm:$0xff]
        %v551 = vld [vmem:[#allocation6 + $0x2b0] sm:$0xff]
        %v552 = vld [vmem:[#allocation6 + $0x2b8] sm:$0xff]
        %v553 = vld [vmem:[#allocation6 + $0x2c0] sm:$0xff]
        %v554 = vld [vmem:[#allocation6 + $0x2c8] sm:$0xff]
        %v555 = vld [vmem:[#allocation6 + $0x2d0] sm:$0xff]
        %v556 = vld [vmem:[#allocation6 + $0x2d8] sm:$0xff]
        %v557 = vld [vmem:[#allocation6 + $0x2e0] sm:$0xff]
        %v558 = vld [vmem:[#allocation6 + $0x2e8] sm:$0xff]
        %v559 = vld [vmem:[#allocation6 + $0x2f0] sm:$0xff]
        %v560 = vld [vmem:[#allocation6 + $0x2f8] sm:$0xff]
        %v561 = vld [vmem:[#allocation6 + $0x300] sm:$0xff]
        %v562 = vld [vmem:[#allocation6 + $0x308] sm:$0xff]
        %v563 = vld [vmem:[#allocation6 + $0x310] sm:$0xff]
        %v564 = vld [vmem:[#allocation6 + $0x318] sm:$0xff]
        %v565 = vld [vmem:[#allocation6 + $0x320] sm:$0xff]
        %v566 = vld [vmem:[#allocation6 + $0x328] sm:$0xff]
        %v567 = vld [vmem:[#allocation6 + $0x330] sm:$0xff]
        %v568 = vld [vmem:[#allocation6 + $0x338] sm:$0xff]
        %v569 = vld [vmem:[#allocation6 + $0x340] sm:$0xff]
        %v570 = vld [vmem:[#allocation6 + $0x348] sm:$0xff]
        %v571 = vld [vmem:[#allocation6 + $0x350] sm:$0xff]
        %v572 = vld [vmem:[#allocation6 + $0x358] sm:$0xff]
        %v573 = vld [vmem:[#allocation6 + $0x360] sm:$0xff]
        %v574 = vld [vmem:[#allocation6 + $0x368] sm:$0xff]
        %v575 = vld [vmem:[#allocation6 + $0x370] sm:$0xff]
        %v576 = vld [vmem:[#allocation6 + $0x378] sm:$0xff]
        %v577 = vld [vmem:[#allocation6 + $0x380] sm:$0xff]
        %v578 = vld [vmem:[#allocation6 + $0x388] sm:$0xff]
        %v579 = vld [vmem:[#allocation6 + $0x390] sm:$0xff]
        %v580 = vld [vmem:[#allocation6 + $0x398] sm:$0xff]
        %v581 = vld [vmem:[#allocation6 + $0x3a0] sm:$0xff]
        %v582 = vld [vmem:[#allocation6 + $0x3a8] sm:$0xff]
        %v583 = vld [vmem:[#allocation6 + $0x3b0] sm:$0xff]
        %v584 = vld [vmem:[#allocation6 + $0x3b8] sm:$0xff]
        %v585 = vld [vmem:[#allocation6 + $0x3c0] sm:$0xff]
        %v586 = vld [vmem:[#allocation6 + $0x3c8] sm:$0xff]
        %v587 = vld [vmem:[#allocation6 + $0x3d0] sm:$0xff]
        %v588 = vld [vmem:[#allocation6 + $0x3d8] sm:$0xff]
        %v589 = vld [vmem:[#allocation6 + $0x3e0] sm:$0xff]
        %v590 = vld [vmem:[#allocation6 + $0x3e8] sm:$0xff]
        %v591 = vld [vmem:[#allocation6 + $0x3f0] sm:$0xff]
        %v592 = vld [vmem:[#allocation6 + $0x3f8] sm:$0xff]
        %v595 = vunpack.c.l.s4 1966171168
        %v596 = vunpack.c.0.s8 %v595
        %v597 = vlaneseq
        %v598 = vshrl.u32 %v597, 7
        %v599 = vsub.s32 %v596, %v598
        %v600 = vrot.slane %v458, %v599
        %v601 = vcombine.high %v600, %v600
        %v603 = vunpack.c.l.s4 1966171168
        %v604 = vunpack.c.0.s8 %v603
        %v605 = vlaneseq
        %v606 = vshrl.u32 %v605, 7
        %v607 = vsub.s32 %v604, %v606
        %v608 = vrot.slane %v600, %v607
        %v610 = vunpack.c.l.s4 1966171168
        %v611 = vunpack.c.0.s8 %v610
        %v612 = vlaneseq
        %v613 = vshrl.u32 %v612, 7
        %v614 = vsub.s32 %v611, %v613
        %v615 = vrot.slane %v601, %v614
        %v746 = vunpack.c.l.b16 %v465
        %v747 = vunpack.c.h.b16 %v465
        %v748 = vunpack.c.l.b16 %v466
        %v749 = vunpack.c.h.b16 %v466
        %v750 = vunpack.c.l.b16 %v467
        %v751 = vunpack.c.h.b16 %v467
        %v752 = vunpack.c.l.b16 %v468
        %v753 = vunpack.c.h.b16 %v468
        %v754 = vunpack.c.l.b16 %v469
        %v755 = vunpack.c.h.b16 %v469
        %v756 = vunpack.c.l.b16 %v470
        %v757 = vunpack.c.h.b16 %v470
        %v758 = vunpack.c.l.b16 %v471
        %v759 = vunpack.c.h.b16 %v471
        %v760 = vunpack.c.l.b16 %v472
        %v761 = vunpack.c.h.b16 %v472
        %v762 = vunpack.c.l.b16 %v473
        %v763 = vunpack.c.h.b16 %v473
        %v764 = vunpack.c.l.b16 %v474
        %v765 = vunpack.c.h.b16 %v474
        %v766 = vunpack.c.l.b16 %v475
        %v767 = vunpack.c.h.b16 %v475
        %v768 = vunpack.c.l.b16 %v476
        %v769 = vunpack.c.h.b16 %v476
        %v770 = vunpack.c.l.b16 %v477
        %v771 = vunpack.c.h.b16 %v477
        %v772 = vunpack.c.l.b16 %v478
        %v773 = vunpack.c.h.b16 %v478
        %v774 = vunpack.c.l.b16 %v479
        %v775 = vunpack.c.h.b16 %v479
        %v776 = vunpack.c.l.b16 %v480
        %v777 = vunpack.c.h.b16 %v480
        %v778 = vunpack.c.l.b16 %v481
        %v779 = vunpack.c.h.b16 %v481
        %v780 = vunpack.c.l.b16 %v482
        %v781 = vunpack.c.h.b16 %v482
        %v782 = vunpack.c.l.b16 %v483
        %v783 = vunpack.c.h.b16 %v483
        %v784 = vunpack.c.l.b16 %v484
        %v785 = vunpack.c.h.b16 %v484
        %v786 = vunpack.c.l.b16 %v485
        %v787 = vunpack.c.h.b16 %v485
        %v788 = vunpack.c.l.b16 %v486
        %v789 = vunpack.c.h.b16 %v486
        %v790 = vunpack.c.l.b16 %v487
        %v791 = vunpack.c.h.b16 %v487
        %v792 = vunpack.c.l.b16 %v488
        %v793 = vunpack.c.h.b16 %v488
        %v794 = vunpack.c.l.b16 %v489
        %v795 = vunpack.c.h.b16 %v489
        %v796 = vunpack.c.l.b16 %v490
        %v797 = vunpack.c.h.b16 %v490
        %v798 = vunpack.c.l.b16 %v491
        %v799 = vunpack.c.h.b16 %v491
        %v800 = vunpack.c.l.b16 %v492
        %v801 = vunpack.c.h.b16 %v492
        %v802 = vunpack.c.l.b16 %v493
        %v803 = vunpack.c.h.b16 %v493
        %v804 = vunpack.c.l.b16 %v494
        %v805 = vunpack.c.h.b16 %v494
        %v806 = vunpack.c.l.b16 %v495
        %v807 = vunpack.c.h.b16 %v495
        %v808 = vunpack.c.l.b16 %v496
        %v809 = vunpack.c.h.b16 %v496
        %v810 = vunpack.c.l.b16 %v497
        %v811 = vunpack.c.h.b16 %v497
        %v812 = vunpack.c.l.b16 %v498
        %v813 = vunpack.c.h.b16 %v498
        %v814 = vunpack.c.l.b16 %v499
        %v815 = vunpack.c.h.b16 %v499
        %v816 = vunpack.c.l.b16 %v500
        %v817 = vunpack.c.h.b16 %v500
        %v818 = vunpack.c.l.b16 %v501
        %v819 = vunpack.c.h.b16 %v501
        %v820 = vunpack.c.l.b16 %v502
        %v821 = vunpack.c.h.b16 %v502
        %v822 = vunpack.c.l.b16 %v503
        %v823 = vunpack.c.h.b16 %v503
        %v824 = vunpack.c.l.b16 %v504
        %v825 = vunpack.c.h.b16 %v504
        %v826 = vunpack.c.l.b16 %v505
        %v827 = vunpack.c.h.b16 %v505
        %v828 = vunpack.c.l.b16 %v506
        %v829 = vunpack.c.h.b16 %v506
        %v830 = vunpack.c.l.b16 %v507
        %v831 = vunpack.c.h.b16 %v507
        %v832 = vunpack.c.l.b16 %v508
        %v833 = vunpack.c.h.b16 %v508
        %v834 = vunpack.c.l.b16 %v509
        %v835 = vunpack.c.h.b16 %v509
        %v836 = vunpack.c.l.b16 %v510
        %v837 = vunpack.c.h.b16 %v510
        %v838 = vunpack.c.l.b16 %v511
        %v839 = vunpack.c.h.b16 %v511
        %v840 = vunpack.c.l.b16 %v512
        %v841 = vunpack.c.h.b16 %v512
        %v842 = vunpack.c.l.b16 %v513
        %v843 = vunpack.c.h.b16 %v513
        %v844 = vunpack.c.l.b16 %v514
        %v845 = vunpack.c.h.b16 %v514
        %v846 = vunpack.c.l.b16 %v515
        %v847 = vunpack.c.h.b16 %v515
        %v848 = vunpack.c.l.b16 %v516
        %v849 = vunpack.c.h.b16 %v516
        %v850 = vunpack.c.l.b16 %v517
        %v851 = vunpack.c.h.b16 %v517
        %v852 = vunpack.c.l.b16 %v518
        %v853 = vunpack.c.h.b16 %v518
        %v854 = vunpack.c.l.b16 %v519
        %v855 = vunpack.c.h.b16 %v519
        %v856 = vunpack.c.l.b16 %v520
        %v857 = vunpack.c.h.b16 %v520
        %v858 = vunpack.c.l.b16 %v521
        %v859 = vunpack.c.h.b16 %v521
        %v860 = vunpack.c.l.b16 %v522
        %v861 = vunpack.c.h.b16 %v522
        %v862 = vunpack.c.l.b16 %v523
        %v863 = vunpack.c.h.b16 %v523
        %v864 = vunpack.c.l.b16 %v524
        %v865 = vunpack.c.h.b16 %v524
        %v866 = vunpack.c.l.b16 %v525
        %v867 = vunpack.c.h.b16 %v525
        %v868 = vunpack.c.l.b16 %v526
        %v869 = vunpack.c.h.b16 %v526
        %v870 = vunpack.c.l.b16 %v527
        %v871 = vunpack.c.h.b16 %v527
        %v872 = vunpack.c.l.b16 %v528
        %v873 = vunpack.c.h.b16 %v528
        %v874 = vunpack.c.l.b16 %v529
        %v875 = vunpack.c.h.b16 %v529
        %v876 = vunpack.c.l.b16 %v530
        %v877 = vunpack.c.h.b16 %v530
        %v878 = vunpack.c.l.b16 %v531
        %v879 = vunpack.c.h.b16 %v531
        %v880 = vunpack.c.l.b16 %v532
        %v881 = vunpack.c.h.b16 %v532
        %v882 = vunpack.c.l.b16 %v533
        %v883 = vunpack.c.h.b16 %v533
        %v884 = vunpack.c.l.b16 %v534
        %v885 = vunpack.c.h.b16 %v534
        %v886 = vunpack.c.l.b16 %v535
        %v887 = vunpack.c.h.b16 %v535
        %v888 = vunpack.c.l.b16 %v536
        %v889 = vunpack.c.h.b16 %v536
        %v890 = vunpack.c.l.b16 %v537
        %v891 = vunpack.c.h.b16 %v537
        %v892 = vunpack.c.l.b16 %v538
        %v893 = vunpack.c.h.b16 %v538
        %v894 = vunpack.c.l.b16 %v539
        %v895 = vunpack.c.h.b16 %v539
        %v896 = vunpack.c.l.b16 %v540
        %v897 = vunpack.c.h.b16 %v540
        %v898 = vunpack.c.l.b16 %v541
        %v899 = vunpack.c.h.b16 %v541
        %v900 = vunpack.c.l.b16 %v542
        %v901 = vunpack.c.h.b16 %v542
        %v902 = vunpack.c.l.b16 %v543
        %v903 = vunpack.c.h.b16 %v543
        %v904 = vunpack.c.l.b16 %v544
        %v905 = vunpack.c.h.b16 %v544
        %v906 = vunpack.c.l.b16 %v545
        %v907 = vunpack.c.h.b16 %v545
        %v908 = vunpack.c.l.b16 %v546
        %v909 = vunpack.c.h.b16 %v546
        %v910 = vunpack.c.l.b16 %v547
        %v911 = vunpack.c.h.b16 %v547
        %v912 = vunpack.c.l.b16 %v548
        %v913 = vunpack.c.h.b16 %v548
        %v914 = vunpack.c.l.b16 %v549
        %v915 = vunpack.c.h.b16 %v549
        %v916 = vunpack.c.l.b16 %v550
        %v917 = vunpack.c.h.b16 %v550
        %v918 = vunpack.c.l.b16 %v551
        %v919 = vunpack.c.h.b16 %v551
        %v920 = vunpack.c.l.b16 %v552
        %v921 = vunpack.c.h.b16 %v552
        %v922 = vunpack.c.l.b16 %v553
        %v923 = vunpack.c.h.b16 %v553
        %v924 = vunpack.c.l.b16 %v554
        %v925 = vunpack.c.h.b16 %v554
        %v926 = vunpack.c.l.b16 %v555
        %v927 = vunpack.c.h.b16 %v555
        %v928 = vunpack.c.l.b16 %v556
        %v929 = vunpack.c.h.b16 %v556
        %v930 = vunpack.c.l.b16 %v557
        %v931 = vunpack.c.h.b16 %v557
        %v932 = vunpack.c.l.b16 %v558
        %v933 = vunpack.c.h.b16 %v558
        %v934 = vunpack.c.l.b16 %v559
        %v935 = vunpack.c.h.b16 %v559
        %v936 = vunpack.c.l.b16 %v560
        %v937 = vunpack.c.h.b16 %v560
        %v938 = vunpack.c.l.b16 %v561
        %v939 = vunpack.c.h.b16 %v561
        %v940 = vunpack.c.l.b16 %v562
        %v941 = vunpack.c.h.b16 %v562
        %v942 = vunpack.c.l.b16 %v563
        %v943 = vunpack.c.h.b16 %v563
        %v944 = vunpack.c.l.b16 %v564
        %v945 = vunpack.c.h.b16 %v564
        %v946 = vunpack.c.l.b16 %v565
        %v947 = vunpack.c.h.b16 %v565
        %v948 = vunpack.c.l.b16 %v566
        %v949 = vunpack.c.h.b16 %v566
        %v950 = vunpack.c.l.b16 %v567
        %v951 = vunpack.c.h.b16 %v567
        %v952 = vunpack.c.l.b16 %v568
        %v953 = vunpack.c.h.b16 %v568
        %v954 = vunpack.c.l.b16 %v569
        %v955 = vunpack.c.h.b16 %v569
        %v956 = vunpack.c.l.b16 %v570
        %v957 = vunpack.c.h.b16 %v570
        %v958 = vunpack.c.l.b16 %v571
        %v959 = vunpack.c.h.b16 %v571
        %v960 = vunpack.c.l.b16 %v572
        %v961 = vunpack.c.h.b16 %v572
        %v962 = vunpack.c.l.b16 %v573
        %v963 = vunpack.c.h.b16 %v573
        %v964 = vunpack.c.l.b16 %v574
        %v965 = vunpack.c.h.b16 %v574
        %v966 = vunpack.c.l.b16 %v575
        %v967 = vunpack.c.h.b16 %v575
        %v968 = vunpack.c.l.b16 %v576
        %v969 = vunpack.c.h.b16 %v576
        %v970 = vunpack.c.l.b16 %v577
        %v971 = vunpack.c.h.b16 %v577
        %v972 = vunpack.c.l.b16 %v578
        %v973 = vunpack.c.h.b16 %v578
        %v974 = vunpack.c.l.b16 %v579
        %v975 = vunpack.c.h.b16 %v579
        %v976 = vunpack.c.l.b16 %v580
        %v977 = vunpack.c.h.b16 %v580
        %v978 = vunpack.c.l.b16 %v581
        %v979 = vunpack.c.h.b16 %v581
        %v980 = vunpack.c.l.b16 %v582
        %v981 = vunpack.c.h.b16 %v582
        %v982 = vunpack.c.l.b16 %v583
        %v983 = vunpack.c.h.b16 %v583
        %v984 = vunpack.c.l.b16 %v584
        %v985 = vunpack.c.h.b16 %v584
        %v986 = vunpack.c.l.b16 %v585
        %v987 = vunpack.c.h.b16 %v585
        %v988 = vunpack.c.l.b16 %v586
        %v989 = vunpack.c.h.b16 %v586
        %v990 = vunpack.c.l.b16 %v587
        %v991 = vunpack.c.h.b16 %v587
        %v992 = vunpack.c.l.b16 %v588
        %v993 = vunpack.c.h.b16 %v588
        %v994 = vunpack.c.l.b16 %v589
        %v995 = vunpack.c.h.b16 %v589
        %v996 = vunpack.c.l.b16 %v590
        %v997 = vunpack.c.h.b16 %v590
        %v998 = vunpack.c.l.b16 %v591
        %v999 = vunpack.c.h.b16 %v591
        %v1000 = vunpack.c.l.b16 %v592
        %v1001 = vunpack.c.h.b16 %v592
        %v1002 = vpack.c.b16 %v754, %v746
        %v1003 = vpack.c.b16 %v755, %v747
        %v1004 = vpack.c.b16 %v756, %v748
        %v1005 = vpack.c.b16 %v757, %v749
        %v1006 = vpack.c.b16 %v758, %v750
        %v1007 = vpack.c.b16 %v759, %v751
        %v1008 = vpack.c.b16 %v760, %v752
        %v1009 = vpack.c.b16 %v761, %v753
        %v1010 = vpack.c.b16 %v770, %v762
        %v1011 = vpack.c.b16 %v771, %v763
        %v1012 = vpack.c.b16 %v772, %v764
        %v1013 = vpack.c.b16 %v773, %v765
        %v1014 = vpack.c.b16 %v774, %v766
        %v1015 = vpack.c.b16 %v775, %v767
        %v1016 = vpack.c.b16 %v776, %v768
        %v1017 = vpack.c.b16 %v777, %v769
        %v1018 = vpack.c.b16 %v786, %v778
        %v1019 = vpack.c.b16 %v787, %v779
        %v1020 = vpack.c.b16 %v788, %v780
        %v1021 = vpack.c.b16 %v789, %v781
        %v1022 = vpack.c.b16 %v790, %v782
        %v1023 = vpack.c.b16 %v791, %v783
        %v1024 = vpack.c.b16 %v792, %v784
        %v1025 = vpack.c.b16 %v793, %v785
        %v1026 = vpack.c.b16 %v802, %v794
        %v1027 = vpack.c.b16 %v803, %v795
        %v1028 = vpack.c.b16 %v804, %v796
        %v1029 = vpack.c.b16 %v805, %v797
        %v1030 = vpack.c.b16 %v806, %v798
        %v1031 = vpack.c.b16 %v807, %v799
        %v1032 = vpack.c.b16 %v808, %v800
        %v1033 = vpack.c.b16 %v809, %v801
        %v1034 = vpack.c.b16 %v818, %v810
        %v1035 = vpack.c.b16 %v819, %v811
        %v1036 = vpack.c.b16 %v820, %v812
        %v1037 = vpack.c.b16 %v821, %v813
        %v1038 = vpack.c.b16 %v822, %v814
        %v1039 = vpack.c.b16 %v823, %v815
        %v1040 = vpack.c.b16 %v824, %v816
        %v1041 = vpack.c.b16 %v825, %v817
        %v1042 = vpack.c.b16 %v834, %v826
        %v1043 = vpack.c.b16 %v835, %v827
        %v1044 = vpack.c.b16 %v836, %v828
        %v1045 = vpack.c.b16 %v837, %v829
        %v1046 = vpack.c.b16 %v838, %v830
        %v1047 = vpack.c.b16 %v839, %v831
        %v1048 = vpack.c.b16 %v840, %v832
        %v1049 = vpack.c.b16 %v841, %v833
        %v1050 = vpack.c.b16 %v850, %v842
        %v1051 = vpack.c.b16 %v851, %v843
        %v1052 = vpack.c.b16 %v852, %v844
        %v1053 = vpack.c.b16 %v853, %v845
        %v1054 = vpack.c.b16 %v854, %v846
        %v1055 = vpack.c.b16 %v855, %v847
        %v1056 = vpack.c.b16 %v856, %v848
        %v1057 = vpack.c.b16 %v857, %v849
        %v1058 = vpack.c.b16 %v866, %v858
        %v1059 = vpack.c.b16 %v867, %v859
        %v1060 = vpack.c.b16 %v868, %v860
        %v1061 = vpack.c.b16 %v869, %v861
        %v1062 = vpack.c.b16 %v870, %v862
        %v1063 = vpack.c.b16 %v871, %v863
        %v1064 = vpack.c.b16 %v872, %v864
        %v1065 = vpack.c.b16 %v873, %v865
        %v1066 = vpack.c.b16 %v882, %v874
        %v1067 = vpack.c.b16 %v883, %v875
        %v1068 = vpack.c.b16 %v884, %v876
        %v1069 = vpack.c.b16 %v885, %v877
        %v1070 = vpack.c.b16 %v886, %v878
        %v1071 = vpack.c.b16 %v887, %v879
        %v1072 = vpack.c.b16 %v888, %v880
        %v1073 = vpack.c.b16 %v889, %v881
        %v1074 = vpack.c.b16 %v898, %v890
        %v1075 = vpack.c.b16 %v899, %v891
        %v1076 = vpack.c.b16 %v900, %v892
        %v1077 = vpack.c.b16 %v901, %v893
        %v1078 = vpack.c.b16 %v902, %v894
        %v1079 = vpack.c.b16 %v903, %v895
        %v1080 = vpack.c.b16 %v904, %v896
        %v1081 = vpack.c.b16 %v905, %v897
        %v1082 = vpack.c.b16 %v914, %v906
        %v1083 = vpack.c.b16 %v915, %v907
        %v1084 = vpack.c.b16 %v916, %v908
        %v1085 = vpack.c.b16 %v917, %v909
        %v1086 = vpack.c.b16 %v918, %v910
        %v1087 = vpack.c.b16 %v919, %v911
        %v1088 = vpack.c.b16 %v920, %v912
        %v1089 = vpack.c.b16 %v921, %v913
        %v1090 = vpack.c.b16 %v930, %v922
        %v1091 = vpack.c.b16 %v931, %v923
        %v1092 = vpack.c.b16 %v932, %v924
        %v1093 = vpack.c.b16 %v933, %v925
        %v1094 = vpack.c.b16 %v934, %v926
        %v1095 = vpack.c.b16 %v935, %v927
        %v1096 = vpack.c.b16 %v936, %v928
        %v1097 = vpack.c.b16 %v937, %v929
        %v1098 = vpack.c.b16 %v946, %v938
        %v1099 = vpack.c.b16 %v947, %v939
        %v1100 = vpack.c.b16 %v948, %v940
        %v1101 = vpack.c.b16 %v949, %v941
        %v1102 = vpack.c.b16 %v950, %v942
        %v1103 = vpack.c.b16 %v951, %v943
        %v1104 = vpack.c.b16 %v952, %v944
        %v1105 = vpack.c.b16 %v953, %v945
        %v1106 = vpack.c.b16 %v962, %v954
        %v1107 = vpack.c.b16 %v963, %v955
        %v1108 = vpack.c.b16 %v964, %v956
        %v1109 = vpack.c.b16 %v965, %v957
        %v1110 = vpack.c.b16 %v966, %v958
        %v1111 = vpack.c.b16 %v967, %v959
        %v1112 = vpack.c.b16 %v968, %v960
        %v1113 = vpack.c.b16 %v969, %v961
        %v1114 = vpack.c.b16 %v978, %v970
        %v1115 = vpack.c.b16 %v979, %v971
        %v1116 = vpack.c.b16 %v980, %v972
        %v1117 = vpack.c.b16 %v981, %v973
        %v1118 = vpack.c.b16 %v982, %v974
        %v1119 = vpack.c.b16 %v983, %v975
        %v1120 = vpack.c.b16 %v984, %v976
        %v1121 = vpack.c.b16 %v985, %v977
        %v1122 = vpack.c.b16 %v994, %v986
        %v1123 = vpack.c.b16 %v995, %v987
        %v1124 = vpack.c.b16 %v996, %v988
        %v1125 = vpack.c.b16 %v997, %v989
        %v1126 = vpack.c.b16 %v998, %v990
        %v1127 = vpack.c.b16 %v999, %v991
        %v1128 = vpack.c.b16 %v1000, %v992
        %v1129 = vpack.c.b16 %v1001, %v993
        %1258 = vmatprep.subr.bf16.mxu0 %v1003
        %1259 = vmatpush1.bf16.msra.mxu0 %v1002
        %1260 = vmatprep.subr.bf16.mxu0 %v1011
        %1261 = vmatpush1.bf16.msra.mxu0 %v1010
        %1262 = vmatprep.subr.bf16.mxu0 %v1019
        %1263 = vmatpush1.bf16.msra.mxu0 %v1018
        %1264 = vmatprep.subr.bf16.mxu0 %v1027
        %1265 = vmatpush1.bf16.msra.mxu0 %v1026
        %1266 = vmatprep.subr.bf16.mxu0 %v1035
        %1267 = vmatpush1.bf16.msra.mxu0 %v1034
        %1268 = vmatprep.subr.bf16.mxu0 %v1043
        %1269 = vmatpush1.bf16.msra.mxu0 %v1042
        %1270 = vmatprep.subr.bf16.mxu0 %v1051
        %1271 = vmatpush1.bf16.msra.mxu0 %v1050
        %1272 = vmatprep.subr.bf16.mxu0 %v1059
        %1273 = vmatpush1.bf16.msra.mxu0 %v1058
        %1274 = vmatprep.subr.bf16.mxu0 %v1067
        %1275 = vmatpush1.bf16.msra.mxu0 %v1066
        %1276 = vmatprep.subr.bf16.mxu0 %v1075
        %1277 = vmatpush1.bf16.msra.mxu0 %v1074
        %1278 = vmatprep.subr.bf16.mxu0 %v1083
        %1279 = vmatpush1.bf16.msra.mxu0 %v1082
        %1280 = vmatprep.subr.bf16.mxu0 %v1091
        %1281 = vmatpush1.bf16.msra.mxu0 %v1090
        %1282 = vmatprep.subr.bf16.mxu0 %v1099
        %1283 = vmatpush1.bf16.msra.mxu0 %v1098
        %1284 = vmatprep.subr.bf16.mxu0 %v1107
        %1285 = vmatpush1.bf16.msra.mxu0 %v1106
        %1286 = vmatprep.subr.bf16.mxu0 %v1115
        %1287 = vmatpush1.bf16.msra.mxu0 %v1114
        %1288 = vmatprep.subr.bf16.mxu0 %v1123
        %1289 = vmatpush1.bf16.msra.mxu0 %v1122
        %1290 = vmatprep.mubr.bf16.mxu0 %v615
        %1291 = vmatmul.mubr.bf16.gmra.mrb[0].mxu0 %v608
        %v1292 = vpop.f32.mrb[0].mxu0
        %v1293 = vadd.f32 0.0, %v1292
        %v1294 = vpop.f32.mrb[0].mxu0
        %v1295 = vadd.f32 0.0, %v1294
        %v1296 = vpop.f32.mrb[0].mxu0
        %v1297 = vpop.f32.mrb[0].mxu0
        %1298 = vdwg.mxu0
        %1299 = vmatprep.subr.bf16.mxu0 %v1005
        %1300 = vmatpush1.bf16.msra.mxu0 %v1004
        %1301 = vmatprep.subr.bf16.mxu0 %v1013
        %1302 = vmatpush1.bf16.msra.mxu0 %v1012
        %1303 = vmatprep.subr.bf16.mxu0 %v1021
        %1304 = vmatpush1.bf16.msra.mxu0 %v1020
        %1305 = vmatprep.subr.bf16.mxu0 %v1029
        %1306 = vmatpush1.bf16.msra.mxu0 %v1028
        %1307 = vmatprep.subr.bf16.mxu0 %v1037
        %1308 = vmatpush1.bf16.msra.mxu0 %v1036
        %1309 = vmatprep.subr.bf16.mxu0 %v1045
        %1310 = vmatpush1.bf16.msra.mxu0 %v1044
        %1311 = vmatprep.subr.bf16.mxu0 %v1053
        %1312 = vmatpush1.bf16.msra.mxu0 %v1052
        %1313 = vmatprep.subr.bf16.mxu0 %v1061
        %1314 = vmatpush1.bf16.msra.mxu0 %v1060
        %1315 = vmatprep.subr.bf16.mxu0 %v1069
        %1316 = vmatpush1.bf16.msra.mxu0 %v1068
        %1317 = vmatprep.subr.bf16.mxu0 %v1077
        %1318 = vmatpush1.bf16.msra.mxu0 %v1076
        %1319 = vmatprep.subr.bf16.mxu0 %v1085
        %1320 = vmatpush1.bf16.msra.mxu0 %v1084
        %1321 = vmatprep.subr.bf16.mxu0 %v1093
        %1322 = vmatpush1.bf16.msra.mxu0 %v1092
        %1323 = vmatprep.subr.bf16.mxu0 %v1101
        %1324 = vmatpush1.bf16.msra.mxu0 %v1100
        %1325 = vmatprep.subr.bf16.mxu0 %v1109
        %1326 = vmatpush1.bf16.msra.mxu0 %v1108
        %1327 = vmatprep.subr.bf16.mxu0 %v1117
        %1328 = vmatpush1.bf16.msra.mxu0 %v1116
        %1329 = vmatprep.subr.bf16.mxu0 %v1125
        %1330 = vmatpush1.bf16.msra.mxu0 %v1124
        %1331 = vmatprep.mubr.bf16.mxu0 %v615
        %1332 = vmatmul.mubr.bf16.gmra.mrb[0].mxu0 %v608
        %v1333 = vpop.f32.mrb[0].mxu0
        %v1334 = vadd.f32 0.0, %v1333
        %v1335 = vpop.f32.mrb[0].mxu0
        %v1336 = vadd.f32 0.0, %v1335
        %v1337 = vpop.f32.mrb[0].mxu0
        %v1338 = vpop.f32.mrb[0].mxu0
        %1339 = vdwg.mxu0
        %1340 = vmatprep.subr.bf16.mxu0 %v1007
        %1341 = vmatpush1.bf16.msra.mxu0 %v1006
        %1342 = vmatprep.subr.bf16.mxu0 %v1015
        %1343 = vmatpush1.bf16.msra.mxu0 %v1014
        %1344 = vmatprep.subr.bf16.mxu0 %v1023
        %1345 = vmatpush1.bf16.msra.mxu0 %v1022
        %1346 = vmatprep.subr.bf16.mxu0 %v1031
        %1347 = vmatpush1.bf16.msra.mxu0 %v1030
        %1348 = vmatprep.subr.bf16.mxu0 %v1039
        %1349 = vmatpush1.bf16.msra.mxu0 %v1038
        %1350 = vmatprep.subr.bf16.mxu0 %v1047
        %1351 = vmatpush1.bf16.msra.mxu0 %v1046
        %1352 = vmatprep.subr.bf16.mxu0 %v1055
        %1353 = vmatpush1.bf16.msra.mxu0 %v1054
        %1354 = vmatprep.subr.bf16.mxu0 %v1063
        %1355 = vmatpush1.bf16.msra.mxu0 %v1062
        %1356 = vmatprep.subr.bf16.mxu0 %v1071
        %1357 = vmatpush1.bf16.msra.mxu0 %v1070
        %1358 = vmatprep.subr.bf16.mxu0 %v1079
        %1359 = vmatpush1.bf16.msra.mxu0 %v1078
        %1360 = vmatprep.subr.bf16.mxu0 %v1087
        %1361 = vmatpush1.bf16.msra.mxu0 %v1086
        %1362 = vmatprep.subr.bf16.mxu0 %v1095
        %1363 = vmatpush1.bf16.msra.mxu0 %v1094
        %1364 = vmatprep.subr.bf16.mxu0 %v1103
        %1365 = vmatpush1.bf16.msra.mxu0 %v1102
        %1366 = vmatprep.subr.bf16.mxu0 %v1111
        %1367 = vmatpush1.bf16.msra.mxu0 %v1110
        %1368 = vmatprep.subr.bf16.mxu0 %v1119
        %1369 = vmatpush1.bf16.msra.mxu0 %v1118
        %1370 = vmatprep.subr.bf16.mxu0 %v1127
        %1371 = vmatpush1.bf16.msra.mxu0 %v1126
        %1372 = vmatprep.mubr.bf16.mxu0 %v615
        %1373 = vmatmul.mubr.bf16.gmra.mrb[0].mxu0 %v608
        %v1374 = vpop.f32.mrb[0].mxu0
        %v1375 = vadd.f32 0.0, %v1374
        %v1376 = vpop.f32.mrb[0].mxu0
        %v1377 = vadd.f32 0.0, %v1376
        %v1378 = vpop.f32.mrb[0].mxu0
        %v1379 = vpop.f32.mrb[0].mxu0
        %1380 = vdwg.mxu0
        %1381 = vmatprep.subr.bf16.mxu0 %v1009
        %1382 = vmatpush1.bf16.msra.mxu0 %v1008
        %1383 = vmatprep.subr.bf16.mxu0 %v1017
        %1384 = vmatpush1.bf16.msra.mxu0 %v1016
        %1385 = vmatprep.subr.bf16.mxu0 %v1025
        %1386 = vmatpush1.bf16.msra.mxu0 %v1024
        %1387 = vmatprep.subr.bf16.mxu0 %v1033
        %1388 = vmatpush1.bf16.msra.mxu0 %v1032
        %1389 = vmatprep.subr.bf16.mxu0 %v1041
        %1390 = vmatpush1.bf16.msra.mxu0 %v1040
        %1391 = vmatprep.subr.bf16.mxu0 %v1049
        %1392 = vmatpush1.bf16.msra.mxu0 %v1048
        %1393 = vmatprep.subr.bf16.mxu0 %v1057
        %1394 = vmatpush1.bf16.msra.mxu0 %v1056
        %1395 = vmatprep.subr.bf16.mxu0 %v1065
        %1396 = vmatpush1.bf16.msra.mxu0 %v1064
        %1397 = vmatprep.subr.bf16.mxu0 %v1073
        %1398 = vmatpush1.bf16.msra.mxu0 %v1072
        %1399 = vmatprep.subr.bf16.mxu0 %v1081
        %1400 = vmatpush1.bf16.msra.mxu0 %v1080
        %1401 = vmatprep.subr.bf16.mxu0 %v1089
        %1402 = vmatpush1.bf16.msra.mxu0 %v1088
        %1403 = vmatprep.subr.bf16.mxu0 %v1097
        %1404 = vmatpush1.bf16.msra.mxu0 %v1096
        %1405 = vmatprep.subr.bf16.mxu0 %v1105
        %1406 = vmatpush1.bf16.msra.mxu0 %v1104
        %1407 = vmatprep.subr.bf16.mxu0 %v1113
        %1408 = vmatpush1.bf16.msra.mxu0 %v1112
        %1409 = vmatprep.subr.bf16.mxu0 %v1121
        %1410 = vmatpush1.bf16.msra.mxu0 %v1120
        %1411 = vmatprep.subr.bf16.mxu0 %v1129
        %1412 = vmatpush1.bf16.msra.mxu0 %v1128
        %1413 = vmatprep.mubr.bf16.mxu0 %v615
        %1414 = vmatmul.mubr.bf16.gmra.mrb[0].mxu0 %v608
        %v1415 = vpop.f32.mrb[0].mxu0
        %v1416 = vadd.f32 0.0, %v1415
        %v1417 = vpop.f32.mrb[0].mxu0
        %v1418 = vadd.f32 0.0, %v1417
        %v1419 = vpop.f32.mrb[0].mxu0
        %v1420 = vpop.f32.mrb[0].mxu0
        %1421 = vdwg.mxu0
        %v1426 = vcombine.low %v1293, %v1295
        %v1427 = vcombine.low %v1334, %v1336
        %v1429 = vunpack.c.l.s4 1983009808
        %v1430 = vunpack.c.0.s8 %v1429
        %v1431 = vlaneseq
        %v1432 = vshrl.u32 %v1431, 7
        %v1433 = vsub.s32 %v1430, %v1432
        %v1434 = vrot.slane %v1426, %v1433
        %v1436 = vunpack.c.l.s4 1983009808
        %v1437 = vunpack.c.0.s8 %v1436
        %v1438 = vlaneseq
        %v1439 = vshrl.u32 %v1438, 7
        %v1440 = vsub.s32 %v1437, %v1439
        %v1441 = vrot.slane %v1427, %v1440
        %v1442 = vcombine.low %v1434, %v1441
        %v1444 = vadd.f32 %v461, %v1442
        %v1449 = vcombine.low %v1375, %v1377
        %v1450 = vcombine.low %v1416, %v1418
        %v1452 = vunpack.c.l.s4 1983009808
        %v1453 = vunpack.c.0.s8 %v1452
        %v1454 = vlaneseq
        %v1455 = vshrl.u32 %v1454, 7
        %v1456 = vsub.s32 %v1453, %v1455
        %v1457 = vrot.slane %v1449, %v1456
        %v1459 = vunpack.c.l.s4 1983009808
        %v1460 = vunpack.c.0.s8 %v1459
        %v1461 = vlaneseq
        %v1462 = vshrl.u32 %v1461, 7
        %v1463 = vsub.s32 %v1460, %v1462
        %v1464 = vrot.slane %v1450, %v1463
        %v1465 = vcombine.low %v1457, %v1464
        %v1467 = vadd.f32 %v464, %v1465
        %v1468 = vxor.u32 %v1444, 2147483648
        %v1469 = vmul.f32 %v1468, 1.442695
        %v1470 = vpow.pop %v1469
        %v1471 = vadd.f32 %v1470, 1.0
        %v1472 = vrcp.pop %v1471
        %v1473 = vmul.f32 1.0, %v1472
        %v1475 = vrot.slane %v1444, 2
        %v1477 = vxor.u32 %v1475, 2147483648
        %v1478 = vmul.f32 %v1477, 1.442695
        %v1479 = vpow.pop %v1478
        %v1480 = vadd.f32 %v1479, 1.0
        %v1481 = vrcp.pop %v1480
        %v1482 = vmul.f32 1.0, %v1481
        %v1483 = vrot.slane %v1444, 4
        %v1485 = vtanh.pop %v1483
        %v1486 = vrot.slane %v1444, 6
        %v1488 = vxor.u32 %v1486, 2147483648
        %v1489 = vmul.f32 %v1488, 1.442695
        %v1490 = vpow.pop %v1489
        %v1491 = vadd.f32 %v1490, 1.0
        %v1492 = vrcp.pop %v1491
        %v1493 = vmul.f32 1.0, %v1492
        %v1494 = vmul.f32 %v1482, %v459
        %v1495 = vmul.f32 %v1473, %v1485
        %v1496 = vadd.f32 %v1494, %v1495
        %v1497 = vtanh.pop %v1496
        %v1498 = vmul.f32 %v1493, %v1497
        %v1499 = vxor.u32 %v1467, 2147483648
        %v1500 = vmul.f32 %v1499, 1.442695
        %v1501 = vpow.pop %v1500
        %v1502 = vadd.f32 %v1501, 1.0
        %v1503 = vrcp.pop %v1502
        %v1504 = vmul.f32 1.0, %v1503
        %v1506 = vrot.slane %v1467, 2
        %v1508 = vxor.u32 %v1506, 2147483648
        %v1509 = vmul.f32 %v1508, 1.442695
        %v1510 = vpow.pop %v1509
        %v1511 = vadd.f32 %v1510, 1.0
        %v1512 = vrcp.pop %v1511
        %v1513 = vmul.f32 1.0, %v1512
        %v1514 = vrot.slane %v1467, 4
        %v1516 = vtanh.pop %v1514
        %v1517 = vrot.slane %v1467, 6
        %v1519 = vxor.u32 %v1517, 2147483648
        %v1520 = vmul.f32 %v1519, 1.442695
        %v1521 = vpow.pop %v1520
        %v1522 = vadd.f32 %v1521, 1.0
        %v1523 = vrcp.pop %v1522
        %v1524 = vmul.f32 1.0, %v1523
        %v1526 = vrot.slane %v459, 2
        %v1528 = vmul.f32 %v1513, %v1526
        %v1529 = vmul.f32 %v1504, %v1516
        %v1530 = vadd.f32 %v1528, %v1529
        %v1531 = vtanh.pop %v1530
        %v1532 = vmul.f32 %v1524, %v1531
        %s1533 = ssub.s32 7, %s457
        %v1534 = vstv %s457
        %v1535 = vstv %s1533
        %v1536 = vsel %vm455, %v1534, %v1535
        %v1537 = vsel %vm456, %v1534, %v1535
        %1538 = vset.pattern.permute.xlu0 0
        %1539 = vperm.xlu0 %1538, %v451
        %v1540 = vpop.permute.xlu0 %1539
        %vm1541 = vcmp.lt.s32.totalorder %v1536, %v1540
        %vm1542 = vcmp.lt.s32.totalorder %v1537, %v1540
        %v1543 = vsel %vm1541, %v1498, 0.0
        %v1544 = vsel %vm1542, %v1532, 0.0
        %v1545 = vpack.c.bf16 %v1498, %v1498
        %v1546 = vpack.c.bf16 %v1532, %v1532
        %vm1547 = vmpackc.low %vm1541, %vm1541
        %vm1548 = vmpackc.low %vm1542, %vm1542
        %v1549 = vsel %vm1547, %v1545, %v608
        %v1550 = vsel %vm1548, %v1546, %v615
        %v1552 = vunpack.c.l.s4 1983009808
        %v1553 = vunpack.c.0.s8 %v1552
        %v1554 = vlaneseq
        %v1555 = vshrl.u32 %v1554, 7
        %v1556 = vsub.s32 %v1553, %v1555
        %v1557 = vrot.slane %v459, %v1556
        %v1558 = vcombine.high %v1557, %v1557
        %v1561 = vsel %vm1541, %v1496, %v1557
        %v1562 = vsel %vm1542, %v1530, %v1558
        %v1563 = vpack.c.bf16 %v1543, %v1543
        %1564 = vst [vmem:[%s432] sm:$0x1] %v1563
        %v1565 = vpack.c.bf16 %v1544, %v1544
        %s1566 = scalar_lea.vmem %s441, 3
        %1567 = vst [vmem:[%s1566] sm:$0x1] %v1565
        %s1568 = sadd.s32 %s457, 1
        %s1569 = scalar_lea.vmem %s365, 4 [#allocation4]
        %v1570 = vld [vmem:[%s1569] sm:$0xf]
        %v1571 = vunpack.c.l.bf16 %v1570
        %s1572 = scalar_lea.vmem %s372, 8 [#allocation5]
        %v1573 = vld [vmem:[%s1572] sm:$0xf]
        %v1574 = vunpack.c.l.bf16 %v1573
        %v1575 = vld [vmem:[#allocation6] sm:$0xff]
        %v1576 = vld [vmem:[#allocation6 + $0x8] sm:$0xff]
        %v1577 = vld [vmem:[#allocation6 + $0x10] sm:$0xff]
        %v1578 = vld [vmem:[#allocation6 + $0x18] sm:$0xff]
        %v1579 = vld [vmem:[#allocation6 + $0x20] sm:$0xff]
        %v1580 = vld [vmem:[#allocation6 + $0x28] sm:$0xff]
        %v1581 = vld [vmem:[#allocation6 + $0x30] sm:$0xff]
        %v1582 = vld [vmem:[#allocation6 + $0x38] sm:$0xff]
        %v1583 = vld [vmem:[#allocation6 + $0x40] sm:$0xff]
        %v1584 = vld [vmem:[#allocation6 + $0x48] sm:$0xff]
        %v1585 = vld [vmem:[#allocation6 + $0x50] sm:$0xff]
        %v1586 = vld [vmem:[#allocation6 + $0x58] sm:$0xff]
        %v1587 = vld [vmem:[#allocation6 + $0x60] sm:$0xff]
        %v1588 = vld [vmem:[#allocation6 + $0x68] sm:$0xff]
        %v1589 = vld [vmem:[#allocation6 + $0x70] sm:$0xff]
        %v1590 = vld [vmem:[#allocation6 + $0x78] sm:$0xff]
        %v1591 = vld [vmem:[#allocation6 + $0x80] sm:$0xff]
        %v1592 = vld [vmem:[#allocation6 + $0x88] sm:$0xff]
        %v1593 = vld [vmem:[#allocation6 + $0x90] sm:$0xff]
        %v1594 = vld [vmem:[#allocation6 + $0x98] sm:$0xff]
        %v1595 = vld [vmem:[#allocation6 + $0xa0] sm:$0xff]
        %v1596 = vld [vmem:[#allocation6 + $0xa8] sm:$0xff]
        %v1597 = vld [vmem:[#allocation6 + $0xb0] sm:$0xff]
        %v1598 = vld [vmem:[#allocation6 + $0xb8] sm:$0xff]
        %v1599 = vld [vmem:[#allocation6 + $0xc0] sm:$0xff]
        %v1600 = vld [vmem:[#allocation6 + $0xc8] sm:$0xff]
        %v1601 = vld [vmem:[#allocation6 + $0xd0] sm:$0xff]
        %v1602 = vld [vmem:[#allocation6 + $0xd8] sm:$0xff]
        %v1603 = vld [vmem:[#allocation6 + $0xe0] sm:$0xff]
        %v1604 = vld [vmem:[#allocation6 + $0xe8] sm:$0xff]
        %v1605 = vld [vmem:[#allocation6 + $0xf0] sm:$0xff]
        %v1606 = vld [vmem:[#allocation6 + $0xf8] sm:$0xff]
        %v1607 = vld [vmem:[#allocation6 + $0x100] sm:$0xff]
        %v1608 = vld [vmem:[#allocation6 + $0x108] sm:$0xff]
        %v1609 = vld [vmem:[#allocation6 + $0x110] sm:$0xff]
        %v1610 = vld [vmem:[#allocation6 + $0x118] sm:$0xff]
        %v1611 = vld [vmem:[#allocation6 + $0x120] sm:$0xff]
        %v1612 = vld [vmem:[#allocation6 + $0x128] sm:$0xff]
        %v1613 = vld [vmem:[#allocation6 + $0x130] sm:$0xff]
        %v1614 = vld [vmem:[#allocation6 + $0x138] sm:$0xff]
        %v1615 = vld [vmem:[#allocation6 + $0x140] sm:$0xff]
        %v1616 = vld [vmem:[#allocation6 + $0x148] sm:$0xff]
        %v1617 = vld [vmem:[#allocation6 + $0x150] sm:$0xff]
        %v1618 = vld [vmem:[#allocation6 + $0x158] sm:$0xff]
        %v1619 = vld [vmem:[#allocation6 + $0x160] sm:$0xff]
        %v1620 = vld [vmem:[#allocation6 + $0x168] sm:$0xff]
        %v1621 = vld [vmem:[#allocation6 + $0x170] sm:$0xff]
        %v1622 = vld [vmem:[#allocation6 + $0x178] sm:$0xff]
        %v1623 = vld [vmem:[#allocation6 + $0x180] sm:$0xff]
        %v1624 = vld [vmem:[#allocation6 + $0x188] sm:$0xff]
        %v1625 = vld [vmem:[#allocation6 + $0x190] sm:$0xff]
        %v1626 = vld [vmem:[#allocation6 + $0x198] sm:$0xff]
        %v1627 = vld [vmem:[#allocation6 + $0x1a0] sm:$0xff]
        %v1628 = vld [vmem:[#allocation6 + $0x1a8] sm:$0xff]
        %v1629 = vld [vmem:[#allocation6 + $0x1b0] sm:$0xff]
        %v1630 = vld [vmem:[#allocation6 + $0x1b8] sm:$0xff]
        %v1631 = vld [vmem:[#allocation6 + $0x1c0] sm:$0xff]
        %v1632 = vld [vmem:[#allocation6 + $0x1c8] sm:$0xff]
        %v1633 = vld [vmem:[#allocation6 + $0x1d0] sm:$0xff]
        %v1634 = vld [vmem:[#allocation6 + $0x1d8] sm:$0xff]
        %v1635 = vld [vmem:[#allocation6 + $0x1e0] sm:$0xff]
        %v1636 = vld [vmem:[#allocation6 + $0x1e8] sm:$0xff]
        %v1637 = vld [vmem:[#allocation6 + $0x1f0] sm:$0xff]
        %v1638 = vld [vmem:[#allocation6 + $0x1f8] sm:$0xff]
        %v1639 = vld [vmem:[#allocation6 + $0x200] sm:$0xff]
        %v1640 = vld [vmem:[#allocation6 + $0x208] sm:$0xff]
        %v1641 = vld [vmem:[#allocation6 + $0x210] sm:$0xff]
        %v1642 = vld [vmem:[#allocation6 + $0x218] sm:$0xff]
        %v1643 = vld [vmem:[#allocation6 + $0x220] sm:$0xff]
        %v1644 = vld [vmem:[#allocation6 + $0x228] sm:$0xff]
        %v1645 = vld [vmem:[#allocation6 + $0x230] sm:$0xff]
        %v1646 = vld [vmem:[#allocation6 + $0x238] sm:$0xff]
        %v1647 = vld [vmem:[#allocation6 + $0x240] sm:$0xff]
        %v1648 = vld [vmem:[#allocation6 + $0x248] sm:$0xff]
        %v1649 = vld [vmem:[#allocation6 + $0x250] sm:$0xff]
        %v1650 = vld [vmem:[#allocation6 + $0x258] sm:$0xff]
        %v1651 = vld [vmem:[#allocation6 + $0x260] sm:$0xff]
        %v1652 = vld [vmem:[#allocation6 + $0x268] sm:$0xff]
        %v1653 = vld [vmem:[#allocation6 + $0x270] sm:$0xff]
        %v1654 = vld [vmem:[#allocation6 + $0x278] sm:$0xff]
        %v1655 = vld [vmem:[#allocation6 + $0x280] sm:$0xff]
        %v1656 = vld [vmem:[#allocation6 + $0x288] sm:$0xff]
        %v1657 = vld [vmem:[#allocation6 + $0x290] sm:$0xff]
        %v1658 = vld [vmem:[#allocation6 + $0x298] sm:$0xff]
        %v1659 = vld [vmem:[#allocation6 + $0x2a0] sm:$0xff]
        %v1660 = vld [vmem:[#allocation6 + $0x2a8] sm:$0xff]
        %v1661 = vld [vmem:[#allocation6 + $0x2b0] sm:$0xff]
        %v1662 = vld [vmem:[#allocation6 + $0x2b8] sm:$0xff]
        %v1663 = vld [vmem:[#allocation6 + $0x2c0] sm:$0xff]
        %v1664 = vld [vmem:[#allocation6 + $0x2c8] sm:$0xff]
        %v1665 = vld [vmem:[#allocation6 + $0x2d0] sm:$0xff]
        %v1666 = vld [vmem:[#allocation6 + $0x2d8] sm:$0xff]
        %v1667 = vld [vmem:[#allocation6 + $0x2e0] sm:$0xff]
        %v1668 = vld [vmem:[#allocation6 + $0x2e8] sm:$0xff]
        %v1669 = vld [vmem:[#allocation6 + $0x2f0] sm:$0xff]
        %v1670 = vld [vmem:[#allocation6 + $0x2f8] sm:$0xff]
        %v1671 = vld [vmem:[#allocation6 + $0x300] sm:$0xff]
        %v1672 = vld [vmem:[#allocation6 + $0x308] sm:$0xff]
        %v1673 = vld [vmem:[#allocation6 + $0x310] sm:$0xff]
        %v1674 = vld [vmem:[#allocation6 + $0x318] sm:$0xff]
        %v1675 = vld [vmem:[#allocation6 + $0x320] sm:$0xff]
        %v1676 = vld [vmem:[#allocation6 + $0x328] sm:$0xff]
        %v1677 = vld [vmem:[#allocation6 + $0x330] sm:$0xff]
        %v1678 = vld [vmem:[#allocation6 + $0x338] sm:$0xff]
        %v1679 = vld [vmem:[#allocation6 + $0x340] sm:$0xff]
        %v1680 = vld [vmem:[#allocation6 + $0x348] sm:$0xff]
        %v1681 = vld [vmem:[#allocation6 + $0x350] sm:$0xff]
        %v1682 = vld [vmem:[#allocation6 + $0x358] sm:$0xff]
        %v1683 = vld [vmem:[#allocation6 + $0x360] sm:$0xff]
        %v1684 = vld [vmem:[#allocation6 + $0x368] sm:$0xff]
        %v1685 = vld [vmem:[#allocation6 + $0x370] sm:$0xff]
        %v1686 = vld [vmem:[#allocation6 + $0x378] sm:$0xff]
        %v1687 = vld [vmem:[#allocation6 + $0x380] sm:$0xff]
        %v1688 = vld [vmem:[#allocation6 + $0x388] sm:$0xff]
        %v1689 = vld [vmem:[#allocation6 + $0x390] sm:$0xff]
        %v1690 = vld [vmem:[#allocation6 + $0x398] sm:$0xff]
        %v1691 = vld [vmem:[#allocation6 + $0x3a0] sm:$0xff]
        %v1692 = vld [vmem:[#allocation6 + $0x3a8] sm:$0xff]
        %v1693 = vld [vmem:[#allocation6 + $0x3b0] sm:$0xff]
        %v1694 = vld [vmem:[#allocation6 + $0x3b8] sm:$0xff]
        %v1695 = vld [vmem:[#allocation6 + $0x3c0] sm:$0xff]
        %v1696 = vld [vmem:[#allocation6 + $0x3c8] sm:$0xff]
        %v1697 = vld [vmem:[#allocation6 + $0x3d0] sm:$0xff]
        %v1698 = vld [vmem:[#allocation6 + $0x3d8] sm:$0xff]
        %v1699 = vld [vmem:[#allocation6 + $0x3e0] sm:$0xff]
        %v1700 = vld [vmem:[#allocation6 + $0x3e8] sm:$0xff]
        %v1701 = vld [vmem:[#allocation6 + $0x3f0] sm:$0xff]
        %v1702 = vld [vmem:[#allocation6 + $0x3f8] sm:$0xff]
        %v1831 = vunpack.c.l.b16 %v1575
        %v1832 = vunpack.c.h.b16 %v1575
        %v1833 = vunpack.c.l.b16 %v1576
        %v1834 = vunpack.c.h.b16 %v1576
        %v1835 = vunpack.c.l.b16 %v1577
        %v1836 = vunpack.c.h.b16 %v1577
        %v1837 = vunpack.c.l.b16 %v1578
        %v1838 = vunpack.c.h.b16 %v1578
        %v1839 = vunpack.c.l.b16 %v1579
        %v1840 = vunpack.c.h.b16 %v1579
        %v1841 = vunpack.c.l.b16 %v1580
        %v1842 = vunpack.c.h.b16 %v1580
        %v1843 = vunpack.c.l.b16 %v1581
        %v1844 = vunpack.c.h.b16 %v1581
        %v1845 = vunpack.c.l.b16 %v1582
        %v1846 = vunpack.c.h.b16 %v1582
        %v1847 = vunpack.c.l.b16 %v1583
        %v1848 = vunpack.c.h.b16 %v1583
        %v1849 = vunpack.c.l.b16 %v1584
        %v1850 = vunpack.c.h.b16 %v1584
        %v1851 = vunpack.c.l.b16 %v1585
        %v1852 = vunpack.c.h.b16 %v1585
        %v1853 = vunpack.c.l.b16 %v1586
        %v1854 = vunpack.c.h.b16 %v1586
        %v1855 = vunpack.c.l.b16 %v1587
        %v1856 = vunpack.c.h.b16 %v1587
        %v1857 = vunpack.c.l.b16 %v1588
        %v1858 = vunpack.c.h.b16 %v1588
        %v1859 = vunpack.c.l.b16 %v1589
        %v1860 = vunpack.c.h.b16 %v1589
        %v1861 = vunpack.c.l.b16 %v1590
        %v1862 = vunpack.c.h.b16 %v1590
        %v1863 = vunpack.c.l.b16 %v1591
        %v1864 = vunpack.c.h.b16 %v1591
        %v1865 = vunpack.c.l.b16 %v1592
        %v1866 = vunpack.c.h.b16 %v1592
        %v1867 = vunpack.c.l.b16 %v1593
        %v1868 = vunpack.c.h.b16 %v1593
        %v1869 = vunpack.c.l.b16 %v1594
        %v1870 = vunpack.c.h.b16 %v1594
        %v1871 = vunpack.c.l.b16 %v1595
        %v1872 = vunpack.c.h.b16 %v1595
        %v1873 = vunpack.c.l.b16 %v1596
        %v1874 = vunpack.c.h.b16 %v1596
        %v1875 = vunpack.c.l.b16 %v1597
        %v1876 = vunpack.c.h.b16 %v1597
        %v1877 = vunpack.c.l.b16 %v1598
        %v1878 = vunpack.c.h.b16 %v1598
        %v1879 = vunpack.c.l.b16 %v1599
        %v1880 = vunpack.c.h.b16 %v1599
        %v1881 = vunpack.c.l.b16 %v1600
        %v1882 = vunpack.c.h.b16 %v1600
        %v1883 = vunpack.c.l.b16 %v1601
        %v1884 = vunpack.c.h.b16 %v1601
        %v1885 = vunpack.c.l.b16 %v1602
        %v1886 = vunpack.c.h.b16 %v1602
        %v1887 = vunpack.c.l.b16 %v1603
        %v1888 = vunpack.c.h.b16 %v1603
        %v1889 = vunpack.c.l.b16 %v1604
        %v1890 = vunpack.c.h.b16 %v1604
        %v1891 = vunpack.c.l.b16 %v1605
        %v1892 = vunpack.c.h.b16 %v1605
        %v1893 = vunpack.c.l.b16 %v1606
        %v1894 = vunpack.c.h.b16 %v1606
        %v1895 = vunpack.c.l.b16 %v1607
        %v1896 = vunpack.c.h.b16 %v1607
        %v1897 = vunpack.c.l.b16 %v1608
        %v1898 = vunpack.c.h.b16 %v1608
        %v1899 = vunpack.c.l.b16 %v1609
        %v1900 = vunpack.c.h.b16 %v1609
        %v1901 = vunpack.c.l.b16 %v1610
        %v1902 = vunpack.c.h.b16 %v1610
        %v1903 = vunpack.c.l.b16 %v1611
        %v1904 = vunpack.c.h.b16 %v1611
        %v1905 = vunpack.c.l.b16 %v1612
        %v1906 = vunpack.c.h.b16 %v1612
        %v1907 = vunpack.c.l.b16 %v1613
        %v1908 = vunpack.c.h.b16 %v1613
        %v1909 = vunpack.c.l.b16 %v1614
        %v1910 = vunpack.c.h.b16 %v1614
        %v1911 = vunpack.c.l.b16 %v1615
        %v1912 = vunpack.c.h.b16 %v1615
        %v1913 = vunpack.c.l.b16 %v1616
        %v1914 = vunpack.c.h.b16 %v1616
        %v1915 = vunpack.c.l.b16 %v1617
        %v1916 = vunpack.c.h.b16 %v1617
        %v1917 = vunpack.c.l.b16 %v1618
        %v1918 = vunpack.c.h.b16 %v1618
        %v1919 = vunpack.c.l.b16 %v1619
        %v1920 = vunpack.c.h.b16 %v1619
        %v1921 = vunpack.c.l.b16 %v1620
        %v1922 = vunpack.c.h.b16 %v1620
        %v1923 = vunpack.c.l.b16 %v1621
        %v1924 = vunpack.c.h.b16 %v1621
        %v1925 = vunpack.c.l.b16 %v1622
        %v1926 = vunpack.c.h.b16 %v1622
        %v1927 = vunpack.c.l.b16 %v1623
        %v1928 = vunpack.c.h.b16 %v1623
        %v1929 = vunpack.c.l.b16 %v1624
        %v1930 = vunpack.c.h.b16 %v1624
        %v1931 = vunpack.c.l.b16 %v1625
        %v1932 = vunpack.c.h.b16 %v1625
        %v1933 = vunpack.c.l.b16 %v1626
        %v1934 = vunpack.c.h.b16 %v1626
        %v1935 = vunpack.c.l.b16 %v1627
        %v1936 = vunpack.c.h.b16 %v1627
        %v1937 = vunpack.c.l.b16 %v1628
        %v1938 = vunpack.c.h.b16 %v1628
        %v1939 = vunpack.c.l.b16 %v1629
        %v1940 = vunpack.c.h.b16 %v1629
        %v1941 = vunpack.c.l.b16 %v1630
        %v1942 = vunpack.c.h.b16 %v1630
        %v1943 = vunpack.c.l.b16 %v1631
        %v1944 = vunpack.c.h.b16 %v1631
        %v1945 = vunpack.c.l.b16 %v1632
        %v1946 = vunpack.c.h.b16 %v1632
        %v1947 = vunpack.c.l.b16 %v1633
        %v1948 = vunpack.c.h.b16 %v1633
        %v1949 = vunpack.c.l.b16 %v1634
        %v1950 = vunpack.c.h.b16 %v1634
        %v1951 = vunpack.c.l.b16 %v1635
        %v1952 = vunpack.c.h.b16 %v1635
        %v1953 = vunpack.c.l.b16 %v1636
        %v1954 = vunpack.c.h.b16 %v1636
        %v1955 = vunpack.c.l.b16 %v1637
        %v1956 = vunpack.c.h.b16 %v1637
        %v1957 = vunpack.c.l.b16 %v1638
        %v1958 = vunpack.c.h.b16 %v1638
        %v1959 = vunpack.c.l.b16 %v1639
        %v1960 = vunpack.c.h.b16 %v1639
        %v1961 = vunpack.c.l.b16 %v1640
        %v1962 = vunpack.c.h.b16 %v1640
        %v1963 = vunpack.c.l.b16 %v1641
        %v1964 = vunpack.c.h.b16 %v1641
        %v1965 = vunpack.c.l.b16 %v1642
        %v1966 = vunpack.c.h.b16 %v1642
        %v1967 = vunpack.c.l.b16 %v1643
        %v1968 = vunpack.c.h.b16 %v1643
        %v1969 = vunpack.c.l.b16 %v1644
        %v1970 = vunpack.c.h.b16 %v1644
        %v1971 = vunpack.c.l.b16 %v1645
        %v1972 = vunpack.c.h.b16 %v1645
        %v1973 = vunpack.c.l.b16 %v1646
        %v1974 = vunpack.c.h.b16 %v1646
        %v1975 = vunpack.c.l.b16 %v1647
        %v1976 = vunpack.c.h.b16 %v1647
        %v1977 = vunpack.c.l.b16 %v1648
        %v1978 = vunpack.c.h.b16 %v1648
        %v1979 = vunpack.c.l.b16 %v1649
        %v1980 = vunpack.c.h.b16 %v1649
        %v1981 = vunpack.c.l.b16 %v1650
        %v1982 = vunpack.c.h.b16 %v1650
        %v1983 = vunpack.c.l.b16 %v1651
        %v1984 = vunpack.c.h.b16 %v1651
        %v1985 = vunpack.c.l.b16 %v1652
        %v1986 = vunpack.c.h.b16 %v1652
        %v1987 = vunpack.c.l.b16 %v1653
        %v1988 = vunpack.c.h.b16 %v1653
        %v1989 = vunpack.c.l.b16 %v1654
        %v1990 = vunpack.c.h.b16 %v1654
        %v1991 = vunpack.c.l.b16 %v1655
        %v1992 = vunpack.c.h.b16 %v1655
        %v1993 = vunpack.c.l.b16 %v1656
        %v1994 = vunpack.c.h.b16 %v1656
        %v1995 = vunpack.c.l.b16 %v1657
        %v1996 = vunpack.c.h.b16 %v1657
        %v1997 = vunpack.c.l.b16 %v1658
        %v1998 = vunpack.c.h.b16 %v1658
        %v1999 = vunpack.c.l.b16 %v1659
        %v2000 = vunpack.c.h.b16 %v1659
        %v2001 = vunpack.c.l.b16 %v1660
        %v2002 = vunpack.c.h.b16 %v1660
        %v2003 = vunpack.c.l.b16 %v1661
        %v2004 = vunpack.c.h.b16 %v1661
        %v2005 = vunpack.c.l.b16 %v1662
        %v2006 = vunpack.c.h.b16 %v1662
        %v2007 = vunpack.c.l.b16 %v1663
        %v2008 = vunpack.c.h.b16 %v1663
        %v2009 = vunpack.c.l.b16 %v1664
        %v2010 = vunpack.c.h.b16 %v1664
        %v2011 = vunpack.c.l.b16 %v1665
        %v2012 = vunpack.c.h.b16 %v1665
        %v2013 = vunpack.c.l.b16 %v1666
        %v2014 = vunpack.c.h.b16 %v1666
        %v2015 = vunpack.c.l.b16 %v1667
        %v2016 = vunpack.c.h.b16 %v1667
        %v2017 = vunpack.c.l.b16 %v1668
        %v2018 = vunpack.c.h.b16 %v1668
        %v2019 = vunpack.c.l.b16 %v1669
        %v2020 = vunpack.c.h.b16 %v1669
        %v2021 = vunpack.c.l.b16 %v1670
        %v2022 = vunpack.c.h.b16 %v1670
        %v2023 = vunpack.c.l.b16 %v1671
        %v2024 = vunpack.c.h.b16 %v1671
        %v2025 = vunpack.c.l.b16 %v1672
        %v2026 = vunpack.c.h.b16 %v1672
        %v2027 = vunpack.c.l.b16 %v1673
        %v2028 = vunpack.c.h.b16 %v1673
        %v2029 = vunpack.c.l.b16 %v1674
        %v2030 = vunpack.c.h.b16 %v1674
        %v2031 = vunpack.c.l.b16 %v1675
        %v2032 = vunpack.c.h.b16 %v1675
        %v2033 = vunpack.c.l.b16 %v1676
        %v2034 = vunpack.c.h.b16 %v1676
        %v2035 = vunpack.c.l.b16 %v1677
        %v2036 = vunpack.c.h.b16 %v1677
        %v2037 = vunpack.c.l.b16 %v1678
        %v2038 = vunpack.c.h.b16 %v1678
        %v2039 = vunpack.c.l.b16 %v1679
        %v2040 = vunpack.c.h.b16 %v1679
        %v2041 = vunpack.c.l.b16 %v1680
        %v2042 = vunpack.c.h.b16 %v1680
        %v2043 = vunpack.c.l.b16 %v1681
        %v2044 = vunpack.c.h.b16 %v1681
        %v2045 = vunpack.c.l.b16 %v1682
        %v2046 = vunpack.c.h.b16 %v1682
        %v2047 = vunpack.c.l.b16 %v1683
        %v2048 = vunpack.c.h.b16 %v1683
        %v2049 = vunpack.c.l.b16 %v1684
        %v2050 = vunpack.c.h.b16 %v1684
        %v2051 = vunpack.c.l.b16 %v1685
        %v2052 = vunpack.c.h.b16 %v1685
        %v2053 = vunpack.c.l.b16 %v1686
        %v2054 = vunpack.c.h.b16 %v1686
        %v2055 = vunpack.c.l.b16 %v1687
        %v2056 = vunpack.c.h.b16 %v1687
        %v2057 = vunpack.c.l.b16 %v1688
        %v2058 = vunpack.c.h.b16 %v1688
        %v2059 = vunpack.c.l.b16 %v1689
        %v2060 = vunpack.c.h.b16 %v1689
        %v2061 = vunpack.c.l.b16 %v1690
        %v2062 = vunpack.c.h.b16 %v1690
        %v2063 = vunpack.c.l.b16 %v1691
        %v2064 = vunpack.c.h.b16 %v1691
        %v2065 = vunpack.c.l.b16 %v1692
        %v2066 = vunpack.c.h.b16 %v1692
        %v2067 = vunpack.c.l.b16 %v1693
        %v2068 = vunpack.c.h.b16 %v1693
        %v2069 = vunpack.c.l.b16 %v1694
        %v2070 = vunpack.c.h.b16 %v1694
        %v2071 = vunpack.c.l.b16 %v1695
        %v2072 = vunpack.c.h.b16 %v1695
        %v2073 = vunpack.c.l.b16 %v1696
        %v2074 = vunpack.c.h.b16 %v1696
        %v2075 = vunpack.c.l.b16 %v1697
        %v2076 = vunpack.c.h.b16 %v1697
        %v2077 = vunpack.c.l.b16 %v1698
        %v2078 = vunpack.c.h.b16 %v1698
        %v2079 = vunpack.c.l.b16 %v1699
        %v2080 = vunpack.c.h.b16 %v1699
        %v2081 = vunpack.c.l.b16 %v1700
        %v2082 = vunpack.c.h.b16 %v1700
        %v2083 = vunpack.c.l.b16 %v1701
        %v2084 = vunpack.c.h.b16 %v1701
        %v2085 = vunpack.c.l.b16 %v1702
        %v2086 = vunpack.c.h.b16 %v1702
        %v2087 = vpack.c.b16 %v1839, %v1831
        %v2088 = vpack.c.b16 %v1840, %v1832
        %v2089 = vpack.c.b16 %v1841, %v1833
        %v2090 = vpack.c.b16 %v1842, %v1834
        %v2091 = vpack.c.b16 %v1843, %v1835
        %v2092 = vpack.c.b16 %v1844, %v1836
        %v2093 = vpack.c.b16 %v1845, %v1837
        %v2094 = vpack.c.b16 %v1846, %v1838
        %v2095 = vpack.c.b16 %v1855, %v1847
        %v2096 = vpack.c.b16 %v1856, %v1848
        %v2097 = vpack.c.b16 %v1857, %v1849
        %v2098 = vpack.c.b16 %v1858, %v1850
        %v2099 = vpack.c.b16 %v1859, %v1851
        %v2100 = vpack.c.b16 %v1860, %v1852
        %v2101 = vpack.c.b16 %v1861, %v1853
        %v2102 = vpack.c.b16 %v1862, %v1854
        %v2103 = vpack.c.b16 %v1871, %v1863
        %v2104 = vpack.c.b16 %v1872, %v1864
        %v2105 = vpack.c.b16 %v1873, %v1865
        %v2106 = vpack.c.b16 %v1874, %v1866
        %v2107 = vpack.c.b16 %v1875, %v1867
        %v2108 = vpack.c.b16 %v1876, %v1868
        %v2109 = vpack.c.b16 %v1877, %v1869
        %v2110 = vpack.c.b16 %v1878, %v1870
        %v2111 = vpack.c.b16 %v1887, %v1879
        %v2112 = vpack.c.b16 %v1888, %v1880
        %v2113 = vpack.c.b16 %v1889, %v1881
        %v2114 = vpack.c.b16 %v1890, %v1882
        %v2115 = vpack.c.b16 %v1891, %v1883
        %v2116 = vpack.c.b16 %v1892, %v1884
        %v2117 = vpack.c.b16 %v1893, %v1885
        %v2118 = vpack.c.b16 %v1894, %v1886
        %v2119 = vpack.c.b16 %v1903, %v1895
        %v2120 = vpack.c.b16 %v1904, %v1896
        %v2121 = vpack.c.b16 %v1905, %v1897
        %v2122 = vpack.c.b16 %v1906, %v1898
        %v2123 = vpack.c.b16 %v1907, %v1899
        %v2124 = vpack.c.b16 %v1908, %v1900
        %v2125 = vpack.c.b16 %v1909, %v1901
        %v2126 = vpack.c.b16 %v1910, %v1902
        %v2127 = vpack.c.b16 %v1919, %v1911
        %v2128 = vpack.c.b16 %v1920, %v1912
        %v2129 = vpack.c.b16 %v1921, %v1913
        %v2130 = vpack.c.b16 %v1922, %v1914
        %v2131 = vpack.c.b16 %v1923, %v1915
        %v2132 = vpack.c.b16 %v1924, %v1916
        %v2133 = vpack.c.b16 %v1925, %v1917
        %v2134 = vpack.c.b16 %v1926, %v1918
        %v2135 = vpack.c.b16 %v1935, %v1927
        %v2136 = vpack.c.b16 %v1936, %v1928
        %v2137 = vpack.c.b16 %v1937, %v1929
        %v2138 = vpack.c.b16 %v1938, %v1930
        %v2139 = vpack.c.b16 %v1939, %v1931
        %v2140 = vpack.c.b16 %v1940, %v1932
        %v2141 = vpack.c.b16 %v1941, %v1933
        %v2142 = vpack.c.b16 %v1942, %v1934
        %v2143 = vpack.c.b16 %v1951, %v1943
        %v2144 = vpack.c.b16 %v1952, %v1944
        %v2145 = vpack.c.b16 %v1953, %v1945
        %v2146 = vpack.c.b16 %v1954, %v1946
        %v2147 = vpack.c.b16 %v1955, %v1947
        %v2148 = vpack.c.b16 %v1956, %v1948
        %v2149 = vpack.c.b16 %v1957, %v1949
        %v2150 = vpack.c.b16 %v1958, %v1950
        %v2151 = vpack.c.b16 %v1967, %v1959
        %v2152 = vpack.c.b16 %v1968, %v1960
        %v2153 = vpack.c.b16 %v1969, %v1961
        %v2154 = vpack.c.b16 %v1970, %v1962
        %v2155 = vpack.c.b16 %v1971, %v1963
        %v2156 = vpack.c.b16 %v1972, %v1964
        %v2157 = vpack.c.b16 %v1973, %v1965
        %v2158 = vpack.c.b16 %v1974, %v1966
        %v2159 = vpack.c.b16 %v1983, %v1975
        %v2160 = vpack.c.b16 %v1984, %v1976
        %v2161 = vpack.c.b16 %v1985, %v1977
        %v2162 = vpack.c.b16 %v1986, %v1978
        %v2163 = vpack.c.b16 %v1987, %v1979
        %v2164 = vpack.c.b16 %v1988, %v1980
        %v2165 = vpack.c.b16 %v1989, %v1981
        %v2166 = vpack.c.b16 %v1990, %v1982
        %v2167 = vpack.c.b16 %v1999, %v1991
        %v2168 = vpack.c.b16 %v2000, %v1992
        %v2169 = vpack.c.b16 %v2001, %v1993
        %v2170 = vpack.c.b16 %v2002, %v1994
        %v2171 = vpack.c.b16 %v2003, %v1995
        %v2172 = vpack.c.b16 %v2004, %v1996
        %v2173 = vpack.c.b16 %v2005, %v1997
        %v2174 = vpack.c.b16 %v2006, %v1998
        %v2175 = vpack.c.b16 %v2015, %v2007
        %v2176 = vpack.c.b16 %v2016, %v2008
        %v2177 = vpack.c.b16 %v2017, %v2009
        %v2178 = vpack.c.b16 %v2018, %v2010
        %v2179 = vpack.c.b16 %v2019, %v2011
        %v2180 = vpack.c.b16 %v2020, %v2012
        %v2181 = vpack.c.b16 %v2021, %v2013
        %v2182 = vpack.c.b16 %v2022, %v2014
        %v2183 = vpack.c.b16 %v2031, %v2023
        %v2184 = vpack.c.b16 %v2032, %v2024
        %v2185 = vpack.c.b16 %v2033, %v2025
        %v2186 = vpack.c.b16 %v2034, %v2026
        %v2187 = vpack.c.b16 %v2035, %v2027
        %v2188 = vpack.c.b16 %v2036, %v2028
        %v2189 = vpack.c.b16 %v2037, %v2029
        %v2190 = vpack.c.b16 %v2038, %v2030
        %v2191 = vpack.c.b16 %v2047, %v2039
        %v2192 = vpack.c.b16 %v2048, %v2040
        %v2193 = vpack.c.b16 %v2049, %v2041
        %v2194 = vpack.c.b16 %v2050, %v2042
        %v2195 = vpack.c.b16 %v2051, %v2043
        %v2196 = vpack.c.b16 %v2052, %v2044
        %v2197 = vpack.c.b16 %v2053, %v2045
        %v2198 = vpack.c.b16 %v2054, %v2046
        %v2199 = vpack.c.b16 %v2063, %v2055
        %v2200 = vpack.c.b16 %v2064, %v2056
        %v2201 = vpack.c.b16 %v2065, %v2057
        %v2202 = vpack.c.b16 %v2066, %v2058
        %v2203 = vpack.c.b16 %v2067, %v2059
        %v2204 = vpack.c.b16 %v2068, %v2060
        %v2205 = vpack.c.b16 %v2069, %v2061
        %v2206 = vpack.c.b16 %v2070, %v2062
        %v2207 = vpack.c.b16 %v2079, %v2071
        %v2208 = vpack.c.b16 %v2080, %v2072
        %v2209 = vpack.c.b16 %v2081, %v2073
        %v2210 = vpack.c.b16 %v2082, %v2074
        %v2211 = vpack.c.b16 %v2083, %v2075
        %v2212 = vpack.c.b16 %v2084, %v2076
        %v2213 = vpack.c.b16 %v2085, %v2077
        %v2214 = vpack.c.b16 %v2086, %v2078
        %2343 = vmatprep.subr.bf16.mxu0 %v2088
        %2344 = vmatpush1.bf16.msra.mxu0 %v2087
        %2345 = vmatprep.subr.bf16.mxu0 %v2096
        %2346 = vmatpush1.bf16.msra.mxu0 %v2095
        %2347 = vmatprep.subr.bf16.mxu0 %v2104
        %2348 = vmatpush1.bf16.msra.mxu0 %v2103
        %2349 = vmatprep.subr.bf16.mxu0 %v2112
        %2350 = vmatpush1.bf16.msra.mxu0 %v2111
        %2351 = vmatprep.subr.bf16.mxu0 %v2120
        %2352 = vmatpush1.bf16.msra.mxu0 %v2119
        %2353 = vmatprep.subr.bf16.mxu0 %v2128
        %2354 = vmatpush1.bf16.msra.mxu0 %v2127
        %2355 = vmatprep.subr.bf16.mxu0 %v2136
        %2356 = vmatpush1.bf16.msra.mxu0 %v2135
        %2357 = vmatprep.subr.bf16.mxu0 %v2144
        %2358 = vmatpush1.bf16.msra.mxu0 %v2143
        %2359 = vmatprep.subr.bf16.mxu0 %v2152
        %2360 = vmatpush1.bf16.msra.mxu0 %v2151
        %2361 = vmatprep.subr.bf16.mxu0 %v2160
        %2362 = vmatpush1.bf16.msra.mxu0 %v2159
        %2363 = vmatprep.subr.bf16.mxu0 %v2168
        %2364 = vmatpush1.bf16.msra.mxu0 %v2167
        %2365 = vmatprep.subr.bf16.mxu0 %v2176
        %2366 = vmatpush1.bf16.msra.mxu0 %v2175
        %2367 = vmatprep.subr.bf16.mxu0 %v2184
        %2368 = vmatpush1.bf16.msra.mxu0 %v2183
        %2369 = vmatprep.subr.bf16.mxu0 %v2192
        %2370 = vmatpush1.bf16.msra.mxu0 %v2191
        %2371 = vmatprep.subr.bf16.mxu0 %v2200
        %2372 = vmatpush1.bf16.msra.mxu0 %v2199
        %2373 = vmatprep.subr.bf16.mxu0 %v2208
        %2374 = vmatpush1.bf16.msra.mxu0 %v2207
        %2375 = vmatprep.mubr.bf16.mxu0 %v1550
        %2376 = vmatmul.mubr.bf16.gmra.mrb[0].mxu0 %v1549
        %v2377 = vpop.f32.mrb[0].mxu0
        %v2378 = vadd.f32 0.0, %v2377
        %v2379 = vpop.f32.mrb[0].mxu0
        %v2380 = vadd.f32 0.0, %v2379
        %v2381 = vpop.f32.mrb[0].mxu0
        %v2382 = vpop.f32.mrb[0].mxu0
        %2383 = vdwg.mxu0
        %2384 = vmatprep.subr.bf16.mxu0 %v2090
        %2385 = vmatpush1.bf16.msra.mxu0 %v2089
        %2386 = vmatprep.subr.bf16.mxu0 %v2098
        %2387 = vmatpush1.bf16.msra.mxu0 %v2097
        %2388 = vmatprep.subr.bf16.mxu0 %v2106
        %2389 = vmatpush1.bf16.msra.mxu0 %v2105
        %2390 = vmatprep.subr.bf16.mxu0 %v2114
        %2391 = vmatpush1.bf16.msra.mxu0 %v2113
        %2392 = vmatprep.subr.bf16.mxu0 %v2122
        %2393 = vmatpush1.bf16.msra.mxu0 %v2121
        %2394 = vmatprep.subr.bf16.mxu0 %v2130
        %2395 = vmatpush1.bf16.msra.mxu0 %v2129
        %2396 = vmatprep.subr.bf16.mxu0 %v2138
        %2397 = vmatpush1.bf16.msra.mxu0 %v2137
        %2398 = vmatprep.subr.bf16.mxu0 %v2146
        %2399 = vmatpush1.bf16.msra.mxu0 %v2145
        %2400 = vmatprep.subr.bf16.mxu0 %v2154
        %2401 = vmatpush1.bf16.msra.mxu0 %v2153
        %2402 = vmatprep.subr.bf16.mxu0 %v2162
        %2403 = vmatpush1.bf16.msra.mxu0 %v2161
        %2404 = vmatprep.subr.bf16.mxu0 %v2170
        %2405 = vmatpush1.bf16.msra.mxu0 %v2169
        %2406 = vmatprep.subr.bf16.mxu0 %v2178
        %2407 = vmatpush1.bf16.msra.mxu0 %v2177
        %2408 = vmatprep.subr.bf16.mxu0 %v2186
        %2409 = vmatpush1.bf16.msra.mxu0 %v2185
        %2410 = vmatprep.subr.bf16.mxu0 %v2194
        %2411 = vmatpush1.bf16.msra.mxu0 %v2193
        %2412 = vmatprep.subr.bf16.mxu0 %v2202
        %2413 = vmatpush1.bf16.msra.mxu0 %v2201
        %2414 = vmatprep.subr.bf16.mxu0 %v2210
        %2415 = vmatpush1.bf16.msra.mxu0 %v2209
        %2416 = vmatprep.mubr.bf16.mxu0 %v1550
        %2417 = vmatmul.mubr.bf16.gmra.mrb[0].mxu0 %v1549
        %v2418 = vpop.f32.mrb[0].mxu0
        %v2419 = vadd.f32 0.0, %v2418
        %v2420 = vpop.f32.mrb[0].mxu0
        %v2421 = vadd.f32 0.0, %v2420
        %v2422 = vpop.f32.mrb[0].mxu0
        %v2423 = vpop.f32.mrb[0].mxu0
        %2424 = vdwg.mxu0
        %2425 = vmatprep.subr.bf16.mxu0 %v2092
        %2426 = vmatpush1.bf16.msra.mxu0 %v2091
        %2427 = vmatprep.subr.bf16.mxu0 %v2100
        %2428 = vmatpush1.bf16.msra.mxu0 %v2099
        %2429 = vmatprep.subr.bf16.mxu0 %v2108
        %2430 = vmatpush1.bf16.msra.mxu0 %v2107
        %2431 = vmatprep.subr.bf16.mxu0 %v2116
        %2432 = vmatpush1.bf16.msra.mxu0 %v2115
        %2433 = vmatprep.subr.bf16.mxu0 %v2124
        %2434 = vmatpush1.bf16.msra.mxu0 %v2123
        %2435 = vmatprep.subr.bf16.mxu0 %v2132
        %2436 = vmatpush1.bf16.msra.mxu0 %v2131
        %2437 = vmatprep.subr.bf16.mxu0 %v2140
        %2438 = vmatpush1.bf16.msra.mxu0 %v2139
        %2439 = vmatprep.subr.bf16.mxu0 %v2148
        %2440 = vmatpush1.bf16.msra.mxu0 %v2147
        %2441 = vmatprep.subr.bf16.mxu0 %v2156
        %2442 = vmatpush1.bf16.msra.mxu0 %v2155
        %2443 = vmatprep.subr.bf16.mxu0 %v2164
        %2444 = vmatpush1.bf16.msra.mxu0 %v2163
        %2445 = vmatprep.subr.bf16.mxu0 %v2172
        %2446 = vmatpush1.bf16.msra.mxu0 %v2171
        %2447 = vmatprep.subr.bf16.mxu0 %v2180
        %2448 = vmatpush1.bf16.msra.mxu0 %v2179
        %2449 = vmatprep.subr.bf16.mxu0 %v2188
        %2450 = vmatpush1.bf16.msra.mxu0 %v2187
        %2451 = vmatprep.subr.bf16.mxu0 %v2196
        %2452 = vmatpush1.bf16.msra.mxu0 %v2195
        %2453 = vmatprep.subr.bf16.mxu0 %v2204
        %2454 = vmatpush1.bf16.msra.mxu0 %v2203
        %2455 = vmatprep.subr.bf16.mxu0 %v2212
        %2456 = vmatpush1.bf16.msra.mxu0 %v2211
        %2457 = vmatprep.mubr.bf16.mxu0 %v1550
        %2458 = vmatmul.mubr.bf16.gmra.mrb[0].mxu0 %v1549
        %v2459 = vpop.f32.mrb[0].mxu0
        %v2460 = vadd.f32 0.0, %v2459
        %v2461 = vpop.f32.mrb[0].mxu0
        %v2462 = vadd.f32 0.0, %v2461
        %v2463 = vpop.f32.mrb[0].mxu0
        %v2464 = vpop.f32.mrb[0].mxu0
        %2465 = vdwg.mxu0
        %2466 = vmatprep.subr.bf16.mxu0 %v2094
        %2467 = vmatpush1.bf16.msra.mxu0 %v2093
        %2468 = vmatprep.subr.bf16.mxu0 %v2102
        %2469 = vmatpush1.bf16.msra.mxu0 %v2101
        %2470 = vmatprep.subr.bf16.mxu0 %v2110
        %2471 = vmatpush1.bf16.msra.mxu0 %v2109
        %2472 = vmatprep.subr.bf16.mxu0 %v2118
        %2473 = vmatpush1.bf16.msra.mxu0 %v2117
        %2474 = vmatprep.subr.bf16.mxu0 %v2126
        %2475 = vmatpush1.bf16.msra.mxu0 %v2125
        %2476 = vmatprep.subr.bf16.mxu0 %v2134
        %2477 = vmatpush1.bf16.msra.mxu0 %v2133
        %2478 = vmatprep.subr.bf16.mxu0 %v2142
        %2479 = vmatpush1.bf16.msra.mxu0 %v2141
        %2480 = vmatprep.subr.bf16.mxu0 %v2150
        %2481 = vmatpush1.bf16.msra.mxu0 %v2149
        %2482 = vmatprep.subr.bf16.mxu0 %v2158
        %2483 = vmatpush1.bf16.msra.mxu0 %v2157
        %2484 = vmatprep.subr.bf16.mxu0 %v2166
        %2485 = vmatpush1.bf16.msra.mxu0 %v2165
        %2486 = vmatprep.subr.bf16.mxu0 %v2174
        %2487 = vmatpush1.bf16.msra.mxu0 %v2173
        %2488 = vmatprep.subr.bf16.mxu0 %v2182
        %2489 = vmatpush1.bf16.msra.mxu0 %v2181
        %2490 = vmatprep.subr.bf16.mxu0 %v2190
        %2491 = vmatpush1.bf16.msra.mxu0 %v2189
        %2492 = vmatprep.subr.bf16.mxu0 %v2198
        %2493 = vmatpush1.bf16.msra.mxu0 %v2197
        %2494 = vmatprep.subr.bf16.mxu0 %v2206
        %2495 = vmatpush1.bf16.msra.mxu0 %v2205
        %2496 = vmatprep.subr.bf16.mxu0 %v2214
        %2497 = vmatpush1.bf16.msra.mxu0 %v2213
        %2498 = vmatprep.mubr.bf16.mxu0 %v1550
        %2499 = vmatmul.mubr.bf16.gmra.mrb[0].mxu0 %v1549
        %v2500 = vpop.f32.mrb[0].mxu0
        %v2501 = vadd.f32 0.0, %v2500
        %v2502 = vpop.f32.mrb[0].mxu0
        %v2503 = vadd.f32 0.0, %v2502
        %v2504 = vpop.f32.mrb[0].mxu0
        %v2505 = vpop.f32.mrb[0].mxu0
        %2506 = vdwg.mxu0
        %v2511 = vcombine.low %v2378, %v2380
        %v2512 = vcombine.low %v2419, %v2421
        %v2514 = vunpack.c.l.s4 1983009808
        %v2515 = vunpack.c.0.s8 %v2514
        %v2516 = vlaneseq
        %v2517 = vshrl.u32 %v2516, 7
        %v2518 = vsub.s32 %v2515, %v2517
        %v2519 = vrot.slane %v2511, %v2518
        %v2521 = vunpack.c.l.s4 1983009808
        %v2522 = vunpack.c.0.s8 %v2521
        %v2523 = vlaneseq
        %v2524 = vshrl.u32 %v2523, 7
        %v2525 = vsub.s32 %v2522, %v2524
        %v2526 = vrot.slane %v2512, %v2525
        %v2527 = vcombine.low %v2519, %v2526
        %v2529 = vadd.f32 %v1571, %v2527
        %v2534 = vcombine.low %v2460, %v2462
        %v2535 = vcombine.low %v2501, %v2503
        %v2537 = vunpack.c.l.s4 1983009808
        %v2538 = vunpack.c.0.s8 %v2537
        %v2539 = vlaneseq
        %v2540 = vshrl.u32 %v2539, 7
        %v2541 = vsub.s32 %v2538, %v2540
        %v2542 = vrot.slane %v2534, %v2541
        %v2544 = vunpack.c.l.s4 1983009808
        %v2545 = vunpack.c.0.s8 %v2544
        %v2546 = vlaneseq
        %v2547 = vshrl.u32 %v2546, 7
        %v2548 = vsub.s32 %v2545, %v2547
        %v2549 = vrot.slane %v2535, %v2548
        %v2550 = vcombine.low %v2542, %v2549
        %v2552 = vadd.f32 %v1574, %v2550
        %v2553 = vxor.u32 %v2529, 2147483648
        %v2554 = vmul.f32 %v2553, 1.442695
        %v2555 = vpow.pop %v2554
        %v2556 = vadd.f32 %v2555, 1.0
        %v2557 = vrcp.pop %v2556
        %v2558 = vmul.f32 1.0, %v2557
        %v2560 = vrot.slane %v2529, 2
        %v2562 = vxor.u32 %v2560, 2147483648
        %v2563 = vmul.f32 %v2562, 1.442695
        %v2564 = vpow.pop %v2563
        %v2565 = vadd.f32 %v2564, 1.0
        %v2566 = vrcp.pop %v2565
        %v2567 = vmul.f32 1.0, %v2566
        %v2568 = vrot.slane %v2529, 4
        %v2570 = vtanh.pop %v2568
        %v2571 = vrot.slane %v2529, 6
        %v2573 = vxor.u32 %v2571, 2147483648
        %v2574 = vmul.f32 %v2573, 1.442695
        %v2575 = vpow.pop %v2574
        %v2576 = vadd.f32 %v2575, 1.0
        %v2577 = vrcp.pop %v2576
        %v2578 = vmul.f32 1.0, %v2577
        %v2579 = vmul.f32 %v2567, %v1561
        %v2580 = vmul.f32 %v2558, %v2570
        %v2581 = vadd.f32 %v2579, %v2580
        %v2582 = vtanh.pop %v2581
        %v2583 = vmul.f32 %v2578, %v2582
        %v2584 = vxor.u32 %v2552, 2147483648
        %v2585 = vmul.f32 %v2584, 1.442695
        %v2586 = vpow.pop %v2585
        %v2587 = vadd.f32 %v2586, 1.0
        %v2588 = vrcp.pop %v2587
        %v2589 = vmul.f32 1.0, %v2588
        %v2591 = vrot.slane %v2552, 2
        %v2593 = vxor.u32 %v2591, 2147483648
        %v2594 = vmul.f32 %v2593, 1.442695
        %v2595 = vpow.pop %v2594
        %v2596 = vadd.f32 %v2595, 1.0
        %v2597 = vrcp.pop %v2596
        %v2598 = vmul.f32 1.0, %v2597
        %v2599 = vrot.slane %v2552, 4
        %v2601 = vtanh.pop %v2599
        %v2602 = vrot.slane %v2552, 6
        %v2604 = vxor.u32 %v2602, 2147483648
        %v2605 = vmul.f32 %v2604, 1.442695
        %v2606 = vpow.pop %v2605
        %v2607 = vadd.f32 %v2606, 1.0
        %v2608 = vrcp.pop %v2607
        %v2609 = vmul.f32 1.0, %v2608
        %v2610 = vmul.f32 %v2598, %v1562
        %v2611 = vmul.f32 %v2589, %v2601
        %v2612 = vadd.f32 %v2610, %v2611
        %v2613 = vtanh.pop %v2612
        %v2614 = vmul.f32 %v2609, %v2613
        %s2615 = ssub.s32 6, %s457
        %v2616 = vstv %s1568
        %v2617 = vstv %s2615
        %v2618 = vsel %vm455, %v2616, %v2617
        %v2619 = vsel %vm456, %v2616, %v2617
        %vm2620 = vcmp.lt.s32.totalorder %v2618, %v1540
        %vm2621 = vcmp.lt.s32.totalorder %v2619, %v1540
        %v2622 = vsel %vm2620, %v2583, 0.0
        %v2623 = vsel %vm2621, %v2614, 0.0
        %v2624 = vpack.c.bf16 %v2583, %v2583
        %v2625 = vpack.c.bf16 %v2614, %v2614
        %vm2626 = vmpackc.low %vm2620, %vm2620
        %vm2627 = vmpackc.low %vm2621, %vm2621
        %v2628 = vsel %vm2626, %v2624, %v1549
        %v2629 = vsel %vm2627, %v2625, %v1550
        %v2630 = vsel %vm2620, %v2581, %v1561
        %v2631 = vsel %vm2621, %v2612, %v1562
        %v2632 = vpack.c.bf16 %v2622, %v2622
        %s2633 = scalar_lea.vmem %s432, 1
        %2634 = vst [vmem:[%s2633] sm:$0x1] %v2632
        %v2635 = vpack.c.bf16 %v2623, %v2623
        %s2636 = scalar_lea.vmem %s441, 2
        %2637 = vst [vmem:[%s2636] sm:$0x1] %v2635
        %s2638 = sadd.s32 %s457, 2
        %s2639 = scalar_lea.vmem %s365, 8 [#allocation4]
        %v2640 = vld [vmem:[%s2639] sm:$0xf]
        %v2641 = vunpack.c.l.bf16 %v2640
        %s2642 = scalar_lea.vmem %s372, 4 [#allocation5]
        %v2643 = vld [vmem:[%s2642] sm:$0xf]
        %v2644 = vunpack.c.l.bf16 %v2643
        %v2645 = vld [vmem:[#allocation6] sm:$0xff]
        %v2646 = vld [vmem:[#allocation6 + $0x8] sm:$0xff]
        %v2647 = vld [vmem:[#allocation6 + $0x10] sm:$0xff]
        %v2648 = vld [vmem:[#allocation6 + $0x18] sm:$0xff]
        %v2649 = vld [vmem:[#allocation6 + $0x20] sm:$0xff]
        %v2650 = vld [vmem:[#allocation6 + $0x28] sm:$0xff]
        %v2651 = vld [vmem:[#allocation6 + $0x30] sm:$0xff]
        %v2652 = vld [vmem:[#allocation6 + $0x38] sm:$0xff]
        %v2653 = vld [vmem:[#allocation6 + $0x40] sm:$0xff]
        %v2654 = vld [vmem:[#allocation6 + $0x48] sm:$0xff]
        %v2655 = vld [vmem:[#allocation6 + $0x50] sm:$0xff]
        %v2656 = vld [vmem:[#allocation6 + $0x58] sm:$0xff]
        %v2657 = vld [vmem:[#allocation6 + $0x60] sm:$0xff]
        %v2658 = vld [vmem:[#allocation6 + $0x68] sm:$0xff]
        %v2659 = vld [vmem:[#allocation6 + $0x70] sm:$0xff]
        %v2660 = vld [vmem:[#allocation6 + $0x78] sm:$0xff]
        %v2661 = vld [vmem:[#allocation6 + $0x80] sm:$0xff]
        %v2662 = vld [vmem:[#allocation6 + $0x88] sm:$0xff]
        %v2663 = vld [vmem:[#allocation6 + $0x90] sm:$0xff]
        %v2664 = vld [vmem:[#allocation6 + $0x98] sm:$0xff]
        %v2665 = vld [vmem:[#allocation6 + $0xa0] sm:$0xff]
        %v2666 = vld [vmem:[#allocation6 + $0xa8] sm:$0xff]
        %v2667 = vld [vmem:[#allocation6 + $0xb0] sm:$0xff]
        %v2668 = vld [vmem:[#allocation6 + $0xb8] sm:$0xff]
        %v2669 = vld [vmem:[#allocation6 + $0xc0] sm:$0xff]
        %v2670 = vld [vmem:[#allocation6 + $0xc8] sm:$0xff]
        %v2671 = vld [vmem:[#allocation6 + $0xd0] sm:$0xff]
        %v2672 = vld [vmem:[#allocation6 + $0xd8] sm:$0xff]
        %v2673 = vld [vmem:[#allocation6 + $0xe0] sm:$0xff]
        %v2674 = vld [vmem:[#allocation6 + $0xe8] sm:$0xff]
        %v2675 = vld [vmem:[#allocation6 + $0xf0] sm:$0xff]
        %v2676 = vld [vmem:[#allocation6 + $0xf8] sm:$0xff]
        %v2677 = vld [vmem:[#allocation6 + $0x100] sm:$0xff]
        %v2678 = vld [vmem:[#allocation6 + $0x108] sm:$0xff]
        %v2679 = vld [vmem:[#allocation6 + $0x110] sm:$0xff]
        %v2680 = vld [vmem:[#allocation6 + $0x118] sm:$0xff]
        %v2681 = vld [vmem:[#allocation6 + $0x120] sm:$0xff]
        %v2682 = vld [vmem:[#allocation6 + $0x128] sm:$0xff]
        %v2683 = vld [vmem:[#allocation6 + $0x130] sm:$0xff]
        %v2684 = vld [vmem:[#allocation6 + $0x138] sm:$0xff]
        %v2685 = vld [vmem:[#allocation6 + $0x140] sm:$0xff]
        %v2686 = vld [vmem:[#allocation6 + $0x148] sm:$0xff]
        %v2687 = vld [vmem:[#allocation6 + $0x150] sm:$0xff]
        %v2688 = vld [vmem:[#allocation6 + $0x158] sm:$0xff]
        %v2689 = vld [vmem:[#allocation6 + $0x160] sm:$0xff]
        %v2690 = vld [vmem:[#allocation6 + $0x168] sm:$0xff]
        %v2691 = vld [vmem:[#allocation6 + $0x170] sm:$0xff]
        %v2692 = vld [vmem:[#allocation6 + $0x178] sm:$0xff]
        %v2693 = vld [vmem:[#allocation6 + $0x180] sm:$0xff]
        %v2694 = vld [vmem:[#allocation6 + $0x188] sm:$0xff]
        %v2695 = vld [vmem:[#allocation6 + $0x190] sm:$0xff]
        %v2696 = vld [vmem:[#allocation6 + $0x198] sm:$0xff]
        %v2697 = vld [vmem:[#allocation6 + $0x1a0] sm:$0xff]
        %v2698 = vld [vmem:[#allocation6 + $0x1a8] sm:$0xff]
        %v2699 = vld [vmem:[#allocation6 + $0x1b0] sm:$0xff]
        %v2700 = vld [vmem:[#allocation6 + $0x1b8] sm:$0xff]
        %v2701 = vld [vmem:[#allocation6 + $0x1c0] sm:$0xff]
        %v2702 = vld [vmem:[#allocation6 + $0x1c8] sm:$0xff]
        %v2703 = vld [vmem:[#allocation6 + $0x1d0] sm:$0xff]
        %v2704 = vld [vmem:[#allocation6 + $0x1d8] sm:$0xff]
        %v2705 = vld [vmem:[#allocation6 + $0x1e0] sm:$0xff]
        %v2706 = vld [vmem:[#allocation6 + $0x1e8] sm:$0xff]
        %v2707 = vld [vmem:[#allocation6 + $0x1f0] sm:$0xff]
        %v2708 = vld [vmem:[#allocation6 + $0x1f8] sm:$0xff]
        %v2709 = vld [vmem:[#allocation6 + $0x200] sm:$0xff]
        %v2710 = vld [vmem:[#allocation6 + $0x208] sm:$0xff]
        %v2711 = vld [vmem:[#allocation6 + $0x210] sm:$0xff]
        %v2712 = vld [vmem:[#allocation6 + $0x218] sm:$0xff]
        %v2713 = vld [vmem:[#allocation6 + $0x220] sm:$0xff]
        %v2714 = vld [vmem:[#allocation6 + $0x228] sm:$0xff]
        %v2715 = vld [vmem:[#allocation6 + $0x230] sm:$0xff]
        %v2716 = vld [vmem:[#allocation6 + $0x238] sm:$0xff]
        %v2717 = vld [vmem:[#allocation6 + $0x240] sm:$0xff]
        %v2718 = vld [vmem:[#allocation6 + $0x248] sm:$0xff]
        %v2719 = vld [vmem:[#allocation6 + $0x250] sm:$0xff]
        %v2720 = vld [vmem:[#allocation6 + $0x258] sm:$0xff]
        %v2721 = vld [vmem:[#allocation6 + $0x260] sm:$0xff]
        %v2722 = vld [vmem:[#allocation6 + $0x268] sm:$0xff]
        %v2723 = vld [vmem:[#allocation6 + $0x270] sm:$0xff]
        %v2724 = vld [vmem:[#allocation6 + $0x278] sm:$0xff]
        %v2725 = vld [vmem:[#allocation6 + $0x280] sm:$0xff]
        %v2726 = vld [vmem:[#allocation6 + $0x288] sm:$0xff]
        %v2727 = vld [vmem:[#allocation6 + $0x290] sm:$0xff]
        %v2728 = vld [vmem:[#allocation6 + $0x298] sm:$0xff]
        %v2729 = vld [vmem:[#allocation6 + $0x2a0] sm:$0xff]
        %v2730 = vld [vmem:[#allocation6 + $0x2a8] sm:$0xff]
        %v2731 = vld [vmem:[#allocation6 + $0x2b0] sm:$0xff]
        %v2732 = vld [vmem:[#allocation6 + $0x2b8] sm:$0xff]
        %v2733 = vld [vmem:[#allocation6 + $0x2c0] sm:$0xff]
        %v2734 = vld [vmem:[#allocation6 + $0x2c8] sm:$0xff]
        %v2735 = vld [vmem:[#allocation6 + $0x2d0] sm:$0xff]
        %v2736 = vld [vmem:[#allocation6 + $0x2d8] sm:$0xff]
        %v2737 = vld [vmem:[#allocation6 + $0x2e0] sm:$0xff]
        %v2738 = vld [vmem:[#allocation6 + $0x2e8] sm:$0xff]
        %v2739 = vld [vmem:[#allocation6 + $0x2f0] sm:$0xff]
        %v2740 = vld [vmem:[#allocation6 + $0x2f8] sm:$0xff]
        %v2741 = vld [vmem:[#allocation6 + $0x300] sm:$0xff]
        %v2742 = vld [vmem:[#allocation6 + $0x308] sm:$0xff]
        %v2743 = vld [vmem:[#allocation6 + $0x310] sm:$0xff]
        %v2744 = vld [vmem:[#allocation6 + $0x318] sm:$0xff]
        %v2745 = vld [vmem:[#allocation6 + $0x320] sm:$0xff]
        %v2746 = vld [vmem:[#allocation6 + $0x328] sm:$0xff]
        %v2747 = vld [vmem:[#allocation6 + $0x330] sm:$0xff]
        %v2748 = vld [vmem:[#allocation6 + $0x338] sm:$0xff]
        %v2749 = vld [vmem:[#allocation6 + $0x340] sm:$0xff]
        %v2750 = vld [vmem:[#allocation6 + $0x348] sm:$0xff]
        %v2751 = vld [vmem:[#allocation6 + $0x350] sm:$0xff]
        %v2752 = vld [vmem:[#allocation6 + $0x358] sm:$0xff]
        %v2753 = vld [vmem:[#allocation6 + $0x360] sm:$0xff]
        %v2754 = vld [vmem:[#allocation6 + $0x368] sm:$0xff]
        %v2755 = vld [vmem:[#allocation6 + $0x370] sm:$0xff]
        %v2756 = vld [vmem:[#allocation6 + $0x378] sm:$0xff]
        %v2757 = vld [vmem:[#allocation6 + $0x380] sm:$0xff]
        %v2758 = vld [vmem:[#allocation6 + $0x388] sm:$0xff]
        %v2759 = vld [vmem:[#allocation6 + $0x390] sm:$0xff]
        %v2760 = vld [vmem:[#allocation6 + $0x398] sm:$0xff]
        %v2761 = vld [vmem:[#allocation6 + $0x3a0] sm:$0xff]
        %v2762 = vld [vmem:[#allocation6 + $0x3a8] sm:$0xff]
        %v2763 = vld [vmem:[#allocation6 + $0x3b0] sm:$0xff]
        %v2764 = vld [vmem:[#allocation6 + $0x3b8] sm:$0xff]
        %v2765 = vld [vmem:[#allocation6 + $0x3c0] sm:$0xff]
        %v2766 = vld [vmem:[#allocation6 + $0x3c8] sm:$0xff]
        %v2767 = vld [vmem:[#allocation6 + $0x3d0] sm:$0xff]
        %v2768 = vld [vmem:[#allocation6 + $0x3d8] sm:$0xff]
        %v2769 = vld [vmem:[#allocation6 + $0x3e0] sm:$0xff]
        %v2770 = vld [vmem:[#allocation6 + $0x3e8] sm:$0xff]
        %v2771 = vld [vmem:[#allocation6 + $0x3f0] sm:$0xff]
        %v2772 = vld [vmem:[#allocation6 + $0x3f8] sm:$0xff]
        %v2901 = vunpack.c.l.b16 %v2645
        %v2902 = vunpack.c.h.b16 %v2645
        %v2903 = vunpack.c.l.b16 %v2646
        %v2904 = vunpack.c.h.b16 %v2646
        %v2905 = vunpack.c.l.b16 %v2647
        %v2906 = vunpack.c.h.b16 %v2647
        %v2907 = vunpack.c.l.b16 %v2648
        %v2908 = vunpack.c.h.b16 %v2648
        %v2909 = vunpack.c.l.b16 %v2649
        %v2910 = vunpack.c.h.b16 %v2649
        %v2911 = vunpack.c.l.b16 %v2650
        %v2912 = vunpack.c.h.b16 %v2650
        %v2913 = vunpack.c.l.b16 %v2651
        %v2914 = vunpack.c.h.b16 %v2651
        %v2915 = vunpack.c.l.b16 %v2652
        %v2916 = vunpack.c.h.b16 %v2652
        %v2917 = vunpack.c.l.b16 %v2653
        %v2918 = vunpack.c.h.b16 %v2653
        %v2919 = vunpack.c.l.b16 %v2654
        %v2920 = vunpack.c.h.b16 %v2654
        %v2921 = vunpack.c.l.b16 %v2655
        %v2922 = vunpack.c.h.b16 %v2655
        %v2923 = vunpack.c.l.b16 %v2656
        %v2924 = vunpack.c.h.b16 %v2656
        %v2925 = vunpack.c.l.b16 %v2657
        %v2926 = vunpack.c.h.b16 %v2657
        %v2927 = vunpack.c.l.b16 %v2658
        %v2928 = vunpack.c.h.b16 %v2658
        %v2929 = vunpack.c.l.b16 %v2659
        %v2930 = vunpack.c.h.b16 %v2659
        %v2931 = vunpack.c.l.b16 %v2660
        %v2932 = vunpack.c.h.b16 %v2660
        %v2933 = vunpack.c.l.b16 %v2661
        %v2934 = vunpack.c.h.b16 %v2661
        %v2935 = vunpack.c.l.b16 %v2662
        %v2936 = vunpack.c.h.b16 %v2662
        %v2937 = vunpack.c.l.b16 %v2663
        %v2938 = vunpack.c.h.b16 %v2663
        %v2939 = vunpack.c.l.b16 %v2664
        %v2940 = vunpack.c.h.b16 %v2664
        %v2941 = vunpack.c.l.b16 %v2665
        %v2942 = vunpack.c.h.b16 %v2665
        %v2943 = vunpack.c.l.b16 %v2666
        %v2944 = vunpack.c.h.b16 %v2666
        %v2945 = vunpack.c.l.b16 %v2667
        %v2946 = vunpack.c.h.b16 %v2667
        %v2947 = vunpack.c.l.b16 %v2668
        %v2948 = vunpack.c.h.b16 %v2668
        %v2949 = vunpack.c.l.b16 %v2669
        %v2950 = vunpack.c.h.b16 %v2669
        %v2951 = vunpack.c.l.b16 %v2670
        %v2952 = vunpack.c.h.b16 %v2670
        %v2953 = vunpack.c.l.b16 %v2671
        %v2954 = vunpack.c.h.b16 %v2671
        %v2955 = vunpack.c.l.b16 %v2672
        %v2956 = vunpack.c.h.b16 %v2672
        %v2957 = vunpack.c.l.b16 %v2673
        %v2958 = vunpack.c.h.b16 %v2673
        %v2959 = vunpack.c.l.b16 %v2674
        %v2960 = vunpack.c.h.b16 %v2674
        %v2961 = vunpack.c.l.b16 %v2675
        %v2962 = vunpack.c.h.b16 %v2675
        %v2963 = vunpack.c.l.b16 %v2676
        %v2964 = vunpack.c.h.b16 %v2676
        %v2965 = vunpack.c.l.b16 %v2677
        %v2966 = vunpack.c.h.b16 %v2677
        %v2967 = vunpack.c.l.b16 %v2678
        %v2968 = vunpack.c.h.b16 %v2678
        %v2969 = vunpack.c.l.b16 %v2679
        %v2970 = vunpack.c.h.b16 %v2679
        %v2971 = vunpack.c.l.b16 %v2680
        %v2972 = vunpack.c.h.b16 %v2680
        %v2973 = vunpack.c.l.b16 %v2681
        %v2974 = vunpack.c.h.b16 %v2681
        %v2975 = vunpack.c.l.b16 %v2682
        %v2976 = vunpack.c.h.b16 %v2682
        %v2977 = vunpack.c.l.b16 %v2683
        %v2978 = vunpack.c.h.b16 %v2683
        %v2979 = vunpack.c.l.b16 %v2684
        %v2980 = vunpack.c.h.b16 %v2684
        %v2981 = vunpack.c.l.b16 %v2685
        %v2982 = vunpack.c.h.b16 %v2685
        %v2983 = vunpack.c.l.b16 %v2686
        %v2984 = vunpack.c.h.b16 %v2686
        %v2985 = vunpack.c.l.b16 %v2687
        %v2986 = vunpack.c.h.b16 %v2687
        %v2987 = vunpack.c.l.b16 %v2688
        %v2988 = vunpack.c.h.b16 %v2688
        %v2989 = vunpack.c.l.b16 %v2689
        %v2990 = vunpack.c.h.b16 %v2689
        %v2991 = vunpack.c.l.b16 %v2690
        %v2992 = vunpack.c.h.b16 %v2690
        %v2993 = vunpack.c.l.b16 %v2691
        %v2994 = vunpack.c.h.b16 %v2691
        %v2995 = vunpack.c.l.b16 %v2692
        %v2996 = vunpack.c.h.b16 %v2692
        %v2997 = vunpack.c.l.b16 %v2693
        %v2998 = vunpack.c.h.b16 %v2693
        %v2999 = vunpack.c.l.b16 %v2694
        %v3000 = vunpack.c.h.b16 %v2694
        %v3001 = vunpack.c.l.b16 %v2695
        %v3002 = vunpack.c.h.b16 %v2695
        %v3003 = vunpack.c.l.b16 %v2696
        %v3004 = vunpack.c.h.b16 %v2696
        %v3005 = vunpack.c.l.b16 %v2697
        %v3006 = vunpack.c.h.b16 %v2697
        %v3007 = vunpack.c.l.b16 %v2698
        %v3008 = vunpack.c.h.b16 %v2698
        %v3009 = vunpack.c.l.b16 %v2699
        %v3010 = vunpack.c.h.b16 %v2699
        %v3011 = vunpack.c.l.b16 %v2700
        %v3012 = vunpack.c.h.b16 %v2700
        %v3013 = vunpack.c.l.b16 %v2701
        %v3014 = vunpack.c.h.b16 %v2701
        %v3015 = vunpack.c.l.b16 %v2702
        %v3016 = vunpack.c.h.b16 %v2702
        %v3017 = vunpack.c.l.b16 %v2703
        %v3018 = vunpack.c.h.b16 %v2703
        %v3019 = vunpack.c.l.b16 %v2704
        %v3020 = vunpack.c.h.b16 %v2704
        %v3021 = vunpack.c.l.b16 %v2705
        %v3022 = vunpack.c.h.b16 %v2705
        %v3023 = vunpack.c.l.b16 %v2706
        %v3024 = vunpack.c.h.b16 %v2706
        %v3025 = vunpack.c.l.b16 %v2707
        %v3026 = vunpack.c.h.b16 %v2707
        %v3027 = vunpack.c.l.b16 %v2708
        %v3028 = vunpack.c.h.b16 %v2708
        %v3029 = vunpack.c.l.b16 %v2709
        %v3030 = vunpack.c.h.b16 %v2709
        %v3031 = vunpack.c.l.b16 %v2710
        %v3032 = vunpack.c.h.b16 %v2710
        %v3033 = vunpack.c.l.b16 %v2711
        %v3034 = vunpack.c.h.b16 %v2711
        %v3035 = vunpack.c.l.b16 %v2712
        %v3036 = vunpack.c.h.b16 %v2712
        %v3037 = vunpack.c.l.b16 %v2713
        %v3038 = vunpack.c.h.b16 %v2713
        %v3039 = vunpack.c.l.b16 %v2714
        %v3040 = vunpack.c.h.b16 %v2714
        %v3041 = vunpack.c.l.b16 %v2715
        %v3042 = vunpack.c.h.b16 %v2715
        %v3043 = vunpack.c.l.b16 %v2716
        %v3044 = vunpack.c.h.b16 %v2716
        %v3045 = vunpack.c.l.b16 %v2717
        %v3046 = vunpack.c.h.b16 %v2717
        %v3047 = vunpack.c.l.b16 %v2718
        %v3048 = vunpack.c.h.b16 %v2718
        %v3049 = vunpack.c.l.b16 %v2719
        %v3050 = vunpack.c.h.b16 %v2719
        %v3051 = vunpack.c.l.b16 %v2720
        %v3052 = vunpack.c.h.b16 %v2720
        %v3053 = vunpack.c.l.b16 %v2721
        %v3054 = vunpack.c.h.b16 %v2721
        %v3055 = vunpack.c.l.b16 %v2722
        %v3056 = vunpack.c.h.b16 %v2722
        %v3057 = vunpack.c.l.b16 %v2723
        %v3058 = vunpack.c.h.b16 %v2723
        %v3059 = vunpack.c.l.b16 %v2724
        %v3060 = vunpack.c.h.b16 %v2724
        %v3061 = vunpack.c.l.b16 %v2725
        %v3062 = vunpack.c.h.b16 %v2725
        %v3063 = vunpack.c.l.b16 %v2726
        %v3064 = vunpack.c.h.b16 %v2726
        %v3065 = vunpack.c.l.b16 %v2727
        %v3066 = vunpack.c.h.b16 %v2727
        %v3067 = vunpack.c.l.b16 %v2728
        %v3068 = vunpack.c.h.b16 %v2728
        %v3069 = vunpack.c.l.b16 %v2729
        %v3070 = vunpack.c.h.b16 %v2729
        %v3071 = vunpack.c.l.b16 %v2730
        %v3072 = vunpack.c.h.b16 %v2730
        %v3073 = vunpack.c.l.b16 %v2731
        %v3074 = vunpack.c.h.b16 %v2731
        %v3075 = vunpack.c.l.b16 %v2732
        %v3076 = vunpack.c.h.b16 %v2732
        %v3077 = vunpack.c.l.b16 %v2733
        %v3078 = vunpack.c.h.b16 %v2733
        %v3079 = vunpack.c.l.b16 %v2734
        %v3080 = vunpack.c.h.b16 %v2734
        %v3081 = vunpack.c.l.b16 %v2735
        %v3082 = vunpack.c.h.b16 %v2735
        %v3083 = vunpack.c.l.b16 %v2736
        %v3084 = vunpack.c.h.b16 %v2736
        %v3085 = vunpack.c.l.b16 %v2737
        %v3086 = vunpack.c.h.b16 %v2737
        %v3087 = vunpack.c.l.b16 %v2738
        %v3088 = vunpack.c.h.b16 %v2738
        %v3089 = vunpack.c.l.b16 %v2739
        %v3090 = vunpack.c.h.b16 %v2739
        %v3091 = vunpack.c.l.b16 %v2740
        %v3092 = vunpack.c.h.b16 %v2740
        %v3093 = vunpack.c.l.b16 %v2741
        %v3094 = vunpack.c.h.b16 %v2741
        %v3095 = vunpack.c.l.b16 %v2742
        %v3096 = vunpack.c.h.b16 %v2742
        %v3097 = vunpack.c.l.b16 %v2743
        %v3098 = vunpack.c.h.b16 %v2743
        %v3099 = vunpack.c.l.b16 %v2744
        %v3100 = vunpack.c.h.b16 %v2744
        %v3101 = vunpack.c.l.b16 %v2745
        %v3102 = vunpack.c.h.b16 %v2745
        %v3103 = vunpack.c.l.b16 %v2746
        %v3104 = vunpack.c.h.b16 %v2746
        %v3105 = vunpack.c.l.b16 %v2747
        %v3106 = vunpack.c.h.b16 %v2747
        %v3107 = vunpack.c.l.b16 %v2748
        %v3108 = vunpack.c.h.b16 %v2748
        %v3109 = vunpack.c.l.b16 %v2749
        %v3110 = vunpack.c.h.b16 %v2749
        %v3111 = vunpack.c.l.b16 %v2750
        %v3112 = vunpack.c.h.b16 %v2750
        %v3113 = vunpack.c.l.b16 %v2751
        %v3114 = vunpack.c.h.b16 %v2751
        %v3115 = vunpack.c.l.b16 %v2752
        %v3116 = vunpack.c.h.b16 %v2752
        %v3117 = vunpack.c.l.b16 %v2753
        %v3118 = vunpack.c.h.b16 %v2753
        %v3119 = vunpack.c.l.b16 %v2754
        %v3120 = vunpack.c.h.b16 %v2754
        %v3121 = vunpack.c.l.b16 %v2755
        %v3122 = vunpack.c.h.b16 %v2755
        %v3123 = vunpack.c.l.b16 %v2756
        %v3124 = vunpack.c.h.b16 %v2756
        %v3125 = vunpack.c.l.b16 %v2757
        %v3126 = vunpack.c.h.b16 %v2757
        %v3127 = vunpack.c.l.b16 %v2758
        %v3128 = vunpack.c.h.b16 %v2758
        %v3129 = vunpack.c.l.b16 %v2759
        %v3130 = vunpack.c.h.b16 %v2759
        %v3131 = vunpack.c.l.b16 %v2760
        %v3132 = vunpack.c.h.b16 %v2760
        %v3133 = vunpack.c.l.b16 %v2761
        %v3134 = vunpack.c.h.b16 %v2761
        %v3135 = vunpack.c.l.b16 %v2762
        %v3136 = vunpack.c.h.b16 %v2762
        %v3137 = vunpack.c.l.b16 %v2763
        %v3138 = vunpack.c.h.b16 %v2763
        %v3139 = vunpack.c.l.b16 %v2764
        %v3140 = vunpack.c.h.b16 %v2764
        %v3141 = vunpack.c.l.b16 %v2765
        %v3142 = vunpack.c.h.b16 %v2765
        %v3143 = vunpack.c.l.b16 %v2766
        %v3144 = vunpack.c.h.b16 %v2766
        %v3145 = vunpack.c.l.b16 %v2767
        %v3146 = vunpack.c.h.b16 %v2767
        %v3147 = vunpack.c.l.b16 %v2768
        %v3148 = vunpack.c.h.b16 %v2768
        %v3149 = vunpack.c.l.b16 %v2769
        %v3150 = vunpack.c.h.b16 %v2769
        %v3151 = vunpack.c.l.b16 %v2770
        %v3152 = vunpack.c.h.b16 %v2770
        %v3153 = vunpack.c.l.b16 %v2771
        %v3154 = vunpack.c.h.b16 %v2771
        %v3155 = vunpack.c.l.b16 %v2772
        %v3156 = vunpack.c.h.b16 %v2772
        %v3157 = vpack.c.b16 %v2909, %v2901
        %v3158 = vpack.c.b16 %v2910, %v2902
        %v3159 = vpack.c.b16 %v2911, %v2903
        %v3160 = vpack.c.b16 %v2912, %v2904
        %v3161 = vpack.c.b16 %v2913, %v2905
        %v3162 = vpack.c.b16 %v2914, %v2906
        %v3163 = vpack.c.b16 %v2915, %v2907
        %v3164 = vpack.c.b16 %v2916, %v2908
        %v3165 = vpack.c.b16 %v2925, %v2917
        %v3166 = vpack.c.b16 %v2926, %v2918
        %v3167 = vpack.c.b16 %v2927, %v2919
        %v3168 = vpack.c.b16 %v2928, %v2920
        %v3169 = vpack.c.b16 %v2929, %v2921
        %v3170 = vpack.c.b16 %v2930, %v2922
        %v3171 = vpack.c.b16 %v2931, %v2923
        %v3172 = vpack.c.b16 %v2932, %v2924
        %v3173 = vpack.c.b16 %v2941, %v2933
        %v3174 = vpack.c.b16 %v2942, %v2934
        %v3175 = vpack.c.b16 %v2943, %v2935
        %v3176 = vpack.c.b16 %v2944, %v2936
        %v3177 = vpack.c.b16 %v2945, %v2937
        %v3178 = vpack.c.b16 %v2946, %v2938
        %v3179 = vpack.c.b16 %v2947, %v2939
        %v3180 = vpack.c.b16 %v2948, %v2940
        %v3181 = vpack.c.b16 %v2957, %v2949
        %v3182 = vpack.c.b16 %v2958, %v2950
        %v3183 = vpack.c.b16 %v2959, %v2951
        %v3184 = vpack.c.b16 %v2960, %v2952
        %v3185 = vpack.c.b16 %v2961, %v2953
        %v3186 = vpack.c.b16 %v2962, %v2954
        %v3187 = vpack.c.b16 %v2963, %v2955
        %v3188 = vpack.c.b16 %v2964, %v2956
        %v3189 = vpack.c.b16 %v2973, %v2965
        %v3190 = vpack.c.b16 %v2974, %v2966
        %v3191 = vpack.c.b16 %v2975, %v2967
        %v3192 = vpack.c.b16 %v2976, %v2968
        %v3193 = vpack.c.b16 %v2977, %v2969
        %v3194 = vpack.c.b16 %v2978, %v2970
        %v3195 = vpack.c.b16 %v2979, %v2971
        %v3196 = vpack.c.b16 %v2980, %v2972
        %v3197 = vpack.c.b16 %v2989, %v2981
        %v3198 = vpack.c.b16 %v2990, %v2982
        %v3199 = vpack.c.b16 %v2991, %v2983
        %v3200 = vpack.c.b16 %v2992, %v2984
        %v3201 = vpack.c.b16 %v2993, %v2985
        %v3202 = vpack.c.b16 %v2994, %v2986
        %v3203 = vpack.c.b16 %v2995, %v2987
        %v3204 = vpack.c.b16 %v2996, %v2988
        %v3205 = vpack.c.b16 %v3005, %v2997
        %v3206 = vpack.c.b16 %v3006, %v2998
        %v3207 = vpack.c.b16 %v3007, %v2999
        %v3208 = vpack.c.b16 %v3008, %v3000
        %v3209 = vpack.c.b16 %v3009, %v3001
        %v3210 = vpack.c.b16 %v3010, %v3002
        %v3211 = vpack.c.b16 %v3011, %v3003
        %v3212 = vpack.c.b16 %v3012, %v3004
        %v3213 = vpack.c.b16 %v3021, %v3013
        %v3214 = vpack.c.b16 %v3022, %v3014
        %v3215 = vpack.c.b16 %v3023, %v3015
        %v3216 = vpack.c.b16 %v3024, %v3016
        %v3217 = vpack.c.b16 %v3025, %v3017
        %v3218 = vpack.c.b16 %v3026, %v3018
        %v3219 = vpack.c.b16 %v3027, %v3019
        %v3220 = vpack.c.b16 %v3028, %v3020
        %v3221 = vpack.c.b16 %v3037, %v3029
        %v3222 = vpack.c.b16 %v3038, %v3030
        %v3223 = vpack.c.b16 %v3039, %v3031
        %v3224 = vpack.c.b16 %v3040, %v3032
        %v3225 = vpack.c.b16 %v3041, %v3033
        %v3226 = vpack.c.b16 %v3042, %v3034
        %v3227 = vpack.c.b16 %v3043, %v3035
        %v3228 = vpack.c.b16 %v3044, %v3036
        %v3229 = vpack.c.b16 %v3053, %v3045
        %v3230 = vpack.c.b16 %v3054, %v3046
        %v3231 = vpack.c.b16 %v3055, %v3047
        %v3232 = vpack.c.b16 %v3056, %v3048
        %v3233 = vpack.c.b16 %v3057, %v3049
        %v3234 = vpack.c.b16 %v3058, %v3050
        %v3235 = vpack.c.b16 %v3059, %v3051
        %v3236 = vpack.c.b16 %v3060, %v3052
        %v3237 = vpack.c.b16 %v3069, %v3061
        %v3238 = vpack.c.b16 %v3070, %v3062
        %v3239 = vpack.c.b16 %v3071, %v3063
        %v3240 = vpack.c.b16 %v3072, %v3064
        %v3241 = vpack.c.b16 %v3073, %v3065
        %v3242 = vpack.c.b16 %v3074, %v3066
        %v3243 = vpack.c.b16 %v3075, %v3067
        %v3244 = vpack.c.b16 %v3076, %v3068
        %v3245 = vpack.c.b16 %v3085, %v3077
        %v3246 = vpack.c.b16 %v3086, %v3078
        %v3247 = vpack.c.b16 %v3087, %v3079
        %v3248 = vpack.c.b16 %v3088, %v3080
        %v3249 = vpack.c.b16 %v3089, %v3081
        %v3250 = vpack.c.b16 %v3090, %v3082
        %v3251 = vpack.c.b16 %v3091, %v3083
        %v3252 = vpack.c.b16 %v3092, %v3084
        %v3253 = vpack.c.b16 %v3101, %v3093
        %v3254 = vpack.c.b16 %v3102, %v3094
        %v3255 = vpack.c.b16 %v3103, %v3095
        %v3256 = vpack.c.b16 %v3104, %v3096
        %v3257 = vpack.c.b16 %v3105, %v3097
        %v3258 = vpack.c.b16 %v3106, %v3098
        %v3259 = vpack.c.b16 %v3107, %v3099
        %v3260 = vpack.c.b16 %v3108, %v3100
        %v3261 = vpack.c.b16 %v3117, %v3109
        %v3262 = vpack.c.b16 %v3118, %v3110
        %v3263 = vpack.c.b16 %v3119, %v3111
        %v3264 = vpack.c.b16 %v3120, %v3112
        %v3265 = vpack.c.b16 %v3121, %v3113
        %v3266 = vpack.c.b16 %v3122, %v3114
        %v3267 = vpack.c.b16 %v3123, %v3115
        %v3268 = vpack.c.b16 %v3124, %v3116
        %v3269 = vpack.c.b16 %v3133, %v3125
        %v3270 = vpack.c.b16 %v3134, %v3126
        %v3271 = vpack.c.b16 %v3135, %v3127
        %v3272 = vpack.c.b16 %v3136, %v3128
        %v3273 = vpack.c.b16 %v3137, %v3129
        %v3274 = vpack.c.b16 %v3138, %v3130
        %v3275 = vpack.c.b16 %v3139, %v3131
        %v3276 = vpack.c.b16 %v3140, %v3132
        %v3277 = vpack.c.b16 %v3149, %v3141
        %v3278 = vpack.c.b16 %v3150, %v3142
        %v3279 = vpack.c.b16 %v3151, %v3143
        %v3280 = vpack.c.b16 %v3152, %v3144
        %v3281 = vpack.c.b16 %v3153, %v3145
        %v3282 = vpack.c.b16 %v3154, %v3146
        %v3283 = vpack.c.b16 %v3155, %v3147
        %v3284 = vpack.c.b16 %v3156, %v3148
        %3413 = vmatprep.subr.bf16.mxu0 %v3158
        %3414 = vmatpush1.bf16.msra.mxu0 %v3157
        %3415 = vmatprep.subr.bf16.mxu0 %v3166
        %3416 = vmatpush1.bf16.msra.mxu0 %v3165
        %3417 = vmatprep.subr.bf16.mxu0 %v3174
        %3418 = vmatpush1.bf16.msra.mxu0 %v3173
        %3419 = vmatprep.subr.bf16.mxu0 %v3182
        %3420 = vmatpush1.bf16.msra.mxu0 %v3181
        %3421 = vmatprep.subr.bf16.mxu0 %v3190
        %3422 = vmatpush1.bf16.msra.mxu0 %v3189
        %3423 = vmatprep.subr.bf16.mxu0 %v3198
        %3424 = vmatpush1.bf16.msra.mxu0 %v3197
        %3425 = vmatprep.subr.bf16.mxu0 %v3206
        %3426 = vmatpush1.bf16.msra.mxu0 %v3205
        %3427 = vmatprep.subr.bf16.mxu0 %v3214
        %3428 = vmatpush1.bf16.msra.mxu0 %v3213
        %3429 = vmatprep.subr.bf16.mxu0 %v3222
        %3430 = vmatpush1.bf16.msra.mxu0 %v3221
        %3431 = vmatprep.subr.bf16.mxu0 %v3230
        %3432 = vmatpush1.bf16.msra.mxu0 %v3229
        %3433 = vmatprep.subr.bf16.mxu0 %v3238
        %3434 = vmatpush1.bf16.msra.mxu0 %v3237
        %3435 = vmatprep.subr.bf16.mxu0 %v3246
        %3436 = vmatpush1.bf16.msra.mxu0 %v3245
        %3437 = vmatprep.subr.bf16.mxu0 %v3254
        %3438 = vmatpush1.bf16.msra.mxu0 %v3253
        %3439 = vmatprep.subr.bf16.mxu0 %v3262
        %3440 = vmatpush1.bf16.msra.mxu0 %v3261
        %3441 = vmatprep.subr.bf16.mxu0 %v3270
        %3442 = vmatpush1.bf16.msra.mxu0 %v3269
        %3443 = vmatprep.subr.bf16.mxu0 %v3278
        %3444 = vmatpush1.bf16.msra.mxu0 %v3277
        %3445 = vmatprep.mubr.bf16.mxu0 %v2629
        %3446 = vmatmul.mubr.bf16.gmra.mrb[0].mxu0 %v2628
        %v3447 = vpop.f32.mrb[0].mxu0
        %v3448 = vadd.f32 0.0, %v3447
        %v3449 = vpop.f32.mrb[0].mxu0
        %v3450 = vadd.f32 0.0, %v3449
        %v3451 = vpop.f32.mrb[0].mxu0
        %v3452 = vpop.f32.mrb[0].mxu0
        %3453 = vdwg.mxu0
        %3454 = vmatprep.subr.bf16.mxu0 %v3160
        %3455 = vmatpush1.bf16.msra.mxu0 %v3159
        %3456 = vmatprep.subr.bf16.mxu0 %v3168
        %3457 = vmatpush1.bf16.msra.mxu0 %v3167
        %3458 = vmatprep.subr.bf16.mxu0 %v3176
        %3459 = vmatpush1.bf16.msra.mxu0 %v3175
        %3460 = vmatprep.subr.bf16.mxu0 %v3184
        %3461 = vmatpush1.bf16.msra.mxu0 %v3183
        %3462 = vmatprep.subr.bf16.mxu0 %v3192
        %3463 = vmatpush1.bf16.msra.mxu0 %v3191
        %3464 = vmatprep.subr.bf16.mxu0 %v3200
        %3465 = vmatpush1.bf16.msra.mxu0 %v3199
        %3466 = vmatprep.subr.bf16.mxu0 %v3208
        %3467 = vmatpush1.bf16.msra.mxu0 %v3207
        %3468 = vmatprep.subr.bf16.mxu0 %v3216
        %3469 = vmatpush1.bf16.msra.mxu0 %v3215
        %3470 = vmatprep.subr.bf16.mxu0 %v3224
        %3471 = vmatpush1.bf16.msra.mxu0 %v3223
        %3472 = vmatprep.subr.bf16.mxu0 %v3232
        %3473 = vmatpush1.bf16.msra.mxu0 %v3231
        %3474 = vmatprep.subr.bf16.mxu0 %v3240
        %3475 = vmatpush1.bf16.msra.mxu0 %v3239
        %3476 = vmatprep.subr.bf16.mxu0 %v3248
        %3477 = vmatpush1.bf16.msra.mxu0 %v3247
        %3478 = vmatprep.subr.bf16.mxu0 %v3256
        %3479 = vmatpush1.bf16.msra.mxu0 %v3255
        %3480 = vmatprep.subr.bf16.mxu0 %v3264
        %3481 = vmatpush1.bf16.msra.mxu0 %v3263
        %3482 = vmatprep.subr.bf16.mxu0 %v3272
        %3483 = vmatpush1.bf16.msra.mxu0 %v3271
        %3484 = vmatprep.subr.bf16.mxu0 %v3280
        %3485 = vmatpush1.bf16.msra.mxu0 %v3279
        %3486 = vmatprep.mubr.bf16.mxu0 %v2629
        %3487 = vmatmul.mubr.bf16.gmra.mrb[0].mxu0 %v2628
        %v3488 = vpop.f32.mrb[0].mxu0
        %v3489 = vadd.f32 0.0, %v3488
        %v3490 = vpop.f32.mrb[0].mxu0
        %v3491 = vadd.f32 0.0, %v3490
        %v3492 = vpop.f32.mrb[0].mxu0
        %v3493 = vpop.f32.mrb[0].mxu0
        %3494 = vdwg.mxu0
        %3495 = vmatprep.subr.bf16.mxu0 %v3162
        %3496 = vmatpush1.bf16.msra.mxu0 %v3161
        %3497 = vmatprep.subr.bf16.mxu0 %v3170
        %3498 = vmatpush1.bf16.msra.mxu0 %v3169
        %3499 = vmatprep.subr.bf16.mxu0 %v3178
        %3500 = vmatpush1.bf16.msra.mxu0 %v3177
        %3501 = vmatprep.subr.bf16.mxu0 %v3186
        %3502 = vmatpush1.bf16.msra.mxu0 %v3185
        %3503 = vmatprep.subr.bf16.mxu0 %v3194
        %3504 = vmatpush1.bf16.msra.mxu0 %v3193
        %3505 = vmatprep.subr.bf16.mxu0 %v3202
        %3506 = vmatpush1.bf16.msra.mxu0 %v3201
        %3507 = vmatprep.subr.bf16.mxu0 %v3210
        %3508 = vmatpush1.bf16.msra.mxu0 %v3209
        %3509 = vmatprep.subr.bf16.mxu0 %v3218
        %3510 = vmatpush1.bf16.msra.mxu0 %v3217
        %3511 = vmatprep.subr.bf16.mxu0 %v3226
        %3512 = vmatpush1.bf16.msra.mxu0 %v3225
        %3513 = vmatprep.subr.bf16.mxu0 %v3234
        %3514 = vmatpush1.bf16.msra.mxu0 %v3233
        %3515 = vmatprep.subr.bf16.mxu0 %v3242
        %3516 = vmatpush1.bf16.msra.mxu0 %v3241
        %3517 = vmatprep.subr.bf16.mxu0 %v3250
        %3518 = vmatpush1.bf16.msra.mxu0 %v3249
        %3519 = vmatprep.subr.bf16.mxu0 %v3258
        %3520 = vmatpush1.bf16.msra.mxu0 %v3257
        %3521 = vmatprep.subr.bf16.mxu0 %v3266
        %3522 = vmatpush1.bf16.msra.mxu0 %v3265
        %3523 = vmatprep.subr.bf16.mxu0 %v3274
        %3524 = vmatpush1.bf16.msra.mxu0 %v3273
        %3525 = vmatprep.subr.bf16.mxu0 %v3282
        %3526 = vmatpush1.bf16.msra.mxu0 %v3281
        %3527 = vmatprep.mubr.bf16.mxu0 %v2629
        %3528 = vmatmul.mubr.bf16.gmra.mrb[0].mxu0 %v2628
        %v3529 = vpop.f32.mrb[0].mxu0
        %v3530 = vadd.f32 0.0, %v3529
        %v3531 = vpop.f32.mrb[0].mxu0
        %v3532 = vadd.f32 0.0, %v3531
        %v3533 = vpop.f32.mrb[0].mxu0
        %v3534 = vpop.f32.mrb[0].mxu0
        %3535 = vdwg.mxu0
        %3536 = vmatprep.subr.bf16.mxu0 %v3164
        %3537 = vmatpush1.bf16.msra.mxu0 %v3163
        %3538 = vmatprep.subr.bf16.mxu0 %v3172
        %3539 = vmatpush1.bf16.msra.mxu0 %v3171
        %3540 = vmatprep.subr.bf16.mxu0 %v3180
        %3541 = vmatpush1.bf16.msra.mxu0 %v3179
        %3542 = vmatprep.subr.bf16.mxu0 %v3188
        %3543 = vmatpush1.bf16.msra.mxu0 %v3187
        %3544 = vmatprep.subr.bf16.mxu0 %v3196
        %3545 = vmatpush1.bf16.msra.mxu0 %v3195
        %3546 = vmatprep.subr.bf16.mxu0 %v3204
        %3547 = vmatpush1.bf16.msra.mxu0 %v3203
        %3548 = vmatprep.subr.bf16.mxu0 %v3212
        %3549 = vmatpush1.bf16.msra.mxu0 %v3211
        %3550 = vmatprep.subr.bf16.mxu0 %v3220
        %3551 = vmatpush1.bf16.msra.mxu0 %v3219
        %3552 = vmatprep.subr.bf16.mxu0 %v3228
        %3553 = vmatpush1.bf16.msra.mxu0 %v3227
        %3554 = vmatprep.subr.bf16.mxu0 %v3236
        %3555 = vmatpush1.bf16.msra.mxu0 %v3235
        %3556 = vmatprep.subr.bf16.mxu0 %v3244
        %3557 = vmatpush1.bf16.msra.mxu0 %v3243
        %3558 = vmatprep.subr.bf16.mxu0 %v3252
        %3559 = vmatpush1.bf16.msra.mxu0 %v3251
        %3560 = vmatprep.subr.bf16.mxu0 %v3260
        %3561 = vmatpush1.bf16.msra.mxu0 %v3259
        %3562 = vmatprep.subr.bf16.mxu0 %v3268
        %3563 = vmatpush1.bf16.msra.mxu0 %v3267
        %3564 = vmatprep.subr.bf16.mxu0 %v3276
        %3565 = vmatpush1.bf16.msra.mxu0 %v3275
        %3566 = vmatprep.subr.bf16.mxu0 %v3284
        %3567 = vmatpush1.bf16.msra.mxu0 %v3283
        %3568 = vmatprep.mubr.bf16.mxu0 %v2629
        %3569 = vmatmul.mubr.bf16.gmra.mrb[0].mxu0 %v2628
        %v3570 = vpop.f32.mrb[0].mxu0
        %v3571 = vadd.f32 0.0, %v3570
        %v3572 = vpop.f32.mrb[0].mxu0
        %v3573 = vadd.f32 0.0, %v3572
        %v3574 = vpop.f32.mrb[0].mxu0
        %v3575 = vpop.f32.mrb[0].mxu0
        %3576 = vdwg.mxu0
        %v3581 = vcombine.low %v3448, %v3450
        %v3582 = vcombine.low %v3489, %v3491
        %v3584 = vunpack.c.l.s4 1983009808
        %v3585 = vunpack.c.0.s8 %v3584
        %v3586 = vlaneseq
        %v3587 = vshrl.u32 %v3586, 7
        %v3588 = vsub.s32 %v3585, %v3587
        %v3589 = vrot.slane %v3581, %v3588
        %v3591 = vunpack.c.l.s4 1983009808
        %v3592 = vunpack.c.0.s8 %v3591
        %v3593 = vlaneseq
        %v3594 = vshrl.u32 %v3593, 7
        %v3595 = vsub.s32 %v3592, %v3594
        %v3596 = vrot.slane %v3582, %v3595
        %v3597 = vcombine.low %v3589, %v3596
        %v3599 = vadd.f32 %v2641, %v3597
        %v3604 = vcombine.low %v3530, %v3532
        %v3605 = vcombine.low %v3571, %v3573
        %v3607 = vunpack.c.l.s4 1983009808
        %v3608 = vunpack.c.0.s8 %v3607
        %v3609 = vlaneseq
        %v3610 = vshrl.u32 %v3609, 7
        %v3611 = vsub.s32 %v3608, %v3610
        %v3612 = vrot.slane %v3604, %v3611
        %v3614 = vunpack.c.l.s4 1983009808
        %v3615 = vunpack.c.0.s8 %v3614
        %v3616 = vlaneseq
        %v3617 = vshrl.u32 %v3616, 7
        %v3618 = vsub.s32 %v3615, %v3617
        %v3619 = vrot.slane %v3605, %v3618
        %v3620 = vcombine.low %v3612, %v3619
        %v3622 = vadd.f32 %v2644, %v3620
        %v3623 = vxor.u32 %v3599, 2147483648
        %v3624 = vmul.f32 %v3623, 1.442695
        %v3625 = vpow.pop %v3624
        %v3626 = vadd.f32 %v3625, 1.0
        %v3627 = vrcp.pop %v3626
        %v3628 = vmul.f32 1.0, %v3627
        %v3630 = vrot.slane %v3599, 2
        %v3632 = vxor.u32 %v3630, 2147483648
        %v3633 = vmul.f32 %v3632, 1.442695
        %v3634 = vpow.pop %v3633
        %v3635 = vadd.f32 %v3634, 1.0
        %v3636 = vrcp.pop %v3635
        %v3637 = vmul.f32 1.0, %v3636
        %v3638 = vrot.slane %v3599, 4
        %v3640 = vtanh.pop %v3638
        %v3641 = vrot.slane %v3599, 6
        %v3643 = vxor.u32 %v3641, 2147483648
        %v3644 = vmul.f32 %v3643, 1.442695
        %v3645 = vpow.pop %v3644
        %v3646 = vadd.f32 %v3645, 1.0
        %v3647 = vrcp.pop %v3646
        %v3648 = vmul.f32 1.0, %v3647
        %v3649 = vmul.f32 %v3637, %v2630
        %v3650 = vmul.f32 %v3628, %v3640
        %v3651 = vadd.f32 %v3649, %v3650
        %v3652 = vtanh.pop %v3651
        %v3653 = vmul.f32 %v3648, %v3652
        %v3654 = vxor.u32 %v3622, 2147483648
        %v3655 = vmul.f32 %v3654, 1.442695
        %v3656 = vpow.pop %v3655
        %v3657 = vadd.f32 %v3656, 1.0
        %v3658 = vrcp.pop %v3657
        %v3659 = vmul.f32 1.0, %v3658
        %v3661 = vrot.slane %v3622, 2
        %v3663 = vxor.u32 %v3661, 2147483648
        %v3664 = vmul.f32 %v3663, 1.442695
        %v3665 = vpow.pop %v3664
        %v3666 = vadd.f32 %v3665, 1.0
        %v3667 = vrcp.pop %v3666
        %v3668 = vmul.f32 1.0, %v3667
        %v3669 = vrot.slane %v3622, 4
        %v3671 = vtanh.pop %v3669
        %v3672 = vrot.slane %v3622, 6
        %v3674 = vxor.u32 %v3672, 2147483648
        %v3675 = vmul.f32 %v3674, 1.442695
        %v3676 = vpow.pop %v3675
        %v3677 = vadd.f32 %v3676, 1.0
        %v3678 = vrcp.pop %v3677
        %v3679 = vmul.f32 1.0, %v3678
        %v3680 = vmul.f32 %v3668, %v2631
        %v3681 = vmul.f32 %v3659, %v3671
        %v3682 = vadd.f32 %v3680, %v3681
        %v3683 = vtanh.pop %v3682
        %v3684 = vmul.f32 %v3679, %v3683
        %s3685 = ssub.s32 5, %s457
        %v3686 = vstv %s2638
        %v3687 = vstv %s3685
        %v3688 = vsel %vm455, %v3686, %v3687
        %v3689 = vsel %vm456, %v3686, %v3687
        %vm3690 = vcmp.lt.s32.totalorder %v3688, %v1540
        %vm3691 = vcmp.lt.s32.totalorder %v3689, %v1540
        %v3692 = vsel %vm3690, %v3653, 0.0
        %v3693 = vsel %vm3691, %v3684, 0.0
        %v3694 = vpack.c.bf16 %v3653, %v3653
        %v3695 = vpack.c.bf16 %v3684, %v3684
        %vm3696 = vmpackc.low %vm3690, %vm3690
        %vm3697 = vmpackc.low %vm3691, %vm3691
        %v3698 = vsel %vm3696, %v3694, %v2628
        %v3699 = vsel %vm3697, %v3695, %v2629
        %v3700 = vsel %vm3690, %v3651, %v2630
        %v3701 = vsel %vm3691, %v3682, %v2631
        %v3702 = vpack.c.bf16 %v3692, %v3692
        %s3703 = scalar_lea.vmem %s432, 2
        %3704 = vst [vmem:[%s3703] sm:$0x1] %v3702
        %v3705 = vpack.c.bf16 %v3693, %v3693
        %s3706 = scalar_lea.vmem %s441, 1
        %3707 = vst [vmem:[%s3706] sm:$0x1] %v3705
        %s3708 = sadd.s32 %s457, 3
        %s3709 = scalar_lea.vmem %s365, 12 [#allocation4]
        %v3710 = vld [vmem:[%s3709] sm:$0xf]
        %v3711 = vunpack.c.l.bf16 %v3710
        %v3712 = vld [vmem:[%s372] sm:$0xf]
        %v3713 = vunpack.c.l.bf16 %v3712
        %v3714 = vld [vmem:[#allocation6] sm:$0xff]
        %v3715 = vld [vmem:[#allocation6 + $0x8] sm:$0xff]
        %v3716 = vld [vmem:[#allocation6 + $0x10] sm:$0xff]
        %v3717 = vld [vmem:[#allocation6 + $0x18] sm:$0xff]
        %v3718 = vld [vmem:[#allocation6 + $0x20] sm:$0xff]
        %v3719 = vld [vmem:[#allocation6 + $0x28] sm:$0xff]
        %v3720 = vld [vmem:[#allocation6 + $0x30] sm:$0xff]
        %v3721 = vld [vmem:[#allocation6 + $0x38] sm:$0xff]
        %v3722 = vld [vmem:[#allocation6 + $0x40] sm:$0xff]
        %v3723 = vld [vmem:[#allocation6 + $0x48] sm:$0xff]
        %v3724 = vld [vmem:[#allocation6 + $0x50] sm:$0xff]
        %v3725 = vld [vmem:[#allocation6 + $0x58] sm:$0xff]
        %v3726 = vld [vmem:[#allocation6 + $0x60] sm:$0xff]
        %v3727 = vld [vmem:[#allocation6 + $0x68] sm:$0xff]
        %v3728 = vld [vmem:[#allocation6 + $0x70] sm:$0xff]
        %v3729 = vld [vmem:[#allocation6 + $0x78] sm:$0xff]
        %v3730 = vld [vmem:[#allocation6 + $0x80] sm:$0xff]
        %v3731 = vld [vmem:[#allocation6 + $0x88] sm:$0xff]
        %v3732 = vld [vmem:[#allocation6 + $0x90] sm:$0xff]
        %v3733 = vld [vmem:[#allocation6 + $0x98] sm:$0xff]
        %v3734 = vld [vmem:[#allocation6 + $0xa0] sm:$0xff]
        %v3735 = vld [vmem:[#allocation6 + $0xa8] sm:$0xff]
        %v3736 = vld [vmem:[#allocation6 + $0xb0] sm:$0xff]
        %v3737 = vld [vmem:[#allocation6 + $0xb8] sm:$0xff]
        %v3738 = vld [vmem:[#allocation6 + $0xc0] sm:$0xff]
        %v3739 = vld [vmem:[#allocation6 + $0xc8] sm:$0xff]
        %v3740 = vld [vmem:[#allocation6 + $0xd0] sm:$0xff]
        %v3741 = vld [vmem:[#allocation6 + $0xd8] sm:$0xff]
        %v3742 = vld [vmem:[#allocation6 + $0xe0] sm:$0xff]
        %v3743 = vld [vmem:[#allocation6 + $0xe8] sm:$0xff]
        %v3744 = vld [vmem:[#allocation6 + $0xf0] sm:$0xff]
        %v3745 = vld [vmem:[#allocation6 + $0xf8] sm:$0xff]
        %v3746 = vld [vmem:[#allocation6 + $0x100] sm:$0xff]
        %v3747 = vld [vmem:[#allocation6 + $0x108] sm:$0xff]
        %v3748 = vld [vmem:[#allocation6 + $0x110] sm:$0xff]
        %v3749 = vld [vmem:[#allocation6 + $0x118] sm:$0xff]
        %v3750 = vld [vmem:[#allocation6 + $0x120] sm:$0xff]
        %v3751 = vld [vmem:[#allocation6 + $0x128] sm:$0xff]
        %v3752 = vld [vmem:[#allocation6 + $0x130] sm:$0xff]
        %v3753 = vld [vmem:[#allocation6 + $0x138] sm:$0xff]
        %v3754 = vld [vmem:[#allocation6 + $0x140] sm:$0xff]
        %v3755 = vld [vmem:[#allocation6 + $0x148] sm:$0xff]
        %v3756 = vld [vmem:[#allocation6 + $0x150] sm:$0xff]
        %v3757 = vld [vmem:[#allocation6 + $0x158] sm:$0xff]
        %v3758 = vld [vmem:[#allocation6 + $0x160] sm:$0xff]
        %v3759 = vld [vmem:[#allocation6 + $0x168] sm:$0xff]
        %v3760 = vld [vmem:[#allocation6 + $0x170] sm:$0xff]
        %v3761 = vld [vmem:[#allocation6 + $0x178] sm:$0xff]
        %v3762 = vld [vmem:[#allocation6 + $0x180] sm:$0xff]
        %v3763 = vld [vmem:[#allocation6 + $0x188] sm:$0xff]
        %v3764 = vld [vmem:[#allocation6 + $0x190] sm:$0xff]
        %v3765 = vld [vmem:[#allocation6 + $0x198] sm:$0xff]
        %v3766 = vld [vmem:[#allocation6 + $0x1a0] sm:$0xff]
        %v3767 = vld [vmem:[#allocation6 + $0x1a8] sm:$0xff]
        %v3768 = vld [vmem:[#allocation6 + $0x1b0] sm:$0xff]
        %v3769 = vld [vmem:[#allocation6 + $0x1b8] sm:$0xff]
        %v3770 = vld [vmem:[#allocation6 + $0x1c0] sm:$0xff]
        %v3771 = vld [vmem:[#allocation6 + $0x1c8] sm:$0xff]
        %v3772 = vld [vmem:[#allocation6 + $0x1d0] sm:$0xff]
        %v3773 = vld [vmem:[#allocation6 + $0x1d8] sm:$0xff]
        %v3774 = vld [vmem:[#allocation6 + $0x1e0] sm:$0xff]
        %v3775 = vld [vmem:[#allocation6 + $0x1e8] sm:$0xff]
        %v3776 = vld [vmem:[#allocation6 + $0x1f0] sm:$0xff]
        %v3777 = vld [vmem:[#allocation6 + $0x1f8] sm:$0xff]
        %v3778 = vld [vmem:[#allocation6 + $0x200] sm:$0xff]
        %v3779 = vld [vmem:[#allocation6 + $0x208] sm:$0xff]
        %v3780 = vld [vmem:[#allocation6 + $0x210] sm:$0xff]
        %v3781 = vld [vmem:[#allocation6 + $0x218] sm:$0xff]
        %v3782 = vld [vmem:[#allocation6 + $0x220] sm:$0xff]
        %v3783 = vld [vmem:[#allocation6 + $0x228] sm:$0xff]
        %v3784 = vld [vmem:[#allocation6 + $0x230] sm:$0xff]
        %v3785 = vld [vmem:[#allocation6 + $0x238] sm:$0xff]
        %v3786 = vld [vmem:[#allocation6 + $0x240] sm:$0xff]
        %v3787 = vld [vmem:[#allocation6 + $0x248] sm:$0xff]
        %v3788 = vld [vmem:[#allocation6 + $0x250] sm:$0xff]
        %v3789 = vld [vmem:[#allocation6 + $0x258] sm:$0xff]
        %v3790 = vld [vmem:[#allocation6 + $0x260] sm:$0xff]
        %v3791 = vld [vmem:[#allocation6 + $0x268] sm:$0xff]
        %v3792 = vld [vmem:[#allocation6 + $0x270] sm:$0xff]
        %v3793 = vld [vmem:[#allocation6 + $0x278] sm:$0xff]
        %v3794 = vld [vmem:[#allocation6 + $0x280] sm:$0xff]
        %v3795 = vld [vmem:[#allocation6 + $0x288] sm:$0xff]
        %v3796 = vld [vmem:[#allocation6 + $0x290] sm:$0xff]
        %v3797 = vld [vmem:[#allocation6 + $0x298] sm:$0xff]
        %v3798 = vld [vmem:[#allocation6 + $0x2a0] sm:$0xff]
        %v3799 = vld [vmem:[#allocation6 + $0x2a8] sm:$0xff]
        %v3800 = vld [vmem:[#allocation6 + $0x2b0] sm:$0xff]
        %v3801 = vld [vmem:[#allocation6 + $0x2b8] sm:$0xff]
        %v3802 = vld [vmem:[#allocation6 + $0x2c0] sm:$0xff]
        %v3803 = vld [vmem:[#allocation6 + $0x2c8] sm:$0xff]
        %v3804 = vld [vmem:[#allocation6 + $0x2d0] sm:$0xff]
        %v3805 = vld [vmem:[#allocation6 + $0x2d8] sm:$0xff]
        %v3806 = vld [vmem:[#allocation6 + $0x2e0] sm:$0xff]
        %v3807 = vld [vmem:[#allocation6 + $0x2e8] sm:$0xff]
        %v3808 = vld [vmem:[#allocation6 + $0x2f0] sm:$0xff]
        %v3809 = vld [vmem:[#allocation6 + $0x2f8] sm:$0xff]
        %v3810 = vld [vmem:[#allocation6 + $0x300] sm:$0xff]
        %v3811 = vld [vmem:[#allocation6 + $0x308] sm:$0xff]
        %v3812 = vld [vmem:[#allocation6 + $0x310] sm:$0xff]
        %v3813 = vld [vmem:[#allocation6 + $0x318] sm:$0xff]
        %v3814 = vld [vmem:[#allocation6 + $0x320] sm:$0xff]
        %v3815 = vld [vmem:[#allocation6 + $0x328] sm:$0xff]
        %v3816 = vld [vmem:[#allocation6 + $0x330] sm:$0xff]
        %v3817 = vld [vmem:[#allocation6 + $0x338] sm:$0xff]
        %v3818 = vld [vmem:[#allocation6 + $0x340] sm:$0xff]
        %v3819 = vld [vmem:[#allocation6 + $0x348] sm:$0xff]
        %v3820 = vld [vmem:[#allocation6 + $0x350] sm:$0xff]
        %v3821 = vld [vmem:[#allocation6 + $0x358] sm:$0xff]
        %v3822 = vld [vmem:[#allocation6 + $0x360] sm:$0xff]
        %v3823 = vld [vmem:[#allocation6 + $0x368] sm:$0xff]
        %v3824 = vld [vmem:[#allocation6 + $0x370] sm:$0xff]
        %v3825 = vld [vmem:[#allocation6 + $0x378] sm:$0xff]
        %v3826 = vld [vmem:[#allocation6 + $0x380] sm:$0xff]
        %v3827 = vld [vmem:[#allocation6 + $0x388] sm:$0xff]
        %v3828 = vld [vmem:[#allocation6 + $0x390] sm:$0xff]
        %v3829 = vld [vmem:[#allocation6 + $0x398] sm:$0xff]
        %v3830 = vld [vmem:[#allocation6 + $0x3a0] sm:$0xff]
        %v3831 = vld [vmem:[#allocation6 + $0x3a8] sm:$0xff]
        %v3832 = vld [vmem:[#allocation6 + $0x3b0] sm:$0xff]
        %v3833 = vld [vmem:[#allocation6 + $0x3b8] sm:$0xff]
        %v3834 = vld [vmem:[#allocation6 + $0x3c0] sm:$0xff]
        %v3835 = vld [vmem:[#allocation6 + $0x3c8] sm:$0xff]
        %v3836 = vld [vmem:[#allocation6 + $0x3d0] sm:$0xff]
        %v3837 = vld [vmem:[#allocation6 + $0x3d8] sm:$0xff]
        %v3838 = vld [vmem:[#allocation6 + $0x3e0] sm:$0xff]
        %v3839 = vld [vmem:[#allocation6 + $0x3e8] sm:$0xff]
        %v3840 = vld [vmem:[#allocation6 + $0x3f0] sm:$0xff]
        %v3841 = vld [vmem:[#allocation6 + $0x3f8] sm:$0xff]
        %v3970 = vunpack.c.l.b16 %v3714
        %v3971 = vunpack.c.h.b16 %v3714
        %v3972 = vunpack.c.l.b16 %v3715
        %v3973 = vunpack.c.h.b16 %v3715
        %v3974 = vunpack.c.l.b16 %v3716
        %v3975 = vunpack.c.h.b16 %v3716
        %v3976 = vunpack.c.l.b16 %v3717
        %v3977 = vunpack.c.h.b16 %v3717
        %v3978 = vunpack.c.l.b16 %v3718
        %v3979 = vunpack.c.h.b16 %v3718
        %v3980 = vunpack.c.l.b16 %v3719
        %v3981 = vunpack.c.h.b16 %v3719
        %v3982 = vunpack.c.l.b16 %v3720
        %v3983 = vunpack.c.h.b16 %v3720
        %v3984 = vunpack.c.l.b16 %v3721
        %v3985 = vunpack.c.h.b16 %v3721
        %v3986 = vunpack.c.l.b16 %v3722
        %v3987 = vunpack.c.h.b16 %v3722
        %v3988 = vunpack.c.l.b16 %v3723
        %v3989 = vunpack.c.h.b16 %v3723
        %v3990 = vunpack.c.l.b16 %v3724
        %v3991 = vunpack.c.h.b16 %v3724
        %v3992 = vunpack.c.l.b16 %v3725
        %v3993 = vunpack.c.h.b16 %v3725
        %v3994 = vunpack.c.l.b16 %v3726
        %v3995 = vunpack.c.h.b16 %v3726
        %v3996 = vunpack.c.l.b16 %v3727
        %v3997 = vunpack.c.h.b16 %v3727
        %v3998 = vunpack.c.l.b16 %v3728
        %v3999 = vunpack.c.h.b16 %v3728
        %v4000 = vunpack.c.l.b16 %v3729
        %v4001 = vunpack.c.h.b16 %v3729
        %v4002 = vunpack.c.l.b16 %v3730
        %v4003 = vunpack.c.h.b16 %v3730
        %v4004 = vunpack.c.l.b16 %v3731
        %v4005 = vunpack.c.h.b16 %v3731
        %v4006 = vunpack.c.l.b16 %v3732
        %v4007 = vunpack.c.h.b16 %v3732
        %v4008 = vunpack.c.l.b16 %v3733
        %v4009 = vunpack.c.h.b16 %v3733
        %v4010 = vunpack.c.l.b16 %v3734
        %v4011 = vunpack.c.h.b16 %v3734
        %v4012 = vunpack.c.l.b16 %v3735
        %v4013 = vunpack.c.h.b16 %v3735
        %v4014 = vunpack.c.l.b16 %v3736
        %v4015 = vunpack.c.h.b16 %v3736
        %v4016 = vunpack.c.l.b16 %v3737
        %v4017 = vunpack.c.h.b16 %v3737
        %v4018 = vunpack.c.l.b16 %v3738
        %v4019 = vunpack.c.h.b16 %v3738
        %v4020 = vunpack.c.l.b16 %v3739
        %v4021 = vunpack.c.h.b16 %v3739
        %v4022 = vunpack.c.l.b16 %v3740
        %v4023 = vunpack.c.h.b16 %v3740
        %v4024 = vunpack.c.l.b16 %v3741
        %v4025 = vunpack.c.h.b16 %v3741
        %v4026 = vunpack.c.l.b16 %v3742
        %v4027 = vunpack.c.h.b16 %v3742
        %v4028 = vunpack.c.l.b16 %v3743
        %v4029 = vunpack.c.h.b16 %v3743
        %v4030 = vunpack.c.l.b16 %v3744
        %v4031 = vunpack.c.h.b16 %v3744
        %v4032 = vunpack.c.l.b16 %v3745
        %v4033 = vunpack.c.h.b16 %v3745
        %v4034 = vunpack.c.l.b16 %v3746
        %v4035 = vunpack.c.h.b16 %v3746
        %v4036 = vunpack.c.l.b16 %v3747
        %v4037 = vunpack.c.h.b16 %v3747
        %v4038 = vunpack.c.l.b16 %v3748
        %v4039 = vunpack.c.h.b16 %v3748
        %v4040 = vunpack.c.l.b16 %v3749
        %v4041 = vunpack.c.h.b16 %v3749
        %v4042 = vunpack.c.l.b16 %v3750
        %v4043 = vunpack.c.h.b16 %v3750
        %v4044 = vunpack.c.l.b16 %v3751
        %v4045 = vunpack.c.h.b16 %v3751
        %v4046 = vunpack.c.l.b16 %v3752
        %v4047 = vunpack.c.h.b16 %v3752
        %v4048 = vunpack.c.l.b16 %v3753
        %v4049 = vunpack.c.h.b16 %v3753
        %v4050 = vunpack.c.l.b16 %v3754
        %v4051 = vunpack.c.h.b16 %v3754
        %v4052 = vunpack.c.l.b16 %v3755
        %v4053 = vunpack.c.h.b16 %v3755
        %v4054 = vunpack.c.l.b16 %v3756
        %v4055 = vunpack.c.h.b16 %v3756
        %v4056 = vunpack.c.l.b16 %v3757
        %v4057 = vunpack.c.h.b16 %v3757
        %v4058 = vunpack.c.l.b16 %v3758
        %v4059 = vunpack.c.h.b16 %v3758
        %v4060 = vunpack.c.l.b16 %v3759
        %v4061 = vunpack.c.h.b16 %v3759
        %v4062 = vunpack.c.l.b16 %v3760
        %v4063 = vunpack.c.h.b16 %v3760
        %v4064 = vunpack.c.l.b16 %v3761
        %v4065 = vunpack.c.h.b16 %v3761
        %v4066 = vunpack.c.l.b16 %v3762
        %v4067 = vunpack.c.h.b16 %v3762
        %v4068 = vunpack.c.l.b16 %v3763
        %v4069 = vunpack.c.h.b16 %v3763
        %v4070 = vunpack.c.l.b16 %v3764
        %v4071 = vunpack.c.h.b16 %v3764
        %v4072 = vunpack.c.l.b16 %v3765
        %v4073 = vunpack.c.h.b16 %v3765
        %v4074 = vunpack.c.l.b16 %v3766
        %v4075 = vunpack.c.h.b16 %v3766
        %v4076 = vunpack.c.l.b16 %v3767
        %v4077 = vunpack.c.h.b16 %v3767
        %v4078 = vunpack.c.l.b16 %v3768
        %v4079 = vunpack.c.h.b16 %v3768
        %v4080 = vunpack.c.l.b16 %v3769
        %v4081 = vunpack.c.h.b16 %v3769
        %v4082 = vunpack.c.l.b16 %v3770
        %v4083 = vunpack.c.h.b16 %v3770
        %v4084 = vunpack.c.l.b16 %v3771
        %v4085 = vunpack.c.h.b16 %v3771
        %v4086 = vunpack.c.l.b16 %v3772
        %v4087 = vunpack.c.h.b16 %v3772
        %v4088 = vunpack.c.l.b16 %v3773
        %v4089 = vunpack.c.h.b16 %v3773
        %v4090 = vunpack.c.l.b16 %v3774
        %v4091 = vunpack.c.h.b16 %v3774
        %v4092 = vunpack.c.l.b16 %v3775
        %v4093 = vunpack.c.h.b16 %v3775
        %v4094 = vunpack.c.l.b16 %v3776
        %v4095 = vunpack.c.h.b16 %v3776
        %v4096 = vunpack.c.l.b16 %v3777
        %v4097 = vunpack.c.h.b16 %v3777
        %v4098 = vunpack.c.l.b16 %v3778
        %v4099 = vunpack.c.h.b16 %v3778
        %v4100 = vunpack.c.l.b16 %v3779
        %v4101 = vunpack.c.h.b16 %v3779
        %v4102 = vunpack.c.l.b16 %v3780
        %v4103 = vunpack.c.h.b16 %v3780
        %v4104 = vunpack.c.l.b16 %v3781
        %v4105 = vunpack.c.h.b16 %v3781
        %v4106 = vunpack.c.l.b16 %v3782
        %v4107 = vunpack.c.h.b16 %v3782
        %v4108 = vunpack.c.l.b16 %v3783
        %v4109 = vunpack.c.h.b16 %v3783
        %v4110 = vunpack.c.l.b16 %v3784
        %v4111 = vunpack.c.h.b16 %v3784
        %v4112 = vunpack.c.l.b16 %v3785
        %v4113 = vunpack.c.h.b16 %v3785
        %v4114 = vunpack.c.l.b16 %v3786
        %v4115 = vunpack.c.h.b16 %v3786
        %v4116 = vunpack.c.l.b16 %v3787
        %v4117 = vunpack.c.h.b16 %v3787
        %v4118 = vunpack.c.l.b16 %v3788
        %v4119 = vunpack.c.h.b16 %v3788
        %v4120 = vunpack.c.l.b16 %v3789
        %v4121 = vunpack.c.h.b16 %v3789
        %v4122 = vunpack.c.l.b16 %v3790
        %v4123 = vunpack.c.h.b16 %v3790
        %v4124 = vunpack.c.l.b16 %v3791
        %v4125 = vunpack.c.h.b16 %v3791
        %v4126 = vunpack.c.l.b16 %v3792
        %v4127 = vunpack.c.h.b16 %v3792
        %v4128 = vunpack.c.l.b16 %v3793
        %v4129 = vunpack.c.h.b16 %v3793
        %v4130 = vunpack.c.l.b16 %v3794
        %v4131 = vunpack.c.h.b16 %v3794
        %v4132 = vunpack.c.l.b16 %v3795
        %v4133 = vunpack.c.h.b16 %v3795
        %v4134 = vunpack.c.l.b16 %v3796
        %v4135 = vunpack.c.h.b16 %v3796
        %v4136 = vunpack.c.l.b16 %v3797
        %v4137 = vunpack.c.h.b16 %v3797
        %v4138 = vunpack.c.l.b16 %v3798
        %v4139 = vunpack.c.h.b16 %v3798
        %v4140 = vunpack.c.l.b16 %v3799
        %v4141 = vunpack.c.h.b16 %v3799
        %v4142 = vunpack.c.l.b16 %v3800
        %v4143 = vunpack.c.h.b16 %v3800
        %v4144 = vunpack.c.l.b16 %v3801
        %v4145 = vunpack.c.h.b16 %v3801
        %v4146 = vunpack.c.l.b16 %v3802
        %v4147 = vunpack.c.h.b16 %v3802
        %v4148 = vunpack.c.l.b16 %v3803
        %v4149 = vunpack.c.h.b16 %v3803
        %v4150 = vunpack.c.l.b16 %v3804
        %v4151 = vunpack.c.h.b16 %v3804
        %v4152 = vunpack.c.l.b16 %v3805
        %v4153 = vunpack.c.h.b16 %v3805
        %v4154 = vunpack.c.l.b16 %v3806
        %v4155 = vunpack.c.h.b16 %v3806
        %v4156 = vunpack.c.l.b16 %v3807
        %v4157 = vunpack.c.h.b16 %v3807
        %v4158 = vunpack.c.l.b16 %v3808
        %v4159 = vunpack.c.h.b16 %v3808
        %v4160 = vunpack.c.l.b16 %v3809
        %v4161 = vunpack.c.h.b16 %v3809
        %v4162 = vunpack.c.l.b16 %v3810
        %v4163 = vunpack.c.h.b16 %v3810
        %v4164 = vunpack.c.l.b16 %v3811
        %v4165 = vunpack.c.h.b16 %v3811
        %v4166 = vunpack.c.l.b16 %v3812
        %v4167 = vunpack.c.h.b16 %v3812
        %v4168 = vunpack.c.l.b16 %v3813
        %v4169 = vunpack.c.h.b16 %v3813
        %v4170 = vunpack.c.l.b16 %v3814
        %v4171 = vunpack.c.h.b16 %v3814
        %v4172 = vunpack.c.l.b16 %v3815
        %v4173 = vunpack.c.h.b16 %v3815
        %v4174 = vunpack.c.l.b16 %v3816
        %v4175 = vunpack.c.h.b16 %v3816
        %v4176 = vunpack.c.l.b16 %v3817
        %v4177 = vunpack.c.h.b16 %v3817
        %v4178 = vunpack.c.l.b16 %v3818
        %v4179 = vunpack.c.h.b16 %v3818
        %v4180 = vunpack.c.l.b16 %v3819
        %v4181 = vunpack.c.h.b16 %v3819
        %v4182 = vunpack.c.l.b16 %v3820
        %v4183 = vunpack.c.h.b16 %v3820
        %v4184 = vunpack.c.l.b16 %v3821
        %v4185 = vunpack.c.h.b16 %v3821
        %v4186 = vunpack.c.l.b16 %v3822
        %v4187 = vunpack.c.h.b16 %v3822
        %v4188 = vunpack.c.l.b16 %v3823
        %v4189 = vunpack.c.h.b16 %v3823
        %v4190 = vunpack.c.l.b16 %v3824
        %v4191 = vunpack.c.h.b16 %v3824
        %v4192 = vunpack.c.l.b16 %v3825
        %v4193 = vunpack.c.h.b16 %v3825
        %v4194 = vunpack.c.l.b16 %v3826
        %v4195 = vunpack.c.h.b16 %v3826
        %v4196 = vunpack.c.l.b16 %v3827
        %v4197 = vunpack.c.h.b16 %v3827
        %v4198 = vunpack.c.l.b16 %v3828
        %v4199 = vunpack.c.h.b16 %v3828
        %v4200 = vunpack.c.l.b16 %v3829
        %v4201 = vunpack.c.h.b16 %v3829
        %v4202 = vunpack.c.l.b16 %v3830
        %v4203 = vunpack.c.h.b16 %v3830
        %v4204 = vunpack.c.l.b16 %v3831
        %v4205 = vunpack.c.h.b16 %v3831
        %v4206 = vunpack.c.l.b16 %v3832
        %v4207 = vunpack.c.h.b16 %v3832
        %v4208 = vunpack.c.l.b16 %v3833
        %v4209 = vunpack.c.h.b16 %v3833
        %v4210 = vunpack.c.l.b16 %v3834
        %v4211 = vunpack.c.h.b16 %v3834
        %v4212 = vunpack.c.l.b16 %v3835
        %v4213 = vunpack.c.h.b16 %v3835
        %v4214 = vunpack.c.l.b16 %v3836
        %v4215 = vunpack.c.h.b16 %v3836
        %v4216 = vunpack.c.l.b16 %v3837
        %v4217 = vunpack.c.h.b16 %v3837
        %v4218 = vunpack.c.l.b16 %v3838
        %v4219 = vunpack.c.h.b16 %v3838
        %v4220 = vunpack.c.l.b16 %v3839
        %v4221 = vunpack.c.h.b16 %v3839
        %v4222 = vunpack.c.l.b16 %v3840
        %v4223 = vunpack.c.h.b16 %v3840
        %v4224 = vunpack.c.l.b16 %v3841
        %v4225 = vunpack.c.h.b16 %v3841
        %v4226 = vpack.c.b16 %v3978, %v3970
        %v4227 = vpack.c.b16 %v3979, %v3971
        %v4228 = vpack.c.b16 %v3980, %v3972
        %v4229 = vpack.c.b16 %v3981, %v3973
        %v4230 = vpack.c.b16 %v3982, %v3974
        %v4231 = vpack.c.b16 %v3983, %v3975
        %v4232 = vpack.c.b16 %v3984, %v3976
        %v4233 = vpack.c.b16 %v3985, %v3977
        %v4234 = vpack.c.b16 %v3994, %v3986
        %v4235 = vpack.c.b16 %v3995, %v3987
        %v4236 = vpack.c.b16 %v3996, %v3988
        %v4237 = vpack.c.b16 %v3997, %v3989
        %v4238 = vpack.c.b16 %v3998, %v3990
        %v4239 = vpack.c.b16 %v3999, %v3991
        %v4240 = vpack.c.b16 %v4000, %v3992
        %v4241 = vpack.c.b16 %v4001, %v3993
        %v4242 = vpack.c.b16 %v4010, %v4002
        %v4243 = vpack.c.b16 %v4011, %v4003
        %v4244 = vpack.c.b16 %v4012, %v4004
        %v4245 = vpack.c.b16 %v4013, %v4005
        %v4246 = vpack.c.b16 %v4014, %v4006
        %v4247 = vpack.c.b16 %v4015, %v4007
        %v4248 = vpack.c.b16 %v4016, %v4008
        %v4249 = vpack.c.b16 %v4017, %v4009
        %v4250 = vpack.c.b16 %v4026, %v4018
        %v4251 = vpack.c.b16 %v4027, %v4019
        %v4252 = vpack.c.b16 %v4028, %v4020
        %v4253 = vpack.c.b16 %v4029, %v4021
        %v4254 = vpack.c.b16 %v4030, %v4022
        %v4255 = vpack.c.b16 %v4031, %v4023
        %v4256 = vpack.c.b16 %v4032, %v4024
        %v4257 = vpack.c.b16 %v4033, %v4025
        %v4258 = vpack.c.b16 %v4042, %v4034
        %v4259 = vpack.c.b16 %v4043, %v4035
        %v4260 = vpack.c.b16 %v4044, %v4036
        %v4261 = vpack.c.b16 %v4045, %v4037
        %v4262 = vpack.c.b16 %v4046, %v4038
        %v4263 = vpack.c.b16 %v4047, %v4039
        %v4264 = vpack.c.b16 %v4048, %v4040
        %v4265 = vpack.c.b16 %v4049, %v4041
        %v4266 = vpack.c.b16 %v4058, %v4050
        %v4267 = vpack.c.b16 %v4059, %v4051
        %v4268 = vpack.c.b16 %v4060, %v4052
        %v4269 = vpack.c.b16 %v4061, %v4053
        %v4270 = vpack.c.b16 %v4062, %v4054
        %v4271 = vpack.c.b16 %v4063, %v4055
        %v4272 = vpack.c.b16 %v4064, %v4056
        %v4273 = vpack.c.b16 %v4065, %v4057
        %v4274 = vpack.c.b16 %v4074, %v4066
        %v4275 = vpack.c.b16 %v4075, %v4067
        %v4276 = vpack.c.b16 %v4076, %v4068
        %v4277 = vpack.c.b16 %v4077, %v4069
        %v4278 = vpack.c.b16 %v4078, %v4070
        %v4279 = vpack.c.b16 %v4079, %v4071
        %v4280 = vpack.c.b16 %v4080, %v4072
        %v4281 = vpack.c.b16 %v4081, %v4073
        %v4282 = vpack.c.b16 %v4090, %v4082
        %v4283 = vpack.c.b16 %v4091, %v4083
        %v4284 = vpack.c.b16 %v4092, %v4084
        %v4285 = vpack.c.b16 %v4093, %v4085
        %v4286 = vpack.c.b16 %v4094, %v4086
        %v4287 = vpack.c.b16 %v4095, %v4087
        %v4288 = vpack.c.b16 %v4096, %v4088
        %v4289 = vpack.c.b16 %v4097, %v4089
        %v4290 = vpack.c.b16 %v4106, %v4098
        %v4291 = vpack.c.b16 %v4107, %v4099
        %v4292 = vpack.c.b16 %v4108, %v4100
        %v4293 = vpack.c.b16 %v4109, %v4101
        %v4294 = vpack.c.b16 %v4110, %v4102
        %v4295 = vpack.c.b16 %v4111, %v4103
        %v4296 = vpack.c.b16 %v4112, %v4104
        %v4297 = vpack.c.b16 %v4113, %v4105
        %v4298 = vpack.c.b16 %v4122, %v4114
        %v4299 = vpack.c.b16 %v4123, %v4115
        %v4300 = vpack.c.b16 %v4124, %v4116
        %v4301 = vpack.c.b16 %v4125, %v4117
        %v4302 = vpack.c.b16 %v4126, %v4118
        %v4303 = vpack.c.b16 %v4127, %v4119
        %v4304 = vpack.c.b16 %v4128, %v4120
        %v4305 = vpack.c.b16 %v4129, %v4121
        %v4306 = vpack.c.b16 %v4138, %v4130
        %v4307 = vpack.c.b16 %v4139, %v4131
        %v4308 = vpack.c.b16 %v4140, %v4132
        %v4309 = vpack.c.b16 %v4141, %v4133
        %v4310 = vpack.c.b16 %v4142, %v4134
        %v4311 = vpack.c.b16 %v4143, %v4135
        %v4312 = vpack.c.b16 %v4144, %v4136
        %v4313 = vpack.c.b16 %v4145, %v4137
        %v4314 = vpack.c.b16 %v4154, %v4146
        %v4315 = vpack.c.b16 %v4155, %v4147
        %v4316 = vpack.c.b16 %v4156, %v4148
        %v4317 = vpack.c.b16 %v4157, %v4149
        %v4318 = vpack.c.b16 %v4158, %v4150
        %v4319 = vpack.c.b16 %v4159, %v4151
        %v4320 = vpack.c.b16 %v4160, %v4152
        %v4321 = vpack.c.b16 %v4161, %v4153
        %v4322 = vpack.c.b16 %v4170, %v4162
        %v4323 = vpack.c.b16 %v4171, %v4163
        %v4324 = vpack.c.b16 %v4172, %v4164
        %v4325 = vpack.c.b16 %v4173, %v4165
        %v4326 = vpack.c.b16 %v4174, %v4166
        %v4327 = vpack.c.b16 %v4175, %v4167
        %v4328 = vpack.c.b16 %v4176, %v4168
        %v4329 = vpack.c.b16 %v4177, %v4169
        %v4330 = vpack.c.b16 %v4186, %v4178
        %v4331 = vpack.c.b16 %v4187, %v4179
        %v4332 = vpack.c.b16 %v4188, %v4180
        %v4333 = vpack.c.b16 %v4189, %v4181
        %v4334 = vpack.c.b16 %v4190, %v4182
        %v4335 = vpack.c.b16 %v4191, %v4183
        %v4336 = vpack.c.b16 %v4192, %v4184
        %v4337 = vpack.c.b16 %v4193, %v4185
        %v4338 = vpack.c.b16 %v4202, %v4194
        %v4339 = vpack.c.b16 %v4203, %v4195
        %v4340 = vpack.c.b16 %v4204, %v4196
        %v4341 = vpack.c.b16 %v4205, %v4197
        %v4342 = vpack.c.b16 %v4206, %v4198
        %v4343 = vpack.c.b16 %v4207, %v4199
        %v4344 = vpack.c.b16 %v4208, %v4200
        %v4345 = vpack.c.b16 %v4209, %v4201
        %v4346 = vpack.c.b16 %v4218, %v4210
        %v4347 = vpack.c.b16 %v4219, %v4211
        %v4348 = vpack.c.b16 %v4220, %v4212
        %v4349 = vpack.c.b16 %v4221, %v4213
        %v4350 = vpack.c.b16 %v4222, %v4214
        %v4351 = vpack.c.b16 %v4223, %v4215
        %v4352 = vpack.c.b16 %v4224, %v4216
        %v4353 = vpack.c.b16 %v4225, %v4217
        %4482 = vmatprep.subr.bf16.mxu0 %v4227
        %4483 = vmatpush1.bf16.msra.mxu0 %v4226
        %4484 = vmatprep.subr.bf16.mxu0 %v4235
        %4485 = vmatpush1.bf16.msra.mxu0 %v4234
        %4486 = vmatprep.subr.bf16.mxu0 %v4243
        %4487 = vmatpush1.bf16.msra.mxu0 %v4242
        %4488 = vmatprep.subr.bf16.mxu0 %v4251
        %4489 = vmatpush1.bf16.msra.mxu0 %v4250
        %4490 = vmatprep.subr.bf16.mxu0 %v4259
        %4491 = vmatpush1.bf16.msra.mxu0 %v4258
        %4492 = vmatprep.subr.bf16.mxu0 %v4267
        %4493 = vmatpush1.bf16.msra.mxu0 %v4266
        %4494 = vmatprep.subr.bf16.mxu0 %v4275
        %4495 = vmatpush1.bf16.msra.mxu0 %v4274
        %4496 = vmatprep.subr.bf16.mxu0 %v4283
        %4497 = vmatpush1.bf16.msra.mxu0 %v4282
        %4498 = vmatprep.subr.bf16.mxu0 %v4291
        %4499 = vmatpush1.bf16.msra.mxu0 %v4290
        %4500 = vmatprep.subr.bf16.mxu0 %v4299
        %4501 = vmatpush1.bf16.msra.mxu0 %v4298
        %4502 = vmatprep.subr.bf16.mxu0 %v4307
        %4503 = vmatpush1.bf16.msra.mxu0 %v4306
        %4504 = vmatprep.subr.bf16.mxu0 %v4315
        %4505 = vmatpush1.bf16.msra.mxu0 %v4314
        %4506 = vmatprep.subr.bf16.mxu0 %v4323
        %4507 = vmatpush1.bf16.msra.mxu0 %v4322
        %4508 = vmatprep.subr.bf16.mxu0 %v4331
        %4509 = vmatpush1.bf16.msra.mxu0 %v4330
        %4510 = vmatprep.subr.bf16.mxu0 %v4339
        %4511 = vmatpush1.bf16.msra.mxu0 %v4338
        %4512 = vmatprep.subr.bf16.mxu0 %v4347
        %4513 = vmatpush1.bf16.msra.mxu0 %v4346
        %4514 = vmatprep.mubr.bf16.mxu0 %v3699
        %4515 = vmatmul.mubr.bf16.gmra.mrb[0].mxu0 %v3698
        %v4516 = vpop.f32.mrb[0].mxu0
        %v4517 = vadd.f32 0.0, %v4516
        %v4518 = vpop.f32.mrb[0].mxu0
        %v4519 = vadd.f32 0.0, %v4518
        %v4520 = vpop.f32.mrb[0].mxu0
        %v4521 = vpop.f32.mrb[0].mxu0
        %4522 = vdwg.mxu0
        %4523 = vmatprep.subr.bf16.mxu0 %v4229
        %4524 = vmatpush1.bf16.msra.mxu0 %v4228
        %4525 = vmatprep.subr.bf16.mxu0 %v4237
        %4526 = vmatpush1.bf16.msra.mxu0 %v4236
        %4527 = vmatprep.subr.bf16.mxu0 %v4245
        %4528 = vmatpush1.bf16.msra.mxu0 %v4244
        %4529 = vmatprep.subr.bf16.mxu0 %v4253
        %4530 = vmatpush1.bf16.msra.mxu0 %v4252
        %4531 = vmatprep.subr.bf16.mxu0 %v4261
        %4532 = vmatpush1.bf16.msra.mxu0 %v4260
        %4533 = vmatprep.subr.bf16.mxu0 %v4269
        %4534 = vmatpush1.bf16.msra.mxu0 %v4268
        %4535 = vmatprep.subr.bf16.mxu0 %v4277
        %4536 = vmatpush1.bf16.msra.mxu0 %v4276
        %4537 = vmatprep.subr.bf16.mxu0 %v4285
        %4538 = vmatpush1.bf16.msra.mxu0 %v4284
        %4539 = vmatprep.subr.bf16.mxu0 %v4293
        %4540 = vmatpush1.bf16.msra.mxu0 %v4292
        %4541 = vmatprep.subr.bf16.mxu0 %v4301
        %4542 = vmatpush1.bf16.msra.mxu0 %v4300
        %4543 = vmatprep.subr.bf16.mxu0 %v4309
        %4544 = vmatpush1.bf16.msra.mxu0 %v4308
        %4545 = vmatprep.subr.bf16.mxu0 %v4317
        %4546 = vmatpush1.bf16.msra.mxu0 %v4316
        %4547 = vmatprep.subr.bf16.mxu0 %v4325
        %4548 = vmatpush1.bf16.msra.mxu0 %v4324
        %4549 = vmatprep.subr.bf16.mxu0 %v4333
        %4550 = vmatpush1.bf16.msra.mxu0 %v4332
        %4551 = vmatprep.subr.bf16.mxu0 %v4341
        %4552 = vmatpush1.bf16.msra.mxu0 %v4340
        %4553 = vmatprep.subr.bf16.mxu0 %v4349
        %4554 = vmatpush1.bf16.msra.mxu0 %v4348
        %4555 = vmatprep.mubr.bf16.mxu0 %v3699
        %4556 = vmatmul.mubr.bf16.gmra.mrb[0].mxu0 %v3698
        %v4557 = vpop.f32.mrb[0].mxu0
        %v4558 = vadd.f32 0.0, %v4557
        %v4559 = vpop.f32.mrb[0].mxu0
        %v4560 = vadd.f32 0.0, %v4559
        %v4561 = vpop.f32.mrb[0].mxu0
        %v4562 = vpop.f32.mrb[0].mxu0
        %4563 = vdwg.mxu0
        %4564 = vmatprep.subr.bf16.mxu0 %v4231
        %4565 = vmatpush1.bf16.msra.mxu0 %v4230
        %4566 = vmatprep.subr.bf16.mxu0 %v4239
        %4567 = vmatpush1.bf16.msra.mxu0 %v4238
        %4568 = vmatprep.subr.bf16.mxu0 %v4247
        %4569 = vmatpush1.bf16.msra.mxu0 %v4246
        %4570 = vmatprep.subr.bf16.mxu0 %v4255
        %4571 = vmatpush1.bf16.msra.mxu0 %v4254
        %4572 = vmatprep.subr.bf16.mxu0 %v4263
        %4573 = vmatpush1.bf16.msra.mxu0 %v4262
        %4574 = vmatprep.subr.bf16.mxu0 %v4271
        %4575 = vmatpush1.bf16.msra.mxu0 %v4270
        %4576 = vmatprep.subr.bf16.mxu0 %v4279
        %4577 = vmatpush1.bf16.msra.mxu0 %v4278
        %4578 = vmatprep.subr.bf16.mxu0 %v4287
        %4579 = vmatpush1.bf16.msra.mxu0 %v4286
        %4580 = vmatprep.subr.bf16.mxu0 %v4295
        %4581 = vmatpush1.bf16.msra.mxu0 %v4294
        %4582 = vmatprep.subr.bf16.mxu0 %v4303
        %4583 = vmatpush1.bf16.msra.mxu0 %v4302
        %4584 = vmatprep.subr.bf16.mxu0 %v4311
        %4585 = vmatpush1.bf16.msra.mxu0 %v4310
        %4586 = vmatprep.subr.bf16.mxu0 %v4319
        %4587 = vmatpush1.bf16.msra.mxu0 %v4318
        %4588 = vmatprep.subr.bf16.mxu0 %v4327
        %4589 = vmatpush1.bf16.msra.mxu0 %v4326
        %4590 = vmatprep.subr.bf16.mxu0 %v4335
        %4591 = vmatpush1.bf16.msra.mxu0 %v4334
        %4592 = vmatprep.subr.bf16.mxu0 %v4343
        %4593 = vmatpush1.bf16.msra.mxu0 %v4342
        %4594 = vmatprep.subr.bf16.mxu0 %v4351
        %4595 = vmatpush1.bf16.msra.mxu0 %v4350
        %4596 = vmatprep.mubr.bf16.mxu0 %v3699
        %4597 = vmatmul.mubr.bf16.gmra.mrb[0].mxu0 %v3698
        %v4598 = vpop.f32.mrb[0].mxu0
        %v4599 = vadd.f32 0.0, %v4598
        %v4600 = vpop.f32.mrb[0].mxu0
        %v4601 = vadd.f32 0.0, %v4600
        %v4602 = vpop.f32.mrb[0].mxu0
        %v4603 = vpop.f32.mrb[0].mxu0
        %4604 = vdwg.mxu0
        %4605 = vmatprep.subr.bf16.mxu0 %v4233
        %4606 = vmatpush1.bf16.msra.mxu0 %v4232
        %4607 = vmatprep.subr.bf16.mxu0 %v4241
        %4608 = vmatpush1.bf16.msra.mxu0 %v4240
        %4609 = vmatprep.subr.bf16.mxu0 %v4249
        %4610 = vmatpush1.bf16.msra.mxu0 %v4248
        %4611 = vmatprep.subr.bf16.mxu0 %v4257
        %4612 = vmatpush1.bf16.msra.mxu0 %v4256
        %4613 = vmatprep.subr.bf16.mxu0 %v4265
        %4614 = vmatpush1.bf16.msra.mxu0 %v4264
        %4615 = vmatprep.subr.bf16.mxu0 %v4273
        %4616 = vmatpush1.bf16.msra.mxu0 %v4272
        %4617 = vmatprep.subr.bf16.mxu0 %v4281
        %4618 = vmatpush1.bf16.msra.mxu0 %v4280
        %4619 = vmatprep.subr.bf16.mxu0 %v4289
        %4620 = vmatpush1.bf16.msra.mxu0 %v4288
        %4621 = vmatprep.subr.bf16.mxu0 %v4297
        %4622 = vmatpush1.bf16.msra.mxu0 %v4296
        %4623 = vmatprep.subr.bf16.mxu0 %v4305
        %4624 = vmatpush1.bf16.msra.mxu0 %v4304
        %4625 = vmatprep.subr.bf16.mxu0 %v4313
        %4626 = vmatpush1.bf16.msra.mxu0 %v4312
        %4627 = vmatprep.subr.bf16.mxu0 %v4321
        %4628 = vmatpush1.bf16.msra.mxu0 %v4320
        %4629 = vmatprep.subr.bf16.mxu0 %v4329
        %4630 = vmatpush1.bf16.msra.mxu0 %v4328
        %4631 = vmatprep.subr.bf16.mxu0 %v4337
        %4632 = vmatpush1.bf16.msra.mxu0 %v4336
        %4633 = vmatprep.subr.bf16.mxu0 %v4345
        %4634 = vmatpush1.bf16.msra.mxu0 %v4344
        %4635 = vmatprep.subr.bf16.mxu0 %v4353
        %4636 = vmatpush1.bf16.msra.mxu0 %v4352
        %4637 = vmatprep.mubr.bf16.mxu0 %v3699
        %4638 = vmatmul.mubr.bf16.gmra.mrb[0].mxu0 %v3698
        %v4639 = vpop.f32.mrb[0].mxu0
        %v4640 = vadd.f32 0.0, %v4639
        %v4641 = vpop.f32.mrb[0].mxu0
        %v4642 = vadd.f32 0.0, %v4641
        %v4643 = vpop.f32.mrb[0].mxu0
        %v4644 = vpop.f32.mrb[0].mxu0
        %4645 = vdwg.mxu0
        %v4650 = vcombine.low %v4517, %v4519
        %v4651 = vcombine.low %v4558, %v4560
        %v4653 = vunpack.c.l.s4 1983009808
        %v4654 = vunpack.c.0.s8 %v4653
        %v4655 = vlaneseq
        %v4656 = vshrl.u32 %v4655, 7
        %v4657 = vsub.s32 %v4654, %v4656
        %v4658 = vrot.slane %v4650, %v4657
        %v4660 = vunpack.c.l.s4 1983009808
        %v4661 = vunpack.c.0.s8 %v4660
        %v4662 = vlaneseq
        %v4663 = vshrl.u32 %v4662, 7
        %v4664 = vsub.s32 %v4661, %v4663
        %v4665 = vrot.slane %v4651, %v4664
        %v4666 = vcombine.low %v4658, %v4665
        %v4668 = vadd.f32 %v3711, %v4666
        %v4673 = vcombine.low %v4599, %v4601
        %v4674 = vcombine.low %v4640, %v4642
        %v4676 = vunpack.c.l.s4 1983009808
        %v4677 = vunpack.c.0.s8 %v4676
        %v4678 = vlaneseq
        %v4679 = vshrl.u32 %v4678, 7
        %v4680 = vsub.s32 %v4677, %v4679
        %v4681 = vrot.slane %v4673, %v4680
        %v4683 = vunpack.c.l.s4 1983009808
        %v4684 = vunpack.c.0.s8 %v4683
        %v4685 = vlaneseq
        %v4686 = vshrl.u32 %v4685, 7
        %v4687 = vsub.s32 %v4684, %v4686
        %v4688 = vrot.slane %v4674, %v4687
        %v4689 = vcombine.low %v4681, %v4688
        %v4691 = vadd.f32 %v3713, %v4689
        %v4692 = vxor.u32 %v4668, 2147483648
        %v4693 = vmul.f32 %v4692, 1.442695
        %v4694 = vpow.pop %v4693
        %v4695 = vadd.f32 %v4694, 1.0
        %v4696 = vrcp.pop %v4695
        %v4697 = vmul.f32 1.0, %v4696
        %v4699 = vrot.slane %v4668, 2
        %v4701 = vxor.u32 %v4699, 2147483648
        %v4702 = vmul.f32 %v4701, 1.442695
        %v4703 = vpow.pop %v4702
        %v4704 = vadd.f32 %v4703, 1.0
        %v4705 = vrcp.pop %v4704
        %v4706 = vmul.f32 1.0, %v4705
        %v4707 = vrot.slane %v4668, 4
        %v4709 = vtanh.pop %v4707
        %v4710 = vrot.slane %v4668, 6
        %v4712 = vxor.u32 %v4710, 2147483648
        %v4713 = vmul.f32 %v4712, 1.442695
        %v4714 = vpow.pop %v4713
        %v4715 = vadd.f32 %v4714, 1.0
        %v4716 = vrcp.pop %v4715
        %v4717 = vmul.f32 1.0, %v4716
        %v4718 = vmul.f32 %v4706, %v3700
        %v4719 = vmul.f32 %v4697, %v4709
        %v4720 = vadd.f32 %v4718, %v4719
        %v4721 = vtanh.pop %v4720
        %v4722 = vmul.f32 %v4717, %v4721
        %v4723 = vxor.u32 %v4691, 2147483648
        %v4724 = vmul.f32 %v4723, 1.442695
        %v4725 = vpow.pop %v4724
        %v4726 = vadd.f32 %v4725, 1.0
        %v4727 = vrcp.pop %v4726
        %v4728 = vmul.f32 1.0, %v4727
        %v4730 = vrot.slane %v4691, 2
        %v4732 = vxor.u32 %v4730, 2147483648
        %v4733 = vmul.f32 %v4732, 1.442695
        %v4734 = vpow.pop %v4733
        %v4735 = vadd.f32 %v4734, 1.0
        %v4736 = vrcp.pop %v4735
        %v4737 = vmul.f32 1.0, %v4736
        %v4738 = vrot.slane %v4691, 4
        %v4740 = vtanh.pop %v4738
        %v4741 = vrot.slane %v4691, 6
        %v4743 = vxor.u32 %v4741, 2147483648
        %v4744 = vmul.f32 %v4743, 1.442695
        %v4745 = vpow.pop %v4744
        %v4746 = vadd.f32 %v4745, 1.0
        %v4747 = vrcp.pop %v4746
        %v4748 = vmul.f32 1.0, %v4747
        %v4749 = vmul.f32 %v4737, %v3701
        %v4750 = vmul.f32 %v4728, %v4740
        %v4751 = vadd.f32 %v4749, %v4750
        %v4752 = vtanh.pop %v4751
        %v4753 = vmul.f32 %v4748, %v4752
        %s4754 = ssub.s32 4, %s457
        %v4755 = vstv %s3708
        %v4756 = vstv %s4754
        %v4757 = vsel %vm455, %v4755, %v4756
        %v4758 = vsel %vm456, %v4755, %v4756
        %vm4759 = vcmp.lt.s32.totalorder %v4757, %v1540
        %vm4760 = vcmp.lt.s32.totalorder %v4758, %v1540
        %v4761 = vsel %vm4759, %v4722, 0.0
        %v4762 = vsel %vm4760, %v4753, 0.0
        %v4763 = vpack.c.bf16 %v4722, %v4722
        %v4764 = vpack.c.bf16 %v4753, %v4753
        %vm4765 = vmpackc.low %vm4759, %vm4759
        %vm4766 = vmpackc.low %vm4760, %vm4760
        %v4767 = vsel %vm4765, %v4763, %v3698
        %v4768 = vsel %vm4766, %v4764, %v3699
        %v4769 = vsel %vm4759, %v4720, %v3700
        %v4770 = vsel %vm4760, %v4751, %v3701
        %v4771 = vpack.c.bf16 %v4761, %v4761
        %s4772 = scalar_lea.vmem %s432, 3
        %4773 = vst [vmem:[%s4772] sm:$0x1] %v4771
        %v4774 = vpack.c.bf16 %v4762, %v4762
        %4775 = vst [vmem:[%s441] sm:$0x1] %v4774
        %v4778 = vcombine.low %v4767, %v4768
        %v4780 = vunpack.c.l.s4 1966171168
        %v4781 = vunpack.c.0.s8 %v4780
        %v4782 = vlaneseq
        %v4783 = vshrl.u32 %v4782, 7
        %v4784 = vsub.s32 %v4781, %v4783
        %v4785 = vrot.slane %v4778, %v4784
        %v4787 = vunpack.c.l.s4 1966171168
        %v4788 = vunpack.c.0.s8 %v4787
        %v4789 = vlaneseq
        %v4790 = vshrl.u32 %v4789, 7
        %v4791 = vsub.s32 %v4788, %v4790
        %v4792 = vrot.slane %v4785, %v4791
        %4794 = vst [vmem:[#allocation2] sm:$0x3] %v4792
        %v4797 = vcombine.low %v4769, %v4770
        %v4799 = vunpack.c.l.s4 1983009808
        %v4800 = vunpack.c.0.s8 %v4799
        %v4801 = vlaneseq
        %v4802 = vshrl.u32 %v4801, 7
        %v4803 = vsub.s32 %v4800, %v4802
        %v4804 = vrot.slane %v4797, %v4803
        %4806 = vst [vmem:[#allocation3] sm:$0xf] %v4804
        %s4807 = smul.u32 4, %s23
        %p4808 = scmp.lt.s32.totalorder %s4807, 7
        %s4809 = scalar_select %p4808, %s4807, 7
        %p4810 = scmp.lt.s32.totalorder %s22, 0
        %s4811 = scalar_select %p4810, %s22, 0
        %s4812 = sadd.s32 %s4811, %s4809
        %s4813 = scalar_lea.vmem %s4, %s4812
        %s4814 = ssub.s32 1, %s23
        %s4815 = smul.u32 4, %s4814
        %p4816 = scmp.lt.s32.totalorder %s4815, 7
        %s4817 = scalar_select %p4816, %s4815, 7
        %p4818 = scmp.lt.s32.totalorder %s22, 0
        %s4819 = scalar_select %p4818, %s22, 0
        %s4820 = sadd.s32 %s4819, %s4817
        %s4821 = scalar_lea.vmem %s5, %s4820
        // Predicated region
        $region127: #{rnn_forward.5} parent=109 // pred_check
          %p4822 = pneg %p155
        $region128: #{rnn_forward.5} parent=109 // pred_check_branch
          %4824 = sbr.rel (%p4822) target = $region130
        $region129: #{rnn_forward.5} parent=109 // pred_region
          %s4825 = smul.u32 4, %s23
        $region130: #{rnn_forward.5} parent=109 // pred_fallthru
          _
        // Predicated region
        $region131: #{rnn_forward.5} parent=109 // pred_check
          %p4826 = pneg %p185
        $region132: #{rnn_forward.5} parent=109 // pred_check_branch
          %4828 = sbr.rel (%p4826) target = $region134
        $region133: #{rnn_forward.5} parent=109 // pred_region
          %s4829 = ssub.s32 1, %s23
          %s4830 = smul.u32 4, %s4829
        $region134: #{rnn_forward.5} parent=109 // pred_fallthru
          _
      $region110: #{rnn_forward.5} parent=5 // pred_fallthru
        _
      %p4831 = scmp.le.s32.totalorder 2, %s13
      // Predicated region
      $region135: #{rnn_forward.5} parent=5 // pred_check
        %p4832 = pneg %p4831
      $region136: #{rnn_forward.5} parent=5 // pred_check_branch
        %4834 = sbr.rel (%p4832) target = $region138
      $region137: #{rnn_forward.5} parent=5 // pred_region
        %s4835 = ssub.s32 %s13, 2
        // Predicated region
        $region139: #{rnn_forward.5} parent=137 // pred_check
          %p4836 = pneg %p161
        $region140: #{rnn_forward.5} parent=137 // pred_check_branch
          %4838 = sbr.rel (%p4836) target = $region142
        $region141: #{rnn_forward.5} parent=137 // pred_region
          %s4839 = smul.u32 4, %s25
          %p4840 = scmp.lt.s32.totalorder %s4839, 7
          %s4841 = scalar_select %p4840, %s4839, 7
          %p4842 = scmp.lt.s32.totalorder %s24, 0
          %s4843 = scalar_select %p4842, %s24, 0
          %s4844 = sadd.s32 %s4843, %s4841
          %s4845 = scalar_lea.vmem %s4, %s4844
        $region142: #{rnn_forward.5} parent=137 // pred_fallthru
          _
        // Predicated region
        $region143: #{rnn_forward.5} parent=137 // pred_check
          %p4846 = pneg %p191
        $region144: #{rnn_forward.5} parent=137 // pred_check_branch
          %4848 = sbr.rel (%p4846) target = $region146
        $region145: #{rnn_forward.5} parent=137 // pred_region
          %s4849 = ssub.s32 1, %s25
          %s4850 = smul.u32 4, %s4849
          %p4851 = scmp.lt.s32.totalorder %s4850, 7
          %s4852 = scalar_select %p4851, %s4850, 7
          %p4853 = scmp.lt.s32.totalorder %s24, 0
          %s4854 = scalar_select %p4853, %s24, 0
          %s4855 = sadd.s32 %s4854, %s4852
          %s4856 = scalar_lea.vmem %s5, %s4855
        $region146: #{rnn_forward.5} parent=137 // pred_fallthru
          _
      $region138: #{rnn_forward.5} parent=5 // pred_fallthru
        _
    $region6: #{rnn_forward.5} parent=1 // loop_footer
      %s17 = sadd.s32 1, %s13
    $region7: #{rnn_forward.5} parent=1 // loop_footer_branch
      %12 = sbr.rel target = $region3
    $region8: #{rnn_forward.5} parent=1 // loop_exit
      _
    %4857 = vsyncpa [#allocation7], 1
    %s4858 = scalar_lea.sflag [#allocation7], 1
    %4859 = vsyncpa %s4858, 1

</llo_original>
